<compile_context>
chip_gen: v6e
topology: v6e:2x2x1
jax: 0.10.0
libtpu: 0.0.40
codegen_flags: <defaults>
</compile_context>

<pallas_src>
import functools

import numpy as np

import jax
import jax.numpy as jnp
from jax.experimental import pallas as pl
from jax.experimental.pallas import tpu as pltpu

LEAKY_SLOPE = 0.2
GN_EPS = 1e-5          # nn.GroupNorm default eps
NUM_GROUPS = 2
KSIZE = 3
PAD = 1


# ---------------------------------------------------------------------------
# Host-side helpers: stacked scatter matrices and stacked tap weights
# ---------------------------------------------------------------------------
def _build_scatter(hi, wi, stride, out_pad):
    """Stacked 0/1 scatter matrix (9*Hi*Wi, Ho*Wo), bf16 (exact for 0/1).

    Tap t = ky*3+kx maps input pixel (q, p) to output pixel
    (q*stride - PAD + ky, p*stride - PAD + kx) of a ConvTranspose2d(k=3,
    padding=1, output_padding=out_pad).  Rows are ordered (t, input_pixel)
    to match the column ordering of the in-kernel g_cat.
    """
    assert KSIZE == 3 and PAD == 1
    ho = (hi - 1) * stride - 2 * PAD + KSIZE + out_pad
    wo = (wi - 1) * stride - 2 * PAD + KSIZE + out_pad
    mats = []
    for ky in range(KSIZE):
        my = (np.arange(ho)[:, None] ==
              np.arange(hi)[None, :] * stride - PAD + ky).astype(np.float32)
        for kx in range(KSIZE):
            nx = (np.arange(wo)[:, None] ==
                  np.arange(wi)[None, :] * stride - PAD + kx).astype(np.float32)
            mats.append(np.kron(my, nx).T)            # (HiWi, HoWo)
    stk = np.concatenate(mats, axis=0)                # (9*HiWi, HoWo)
    return jnp.asarray(stk, dtype=jnp.bfloat16)


def _pack_wt(w_pt):
    """PyTorch ConvTranspose2d weight (Cin, Cout, 3, 3) -> stacked (9*Cout, Cin) bf16."""
    ci, co = w_pt.shape[0], w_pt.shape[1]
    w = jnp.transpose(w_pt, (2, 3, 1, 0)).reshape(KSIZE * KSIZE * co, ci)
    return w.astype(jnp.bfloat16)


# ---------------------------------------------------------------------------
# In-kernel building blocks (channel-major (C, H*W) feature maps)
# ---------------------------------------------------------------------------
def _convT(f, w_ref, a_ref, b_ref):
    """Fused ConvTranspose2d: exactly 2 MXU matmuls.  f: (Ci, HiWi) f32 -> (Co, HoWo) f32."""
    taps = KSIZE * KSIZE
    co = w_ref.shape[0] // taps
    # All 9 tap weight-matmuls in one MXU pass: (9*Co, Ci) @ (Ci, HiWi).
    g = jnp.dot(w_ref[...], f.astype(jnp.bfloat16),
                preferred_element_type=jnp.float32)          # (9*Co, HiWi) f32
    # Rearrange (9*Co, HiWi) -> (Co, 9*HiWi): lane-concat of the 9 per-tap
    # slabs, so the scatter runs as ONE (Co, 9*HiWi) @ (9*HiWi, HoWo) matmul.
    g_cat = jnp.concatenate(
        [g[t * co:(t + 1) * co, :] for t in range(taps)], axis=1
    ).astype(jnp.bfloat16)
    out = jnp.dot(g_cat, a_ref[...], preferred_element_type=jnp.float32)
    return out + b_ref[...]


def _gn_lrelu(x, gamma, beta, gmask_ref):
    """GroupNorm(NUM_GROUPS) + LeakyReLU(0.2) on a (C, H*W) map, single-pass stats."""
    c, hw = x.shape
    cg = c // NUM_GROUPS
    inv_n = 1.0 / float(cg * hw)
    rs = jnp.sum(x, axis=-1, keepdims=True)           # (C,1): one lane reduction
    rss = jnp.sum(x * x, axis=-1, keepdims=True)      # (C,1)
    mean_vec = jnp.zeros((c, 1), jnp.float32)
    var_vec = jnp.zeros((c, 1), jnp.float32)
    for g in range(NUM_GROUPS):
        m = gmask_ref[g]                               # (C,1) precomputed 0/1 mask
        mu = jnp.sum(rs * m) * inv_n
        var = jnp.sum(rss * m) * inv_n - mu * mu       # E[x^2] - mean^2
        mean_vec = mean_vec + m * mu
        var_vec = var_vec + m * var
    scale = jax.lax.rsqrt(var_vec + GN_EPS) * gamma
    y = (x - mean_vec) * scale + beta
    return jnp.where(y >= 0.0, y, LEAKY_SLOPE * y)


# ---------------------------------------------------------------------------
# Fused decoder kernel: whole batch in a single invocation (no grid)
# ---------------------------------------------------------------------------
def _decoder_kernel(x_ref, e_ref,
                    a1, w1, b1, g1, be1,
                    a2, w2, b2, g2, be2,
                    a3, w3, b3, g3, be3,
                    aod, wod, bod, god, beod,
                    gmask, ow, ob,
                    o_ref):
    B = x_ref.shape[0]
    for b in range(B):                                 # static loop over batch
        f = x_ref[b]                                   # (hidden, Hs*Ws)
        e = e_ref[b]                                   # (hidden, Hf*Wf)

        # self.decoder
        h = _convT(f, w1, a1, b1)
        h = _gn_lrelu(h, g1[...], be1[...], gmask)
        h = _convT(h, w2, a2, b2)
        h = _gn_lrelu(h, g2[...], be2[...], gmask)
        h = _convT(h, w3, a3, b3)
        h = _gn_lrelu(h, g3[...], be3[...], gmask)

        # self.output_decoder(cat([h, encoding], channels)): sublane concat +
        # unsplit stacked weight (contraction dim 2*hidden).
        hc = jnp.concatenate([h, e], axis=0)           # (2*hidden, Hf*Wf)
        h = _convT(hc, wod, aod, bod)
        h = _gn_lrelu(h, god[...], beod[...], gmask)

        # self.output : 1x1 conv epilogue (tiny, kept f32)
        y = jnp.dot(ow[...], h, preferred_element_type=jnp.float32) + ob[...]
        o_ref[b] = y


# ---------------------------------------------------------------------------
# Public forward (matches CNN_Decoder.forward), NCHW in / NCHW out
# ---------------------------------------------------------------------------
def cnn_decoder_forward(params, x_nchw, enc_nchw, *, use_pallas=True):
    if not use_pallas:
        return _ref_forward(params, x_nchw, enc_nchw)

    B, hidden, hs, ws = x_nchw.shape
    he, we = enc_nchw.shape[2], enc_nchw.shape[3]
    out_ch = params["out_w"].shape[1]
    h1, w1 = 2 * hs, 2 * ws           # after stride-2 layer 1
    h3, w3 = 2 * h1, 2 * w1           # after stride-2 layer 3
    assert (he, we) == (h3, w3)
    assert hidden % NUM_GROUPS == 0

    # VMEM scaling guard: dense scatter matrices grow as 9*(H*W)^2 (bf16 bytes).
    scat_bytes = 2 * 9 * ((hs * ws) * (h1 * w1) + (h1 * w1) ** 2
                          + (h1 * w1) * (h3 * w3) + (h3 * w3) ** 2)
    # TODO(synk): for larger H,W tile the scatter matmul over output-spatial
    # blocks (grid over HoWo) or switch stride-1 layers to pltpu.roll shifts.
    assert scat_bytes < 24 * 1024 * 1024, "scatter matrices would overflow VMEM"

    # NCHW -> channel-major flattened-spatial (plain reshapes, no transposes).
    x2 = x_nchw.reshape(B, hidden, hs * ws).astype(jnp.float32)
    e2 = enc_nchw.reshape(B, hidden, he * we).astype(jnp.float32)

    def col(v):
        return v.astype(jnp.float32).reshape(-1, 1)

    cg = hidden // NUM_GROUPS
    gmask_np = np.zeros((NUM_GROUPS, hidden, 1), np.float32)
    for g in range(NUM_GROUPS):
        gmask_np[g, g * cg:(g + 1) * cg, 0] = 1.0
    gmask = jnp.asarray(gmask_np)

    const_ops = [
        _build_scatter(hs, ws, 2, 1), _pack_wt(params["d1_w"]), col(params["d1_b"]),
        col(params["gn1_g"]), col(params["gn1_b"]),
        _build_scatter(h1, w1, 1, 0), _pack_wt(params["d2_w"]), col(params["d2_b"]),
        col(params["gn2_g"]), col(params["gn2_b"]),
        _build_scatter(h1, w1, 2, 1), _pack_wt(params["d3_w"]), col(params["d3_b"]),
        col(params["gn3_g"]), col(params["gn3_b"]),
        _build_scatter(h3, w3, 1, 0), _pack_wt(params["od_w"]), col(params["od_b"]),
        col(params["gnod_g"]), col(params["gnod_b"]),
        gmask,
        jnp.transpose(params["out_w"]).astype(jnp.float32),   # (out_ch, hidden)
        col(params["out_b"]),
    ]

    vmem_spec = pl.BlockSpec(memory_space=pltpu.MemorySpace.VMEM)
    n_in = 2 + len(const_ops)

    out = pl.pallas_call(
        _decoder_kernel,
        out_shape=jax.ShapeDtypeStruct((B, out_ch, h3 * w3), jnp.float32),
        in_specs=[vmem_spec] * n_in,
        out_specs=vmem_spec,
        compiler_params=pltpu.CompilerParams(vmem_limit_bytes=32 * 1024 * 1024),
    )(x2, e2, *const_ops)

    return out.reshape(B, out_ch, h3, w3)


# ---------------------------------------------------------------------------
# Independent pure-JAX reference (lax.conv_general_dilated == ConvTranspose2d)
# ---------------------------------------------------------------------------
def _convT_ref(x_nhwc, w_pt, b, stride, out_pad):
    w = jnp.flip(w_pt, (2, 3)).transpose(2, 3, 0, 1)     # (3,3,Cin,Cout) HWIO
    p = KSIZE - 1 - PAD
    out = jax.lax.conv_general_dilated(
        x_nhwc, w, window_strides=(1, 1),
        padding=((p, p + out_pad), (p, p + out_pad)),
        lhs_dilation=(stride, stride),
        dimension_numbers=("NHWC", "HWIO", "NHWC"),
        precision=jax.lax.Precision.HIGHEST)
    return out + b


def _gn_lrelu_ref(x, gamma, beta):
    B, H, W, C = x.shape
    cg = C // NUM_GROUPS
    xg = x.reshape(B, H, W, NUM_GROUPS, cg)
    mean = xg.mean(axis=(1, 2, 4), keepdims=True)
    var = ((xg - mean) ** 2).mean(axis=(1, 2, 4), keepdims=True)
    y = ((xg - mean) * jax.lax.rsqrt(var + GN_EPS)).reshape(B, H, W, C)
    y = y * gamma + beta
    return jnp.where(y >= 0, y, LEAKY_SLOPE * y)


def _ref_forward(params, x_nchw, enc_nchw):
    x = jnp.transpose(x_nchw, (0, 2, 3, 1)).astype(jnp.float32)
    e = jnp.transpose(enc_nchw, (0, 2, 3, 1)).astype(jnp.float32)
    h = _convT_ref(x, params["d1_w"], params["d1_b"], 2, 1)
    h = _gn_lrelu_ref(h, params["gn1_g"], params["gn1_b"])
    h = _convT_ref(h, params["d2_w"], params["d2_b"], 1, 0)
    h = _gn_lrelu_ref(h, params["gn2_g"], params["gn2_b"])
    h = _convT_ref(h, params["d3_w"], params["d3_b"], 2, 1)
    h = _gn_lrelu_ref(h, params["gn3_g"], params["gn3_b"])
    cat = jnp.concatenate([h, e], axis=-1)
    h = _convT_ref(cat, params["od_w"], params["od_b"], 1, 0)
    h = _gn_lrelu_ref(h, params["gnod_g"], params["gnod_b"])
    y = jnp.einsum("bhwc,co->bhwo", h, params["out_w"],
                   precision=jax.lax.Precision.HIGHEST) + params["out_b"]
    return jnp.transpose(y, (0, 3, 1, 2))


# ---------------------------------------------------------------------------
# Deterministic parameter init (shapes follow CNN_Decoder.__init__)
# ---------------------------------------------------------------------------
def init_params(key, hidden, out_ch):
    ks = iter(jax.random.split(key, 32))

    def rnd(shape, scale=0.2):
        return scale * jax.random.normal(next(ks), shape, jnp.float32)

    p = {}
    # ConvTranspose2d weights in PyTorch layout (Cin, Cout, 3, 3)
    for name, cin in (("d1", hidden), ("d2", hidden), ("d3", hidden),
                      ("od", 2 * hidden)):
        p[name + "_w"] = rnd((cin, hidden, 3, 3))
        p[name + "_b"] = rnd((hidden,))
    for name in ("gn1", "gn2", "gn3", "gnod"):
        p[name + "_g"] = 1.0 + rnd((hidden,), 0.05)
        p[name + "_b"] = rnd((hidden,), 0.05)
    # 1x1 Conv2d(hidden, out_ch): stored pre-transposed as (hidden, out_ch).
    p["out_w"] = rnd((hidden, out_ch))
    p["out_b"] = rnd((out_ch,))
    return p


if __name__ == "__main__":
    B, hidden, out_ch = 2, 8, 3
    Hs = Ws = 4                                   # decoder upsamples 4x -> 16x16

    kp, kx, ke = jax.random.split(jax.random.PRNGKey(0), 3)
    params = init_params(kp, hidden, out_ch)
    x = jax.random.normal(kx, (B, hidden, Hs, Ws), jnp.float32)
    encoding = jax.random.normal(ke, (B, hidden, 4 * Hs, 4 * Ws), jnp.float32)

    fwd = jax.jit(functools.partial(cnn_decoder_forward, use_pallas=True))
    y = jax.block_until_ready(fwd(params, x, encoding))
    assert y.shape == (B, out_ch, 4 * Hs, 4 * Ws), y.shape

    # Cross-check vs an independent all-f32 lax.conv_general_dilated reference.
    # The kernel's matmul operands are bf16 (f32 accumulation), so use a
    # bf16-appropriate tolerance plus a tighter global relative-L2 check.
    y_ref = cnn_decoder_forward(params, x, encoding, use_pallas=False)
    max_err = float(jnp.max(jnp.abs(y - y_ref)))
    rel_l2 = float(jnp.linalg.norm(y - y_ref) / (jnp.linalg.norm(y_ref) + 1e-12))
    assert rel_l2 < 1e-2, (rel_l2, max_err)
    assert jnp.allclose(y, y_ref, atol=3e-2, rtol=3e-2), (rel_l2, max_err)

    print("KERNEL_OK")
</pallas_src>

<mosaic_0001>
module attributes {stable_mosaic.version = 11 : i64} {
  func.func @_decoder_kernel(%arg0: memref<2x8x16xf32, #tpu.memory_space<vmem>>, %arg1: memref<2x8x256xf32, #tpu.memory_space<vmem>>, %arg2: memref<144x64xbf16, #tpu.memory_space<vmem>>, %arg3: memref<72x8xbf16, #tpu.memory_space<vmem>>, %arg4: memref<8x1xf32, #tpu.memory_space<vmem>>, %arg5: memref<8x1xf32, #tpu.memory_space<vmem>>, %arg6: memref<8x1xf32, #tpu.memory_space<vmem>>, %arg7: memref<576x64xbf16, #tpu.memory_space<vmem>>, %arg8: memref<72x8xbf16, #tpu.memory_space<vmem>>, %arg9: memref<8x1xf32, #tpu.memory_space<vmem>>, %arg10: memref<8x1xf32, #tpu.memory_space<vmem>>, %arg11: memref<8x1xf32, #tpu.memory_space<vmem>>, %arg12: memref<576x256xbf16, #tpu.memory_space<vmem>>, %arg13: memref<72x8xbf16, #tpu.memory_space<vmem>>, %arg14: memref<8x1xf32, #tpu.memory_space<vmem>>, %arg15: memref<8x1xf32, #tpu.memory_space<vmem>>, %arg16: memref<8x1xf32, #tpu.memory_space<vmem>>, %arg17: memref<2304x256xbf16, #tpu.memory_space<vmem>>, %arg18: memref<72x16xbf16, #tpu.memory_space<vmem>>, %arg19: memref<8x1xf32, #tpu.memory_space<vmem>>, %arg20: memref<8x1xf32, #tpu.memory_space<vmem>>, %arg21: memref<8x1xf32, #tpu.memory_space<vmem>>, %arg22: memref<2x8x1xf32, #tpu.memory_space<vmem>>, %arg23: memref<3x8xf32, #tpu.memory_space<vmem>>, %arg24: memref<3x1xf32, #tpu.memory_space<vmem>>, %arg25: memref<2x3x256xf32, #tpu.memory_space<vmem>>) attributes {dimension_semantics = [], scalar_prefetch = 0 : i64, scratch_operands = 0 : i64, tpu.core_type = #tpu.core_type<tc>} {
    %c0 = arith.constant 0 : index
    %c0_0 = arith.constant 0 : index
    %c0_1 = arith.constant 0 : index
    %0 = vector.load %arg0[%c0, %c0_0, %c0_1] : memref<2x8x16xf32, #tpu.memory_space<vmem>>, vector<1x8x16xf32>
    %1 = vector.shape_cast %0 : vector<1x8x16xf32> to vector<8x16xf32>
    %c0_2 = arith.constant 0 : index
    %c0_3 = arith.constant 0 : index
    %c0_4 = arith.constant 0 : index
    %2 = vector.load %arg1[%c0_2, %c0_3, %c0_4] : memref<2x8x256xf32, #tpu.memory_space<vmem>>, vector<1x8x256xf32>
    %3 = vector.shape_cast %2 : vector<1x8x256xf32> to vector<8x256xf32>
    %c0_5 = arith.constant 0 : index
    %c0_6 = arith.constant 0 : index
    %4 = vector.load %arg3[%c0_5, %c0_6] : memref<72x8xbf16, #tpu.memory_space<vmem>>, vector<72x8xbf16>
    %5 = arith.truncf %1 : vector<8x16xf32> to vector<8x16xbf16>
    %cst = arith.constant dense<0.000000e+00> : vector<72x16xf32>
    %6 = tpu.matmul %4, %5, %cst {dimension_numbers = #tpu.dot_dimension_numbers<[1], [0], [0], [1], [0, 0, 1, 1], [], []>} : vector<72x8xbf16>, vector<8x16xbf16>, vector<72x16xf32> -> vector<72x16xf32>
    %7 = vector.extract_strided_slice %6 {offsets = [0, 0], sizes = [8, 16], strides = [1, 1]} : vector<72x16xf32> to vector<8x16xf32>
    %8 = vector.extract_strided_slice %6 {offsets = [8, 0], sizes = [8, 16], strides = [1, 1]} : vector<72x16xf32> to vector<8x16xf32>
    %9 = vector.extract_strided_slice %6 {offsets = [16, 0], sizes = [8, 16], strides = [1, 1]} : vector<72x16xf32> to vector<8x16xf32>
    %10 = vector.extract_strided_slice %6 {offsets = [24, 0], sizes = [8, 16], strides = [1, 1]} : vector<72x16xf32> to vector<8x16xf32>
    %11 = vector.extract_strided_slice %6 {offsets = [32, 0], sizes = [8, 16], strides = [1, 1]} : vector<72x16xf32> to vector<8x16xf32>
    %12 = vector.extract_strided_slice %6 {offsets = [40, 0], sizes = [8, 16], strides = [1, 1]} : vector<72x16xf32> to vector<8x16xf32>
    %13 = vector.extract_strided_slice %6 {offsets = [48, 0], sizes = [8, 16], strides = [1, 1]} : vector<72x16xf32> to vector<8x16xf32>
    %14 = vector.extract_strided_slice %6 {offsets = [56, 0], sizes = [8, 16], strides = [1, 1]} : vector<72x16xf32> to vector<8x16xf32>
    %15 = vector.extract_strided_slice %6 {offsets = [64, 0], sizes = [8, 16], strides = [1, 1]} : vector<72x16xf32> to vector<8x16xf32>
    %16 = tpu.concatenate %7, %8, %9, %10, %11, %12, %13, %14, %15 in 1 : vector<8x16xf32>, vector<8x16xf32>, vector<8x16xf32>, vector<8x16xf32>, vector<8x16xf32>, vector<8x16xf32>, vector<8x16xf32>, vector<8x16xf32>, vector<8x16xf32> -> vector<8x144xf32>
    %17 = arith.truncf %16 : vector<8x144xf32> to vector<8x144xbf16>
    %c0_7 = arith.constant 0 : index
    %c0_8 = arith.constant 0 : index
    %18 = vector.load %arg2[%c0_7, %c0_8] : memref<144x64xbf16, #tpu.memory_space<vmem>>, vector<144x64xbf16>
    %cst_9 = arith.constant dense<0.000000e+00> : vector<8x64xf32>
    %19 = tpu.matmul %17, %18, %cst_9 {dimension_numbers = #tpu.dot_dimension_numbers<[1], [0], [0], [1], [0, 0, 1, 1], [], []>} : vector<8x144xbf16>, vector<144x64xbf16>, vector<8x64xf32> -> vector<8x64xf32>
    %c0_10 = arith.constant 0 : index
    %c0_11 = arith.constant 0 : index
    %20 = vector.load %arg4[%c0_10, %c0_11] : memref<8x1xf32, #tpu.memory_space<vmem>>, vector<8x1xf32>
    %21 = vector.broadcast %20 : vector<8x1xf32> to vector<8x64xf32>
    %22 = arith.addf %19, %21 : vector<8x64xf32>
    %c0_12 = arith.constant 0 : index
    %c0_13 = arith.constant 0 : index
    %23 = vector.load %arg5[%c0_12, %c0_13] : memref<8x1xf32, #tpu.memory_space<vmem>>, vector<8x1xf32>
    %c0_14 = arith.constant 0 : index
    %c0_15 = arith.constant 0 : index
    %24 = vector.load %arg6[%c0_14, %c0_15] : memref<8x1xf32, #tpu.memory_space<vmem>>, vector<8x1xf32>
    %cst_16 = arith.constant dense<0.000000e+00> : vector<8xf32>
    %25 = vector.multi_reduction <add>, %22, %cst_16 [1] : vector<8x64xf32> to vector<8xf32>
    %26 = vector.shape_cast %25 : vector<8xf32> to vector<8x1xf32>
    %27 = arith.mulf %22, %22 : vector<8x64xf32>
    %cst_17 = arith.constant dense<0.000000e+00> : vector<8xf32>
    %28 = vector.multi_reduction <add>, %27, %cst_17 [1] : vector<8x64xf32> to vector<8xf32>
    %29 = vector.shape_cast %28 : vector<8xf32> to vector<8x1xf32>
    %cst_18 = arith.constant 0.000000e+00 : f32
    %30 = vector.broadcast %cst_18 : f32 to vector<8x1xf32>
    %cst_19 = arith.constant 0.000000e+00 : f32
    %31 = vector.broadcast %cst_19 : f32 to vector<8x1xf32>
    %c0_20 = arith.constant 0 : index
    %c0_21 = arith.constant 0 : index
    %c0_22 = arith.constant 0 : index
    %32 = vector.load %arg22[%c0_20, %c0_21, %c0_22] : memref<2x8x1xf32, #tpu.memory_space<vmem>>, vector<1x8x1xf32>
    %33 = vector.shape_cast %32 : vector<1x8x1xf32> to vector<8x1xf32>
    %34 = arith.mulf %26, %33 : vector<8x1xf32>
    %35 = vector.shape_cast %34 : vector<8x1xf32> to vector<1x8x1xf32>
    %cst_23 = arith.constant dense<0.000000e+00> : vector<1xf32>
    %36 = vector.multi_reduction <add>, %35, %cst_23 [1, 2] : vector<1x8x1xf32> to vector<1xf32>
    %37 = vector.shape_cast %36 : vector<1xf32> to vector<1x1x1xf32>
    %38 = vector.extract %37[0, 0, 0] : f32 from vector<1x1x1xf32>
    %cst_24 = arith.constant 3.906250e-03 : f32
    %39 = arith.mulf %38, %cst_24 : f32
    %40 = arith.mulf %29, %33 : vector<8x1xf32>
    %41 = vector.shape_cast %40 : vector<8x1xf32> to vector<1x8x1xf32>
    %cst_25 = arith.constant dense<0.000000e+00> : vector<1xf32>
    %42 = vector.multi_reduction <add>, %41, %cst_25 [1, 2] : vector<1x8x1xf32> to vector<1xf32>
    %43 = vector.shape_cast %42 : vector<1xf32> to vector<1x1x1xf32>
    %44 = vector.extract %43[0, 0, 0] : f32 from vector<1x1x1xf32>
    %cst_26 = arith.constant 3.906250e-03 : f32
    %45 = arith.mulf %44, %cst_26 : f32
    %46 = arith.mulf %39, %39 : f32
    %47 = arith.subf %45, %46 : f32
    %48 = vector.broadcast %39 : f32 to vector<8x1xf32>
    %49 = arith.mulf %33, %48 : vector<8x1xf32>
    %50 = arith.addf %30, %49 : vector<8x1xf32>
    %51 = vector.broadcast %47 : f32 to vector<8x1xf32>
    %52 = arith.mulf %33, %51 : vector<8x1xf32>
    %53 = arith.addf %31, %52 : vector<8x1xf32>
    %c1 = arith.constant 1 : index
    %c0_27 = arith.constant 0 : index
    %c0_28 = arith.constant 0 : index
    %54 = vector.load %arg22[%c1, %c0_27, %c0_28] : memref<2x8x1xf32, #tpu.memory_space<vmem>>, vector<1x8x1xf32>
    %55 = vector.shape_cast %54 : vector<1x8x1xf32> to vector<8x1xf32>
    %56 = arith.mulf %26, %55 : vector<8x1xf32>
    %57 = vector.shape_cast %56 : vector<8x1xf32> to vector<1x8x1xf32>
    %cst_29 = arith.constant dense<0.000000e+00> : vector<1xf32>
    %58 = vector.multi_reduction <add>, %57, %cst_29 [1, 2] : vector<1x8x1xf32> to vector<1xf32>
    %59 = vector.shape_cast %58 : vector<1xf32> to vector<1x1x1xf32>
    %60 = vector.extract %59[0, 0, 0] : f32 from vector<1x1x1xf32>
    %cst_30 = arith.constant 3.906250e-03 : f32
    %61 = arith.mulf %60, %cst_30 : f32
    %62 = arith.mulf %29, %55 : vector<8x1xf32>
    %63 = vector.shape_cast %62 : vector<8x1xf32> to vector<1x8x1xf32>
    %cst_31 = arith.constant dense<0.000000e+00> : vector<1xf32>
    %64 = vector.multi_reduction <add>, %63, %cst_31 [1, 2] : vector<1x8x1xf32> to vector<1xf32>
    %65 = vector.shape_cast %64 : vector<1xf32> to vector<1x1x1xf32>
    %66 = vector.extract %65[0, 0, 0] : f32 from vector<1x1x1xf32>
    %cst_32 = arith.constant 3.906250e-03 : f32
    %67 = arith.mulf %66, %cst_32 : f32
    %68 = arith.mulf %61, %61 : f32
    %69 = arith.subf %67, %68 : f32
    %70 = vector.broadcast %61 : f32 to vector<8x1xf32>
    %71 = arith.mulf %55, %70 : vector<8x1xf32>
    %72 = arith.addf %50, %71 : vector<8x1xf32>
    %73 = vector.broadcast %69 : f32 to vector<8x1xf32>
    %74 = arith.mulf %55, %73 : vector<8x1xf32>
    %75 = arith.addf %53, %74 : vector<8x1xf32>
    %cst_33 = arith.constant 9.99999974E-6 : f32
    %76 = vector.broadcast %cst_33 : f32 to vector<8x1xf32>
    %77 = arith.addf %75, %76 : vector<8x1xf32>
    %78 = math.rsqrt %77 : vector<8x1xf32>
    %79 = arith.mulf %78, %23 : vector<8x1xf32>
    %80 = vector.broadcast %72 : vector<8x1xf32> to vector<8x64xf32>
    %81 = arith.subf %22, %80 : vector<8x64xf32>
    %82 = vector.broadcast %79 : vector<8x1xf32> to vector<8x64xf32>
    %83 = arith.mulf %81, %82 : vector<8x64xf32>
    %84 = vector.broadcast %24 : vector<8x1xf32> to vector<8x64xf32>
    %85 = arith.addf %83, %84 : vector<8x64xf32>
    %cst_34 = arith.constant 0.000000e+00 : f32
    %86 = vector.broadcast %cst_34 : f32 to vector<8x64xf32>
    %87 = arith.cmpf oge, %85, %86 : vector<8x64xf32>
    %cst_35 = arith.constant 2.000000e-01 : f32
    %88 = vector.broadcast %cst_35 : f32 to vector<8x64xf32>
    %89 = arith.mulf %88, %85 : vector<8x64xf32>
    %90 = arith.select %87, %85, %89 : vector<8x64xi1>, vector<8x64xf32>
    %c0_36 = arith.constant 0 : index
    %c0_37 = arith.constant 0 : index
    %91 = vector.load %arg8[%c0_36, %c0_37] : memref<72x8xbf16, #tpu.memory_space<vmem>>, vector<72x8xbf16>
    %92 = arith.truncf %90 : vector<8x64xf32> to vector<8x64xbf16>
    %cst_38 = arith.constant dense<0.000000e+00> : vector<72x64xf32>
    %93 = tpu.matmul %91, %92, %cst_38 {dimension_numbers = #tpu.dot_dimension_numbers<[1], [0], [0], [1], [0, 0, 1, 1], [], []>} : vector<72x8xbf16>, vector<8x64xbf16>, vector<72x64xf32> -> vector<72x64xf32>
    %94 = vector.extract_strided_slice %93 {offsets = [0, 0], sizes = [8, 64], strides = [1, 1]} : vector<72x64xf32> to vector<8x64xf32>
    %95 = vector.extract_strided_slice %93 {offsets = [8, 0], sizes = [8, 64], strides = [1, 1]} : vector<72x64xf32> to vector<8x64xf32>
    %96 = vector.extract_strided_slice %93 {offsets = [16, 0], sizes = [8, 64], strides = [1, 1]} : vector<72x64xf32> to vector<8x64xf32>
    %97 = vector.extract_strided_slice %93 {offsets = [24, 0], sizes = [8, 64], strides = [1, 1]} : vector<72x64xf32> to vector<8x64xf32>
    %98 = vector.extract_strided_slice %93 {offsets = [32, 0], sizes = [8, 64], strides = [1, 1]} : vector<72x64xf32> to vector<8x64xf32>
    %99 = vector.extract_strided_slice %93 {offsets = [40, 0], sizes = [8, 64], strides = [1, 1]} : vector<72x64xf32> to vector<8x64xf32>
    %100 = vector.extract_strided_slice %93 {offsets = [48, 0], sizes = [8, 64], strides = [1, 1]} : vector<72x64xf32> to vector<8x64xf32>
    %101 = vector.extract_strided_slice %93 {offsets = [56, 0], sizes = [8, 64], strides = [1, 1]} : vector<72x64xf32> to vector<8x64xf32>
    %102 = vector.extract_strided_slice %93 {offsets = [64, 0], sizes = [8, 64], strides = [1, 1]} : vector<72x64xf32> to vector<8x64xf32>
    %103 = tpu.concatenate %94, %95, %96, %97, %98, %99, %100, %101, %102 in 1 : vector<8x64xf32>, vector<8x64xf32>, vector<8x64xf32>, vector<8x64xf32>, vector<8x64xf32>, vector<8x64xf32>, vector<8x64xf32>, vector<8x64xf32>, vector<8x64xf32> -> vector<8x576xf32>
    %104 = arith.truncf %103 : vector<8x576xf32> to vector<8x576xbf16>
    %c0_39 = arith.constant 0 : index
    %c0_40 = arith.constant 0 : index
    %105 = vector.load %arg7[%c0_39, %c0_40] : memref<576x64xbf16, #tpu.memory_space<vmem>>, vector<576x64xbf16>
    %cst_41 = arith.constant dense<0.000000e+00> : vector<8x64xf32>
    %106 = tpu.matmul %104, %105, %cst_41 {dimension_numbers = #tpu.dot_dimension_numbers<[1], [0], [0], [1], [0, 0, 1, 1], [], []>} : vector<8x576xbf16>, vector<576x64xbf16>, vector<8x64xf32> -> vector<8x64xf32>
    %c0_42 = arith.constant 0 : index
    %c0_43 = arith.constant 0 : index
    %107 = vector.load %arg9[%c0_42, %c0_43] : memref<8x1xf32, #tpu.memory_space<vmem>>, vector<8x1xf32>
    %108 = vector.broadcast %107 : vector<8x1xf32> to vector<8x64xf32>
    %109 = arith.addf %106, %108 : vector<8x64xf32>
    %c0_44 = arith.constant 0 : index
    %c0_45 = arith.constant 0 : index
    %110 = vector.load %arg10[%c0_44, %c0_45] : memref<8x1xf32, #tpu.memory_space<vmem>>, vector<8x1xf32>
    %c0_46 = arith.constant 0 : index
    %c0_47 = arith.constant 0 : index
    %111 = vector.load %arg11[%c0_46, %c0_47] : memref<8x1xf32, #tpu.memory_space<vmem>>, vector<8x1xf32>
    %cst_48 = arith.constant dense<0.000000e+00> : vector<8xf32>
    %112 = vector.multi_reduction <add>, %109, %cst_48 [1] : vector<8x64xf32> to vector<8xf32>
    %113 = vector.shape_cast %112 : vector<8xf32> to vector<8x1xf32>
    %114 = arith.mulf %109, %109 : vector<8x64xf32>
    %cst_49 = arith.constant dense<0.000000e+00> : vector<8xf32>
    %115 = vector.multi_reduction <add>, %114, %cst_49 [1] : vector<8x64xf32> to vector<8xf32>
    %116 = vector.shape_cast %115 : vector<8xf32> to vector<8x1xf32>
    %cst_50 = arith.constant 0.000000e+00 : f32
    %117 = vector.broadcast %cst_50 : f32 to vector<8x1xf32>
    %cst_51 = arith.constant 0.000000e+00 : f32
    %118 = vector.broadcast %cst_51 : f32 to vector<8x1xf32>
    %c0_52 = arith.constant 0 : index
    %c0_53 = arith.constant 0 : index
    %c0_54 = arith.constant 0 : index
    %119 = vector.load %arg22[%c0_52, %c0_53, %c0_54] : memref<2x8x1xf32, #tpu.memory_space<vmem>>, vector<1x8x1xf32>
    %120 = vector.shape_cast %119 : vector<1x8x1xf32> to vector<8x1xf32>
    %121 = arith.mulf %113, %120 : vector<8x1xf32>
    %122 = vector.shape_cast %121 : vector<8x1xf32> to vector<1x8x1xf32>
    %cst_55 = arith.constant dense<0.000000e+00> : vector<1xf32>
    %123 = vector.multi_reduction <add>, %122, %cst_55 [1, 2] : vector<1x8x1xf32> to vector<1xf32>
    %124 = vector.shape_cast %123 : vector<1xf32> to vector<1x1x1xf32>
    %125 = vector.extract %124[0, 0, 0] : f32 from vector<1x1x1xf32>
    %cst_56 = arith.constant 3.906250e-03 : f32
    %126 = arith.mulf %125, %cst_56 : f32
    %127 = arith.mulf %116, %120 : vector<8x1xf32>
    %128 = vector.shape_cast %127 : vector<8x1xf32> to vector<1x8x1xf32>
    %cst_57 = arith.constant dense<0.000000e+00> : vector<1xf32>
    %129 = vector.multi_reduction <add>, %128, %cst_57 [1, 2] : vector<1x8x1xf32> to vector<1xf32>
    %130 = vector.shape_cast %129 : vector<1xf32> to vector<1x1x1xf32>
    %131 = vector.extract %130[0, 0, 0] : f32 from vector<1x1x1xf32>
    %cst_58 = arith.constant 3.906250e-03 : f32
    %132 = arith.mulf %131, %cst_58 : f32
    %133 = arith.mulf %126, %126 : f32
    %134 = arith.subf %132, %133 : f32
    %135 = vector.broadcast %126 : f32 to vector<8x1xf32>
    %136 = arith.mulf %120, %135 : vector<8x1xf32>
    %137 = arith.addf %117, %136 : vector<8x1xf32>
    %138 = vector.broadcast %134 : f32 to vector<8x1xf32>
    %139 = arith.mulf %120, %138 : vector<8x1xf32>
    %140 = arith.addf %118, %139 : vector<8x1xf32>
    %c1_59 = arith.constant 1 : index
    %c0_60 = arith.constant 0 : index
    %c0_61 = arith.constant 0 : index
    %141 = vector.load %arg22[%c1_59, %c0_60, %c0_61] : memref<2x8x1xf32, #tpu.memory_space<vmem>>, vector<1x8x1xf32>
    %142 = vector.shape_cast %141 : vector<1x8x1xf32> to vector<8x1xf32>
    %143 = arith.mulf %113, %142 : vector<8x1xf32>
    %144 = vector.shape_cast %143 : vector<8x1xf32> to vector<1x8x1xf32>
    %cst_62 = arith.constant dense<0.000000e+00> : vector<1xf32>
    %145 = vector.multi_reduction <add>, %144, %cst_62 [1, 2] : vector<1x8x1xf32> to vector<1xf32>
    %146 = vector.shape_cast %145 : vector<1xf32> to vector<1x1x1xf32>
    %147 = vector.extract %146[0, 0, 0] : f32 from vector<1x1x1xf32>
    %cst_63 = arith.constant 3.906250e-03 : f32
    %148 = arith.mulf %147, %cst_63 : f32
    %149 = arith.mulf %116, %142 : vector<8x1xf32>
    %150 = vector.shape_cast %149 : vector<8x1xf32> to vector<1x8x1xf32>
    %cst_64 = arith.constant dense<0.000000e+00> : vector<1xf32>
    %151 = vector.multi_reduction <add>, %150, %cst_64 [1, 2] : vector<1x8x1xf32> to vector<1xf32>
    %152 = vector.shape_cast %151 : vector<1xf32> to vector<1x1x1xf32>
    %153 = vector.extract %152[0, 0, 0] : f32 from vector<1x1x1xf32>
    %cst_65 = arith.constant 3.906250e-03 : f32
    %154 = arith.mulf %153, %cst_65 : f32
    %155 = arith.mulf %148, %148 : f32
    %156 = arith.subf %154, %155 : f32
    %157 = vector.broadcast %148 : f32 to vector<8x1xf32>
    %158 = arith.mulf %142, %157 : vector<8x1xf32>
    %159 = arith.addf %137, %158 : vector<8x1xf32>
    %160 = vector.broadcast %156 : f32 to vector<8x1xf32>
    %161 = arith.mulf %142, %160 : vector<8x1xf32>
    %162 = arith.addf %140, %161 : vector<8x1xf32>
    %cst_66 = arith.constant 9.99999974E-6 : f32
    %163 = vector.broadcast %cst_66 : f32 to vector<8x1xf32>
    %164 = arith.addf %162, %163 : vector<8x1xf32>
    %165 = math.rsqrt %164 : vector<8x1xf32>
    %166 = arith.mulf %165, %110 : vector<8x1xf32>
    %167 = vector.broadcast %159 : vector<8x1xf32> to vector<8x64xf32>
    %168 = arith.subf %109, %167 : vector<8x64xf32>
    %169 = vector.broadcast %166 : vector<8x1xf32> to vector<8x64xf32>
    %170 = arith.mulf %168, %169 : vector<8x64xf32>
    %171 = vector.broadcast %111 : vector<8x1xf32> to vector<8x64xf32>
    %172 = arith.addf %170, %171 : vector<8x64xf32>
    %cst_67 = arith.constant 0.000000e+00 : f32
    %173 = vector.broadcast %cst_67 : f32 to vector<8x64xf32>
    %174 = arith.cmpf oge, %172, %173 : vector<8x64xf32>
    %cst_68 = arith.constant 2.000000e-01 : f32
    %175 = vector.broadcast %cst_68 : f32 to vector<8x64xf32>
    %176 = arith.mulf %175, %172 : vector<8x64xf32>
    %177 = arith.select %174, %172, %176 : vector<8x64xi1>, vector<8x64xf32>
    %c0_69 = arith.constant 0 : index
    %c0_70 = arith.constant 0 : index
    %178 = vector.load %arg13[%c0_69, %c0_70] : memref<72x8xbf16, #tpu.memory_space<vmem>>, vector<72x8xbf16>
    %179 = arith.truncf %177 : vector<8x64xf32> to vector<8x64xbf16>
    %cst_71 = arith.constant dense<0.000000e+00> : vector<72x64xf32>
    %180 = tpu.matmul %178, %179, %cst_71 {dimension_numbers = #tpu.dot_dimension_numbers<[1], [0], [0], [1], [0, 0, 1, 1], [], []>} : vector<72x8xbf16>, vector<8x64xbf16>, vector<72x64xf32> -> vector<72x64xf32>
    %181 = vector.extract_strided_slice %180 {offsets = [0, 0], sizes = [8, 64], strides = [1, 1]} : vector<72x64xf32> to vector<8x64xf32>
    %182 = vector.extract_strided_slice %180 {offsets = [8, 0], sizes = [8, 64], strides = [1, 1]} : vector<72x64xf32> to vector<8x64xf32>
    %183 = vector.extract_strided_slice %180 {offsets = [16, 0], sizes = [8, 64], strides = [1, 1]} : vector<72x64xf32> to vector<8x64xf32>
    %184 = vector.extract_strided_slice %180 {offsets = [24, 0], sizes = [8, 64], strides = [1, 1]} : vector<72x64xf32> to vector<8x64xf32>
    %185 = vector.extract_strided_slice %180 {offsets = [32, 0], sizes = [8, 64], strides = [1, 1]} : vector<72x64xf32> to vector<8x64xf32>
    %186 = vector.extract_strided_slice %180 {offsets = [40, 0], sizes = [8, 64], strides = [1, 1]} : vector<72x64xf32> to vector<8x64xf32>
    %187 = vector.extract_strided_slice %180 {offsets = [48, 0], sizes = [8, 64], strides = [1, 1]} : vector<72x64xf32> to vector<8x64xf32>
    %188 = vector.extract_strided_slice %180 {offsets = [56, 0], sizes = [8, 64], strides = [1, 1]} : vector<72x64xf32> to vector<8x64xf32>
    %189 = vector.extract_strided_slice %180 {offsets = [64, 0], sizes = [8, 64], strides = [1, 1]} : vector<72x64xf32> to vector<8x64xf32>
    %190 = tpu.concatenate %181, %182, %183, %184, %185, %186, %187, %188, %189 in 1 : vector<8x64xf32>, vector<8x64xf32>, vector<8x64xf32>, vector<8x64xf32>, vector<8x64xf32>, vector<8x64xf32>, vector<8x64xf32>, vector<8x64xf32>, vector<8x64xf32> -> vector<8x576xf32>
    %191 = arith.truncf %190 : vector<8x576xf32> to vector<8x576xbf16>
    %c0_72 = arith.constant 0 : index
    %c0_73 = arith.constant 0 : index
    %192 = vector.load %arg12[%c0_72, %c0_73] : memref<576x256xbf16, #tpu.memory_space<vmem>>, vector<576x256xbf16>
    %cst_74 = arith.constant dense<0.000000e+00> : vector<8x256xf32>
    %193 = tpu.matmul %191, %192, %cst_74 {dimension_numbers = #tpu.dot_dimension_numbers<[1], [0], [0], [1], [0, 0, 1, 1], [], []>} : vector<8x576xbf16>, vector<576x256xbf16>, vector<8x256xf32> -> vector<8x256xf32>
    %c0_75 = arith.constant 0 : index
    %c0_76 = arith.constant 0 : index
    %194 = vector.load %arg14[%c0_75, %c0_76] : memref<8x1xf32, #tpu.memory_space<vmem>>, vector<8x1xf32>
    %195 = vector.broadcast %194 : vector<8x1xf32> to vector<8x256xf32>
    %196 = arith.addf %193, %195 : vector<8x256xf32>
    %c0_77 = arith.constant 0 : index
    %c0_78 = arith.constant 0 : index
    %197 = vector.load %arg15[%c0_77, %c0_78] : memref<8x1xf32, #tpu.memory_space<vmem>>, vector<8x1xf32>
    %c0_79 = arith.constant 0 : index
    %c0_80 = arith.constant 0 : index
    %198 = vector.load %arg16[%c0_79, %c0_80] : memref<8x1xf32, #tpu.memory_space<vmem>>, vector<8x1xf32>
    %cst_81 = arith.constant dense<0.000000e+00> : vector<8xf32>
    %199 = vector.multi_reduction <add>, %196, %cst_81 [1] : vector<8x256xf32> to vector<8xf32>
    %200 = vector.shape_cast %199 : vector<8xf32> to vector<8x1xf32>
    %201 = arith.mulf %196, %196 : vector<8x256xf32>
    %cst_82 = arith.constant dense<0.000000e+00> : vector<8xf32>
    %202 = vector.multi_reduction <add>, %201, %cst_82 [1] : vector<8x256xf32> to vector<8xf32>
    %203 = vector.shape_cast %202 : vector<8xf32> to vector<8x1xf32>
    %cst_83 = arith.constant 0.000000e+00 : f32
    %204 = vector.broadcast %cst_83 : f32 to vector<8x1xf32>
    %cst_84 = arith.constant 0.000000e+00 : f32
    %205 = vector.broadcast %cst_84 : f32 to vector<8x1xf32>
    %c0_85 = arith.constant 0 : index
    %c0_86 = arith.constant 0 : index
    %c0_87 = arith.constant 0 : index
    %206 = vector.load %arg22[%c0_85, %c0_86, %c0_87] : memref<2x8x1xf32, #tpu.memory_space<vmem>>, vector<1x8x1xf32>
    %207 = vector.shape_cast %206 : vector<1x8x1xf32> to vector<8x1xf32>
    %208 = arith.mulf %200, %207 : vector<8x1xf32>
    %209 = vector.shape_cast %208 : vector<8x1xf32> to vector<1x8x1xf32>
    %cst_88 = arith.constant dense<0.000000e+00> : vector<1xf32>
    %210 = vector.multi_reduction <add>, %209, %cst_88 [1, 2] : vector<1x8x1xf32> to vector<1xf32>
    %211 = vector.shape_cast %210 : vector<1xf32> to vector<1x1x1xf32>
    %212 = vector.extract %211[0, 0, 0] : f32 from vector<1x1x1xf32>
    %cst_89 = arith.constant 9.765625E-4 : f32
    %213 = arith.mulf %212, %cst_89 : f32
    %214 = arith.mulf %203, %207 : vector<8x1xf32>
    %215 = vector.shape_cast %214 : vector<8x1xf32> to vector<1x8x1xf32>
    %cst_90 = arith.constant dense<0.000000e+00> : vector<1xf32>
    %216 = vector.multi_reduction <add>, %215, %cst_90 [1, 2] : vector<1x8x1xf32> to vector<1xf32>
    %217 = vector.shape_cast %216 : vector<1xf32> to vector<1x1x1xf32>
    %218 = vector.extract %217[0, 0, 0] : f32 from vector<1x1x1xf32>
    %cst_91 = arith.constant 9.765625E-4 : f32
    %219 = arith.mulf %218, %cst_91 : f32
    %220 = arith.mulf %213, %213 : f32
    %221 = arith.subf %219, %220 : f32
    %222 = vector.broadcast %213 : f32 to vector<8x1xf32>
    %223 = arith.mulf %207, %222 : vector<8x1xf32>
    %224 = arith.addf %204, %223 : vector<8x1xf32>
    %225 = vector.broadcast %221 : f32 to vector<8x1xf32>
    %226 = arith.mulf %207, %225 : vector<8x1xf32>
    %227 = arith.addf %205, %226 : vector<8x1xf32>
    %c1_92 = arith.constant 1 : index
    %c0_93 = arith.constant 0 : index
    %c0_94 = arith.constant 0 : index
    %228 = vector.load %arg22[%c1_92, %c0_93, %c0_94] : memref<2x8x1xf32, #tpu.memory_space<vmem>>, vector<1x8x1xf32>
    %229 = vector.shape_cast %228 : vector<1x8x1xf32> to vector<8x1xf32>
    %230 = arith.mulf %200, %229 : vector<8x1xf32>
    %231 = vector.shape_cast %230 : vector<8x1xf32> to vector<1x8x1xf32>
    %cst_95 = arith.constant dense<0.000000e+00> : vector<1xf32>
    %232 = vector.multi_reduction <add>, %231, %cst_95 [1, 2] : vector<1x8x1xf32> to vector<1xf32>
    %233 = vector.shape_cast %232 : vector<1xf32> to vector<1x1x1xf32>
    %234 = vector.extract %233[0, 0, 0] : f32 from vector<1x1x1xf32>
    %cst_96 = arith.constant 9.765625E-4 : f32
    %235 = arith.mulf %234, %cst_96 : f32
    %236 = arith.mulf %203, %229 : vector<8x1xf32>
    %237 = vector.shape_cast %236 : vector<8x1xf32> to vector<1x8x1xf32>
    %cst_97 = arith.constant dense<0.000000e+00> : vector<1xf32>
    %238 = vector.multi_reduction <add>, %237, %cst_97 [1, 2] : vector<1x8x1xf32> to vector<1xf32>
    %239 = vector.shape_cast %238 : vector<1xf32> to vector<1x1x1xf32>
    %240 = vector.extract %239[0, 0, 0] : f32 from vector<1x1x1xf32>
    %cst_98 = arith.constant 9.765625E-4 : f32
    %241 = arith.mulf %240, %cst_98 : f32
    %242 = arith.mulf %235, %235 : f32
    %243 = arith.subf %241, %242 : f32
    %244 = vector.broadcast %235 : f32 to vector<8x1xf32>
    %245 = arith.mulf %229, %244 : vector<8x1xf32>
    %246 = arith.addf %224, %245 : vector<8x1xf32>
    %247 = vector.broadcast %243 : f32 to vector<8x1xf32>
    %248 = arith.mulf %229, %247 : vector<8x1xf32>
    %249 = arith.addf %227, %248 : vector<8x1xf32>
    %cst_99 = arith.constant 9.99999974E-6 : f32
    %250 = vector.broadcast %cst_99 : f32 to vector<8x1xf32>
    %251 = arith.addf %249, %250 : vector<8x1xf32>
    %252 = math.rsqrt %251 : vector<8x1xf32>
    %253 = arith.mulf %252, %197 : vector<8x1xf32>
    %254 = vector.broadcast %246 : vector<8x1xf32> to vector<8x256xf32>
    %255 = arith.subf %196, %254 : vector<8x256xf32>
    %256 = vector.broadcast %253 : vector<8x1xf32> to vector<8x256xf32>
    %257 = arith.mulf %255, %256 : vector<8x256xf32>
    %258 = vector.broadcast %198 : vector<8x1xf32> to vector<8x256xf32>
    %259 = arith.addf %257, %258 : vector<8x256xf32>
    %cst_100 = arith.constant 0.000000e+00 : f32
    %260 = vector.broadcast %cst_100 : f32 to vector<8x256xf32>
    %261 = arith.cmpf oge, %259, %260 : vector<8x256xf32>
    %cst_101 = arith.constant 2.000000e-01 : f32
    %262 = vector.broadcast %cst_101 : f32 to vector<8x256xf32>
    %263 = arith.mulf %262, %259 : vector<8x256xf32>
    %264 = arith.select %261, %259, %263 : vector<8x256xi1>, vector<8x256xf32>
    %265 = tpu.concatenate %264, %3 in 0 : vector<8x256xf32>, vector<8x256xf32> -> vector<16x256xf32>
    %c0_102 = arith.constant 0 : index
    %c0_103 = arith.constant 0 : index
    %266 = vector.load %arg18[%c0_102, %c0_103] : memref<72x16xbf16, #tpu.memory_space<vmem>>, vector<72x16xbf16>
    %267 = arith.truncf %265 : vector<16x256xf32> to vector<16x256xbf16>
    %cst_104 = arith.constant dense<0.000000e+00> : vector<72x256xf32>
    %268 = tpu.matmul %266, %267, %cst_104 {dimension_numbers = #tpu.dot_dimension_numbers<[1], [0], [0], [1], [0, 0, 1, 1], [], []>} : vector<72x16xbf16>, vector<16x256xbf16>, vector<72x256xf32> -> vector<72x256xf32>
    %269 = vector.extract_strided_slice %268 {offsets = [0, 0], sizes = [8, 256], strides = [1, 1]} : vector<72x256xf32> to vector<8x256xf32>
    %270 = vector.extract_strided_slice %268 {offsets = [8, 0], sizes = [8, 256], strides = [1, 1]} : vector<72x256xf32> to vector<8x256xf32>
    %271 = vector.extract_strided_slice %268 {offsets = [16, 0], sizes = [8, 256], strides = [1, 1]} : vector<72x256xf32> to vector<8x256xf32>
    %272 = vector.extract_strided_slice %268 {offsets = [24, 0], sizes = [8, 256], strides = [1, 1]} : vector<72x256xf32> to vector<8x256xf32>
    %273 = vector.extract_strided_slice %268 {offsets = [32, 0], sizes = [8, 256], strides = [1, 1]} : vector<72x256xf32> to vector<8x256xf32>
    %274 = vector.extract_strided_slice %268 {offsets = [40, 0], sizes = [8, 256], strides = [1, 1]} : vector<72x256xf32> to vector<8x256xf32>
    %275 = vector.extract_strided_slice %268 {offsets = [48, 0], sizes = [8, 256], strides = [1, 1]} : vector<72x256xf32> to vector<8x256xf32>
    %276 = vector.extract_strided_slice %268 {offsets = [56, 0], sizes = [8, 256], strides = [1, 1]} : vector<72x256xf32> to vector<8x256xf32>
    %277 = vector.extract_strided_slice %268 {offsets = [64, 0], sizes = [8, 256], strides = [1, 1]} : vector<72x256xf32> to vector<8x256xf32>
    %278 = tpu.concatenate %269, %270, %271, %272, %273, %274, %275, %276, %277 in 1 : vector<8x256xf32>, vector<8x256xf32>, vector<8x256xf32>, vector<8x256xf32>, vector<8x256xf32>, vector<8x256xf32>, vector<8x256xf32>, vector<8x256xf32>, vector<8x256xf32> -> vector<8x2304xf32>
    %279 = arith.truncf %278 : vector<8x2304xf32> to vector<8x2304xbf16>
    %c0_105 = arith.constant 0 : index
    %c0_106 = arith.constant 0 : index
    %280 = vector.load %arg17[%c0_105, %c0_106] : memref<2304x256xbf16, #tpu.memory_space<vmem>>, vector<2304x256xbf16>
    %cst_107 = arith.constant dense<0.000000e+00> : vector<8x256xf32>
    %281 = tpu.matmul %279, %280, %cst_107 {dimension_numbers = #tpu.dot_dimension_numbers<[1], [0], [0], [1], [0, 0, 1, 1], [], []>} : vector<8x2304xbf16>, vector<2304x256xbf16>, vector<8x256xf32> -> vector<8x256xf32>
    %c0_108 = arith.constant 0 : index
    %c0_109 = arith.constant 0 : index
    %282 = vector.load %arg19[%c0_108, %c0_109] : memref<8x1xf32, #tpu.memory_space<vmem>>, vector<8x1xf32>
    %283 = vector.broadcast %282 : vector<8x1xf32> to vector<8x256xf32>
    %284 = arith.addf %281, %283 : vector<8x256xf32>
    %c0_110 = arith.constant 0 : index
    %c0_111 = arith.constant 0 : index
    %285 = vector.load %arg20[%c0_110, %c0_111] : memref<8x1xf32, #tpu.memory_space<vmem>>, vector<8x1xf32>
    %c0_112 = arith.constant 0 : index
    %c0_113 = arith.constant 0 : index
    %286 = vector.load %arg21[%c0_112, %c0_113] : memref<8x1xf32, #tpu.memory_space<vmem>>, vector<8x1xf32>
    %cst_114 = arith.constant dense<0.000000e+00> : vector<8xf32>
    %287 = vector.multi_reduction <add>, %284, %cst_114 [1] : vector<8x256xf32> to vector<8xf32>
    %288 = vector.shape_cast %287 : vector<8xf32> to vector<8x1xf32>
    %289 = arith.mulf %284, %284 : vector<8x256xf32>
    %cst_115 = arith.constant dense<0.000000e+00> : vector<8xf32>
    %290 = vector.multi_reduction <add>, %289, %cst_115 [1] : vector<8x256xf32> to vector<8xf32>
    %291 = vector.shape_cast %290 : vector<8xf32> to vector<8x1xf32>
    %cst_116 = arith.constant 0.000000e+00 : f32
    %292 = vector.broadcast %cst_116 : f32 to vector<8x1xf32>
    %cst_117 = arith.constant 0.000000e+00 : f32
    %293 = vector.broadcast %cst_117 : f32 to vector<8x1xf32>
    %c0_118 = arith.constant 0 : index
    %c0_119 = arith.constant 0 : index
    %c0_120 = arith.constant 0 : index
    %294 = vector.load %arg22[%c0_118, %c0_119, %c0_120] : memref<2x8x1xf32, #tpu.memory_space<vmem>>, vector<1x8x1xf32>
    %295 = vector.shape_cast %294 : vector<1x8x1xf32> to vector<8x1xf32>
    %296 = arith.mulf %288, %295 : vector<8x1xf32>
    %297 = vector.shape_cast %296 : vector<8x1xf32> to vector<1x8x1xf32>
    %cst_121 = arith.constant dense<0.000000e+00> : vector<1xf32>
    %298 = vector.multi_reduction <add>, %297, %cst_121 [1, 2] : vector<1x8x1xf32> to vector<1xf32>
    %299 = vector.shape_cast %298 : vector<1xf32> to vector<1x1x1xf32>
    %300 = vector.extract %299[0, 0, 0] : f32 from vector<1x1x1xf32>
    %cst_122 = arith.constant 9.765625E-4 : f32
    %301 = arith.mulf %300, %cst_122 : f32
    %302 = arith.mulf %291, %295 : vector<8x1xf32>
    %303 = vector.shape_cast %302 : vector<8x1xf32> to vector<1x8x1xf32>
    %cst_123 = arith.constant dense<0.000000e+00> : vector<1xf32>
    %304 = vector.multi_reduction <add>, %303, %cst_123 [1, 2] : vector<1x8x1xf32> to vector<1xf32>
    %305 = vector.shape_cast %304 : vector<1xf32> to vector<1x1x1xf32>
    %306 = vector.extract %305[0, 0, 0] : f32 from vector<1x1x1xf32>
    %cst_124 = arith.constant 9.765625E-4 : f32
    %307 = arith.mulf %306, %cst_124 : f32
    %308 = arith.mulf %301, %301 : f32
    %309 = arith.subf %307, %308 : f32
    %310 = vector.broadcast %301 : f32 to vector<8x1xf32>
    %311 = arith.mulf %295, %310 : vector<8x1xf32>
    %312 = arith.addf %292, %311 : vector<8x1xf32>
    %313 = vector.broadcast %309 : f32 to vector<8x1xf32>
    %314 = arith.mulf %295, %313 : vector<8x1xf32>
    %315 = arith.addf %293, %314 : vector<8x1xf32>
    %c1_125 = arith.constant 1 : index
    %c0_126 = arith.constant 0 : index
    %c0_127 = arith.constant 0 : index
    %316 = vector.load %arg22[%c1_125, %c0_126, %c0_127] : memref<2x8x1xf32, #tpu.memory_space<vmem>>, vector<1x8x1xf32>
    %317 = vector.shape_cast %316 : vector<1x8x1xf32> to vector<8x1xf32>
    %318 = arith.mulf %288, %317 : vector<8x1xf32>
    %319 = vector.shape_cast %318 : vector<8x1xf32> to vector<1x8x1xf32>
    %cst_128 = arith.constant dense<0.000000e+00> : vector<1xf32>
    %320 = vector.multi_reduction <add>, %319, %cst_128 [1, 2] : vector<1x8x1xf32> to vector<1xf32>
    %321 = vector.shape_cast %320 : vector<1xf32> to vector<1x1x1xf32>
    %322 = vector.extract %321[0, 0, 0] : f32 from vector<1x1x1xf32>
    %cst_129 = arith.constant 9.765625E-4 : f32
    %323 = arith.mulf %322, %cst_129 : f32
    %324 = arith.mulf %291, %317 : vector<8x1xf32>
    %325 = vector.shape_cast %324 : vector<8x1xf32> to vector<1x8x1xf32>
    %cst_130 = arith.constant dense<0.000000e+00> : vector<1xf32>
    %326 = vector.multi_reduction <add>, %325, %cst_130 [1, 2] : vector<1x8x1xf32> to vector<1xf32>
    %327 = vector.shape_cast %326 : vector<1xf32> to vector<1x1x1xf32>
    %328 = vector.extract %327[0, 0, 0] : f32 from vector<1x1x1xf32>
    %cst_131 = arith.constant 9.765625E-4 : f32
    %329 = arith.mulf %328, %cst_131 : f32
    %330 = arith.mulf %323, %323 : f32
    %331 = arith.subf %329, %330 : f32
    %332 = vector.broadcast %323 : f32 to vector<8x1xf32>
    %333 = arith.mulf %317, %332 : vector<8x1xf32>
    %334 = arith.addf %312, %333 : vector<8x1xf32>
    %335 = vector.broadcast %331 : f32 to vector<8x1xf32>
    %336 = arith.mulf %317, %335 : vector<8x1xf32>
    %337 = arith.addf %315, %336 : vector<8x1xf32>
    %cst_132 = arith.constant 9.99999974E-6 : f32
    %338 = vector.broadcast %cst_132 : f32 to vector<8x1xf32>
    %339 = arith.addf %337, %338 : vector<8x1xf32>
    %340 = math.rsqrt %339 : vector<8x1xf32>
    %341 = arith.mulf %340, %285 : vector<8x1xf32>
    %342 = vector.broadcast %334 : vector<8x1xf32> to vector<8x256xf32>
    %343 = arith.subf %284, %342 : vector<8x256xf32>
    %344 = vector.broadcast %341 : vector<8x1xf32> to vector<8x256xf32>
    %345 = arith.mulf %343, %344 : vector<8x256xf32>
    %346 = vector.broadcast %286 : vector<8x1xf32> to vector<8x256xf32>
    %347 = arith.addf %345, %346 : vector<8x256xf32>
    %cst_133 = arith.constant 0.000000e+00 : f32
    %348 = vector.broadcast %cst_133 : f32 to vector<8x256xf32>
    %349 = arith.cmpf oge, %347, %348 : vector<8x256xf32>
    %cst_134 = arith.constant 2.000000e-01 : f32
    %350 = vector.broadcast %cst_134 : f32 to vector<8x256xf32>
    %351 = arith.mulf %350, %347 : vector<8x256xf32>
    %352 = arith.select %349, %347, %351 : vector<8x256xi1>, vector<8x256xf32>
    %c0_135 = arith.constant 0 : index
    %c0_136 = arith.constant 0 : index
    %353 = vector.load %arg23[%c0_135, %c0_136] : memref<3x8xf32, #tpu.memory_space<vmem>>, vector<3x8xf32>
    %cst_137 = arith.constant dense<0.000000e+00> : vector<3x256xf32>
    %354 = tpu.matmul %353, %352, %cst_137 {dimension_numbers = #tpu.dot_dimension_numbers<[1], [0], [0], [1], [0, 0, 1, 1], [], []>} : vector<3x8xf32>, vector<8x256xf32>, vector<3x256xf32> -> vector<3x256xf32>
    %c0_138 = arith.constant 0 : index
    %c0_139 = arith.constant 0 : index
    %355 = vector.load %arg24[%c0_138, %c0_139] : memref<3x1xf32, #tpu.memory_space<vmem>>, vector<3x1xf32>
    %356 = vector.broadcast %355 : vector<3x1xf32> to vector<3x256xf32>
    %357 = arith.addf %354, %356 : vector<3x256xf32>
    %c0_140 = arith.constant 0 : index
    %c0_141 = arith.constant 0 : index
    %c0_142 = arith.constant 0 : index
    %358 = vector.load %arg25[%c0_140, %c0_141, %c0_142] : memref<2x3x256xf32, #tpu.memory_space<vmem>>, vector<1x3x256xf32>
    %359 = vector.shape_cast %358 : vector<1x3x256xf32> to vector<3x256xf32>
    %360 = vector.shape_cast %357 : vector<3x256xf32> to vector<1x3x256xf32>
    tpu.vector_store %arg25[%c0_140, %c0_141, %c0_142], %360 {strides = array<i32>} : memref<2x3x256xf32, #tpu.memory_space<vmem>>, vector<1x3x256xf32>,
    %c1_143 = arith.constant 1 : index
    %c0_144 = arith.constant 0 : index
    %c0_145 = arith.constant 0 : index
    %361 = vector.load %arg0[%c1_143, %c0_144, %c0_145] : memref<2x8x16xf32, #tpu.memory_space<vmem>>, vector<1x8x16xf32>
    %362 = vector.shape_cast %361 : vector<1x8x16xf32> to vector<8x16xf32>
    %c1_146 = arith.constant 1 : index
    %c0_147 = arith.constant 0 : index
    %c0_148 = arith.constant 0 : index
    %363 = vector.load %arg1[%c1_146, %c0_147, %c0_148] : memref<2x8x256xf32, #tpu.memory_space<vmem>>, vector<1x8x256xf32>
    %364 = vector.shape_cast %363 : vector<1x8x256xf32> to vector<8x256xf32>
    %c0_149 = arith.constant 0 : index
    %c0_150 = arith.constant 0 : index
    %365 = vector.load %arg3[%c0_149, %c0_150] : memref<72x8xbf16, #tpu.memory_space<vmem>>, vector<72x8xbf16>
    %366 = arith.truncf %362 : vector<8x16xf32> to vector<8x16xbf16>
    %cst_151 = arith.constant dense<0.000000e+00> : vector<72x16xf32>
    %367 = tpu.matmul %365, %366, %cst_151 {dimension_numbers = #tpu.dot_dimension_numbers<[1], [0], [0], [1], [0, 0, 1, 1], [], []>} : vector<72x8xbf16>, vector<8x16xbf16>, vector<72x16xf32> -> vector<72x16xf32>
    %368 = vector.extract_strided_slice %367 {offsets = [0, 0], sizes = [8, 16], strides = [1, 1]} : vector<72x16xf32> to vector<8x16xf32>
    %369 = vector.extract_strided_slice %367 {offsets = [8, 0], sizes = [8, 16], strides = [1, 1]} : vector<72x16xf32> to vector<8x16xf32>
    %370 = vector.extract_strided_slice %367 {offsets = [16, 0], sizes = [8, 16], strides = [1, 1]} : vector<72x16xf32> to vector<8x16xf32>
    %371 = vector.extract_strided_slice %367 {offsets = [24, 0], sizes = [8, 16], strides = [1, 1]} : vector<72x16xf32> to vector<8x16xf32>
    %372 = vector.extract_strided_slice %367 {offsets = [32, 0], sizes = [8, 16], strides = [1, 1]} : vector<72x16xf32> to vector<8x16xf32>
    %373 = vector.extract_strided_slice %367 {offsets = [40, 0], sizes = [8, 16], strides = [1, 1]} : vector<72x16xf32> to vector<8x16xf32>
    %374 = vector.extract_strided_slice %367 {offsets = [48, 0], sizes = [8, 16], strides = [1, 1]} : vector<72x16xf32> to vector<8x16xf32>
    %375 = vector.extract_strided_slice %367 {offsets = [56, 0], sizes = [8, 16], strides = [1, 1]} : vector<72x16xf32> to vector<8x16xf32>
    %376 = vector.extract_strided_slice %367 {offsets = [64, 0], sizes = [8, 16], strides = [1, 1]} : vector<72x16xf32> to vector<8x16xf32>
    %377 = tpu.concatenate %368, %369, %370, %371, %372, %373, %374, %375, %376 in 1 : vector<8x16xf32>, vector<8x16xf32>, vector<8x16xf32>, vector<8x16xf32>, vector<8x16xf32>, vector<8x16xf32>, vector<8x16xf32>, vector<8x16xf32>, vector<8x16xf32> -> vector<8x144xf32>
    %378 = arith.truncf %377 : vector<8x144xf32> to vector<8x144xbf16>
    %c0_152 = arith.constant 0 : index
    %c0_153 = arith.constant 0 : index
    %379 = vector.load %arg2[%c0_152, %c0_153] : memref<144x64xbf16, #tpu.memory_space<vmem>>, vector<144x64xbf16>
    %cst_154 = arith.constant dense<0.000000e+00> : vector<8x64xf32>
    %380 = tpu.matmul %378, %379, %cst_154 {dimension_numbers = #tpu.dot_dimension_numbers<[1], [0], [0], [1], [0, 0, 1, 1], [], []>} : vector<8x144xbf16>, vector<144x64xbf16>, vector<8x64xf32> -> vector<8x64xf32>
    %c0_155 = arith.constant 0 : index
    %c0_156 = arith.constant 0 : index
    %381 = vector.load %arg4[%c0_155, %c0_156] : memref<8x1xf32, #tpu.memory_space<vmem>>, vector<8x1xf32>
    %382 = vector.broadcast %381 : vector<8x1xf32> to vector<8x64xf32>
    %383 = arith.addf %380, %382 : vector<8x64xf32>
    %c0_157 = arith.constant 0 : index
    %c0_158 = arith.constant 0 : index
    %384 = vector.load %arg5[%c0_157, %c0_158] : memref<8x1xf32, #tpu.memory_space<vmem>>, vector<8x1xf32>
    %c0_159 = arith.constant 0 : index
    %c0_160 = arith.constant 0 : index
    %385 = vector.load %arg6[%c0_159, %c0_160] : memref<8x1xf32, #tpu.memory_space<vmem>>, vector<8x1xf32>
    %cst_161 = arith.constant dense<0.000000e+00> : vector<8xf32>
    %386 = vector.multi_reduction <add>, %383, %cst_161 [1] : vector<8x64xf32> to vector<8xf32>
    %387 = vector.shape_cast %386 : vector<8xf32> to vector<8x1xf32>
    %388 = arith.mulf %383, %383 : vector<8x64xf32>
    %cst_162 = arith.constant dense<0.000000e+00> : vector<8xf32>
    %389 = vector.multi_reduction <add>, %388, %cst_162 [1] : vector<8x64xf32> to vector<8xf32>
    %390 = vector.shape_cast %389 : vector<8xf32> to vector<8x1xf32>
    %cst_163 = arith.constant 0.000000e+00 : f32
    %391 = vector.broadcast %cst_163 : f32 to vector<8x1xf32>
    %cst_164 = arith.constant 0.000000e+00 : f32
    %392 = vector.broadcast %cst_164 : f32 to vector<8x1xf32>
    %c0_165 = arith.constant 0 : index
    %c0_166 = arith.constant 0 : index
    %c0_167 = arith.constant 0 : index
    %393 = vector.load %arg22[%c0_165, %c0_166, %c0_167] : memref<2x8x1xf32, #tpu.memory_space<vmem>>, vector<1x8x1xf32>
    %394 = vector.shape_cast %393 : vector<1x8x1xf32> to vector<8x1xf32>
    %395 = arith.mulf %387, %394 : vector<8x1xf32>
    %396 = vector.shape_cast %395 : vector<8x1xf32> to vector<1x8x1xf32>
    %cst_168 = arith.constant dense<0.000000e+00> : vector<1xf32>
    %397 = vector.multi_reduction <add>, %396, %cst_168 [1, 2] : vector<1x8x1xf32> to vector<1xf32>
    %398 = vector.shape_cast %397 : vector<1xf32> to vector<1x1x1xf32>
    %399 = vector.extract %398[0, 0, 0] : f32 from vector<1x1x1xf32>
    %cst_169 = arith.constant 3.906250e-03 : f32
    %400 = arith.mulf %399, %cst_169 : f32
    %401 = arith.mulf %390, %394 : vector<8x1xf32>
    %402 = vector.shape_cast %401 : vector<8x1xf32> to vector<1x8x1xf32>
    %cst_170 = arith.constant dense<0.000000e+00> : vector<1xf32>
    %403 = vector.multi_reduction <add>, %402, %cst_170 [1, 2] : vector<1x8x1xf32> to vector<1xf32>
    %404 = vector.shape_cast %403 : vector<1xf32> to vector<1x1x1xf32>
    %405 = vector.extract %404[0, 0, 0] : f32 from vector<1x1x1xf32>
    %cst_171 = arith.constant 3.906250e-03 : f32
    %406 = arith.mulf %405, %cst_171 : f32
    %407 = arith.mulf %400, %400 : f32
    %408 = arith.subf %406, %407 : f32
    %409 = vector.broadcast %400 : f32 to vector<8x1xf32>
    %410 = arith.mulf %394, %409 : vector<8x1xf32>
    %411 = arith.addf %391, %410 : vector<8x1xf32>
    %412 = vector.broadcast %408 : f32 to vector<8x1xf32>
    %413 = arith.mulf %394, %412 : vector<8x1xf32>
    %414 = arith.addf %392, %413 : vector<8x1xf32>
    %c1_172 = arith.constant 1 : index
    %c0_173 = arith.constant 0 : index
    %c0_174 = arith.constant 0 : index
    %415 = vector.load %arg22[%c1_172, %c0_173, %c0_174] : memref<2x8x1xf32, #tpu.memory_space<vmem>>, vector<1x8x1xf32>
    %416 = vector.shape_cast %415 : vector<1x8x1xf32> to vector<8x1xf32>
    %417 = arith.mulf %387, %416 : vector<8x1xf32>
    %418 = vector.shape_cast %417 : vector<8x1xf32> to vector<1x8x1xf32>
    %cst_175 = arith.constant dense<0.000000e+00> : vector<1xf32>
    %419 = vector.multi_reduction <add>, %418, %cst_175 [1, 2] : vector<1x8x1xf32> to vector<1xf32>
    %420 = vector.shape_cast %419 : vector<1xf32> to vector<1x1x1xf32>
    %421 = vector.extract %420[0, 0, 0] : f32 from vector<1x1x1xf32>
    %cst_176 = arith.constant 3.906250e-03 : f32
    %422 = arith.mulf %421, %cst_176 : f32
    %423 = arith.mulf %390, %416 : vector<8x1xf32>
    %424 = vector.shape_cast %423 : vector<8x1xf32> to vector<1x8x1xf32>
    %cst_177 = arith.constant dense<0.000000e+00> : vector<1xf32>
    %425 = vector.multi_reduction <add>, %424, %cst_177 [1, 2] : vector<1x8x1xf32> to vector<1xf32>
    %426 = vector.shape_cast %425 : vector<1xf32> to vector<1x1x1xf32>
    %427 = vector.extract %426[0, 0, 0] : f32 from vector<1x1x1xf32>
    %cst_178 = arith.constant 3.906250e-03 : f32
    %428 = arith.mulf %427, %cst_178 : f32
    %429 = arith.mulf %422, %422 : f32
    %430 = arith.subf %428, %429 : f32
    %431 = vector.broadcast %422 : f32 to vector<8x1xf32>
    %432 = arith.mulf %416, %431 : vector<8x1xf32>
    %433 = arith.addf %411, %432 : vector<8x1xf32>
    %434 = vector.broadcast %430 : f32 to vector<8x1xf32>
    %435 = arith.mulf %416, %434 : vector<8x1xf32>
    %436 = arith.addf %414, %435 : vector<8x1xf32>
    %cst_179 = arith.constant 9.99999974E-6 : f32
    %437 = vector.broadcast %cst_179 : f32 to vector<8x1xf32>
    %438 = arith.addf %436, %437 : vector<8x1xf32>
    %439 = math.rsqrt %438 : vector<8x1xf32>
    %440 = arith.mulf %439, %384 : vector<8x1xf32>
    %441 = vector.broadcast %433 : vector<8x1xf32> to vector<8x64xf32>
    %442 = arith.subf %383, %441 : vector<8x64xf32>
    %443 = vector.broadcast %440 : vector<8x1xf32> to vector<8x64xf32>
    %444 = arith.mulf %442, %443 : vector<8x64xf32>
    %445 = vector.broadcast %385 : vector<8x1xf32> to vector<8x64xf32>
    %446 = arith.addf %444, %445 : vector<8x64xf32>
    %cst_180 = arith.constant 0.000000e+00 : f32
    %447 = vector.broadcast %cst_180 : f32 to vector<8x64xf32>
    %448 = arith.cmpf oge, %446, %447 : vector<8x64xf32>
    %cst_181 = arith.constant 2.000000e-01 : f32
    %449 = vector.broadcast %cst_181 : f32 to vector<8x64xf32>
    %450 = arith.mulf %449, %446 : vector<8x64xf32>
    %451 = arith.select %448, %446, %450 : vector<8x64xi1>, vector<8x64xf32>
    %c0_182 = arith.constant 0 : index
    %c0_183 = arith.constant 0 : index
    %452 = vector.load %arg8[%c0_182, %c0_183] : memref<72x8xbf16, #tpu.memory_space<vmem>>, vector<72x8xbf16>
    %453 = arith.truncf %451 : vector<8x64xf32> to vector<8x64xbf16>
    %cst_184 = arith.constant dense<0.000000e+00> : vector<72x64xf32>
    %454 = tpu.matmul %452, %453, %cst_184 {dimension_numbers = #tpu.dot_dimension_numbers<[1], [0], [0], [1], [0, 0, 1, 1], [], []>} : vector<72x8xbf16>, vector<8x64xbf16>, vector<72x64xf32> -> vector<72x64xf32>
    %455 = vector.extract_strided_slice %454 {offsets = [0, 0], sizes = [8, 64], strides = [1, 1]} : vector<72x64xf32> to vector<8x64xf32>
    %456 = vector.extract_strided_slice %454 {offsets = [8, 0], sizes = [8, 64], strides = [1, 1]} : vector<72x64xf32> to vector<8x64xf32>
    %457 = vector.extract_strided_slice %454 {offsets = [16, 0], sizes = [8, 64], strides = [1, 1]} : vector<72x64xf32> to vector<8x64xf32>
    %458 = vector.extract_strided_slice %454 {offsets = [24, 0], sizes = [8, 64], strides = [1, 1]} : vector<72x64xf32> to vector<8x64xf32>
    %459 = vector.extract_strided_slice %454 {offsets = [32, 0], sizes = [8, 64], strides = [1, 1]} : vector<72x64xf32> to vector<8x64xf32>
    %460 = vector.extract_strided_slice %454 {offsets = [40, 0], sizes = [8, 64], strides = [1, 1]} : vector<72x64xf32> to vector<8x64xf32>
    %461 = vector.extract_strided_slice %454 {offsets = [48, 0], sizes = [8, 64], strides = [1, 1]} : vector<72x64xf32> to vector<8x64xf32>
    %462 = vector.extract_strided_slice %454 {offsets = [56, 0], sizes = [8, 64], strides = [1, 1]} : vector<72x64xf32> to vector<8x64xf32>
    %463 = vector.extract_strided_slice %454 {offsets = [64, 0], sizes = [8, 64], strides = [1, 1]} : vector<72x64xf32> to vector<8x64xf32>
    %464 = tpu.concatenate %455, %456, %457, %458, %459, %460, %461, %462, %463 in 1 : vector<8x64xf32>, vector<8x64xf32>, vector<8x64xf32>, vector<8x64xf32>, vector<8x64xf32>, vector<8x64xf32>, vector<8x64xf32>, vector<8x64xf32>, vector<8x64xf32> -> vector<8x576xf32>
    %465 = arith.truncf %464 : vector<8x576xf32> to vector<8x576xbf16>
    %c0_185 = arith.constant 0 : index
    %c0_186 = arith.constant 0 : index
    %466 = vector.load %arg7[%c0_185, %c0_186] : memref<576x64xbf16, #tpu.memory_space<vmem>>, vector<576x64xbf16>
    %cst_187 = arith.constant dense<0.000000e+00> : vector<8x64xf32>
    %467 = tpu.matmul %465, %466, %cst_187 {dimension_numbers = #tpu.dot_dimension_numbers<[1], [0], [0], [1], [0, 0, 1, 1], [], []>} : vector<8x576xbf16>, vector<576x64xbf16>, vector<8x64xf32> -> vector<8x64xf32>
    %c0_188 = arith.constant 0 : index
    %c0_189 = arith.constant 0 : index
    %468 = vector.load %arg9[%c0_188, %c0_189] : memref<8x1xf32, #tpu.memory_space<vmem>>, vector<8x1xf32>
    %469 = vector.broadcast %468 : vector<8x1xf32> to vector<8x64xf32>
    %470 = arith.addf %467, %469 : vector<8x64xf32>
    %c0_190 = arith.constant 0 : index
    %c0_191 = arith.constant 0 : index
    %471 = vector.load %arg10[%c0_190, %c0_191] : memref<8x1xf32, #tpu.memory_space<vmem>>, vector<8x1xf32>
    %c0_192 = arith.constant 0 : index
    %c0_193 = arith.constant 0 : index
    %472 = vector.load %arg11[%c0_192, %c0_193] : memref<8x1xf32, #tpu.memory_space<vmem>>, vector<8x1xf32>
    %cst_194 = arith.constant dense<0.000000e+00> : vector<8xf32>
    %473 = vector.multi_reduction <add>, %470, %cst_194 [1] : vector<8x64xf32> to vector<8xf32>
    %474 = vector.shape_cast %473 : vector<8xf32> to vector<8x1xf32>
    %475 = arith.mulf %470, %470 : vector<8x64xf32>
    %cst_195 = arith.constant dense<0.000000e+00> : vector<8xf32>
    %476 = vector.multi_reduction <add>, %475, %cst_195 [1] : vector<8x64xf32> to vector<8xf32>
    %477 = vector.shape_cast %476 : vector<8xf32> to vector<8x1xf32>
    %cst_196 = arith.constant 0.000000e+00 : f32
    %478 = vector.broadcast %cst_196 : f32 to vector<8x1xf32>
    %cst_197 = arith.constant 0.000000e+00 : f32
    %479 = vector.broadcast %cst_197 : f32 to vector<8x1xf32>
    %c0_198 = arith.constant 0 : index
    %c0_199 = arith.constant 0 : index
    %c0_200 = arith.constant 0 : index
    %480 = vector.load %arg22[%c0_198, %c0_199, %c0_200] : memref<2x8x1xf32, #tpu.memory_space<vmem>>, vector<1x8x1xf32>
    %481 = vector.shape_cast %480 : vector<1x8x1xf32> to vector<8x1xf32>
    %482 = arith.mulf %474, %481 : vector<8x1xf32>
    %483 = vector.shape_cast %482 : vector<8x1xf32> to vector<1x8x1xf32>
    %cst_201 = arith.constant dense<0.000000e+00> : vector<1xf32>
    %484 = vector.multi_reduction <add>, %483, %cst_201 [1, 2] : vector<1x8x1xf32> to vector<1xf32>
    %485 = vector.shape_cast %484 : vector<1xf32> to vector<1x1x1xf32>
    %486 = vector.extract %485[0, 0, 0] : f32 from vector<1x1x1xf32>
    %cst_202 = arith.constant 3.906250e-03 : f32
    %487 = arith.mulf %486, %cst_202 : f32
    %488 = arith.mulf %477, %481 : vector<8x1xf32>
    %489 = vector.shape_cast %488 : vector<8x1xf32> to vector<1x8x1xf32>
    %cst_203 = arith.constant dense<0.000000e+00> : vector<1xf32>
    %490 = vector.multi_reduction <add>, %489, %cst_203 [1, 2] : vector<1x8x1xf32> to vector<1xf32>
    %491 = vector.shape_cast %490 : vector<1xf32> to vector<1x1x1xf32>
    %492 = vector.extract %491[0, 0, 0] : f32 from vector<1x1x1xf32>
    %cst_204 = arith.constant 3.906250e-03 : f32
    %493 = arith.mulf %492, %cst_204 : f32
    %494 = arith.mulf %487, %487 : f32
    %495 = arith.subf %493, %494 : f32
    %496 = vector.broadcast %487 : f32 to vector<8x1xf32>
    %497 = arith.mulf %481, %496 : vector<8x1xf32>
    %498 = arith.addf %478, %497 : vector<8x1xf32>
    %499 = vector.broadcast %495 : f32 to vector<8x1xf32>
    %500 = arith.mulf %481, %499 : vector<8x1xf32>
    %501 = arith.addf %479, %500 : vector<8x1xf32>
    %c1_205 = arith.constant 1 : index
    %c0_206 = arith.constant 0 : index
    %c0_207 = arith.constant 0 : index
    %502 = vector.load %arg22[%c1_205, %c0_206, %c0_207] : memref<2x8x1xf32, #tpu.memory_space<vmem>>, vector<1x8x1xf32>
    %503 = vector.shape_cast %502 : vector<1x8x1xf32> to vector<8x1xf32>
    %504 = arith.mulf %474, %503 : vector<8x1xf32>
    %505 = vector.shape_cast %504 : vector<8x1xf32> to vector<1x8x1xf32>
    %cst_208 = arith.constant dense<0.000000e+00> : vector<1xf32>
    %506 = vector.multi_reduction <add>, %505, %cst_208 [1, 2] : vector<1x8x1xf32> to vector<1xf32>
    %507 = vector.shape_cast %506 : vector<1xf32> to vector<1x1x1xf32>
    %508 = vector.extract %507[0, 0, 0] : f32 from vector<1x1x1xf32>
    %cst_209 = arith.constant 3.906250e-03 : f32
    %509 = arith.mulf %508, %cst_209 : f32
    %510 = arith.mulf %477, %503 : vector<8x1xf32>
    %511 = vector.shape_cast %510 : vector<8x1xf32> to vector<1x8x1xf32>
    %cst_210 = arith.constant dense<0.000000e+00> : vector<1xf32>
    %512 = vector.multi_reduction <add>, %511, %cst_210 [1, 2] : vector<1x8x1xf32> to vector<1xf32>
    %513 = vector.shape_cast %512 : vector<1xf32> to vector<1x1x1xf32>
    %514 = vector.extract %513[0, 0, 0] : f32 from vector<1x1x1xf32>
    %cst_211 = arith.constant 3.906250e-03 : f32
    %515 = arith.mulf %514, %cst_211 : f32
    %516 = arith.mulf %509, %509 : f32
    %517 = arith.subf %515, %516 : f32
    %518 = vector.broadcast %509 : f32 to vector<8x1xf32>
    %519 = arith.mulf %503, %518 : vector<8x1xf32>
    %520 = arith.addf %498, %519 : vector<8x1xf32>
    %521 = vector.broadcast %517 : f32 to vector<8x1xf32>
    %522 = arith.mulf %503, %521 : vector<8x1xf32>
    %523 = arith.addf %501, %522 : vector<8x1xf32>
    %cst_212 = arith.constant 9.99999974E-6 : f32
    %524 = vector.broadcast %cst_212 : f32 to vector<8x1xf32>
    %525 = arith.addf %523, %524 : vector<8x1xf32>
    %526 = math.rsqrt %525 : vector<8x1xf32>
    %527 = arith.mulf %526, %471 : vector<8x1xf32>
    %528 = vector.broadcast %520 : vector<8x1xf32> to vector<8x64xf32>
    %529 = arith.subf %470, %528 : vector<8x64xf32>
    %530 = vector.broadcast %527 : vector<8x1xf32> to vector<8x64xf32>
    %531 = arith.mulf %529, %530 : vector<8x64xf32>
    %532 = vector.broadcast %472 : vector<8x1xf32> to vector<8x64xf32>
    %533 = arith.addf %531, %532 : vector<8x64xf32>
    %cst_213 = arith.constant 0.000000e+00 : f32
    %534 = vector.broadcast %cst_213 : f32 to vector<8x64xf32>
    %535 = arith.cmpf oge, %533, %534 : vector<8x64xf32>
    %cst_214 = arith.constant 2.000000e-01 : f32
    %536 = vector.broadcast %cst_214 : f32 to vector<8x64xf32>
    %537 = arith.mulf %536, %533 : vector<8x64xf32>
    %538 = arith.select %535, %533, %537 : vector<8x64xi1>, vector<8x64xf32>
    %c0_215 = arith.constant 0 : index
    %c0_216 = arith.constant 0 : index
    %539 = vector.load %arg13[%c0_215, %c0_216] : memref<72x8xbf16, #tpu.memory_space<vmem>>, vector<72x8xbf16>
    %540 = arith.truncf %538 : vector<8x64xf32> to vector<8x64xbf16>
    %cst_217 = arith.constant dense<0.000000e+00> : vector<72x64xf32>
    %541 = tpu.matmul %539, %540, %cst_217 {dimension_numbers = #tpu.dot_dimension_numbers<[1], [0], [0], [1], [0, 0, 1, 1], [], []>} : vector<72x8xbf16>, vector<8x64xbf16>, vector<72x64xf32> -> vector<72x64xf32>
    %542 = vector.extract_strided_slice %541 {offsets = [0, 0], sizes = [8, 64], strides = [1, 1]} : vector<72x64xf32> to vector<8x64xf32>
    %543 = vector.extract_strided_slice %541 {offsets = [8, 0], sizes = [8, 64], strides = [1, 1]} : vector<72x64xf32> to vector<8x64xf32>
    %544 = vector.extract_strided_slice %541 {offsets = [16, 0], sizes = [8, 64], strides = [1, 1]} : vector<72x64xf32> to vector<8x64xf32>
    %545 = vector.extract_strided_slice %541 {offsets = [24, 0], sizes = [8, 64], strides = [1, 1]} : vector<72x64xf32> to vector<8x64xf32>
    %546 = vector.extract_strided_slice %541 {offsets = [32, 0], sizes = [8, 64], strides = [1, 1]} : vector<72x64xf32> to vector<8x64xf32>
    %547 = vector.extract_strided_slice %541 {offsets = [40, 0], sizes = [8, 64], strides = [1, 1]} : vector<72x64xf32> to vector<8x64xf32>
    %548 = vector.extract_strided_slice %541 {offsets = [48, 0], sizes = [8, 64], strides = [1, 1]} : vector<72x64xf32> to vector<8x64xf32>
    %549 = vector.extract_strided_slice %541 {offsets = [56, 0], sizes = [8, 64], strides = [1, 1]} : vector<72x64xf32> to vector<8x64xf32>
    %550 = vector.extract_strided_slice %541 {offsets = [64, 0], sizes = [8, 64], strides = [1, 1]} : vector<72x64xf32> to vector<8x64xf32>
    %551 = tpu.concatenate %542, %543, %544, %545, %546, %547, %548, %549, %550 in 1 : vector<8x64xf32>, vector<8x64xf32>, vector<8x64xf32>, vector<8x64xf32>, vector<8x64xf32>, vector<8x64xf32>, vector<8x64xf32>, vector<8x64xf32>, vector<8x64xf32> -> vector<8x576xf32>
    %552 = arith.truncf %551 : vector<8x576xf32> to vector<8x576xbf16>
    %c0_218 = arith.constant 0 : index
    %c0_219 = arith.constant 0 : index
    %553 = vector.load %arg12[%c0_218, %c0_219] : memref<576x256xbf16, #tpu.memory_space<vmem>>, vector<576x256xbf16>
    %cst_220 = arith.constant dense<0.000000e+00> : vector<8x256xf32>
    %554 = tpu.matmul %552, %553, %cst_220 {dimension_numbers = #tpu.dot_dimension_numbers<[1], [0], [0], [1], [0, 0, 1, 1], [], []>} : vector<8x576xbf16>, vector<576x256xbf16>, vector<8x256xf32> -> vector<8x256xf32>
    %c0_221 = arith.constant 0 : index
    %c0_222 = arith.constant 0 : index
    %555 = vector.load %arg14[%c0_221, %c0_222] : memref<8x1xf32, #tpu.memory_space<vmem>>, vector<8x1xf32>
    %556 = vector.broadcast %555 : vector<8x1xf32> to vector<8x256xf32>
    %557 = arith.addf %554, %556 : vector<8x256xf32>
    %c0_223 = arith.constant 0 : index
    %c0_224 = arith.constant 0 : index
    %558 = vector.load %arg15[%c0_223, %c0_224] : memref<8x1xf32, #tpu.memory_space<vmem>>, vector<8x1xf32>
    %c0_225 = arith.constant 0 : index
    %c0_226 = arith.constant 0 : index
    %559 = vector.load %arg16[%c0_225, %c0_226] : memref<8x1xf32, #tpu.memory_space<vmem>>, vector<8x1xf32>
    %cst_227 = arith.constant dense<0.000000e+00> : vector<8xf32>
    %560 = vector.multi_reduction <add>, %557, %cst_227 [1] : vector<8x256xf32> to vector<8xf32>
    %561 = vector.shape_cast %560 : vector<8xf32> to vector<8x1xf32>
    %562 = arith.mulf %557, %557 : vector<8x256xf32>
    %cst_228 = arith.constant dense<0.000000e+00> : vector<8xf32>
    %563 = vector.multi_reduction <add>, %562, %cst_228 [1] : vector<8x256xf32> to vector<8xf32>
    %564 = vector.shape_cast %563 : vector<8xf32> to vector<8x1xf32>
    %cst_229 = arith.constant 0.000000e+00 : f32
    %565 = vector.broadcast %cst_229 : f32 to vector<8x1xf32>
    %cst_230 = arith.constant 0.000000e+00 : f32
    %566 = vector.broadcast %cst_230 : f32 to vector<8x1xf32>
    %c0_231 = arith.constant 0 : index
    %c0_232 = arith.constant 0 : index
    %c0_233 = arith.constant 0 : index
    %567 = vector.load %arg22[%c0_231, %c0_232, %c0_233] : memref<2x8x1xf32, #tpu.memory_space<vmem>>, vector<1x8x1xf32>
    %568 = vector.shape_cast %567 : vector<1x8x1xf32> to vector<8x1xf32>
    %569 = arith.mulf %561, %568 : vector<8x1xf32>
    %570 = vector.shape_cast %569 : vector<8x1xf32> to vector<1x8x1xf32>
    %cst_234 = arith.constant dense<0.000000e+00> : vector<1xf32>
    %571 = vector.multi_reduction <add>, %570, %cst_234 [1, 2] : vector<1x8x1xf32> to vector<1xf32>
    %572 = vector.shape_cast %571 : vector<1xf32> to vector<1x1x1xf32>
    %573 = vector.extract %572[0, 0, 0] : f32 from vector<1x1x1xf32>
    %cst_235 = arith.constant 9.765625E-4 : f32
    %574 = arith.mulf %573, %cst_235 : f32
    %575 = arith.mulf %564, %568 : vector<8x1xf32>
    %576 = vector.shape_cast %575 : vector<8x1xf32> to vector<1x8x1xf32>
    %cst_236 = arith.constant dense<0.000000e+00> : vector<1xf32>
    %577 = vector.multi_reduction <add>, %576, %cst_236 [1, 2] : vector<1x8x1xf32> to vector<1xf32>
    %578 = vector.shape_cast %577 : vector<1xf32> to vector<1x1x1xf32>
    %579 = vector.extract %578[0, 0, 0] : f32 from vector<1x1x1xf32>
    %cst_237 = arith.constant 9.765625E-4 : f32
    %580 = arith.mulf %579, %cst_237 : f32
    %581 = arith.mulf %574, %574 : f32
    %582 = arith.subf %580, %581 : f32
    %583 = vector.broadcast %574 : f32 to vector<8x1xf32>
    %584 = arith.mulf %568, %583 : vector<8x1xf32>
    %585 = arith.addf %565, %584 : vector<8x1xf32>
    %586 = vector.broadcast %582 : f32 to vector<8x1xf32>
    %587 = arith.mulf %568, %586 : vector<8x1xf32>
    %588 = arith.addf %566, %587 : vector<8x1xf32>
    %c1_238 = arith.constant 1 : index
    %c0_239 = arith.constant 0 : index
    %c0_240 = arith.constant 0 : index
    %589 = vector.load %arg22[%c1_238, %c0_239, %c0_240] : memref<2x8x1xf32, #tpu.memory_space<vmem>>, vector<1x8x1xf32>
    %590 = vector.shape_cast %589 : vector<1x8x1xf32> to vector<8x1xf32>
    %591 = arith.mulf %561, %590 : vector<8x1xf32>
    %592 = vector.shape_cast %591 : vector<8x1xf32> to vector<1x8x1xf32>
    %cst_241 = arith.constant dense<0.000000e+00> : vector<1xf32>
    %593 = vector.multi_reduction <add>, %592, %cst_241 [1, 2] : vector<1x8x1xf32> to vector<1xf32>
    %594 = vector.shape_cast %593 : vector<1xf32> to vector<1x1x1xf32>
    %595 = vector.extract %594[0, 0, 0] : f32 from vector<1x1x1xf32>
    %cst_242 = arith.constant 9.765625E-4 : f32
    %596 = arith.mulf %595, %cst_242 : f32
    %597 = arith.mulf %564, %590 : vector<8x1xf32>
    %598 = vector.shape_cast %597 : vector<8x1xf32> to vector<1x8x1xf32>
    %cst_243 = arith.constant dense<0.000000e+00> : vector<1xf32>
    %599 = vector.multi_reduction <add>, %598, %cst_243 [1, 2] : vector<1x8x1xf32> to vector<1xf32>
    %600 = vector.shape_cast %599 : vector<1xf32> to vector<1x1x1xf32>
    %601 = vector.extract %600[0, 0, 0] : f32 from vector<1x1x1xf32>
    %cst_244 = arith.constant 9.765625E-4 : f32
    %602 = arith.mulf %601, %cst_244 : f32
    %603 = arith.mulf %596, %596 : f32
    %604 = arith.subf %602, %603 : f32
    %605 = vector.broadcast %596 : f32 to vector<8x1xf32>
    %606 = arith.mulf %590, %605 : vector<8x1xf32>
    %607 = arith.addf %585, %606 : vector<8x1xf32>
    %608 = vector.broadcast %604 : f32 to vector<8x1xf32>
    %609 = arith.mulf %590, %608 : vector<8x1xf32>
    %610 = arith.addf %588, %609 : vector<8x1xf32>
    %cst_245 = arith.constant 9.99999974E-6 : f32
    %611 = vector.broadcast %cst_245 : f32 to vector<8x1xf32>
    %612 = arith.addf %610, %611 : vector<8x1xf32>
    %613 = math.rsqrt %612 : vector<8x1xf32>
    %614 = arith.mulf %613, %558 : vector<8x1xf32>
    %615 = vector.broadcast %607 : vector<8x1xf32> to vector<8x256xf32>
    %616 = arith.subf %557, %615 : vector<8x256xf32>
    %617 = vector.broadcast %614 : vector<8x1xf32> to vector<8x256xf32>
    %618 = arith.mulf %616, %617 : vector<8x256xf32>
    %619 = vector.broadcast %559 : vector<8x1xf32> to vector<8x256xf32>
    %620 = arith.addf %618, %619 : vector<8x256xf32>
    %cst_246 = arith.constant 0.000000e+00 : f32
    %621 = vector.broadcast %cst_246 : f32 to vector<8x256xf32>
    %622 = arith.cmpf oge, %620, %621 : vector<8x256xf32>
    %cst_247 = arith.constant 2.000000e-01 : f32
    %623 = vector.broadcast %cst_247 : f32 to vector<8x256xf32>
    %624 = arith.mulf %623, %620 : vector<8x256xf32>
    %625 = arith.select %622, %620, %624 : vector<8x256xi1>, vector<8x256xf32>
    %626 = tpu.concatenate %625, %364 in 0 : vector<8x256xf32>, vector<8x256xf32> -> vector<16x256xf32>
    %c0_248 = arith.constant 0 : index
    %c0_249 = arith.constant 0 : index
    %627 = vector.load %arg18[%c0_248, %c0_249] : memref<72x16xbf16, #tpu.memory_space<vmem>>, vector<72x16xbf16>
    %628 = arith.truncf %626 : vector<16x256xf32> to vector<16x256xbf16>
    %cst_250 = arith.constant dense<0.000000e+00> : vector<72x256xf32>
    %629 = tpu.matmul %627, %628, %cst_250 {dimension_numbers = #tpu.dot_dimension_numbers<[1], [0], [0], [1], [0, 0, 1, 1], [], []>} : vector<72x16xbf16>, vector<16x256xbf16>, vector<72x256xf32> -> vector<72x256xf32>
    %630 = vector.extract_strided_slice %629 {offsets = [0, 0], sizes = [8, 256], strides = [1, 1]} : vector<72x256xf32> to vector<8x256xf32>
    %631 = vector.extract_strided_slice %629 {offsets = [8, 0], sizes = [8, 256], strides = [1, 1]} : vector<72x256xf32> to vector<8x256xf32>
    %632 = vector.extract_strided_slice %629 {offsets = [16, 0], sizes = [8, 256], strides = [1, 1]} : vector<72x256xf32> to vector<8x256xf32>
    %633 = vector.extract_strided_slice %629 {offsets = [24, 0], sizes = [8, 256], strides = [1, 1]} : vector<72x256xf32> to vector<8x256xf32>
    %634 = vector.extract_strided_slice %629 {offsets = [32, 0], sizes = [8, 256], strides = [1, 1]} : vector<72x256xf32> to vector<8x256xf32>
    %635 = vector.extract_strided_slice %629 {offsets = [40, 0], sizes = [8, 256], strides = [1, 1]} : vector<72x256xf32> to vector<8x256xf32>
    %636 = vector.extract_strided_slice %629 {offsets = [48, 0], sizes = [8, 256], strides = [1, 1]} : vector<72x256xf32> to vector<8x256xf32>
    %637 = vector.extract_strided_slice %629 {offsets = [56, 0], sizes = [8, 256], strides = [1, 1]} : vector<72x256xf32> to vector<8x256xf32>
    %638 = vector.extract_strided_slice %629 {offsets = [64, 0], sizes = [8, 256], strides = [1, 1]} : vector<72x256xf32> to vector<8x256xf32>
    %639 = tpu.concatenate %630, %631, %632, %633, %634, %635, %636, %637, %638 in 1 : vector<8x256xf32>, vector<8x256xf32>, vector<8x256xf32>, vector<8x256xf32>, vector<8x256xf32>, vector<8x256xf32>, vector<8x256xf32>, vector<8x256xf32>, vector<8x256xf32> -> vector<8x2304xf32>
    %640 = arith.truncf %639 : vector<8x2304xf32> to vector<8x2304xbf16>
    %c0_251 = arith.constant 0 : index
    %c0_252 = arith.constant 0 : index
    %641 = vector.load %arg17[%c0_251, %c0_252] : memref<2304x256xbf16, #tpu.memory_space<vmem>>, vector<2304x256xbf16>
    %cst_253 = arith.constant dense<0.000000e+00> : vector<8x256xf32>
    %642 = tpu.matmul %640, %641, %cst_253 {dimension_numbers = #tpu.dot_dimension_numbers<[1], [0], [0], [1], [0, 0, 1, 1], [], []>} : vector<8x2304xbf16>, vector<2304x256xbf16>, vector<8x256xf32> -> vector<8x256xf32>
    %c0_254 = arith.constant 0 : index
    %c0_255 = arith.constant 0 : index
    %643 = vector.load %arg19[%c0_254, %c0_255] : memref<8x1xf32, #tpu.memory_space<vmem>>, vector<8x1xf32>
    %644 = vector.broadcast %643 : vector<8x1xf32> to vector<8x256xf32>
    %645 = arith.addf %642, %644 : vector<8x256xf32>
    %c0_256 = arith.constant 0 : index
    %c0_257 = arith.constant 0 : index
    %646 = vector.load %arg20[%c0_256, %c0_257] : memref<8x1xf32, #tpu.memory_space<vmem>>, vector<8x1xf32>
    %c0_258 = arith.constant 0 : index
    %c0_259 = arith.constant 0 : index
    %647 = vector.load %arg21[%c0_258, %c0_259] : memref<8x1xf32, #tpu.memory_space<vmem>>, vector<8x1xf32>
    %cst_260 = arith.constant dense<0.000000e+00> : vector<8xf32>
    %648 = vector.multi_reduction <add>, %645, %cst_260 [1] : vector<8x256xf32> to vector<8xf32>
    %649 = vector.shape_cast %648 : vector<8xf32> to vector<8x1xf32>
    %650 = arith.mulf %645, %645 : vector<8x256xf32>
    %cst_261 = arith.constant dense<0.000000e+00> : vector<8xf32>
    %651 = vector.multi_reduction <add>, %650, %cst_261 [1] : vector<8x256xf32> to vector<8xf32>
    %652 = vector.shape_cast %651 : vector<8xf32> to vector<8x1xf32>
    %cst_262 = arith.constant 0.000000e+00 : f32
    %653 = vector.broadcast %cst_262 : f32 to vector<8x1xf32>
    %cst_263 = arith.constant 0.000000e+00 : f32
    %654 = vector.broadcast %cst_263 : f32 to vector<8x1xf32>
    %c0_264 = arith.constant 0 : index
    %c0_265 = arith.constant 0 : index
    %c0_266 = arith.constant 0 : index
    %655 = vector.load %arg22[%c0_264, %c0_265, %c0_266] : memref<2x8x1xf32, #tpu.memory_space<vmem>>, vector<1x8x1xf32>
    %656 = vector.shape_cast %655 : vector<1x8x1xf32> to vector<8x1xf32>
    %657 = arith.mulf %649, %656 : vector<8x1xf32>
    %658 = vector.shape_cast %657 : vector<8x1xf32> to vector<1x8x1xf32>
    %cst_267 = arith.constant dense<0.000000e+00> : vector<1xf32>
    %659 = vector.multi_reduction <add>, %658, %cst_267 [1, 2] : vector<1x8x1xf32> to vector<1xf32>
    %660 = vector.shape_cast %659 : vector<1xf32> to vector<1x1x1xf32>
    %661 = vector.extract %660[0, 0, 0] : f32 from vector<1x1x1xf32>
    %cst_268 = arith.constant 9.765625E-4 : f32
    %662 = arith.mulf %661, %cst_268 : f32
    %663 = arith.mulf %652, %656 : vector<8x1xf32>
    %664 = vector.shape_cast %663 : vector<8x1xf32> to vector<1x8x1xf32>
    %cst_269 = arith.constant dense<0.000000e+00> : vector<1xf32>
    %665 = vector.multi_reduction <add>, %664, %cst_269 [1, 2] : vector<1x8x1xf32> to vector<1xf32>
    %666 = vector.shape_cast %665 : vector<1xf32> to vector<1x1x1xf32>
    %667 = vector.extract %666[0, 0, 0] : f32 from vector<1x1x1xf32>
    %cst_270 = arith.constant 9.765625E-4 : f32
    %668 = arith.mulf %667, %cst_270 : f32
    %669 = arith.mulf %662, %662 : f32
    %670 = arith.subf %668, %669 : f32
    %671 = vector.broadcast %662 : f32 to vector<8x1xf32>
    %672 = arith.mulf %656, %671 : vector<8x1xf32>
    %673 = arith.addf %653, %672 : vector<8x1xf32>
    %674 = vector.broadcast %670 : f32 to vector<8x1xf32>
    %675 = arith.mulf %656, %674 : vector<8x1xf32>
    %676 = arith.addf %654, %675 : vector<8x1xf32>
    %c1_271 = arith.constant 1 : index
    %c0_272 = arith.constant 0 : index
    %c0_273 = arith.constant 0 : index
    %677 = vector.load %arg22[%c1_271, %c0_272, %c0_273] : memref<2x8x1xf32, #tpu.memory_space<vmem>>, vector<1x8x1xf32>
    %678 = vector.shape_cast %677 : vector<1x8x1xf32> to vector<8x1xf32>
    %679 = arith.mulf %649, %678 : vector<8x1xf32>
    %680 = vector.shape_cast %679 : vector<8x1xf32> to vector<1x8x1xf32>
    %cst_274 = arith.constant dense<0.000000e+00> : vector<1xf32>
    %681 = vector.multi_reduction <add>, %680, %cst_274 [1, 2] : vector<1x8x1xf32> to vector<1xf32>
    %682 = vector.shape_cast %681 : vector<1xf32> to vector<1x1x1xf32>
    %683 = vector.extract %682[0, 0, 0] : f32 from vector<1x1x1xf32>
    %cst_275 = arith.constant 9.765625E-4 : f32
    %684 = arith.mulf %683, %cst_275 : f32
    %685 = arith.mulf %652, %678 : vector<8x1xf32>
    %686 = vector.shape_cast %685 : vector<8x1xf32> to vector<1x8x1xf32>
    %cst_276 = arith.constant dense<0.000000e+00> : vector<1xf32>
    %687 = vector.multi_reduction <add>, %686, %cst_276 [1, 2] : vector<1x8x1xf32> to vector<1xf32>
    %688 = vector.shape_cast %687 : vector<1xf32> to vector<1x1x1xf32>
    %689 = vector.extract %688[0, 0, 0] : f32 from vector<1x1x1xf32>
    %cst_277 = arith.constant 9.765625E-4 : f32
    %690 = arith.mulf %689, %cst_277 : f32
    %691 = arith.mulf %684, %684 : f32
    %692 = arith.subf %690, %691 : f32
    %693 = vector.broadcast %684 : f32 to vector<8x1xf32>
    %694 = arith.mulf %678, %693 : vector<8x1xf32>
    %695 = arith.addf %673, %694 : vector<8x1xf32>
    %696 = vector.broadcast %692 : f32 to vector<8x1xf32>
    %697 = arith.mulf %678, %696 : vector<8x1xf32>
    %698 = arith.addf %676, %697 : vector<8x1xf32>
    %cst_278 = arith.constant 9.99999974E-6 : f32
    %699 = vector.broadcast %cst_278 : f32 to vector<8x1xf32>
    %700 = arith.addf %698, %699 : vector<8x1xf32>
    %701 = math.rsqrt %700 : vector<8x1xf32>
    %702 = arith.mulf %701, %646 : vector<8x1xf32>
    %703 = vector.broadcast %695 : vector<8x1xf32> to vector<8x256xf32>
    %704 = arith.subf %645, %703 : vector<8x256xf32>
    %705 = vector.broadcast %702 : vector<8x1xf32> to vector<8x256xf32>
    %706 = arith.mulf %704, %705 : vector<8x256xf32>
    %707 = vector.broadcast %647 : vector<8x1xf32> to vector<8x256xf32>
    %708 = arith.addf %706, %707 : vector<8x256xf32>
    %cst_279 = arith.constant 0.000000e+00 : f32
    %709 = vector.broadcast %cst_279 : f32 to vector<8x256xf32>
    %710 = arith.cmpf oge, %708, %709 : vector<8x256xf32>
    %cst_280 = arith.constant 2.000000e-01 : f32
    %711 = vector.broadcast %cst_280 : f32 to vector<8x256xf32>
    %712 = arith.mulf %711, %708 : vector<8x256xf32>
    %713 = arith.select %710, %708, %712 : vector<8x256xi1>, vector<8x256xf32>
    %c0_281 = arith.constant 0 : index
    %c0_282 = arith.constant 0 : index
    %714 = vector.load %arg23[%c0_281, %c0_282] : memref<3x8xf32, #tpu.memory_space<vmem>>, vector<3x8xf32>
    %cst_283 = arith.constant dense<0.000000e+00> : vector<3x256xf32>
    %715 = tpu.matmul %714, %713, %cst_283 {dimension_numbers = #tpu.dot_dimension_numbers<[1], [0], [0], [1], [0, 0, 1, 1], [], []>} : vector<3x8xf32>, vector<8x256xf32>, vector<3x256xf32> -> vector<3x256xf32>
    %c0_284 = arith.constant 0 : index
    %c0_285 = arith.constant 0 : index
    %716 = vector.load %arg24[%c0_284, %c0_285] : memref<3x1xf32, #tpu.memory_space<vmem>>, vector<3x1xf32>
    %717 = vector.broadcast %716 : vector<3x1xf32> to vector<3x256xf32>
    %718 = arith.addf %715, %717 : vector<3x256xf32>
    %c1_286 = arith.constant 1 : index
    %c0_287 = arith.constant 0 : index
    %c0_288 = arith.constant 0 : index
    %719 = vector.load %arg25[%c1_286, %c0_287, %c0_288] : memref<2x3x256xf32, #tpu.memory_space<vmem>>, vector<1x3x256xf32>
    %720 = vector.shape_cast %719 : vector<1x3x256xf32> to vector<3x256xf32>
    %721 = vector.shape_cast %718 : vector<3x256xf32> to vector<1x3x256xf32>
    tpu.vector_store %arg25[%c1_286, %c0_287, %c0_288], %721 {strides = array<i32>} : memref<2x3x256xf32, #tpu.memory_space<vmem>>, vector<1x3x256xf32>,
    return
  }
}

</mosaic_0001>

<llo_original>
// kernel: cnn_decoder_forward.1
$region0: #{cnn_decoder_forward.1}
  #allocation0 [shape = 'u32[]', space=smem, size = 0x4, offset = 0x4, fixed_abs, tag = 'smem constant byte address 0x4 - core index']
  #allocation1 [shape = 'u32[144,128]{1,0:T(1,128)}', space=vmem, size = 0x12000, scoped, tag = 'internal scratch']
  %s0 = inlined_call_operand.vmem [shape: f32[2,8,16], index: 0, kind: input, shape index: {}]
  %s1 = inlined_call_operand.vmem [shape: f32[2,8,256], index: 1, kind: input, shape index: {}]
  %s2 = inlined_call_operand.hbm [shape: bf16[144,64], index: 2, kind: input, shape index: {}]
  %s3 = inlined_call_operand.vmem [shape: bf16[72,8], index: 3, kind: input, shape index: {}]
  %s4 = inlined_call_operand.vmem [shape: f32[8,1], index: 4, kind: input, shape index: {}]
  %s5 = inlined_call_operand.vmem [shape: f32[8,1], index: 5, kind: input, shape index: {}]
  %s6 = inlined_call_operand.vmem [shape: f32[8,1], index: 6, kind: input, shape index: {}]
  %s7 = inlined_call_operand.hbm [shape: bf16[576,64], index: 7, kind: input, shape index: {}]
  %s8 = inlined_call_operand.vmem [shape: bf16[72,8], index: 8, kind: input, shape index: {}]
  %s9 = inlined_call_operand.vmem [shape: f32[8,1], index: 9, kind: input, shape index: {}]
  %s10 = inlined_call_operand.vmem [shape: f32[8,1], index: 10, kind: input, shape index: {}]
  %s11 = inlined_call_operand.vmem [shape: f32[8,1], index: 11, kind: input, shape index: {}]
  %s12 = inlined_call_operand.hbm [shape: bf16[576,256], index: 12, kind: input, shape index: {}]
  %s13 = inlined_call_operand.vmem [shape: bf16[72,8], index: 13, kind: input, shape index: {}]
  %s14 = inlined_call_operand.vmem [shape: f32[8,1], index: 14, kind: input, shape index: {}]
  %s15 = inlined_call_operand.vmem [shape: f32[8,1], index: 15, kind: input, shape index: {}]
  %s16 = inlined_call_operand.vmem [shape: f32[8,1], index: 16, kind: input, shape index: {}]
  %s17 = inlined_call_operand.hbm [shape: bf16[2304,256], index: 17, kind: input, shape index: {}]
  %s18 = inlined_call_operand.vmem [shape: bf16[72,16], index: 18, kind: input, shape index: {}]
  %s19 = inlined_call_operand.vmem [shape: f32[8,1], index: 19, kind: input, shape index: {}]
  %s20 = inlined_call_operand.vmem [shape: f32[8,1], index: 20, kind: input, shape index: {}]
  %s21 = inlined_call_operand.vmem [shape: f32[8,1], index: 21, kind: input, shape index: {}]
  %s22 = inlined_call_operand.hbm [shape: f32[2,8,1], index: 22, kind: input, shape index: {}]
  %s23 = inlined_call_operand.hbm [shape: f32[3,8], index: 23, kind: input, shape index: {}]
  %s24 = inlined_call_operand.vmem [shape: f32[3,1], index: 24, kind: input, shape index: {}]
  %s25 = inlined_call_operand.vmem [shape: f32[2,3,256], index: 25, kind: output, shape index: {}]
  %s26 = sld [smem:[#allocation0]]
  $region134: #{cnn_decoder_forward.1} parent=0
    _
  %s28 = ssub.s32 1, %s26
  %s29 = scalar_select 0, %s28, %s26
  $region1: #{cnn_decoder_forward.1} parent=0
    #allocation2 [shape = 'u8[36864]{0}', space=vmem, size = 0x9000, scoped, tag = 'input window, operand 2, single buffered']
    #allocation3 [shape = 's32[1]{0}', space=sflag, size = 0x4, scoped, tag = 'scoped memory for cnn_decoder_forward.1']
    #allocation4 [shape = 'u8[147456]{0}', space=vmem, size = 0x24000, scoped, tag = 'input window, operand 7, single buffered']
    #allocation5 [shape = 's32[1]{0}', space=sflag, size = 0x4, scoped, tag = 'scoped memory for cnn_decoder_forward.1']
    #allocation6 [shape = 'u8[294912]{0}', space=vmem, size = 0x48000, scoped, tag = 'input window, operand 12, single buffered']
    #allocation7 [shape = 'u8[1179648]{0}', space=vmem, size = 0x120000, scoped, tag = 'input window, operand 17, single buffered']
    #allocation8 [shape = 's32[1]{0}', space=sflag, size = 0x4, scoped, tag = 'scoped memory for cnn_decoder_forward.1']
    #allocation9 [shape = 'u8[8192]{0}', space=vmem, size = 0x2000, scoped, tag = 'input window, operand 22, single buffered']
    #allocation10 [shape = 'u8[2048]{0}', space=vmem, size = 0x800, scoped, tag = 'input window, operand 23, single buffered']
    #allocation11 [shape = 's32[1]{0}', space=sflag, size = 0x4, scoped, tag = 'scoped memory for cnn_decoder_forward.1']
    %30 = vsyncpa [#allocation3], 0
    %31 = vsyncpa [#allocation5], 0
    %32 = vsyncpa [#allocation8], 0
    %33 = vsyncpa [#allocation11], 0
    // Predicated region
    $region2: #{cnn_decoder_forward.1} parent=1 // pred_check
      _
    $region3: #{cnn_decoder_forward.1} parent=1 // pred_check_branch
      %35 = sbr.rel (0) target = $region5
    $region4: #{cnn_decoder_forward.1} parent=1 // pred_region
      _
    $region5: #{cnn_decoder_forward.1} parent=1 // pred_fallthru
      _
    // Predicated region
    $region6: #{cnn_decoder_forward.1} parent=1 // pred_check
      _
    $region7: #{cnn_decoder_forward.1} parent=1 // pred_check_branch
      %37 = sbr.rel (0) target = $region9
    $region8: #{cnn_decoder_forward.1} parent=1 // pred_region
      _
    $region9: #{cnn_decoder_forward.1} parent=1 // pred_fallthru
      _
    // Predicated region
    $region10: #{cnn_decoder_forward.1} parent=1 // pred_check
      _
    $region11: #{cnn_decoder_forward.1} parent=1 // pred_check_branch
      %39 = sbr.rel (0) target = $region13
    $region12: #{cnn_decoder_forward.1} parent=1 // pred_region
      %s41 = ssub.s32 1152, 1152
      %42 = vsyncadd [#allocation3], %s41
      %s43 = sshll.u32 [#allocation2], 4
      %s44 = int_to_ptr.vmem [resolvable:$true] %s43
      %49 = dma.hbm_to_vmem [thread:$0]  %s2, 1152, %s44, [#allocation3], 64, 64, 4
    $region13: #{cnn_decoder_forward.1} parent=1 // pred_fallthru
      _
    // Predicated region
    $region14: #{cnn_decoder_forward.1} parent=1 // pred_check
      _
    $region15: #{cnn_decoder_forward.1} parent=1 // pred_check_branch
      %51 = sbr.rel (0) target = $region17
    $region16: #{cnn_decoder_forward.1} parent=1 // pred_region
      _
    $region17: #{cnn_decoder_forward.1} parent=1 // pred_fallthru
      _
    // Predicated region
    $region18: #{cnn_decoder_forward.1} parent=1 // pred_check
      _
    $region19: #{cnn_decoder_forward.1} parent=1 // pred_check_branch
      %53 = sbr.rel (0) target = $region21
    $region20: #{cnn_decoder_forward.1} parent=1 // pred_region
      _
    $region21: #{cnn_decoder_forward.1} parent=1 // pred_fallthru
      _
    // Predicated region
    $region22: #{cnn_decoder_forward.1} parent=1 // pred_check
      _
    $region23: #{cnn_decoder_forward.1} parent=1 // pred_check_branch
      %55 = sbr.rel (0) target = $region25
    $region24: #{cnn_decoder_forward.1} parent=1 // pred_region
      _
    $region25: #{cnn_decoder_forward.1} parent=1 // pred_fallthru
      _
    // Predicated region
    $region26: #{cnn_decoder_forward.1} parent=1 // pred_check
      _
    $region27: #{cnn_decoder_forward.1} parent=1 // pred_check_branch
      %57 = sbr.rel (0) target = $region29
    $region28: #{cnn_decoder_forward.1} parent=1 // pred_region
      _
    $region29: #{cnn_decoder_forward.1} parent=1 // pred_fallthru
      _
    // Predicated region
    $region30: #{cnn_decoder_forward.1} parent=1 // pred_check
      _
    $region31: #{cnn_decoder_forward.1} parent=1 // pred_check_branch
      %59 = sbr.rel (0) target = $region33
    $region32: #{cnn_decoder_forward.1} parent=1 // pred_region
      %s61 = ssub.s32 4608, 4608
      %62 = vsyncadd [#allocation5], %s61
      %s63 = sshll.u32 [#allocation4], 4
      %s64 = int_to_ptr.vmem [resolvable:$true] %s63
      %69 = dma.hbm_to_vmem [thread:$0]  %s7, 4608, %s64, [#allocation5], 64, 64, 4
    $region33: #{cnn_decoder_forward.1} parent=1 // pred_fallthru
      _
    // Predicated region
    $region34: #{cnn_decoder_forward.1} parent=1 // pred_check
      _
    $region35: #{cnn_decoder_forward.1} parent=1 // pred_check_branch
      %71 = sbr.rel (0) target = $region37
    $region36: #{cnn_decoder_forward.1} parent=1 // pred_region
      _
    $region37: #{cnn_decoder_forward.1} parent=1 // pred_fallthru
      _
    // Predicated region
    $region38: #{cnn_decoder_forward.1} parent=1 // pred_check
      _
    $region39: #{cnn_decoder_forward.1} parent=1 // pred_check_branch
      %73 = sbr.rel (0) target = $region41
    $region40: #{cnn_decoder_forward.1} parent=1 // pred_region
      _
    $region41: #{cnn_decoder_forward.1} parent=1 // pred_fallthru
      _
    // Predicated region
    $region42: #{cnn_decoder_forward.1} parent=1 // pred_check
      _
    $region43: #{cnn_decoder_forward.1} parent=1 // pred_check_branch
      %75 = sbr.rel (0) target = $region45
    $region44: #{cnn_decoder_forward.1} parent=1 // pred_region
      _
    $region45: #{cnn_decoder_forward.1} parent=1 // pred_fallthru
      _
    // Predicated region
    $region46: #{cnn_decoder_forward.1} parent=1 // pred_check
      _
    $region47: #{cnn_decoder_forward.1} parent=1 // pred_check_branch
      %77 = sbr.rel (0) target = $region49
    $region48: #{cnn_decoder_forward.1} parent=1 // pred_region
      _
    $region49: #{cnn_decoder_forward.1} parent=1 // pred_fallthru
      _
    // Predicated region
    $region50: #{cnn_decoder_forward.1} parent=1 // pred_check
      _
    $region51: #{cnn_decoder_forward.1} parent=1 // pred_check_branch
      %79 = sbr.rel (0) target = $region53
    $region52: #{cnn_decoder_forward.1} parent=1 // pred_region
      %s81 = ssub.s32 9216, 9216
      %82 = vsyncadd [#allocation5], %s81
      %s83 = sshll.u32 [#allocation6], 4
      %s84 = int_to_ptr.vmem [resolvable:$true] %s83
      %89 = dma.hbm_to_vmem [thread:$0]  %s12, 9216, %s84, [#allocation5], 128, 128, 8
    $region53: #{cnn_decoder_forward.1} parent=1 // pred_fallthru
      _
    // Predicated region
    $region54: #{cnn_decoder_forward.1} parent=1 // pred_check
      _
    $region55: #{cnn_decoder_forward.1} parent=1 // pred_check_branch
      %91 = sbr.rel (0) target = $region57
    $region56: #{cnn_decoder_forward.1} parent=1 // pred_region
      _
    $region57: #{cnn_decoder_forward.1} parent=1 // pred_fallthru
      _
    // Predicated region
    $region58: #{cnn_decoder_forward.1} parent=1 // pred_check
      _
    $region59: #{cnn_decoder_forward.1} parent=1 // pred_check_branch
      %93 = sbr.rel (0) target = $region61
    $region60: #{cnn_decoder_forward.1} parent=1 // pred_region
      _
    $region61: #{cnn_decoder_forward.1} parent=1 // pred_fallthru
      _
    // Predicated region
    $region62: #{cnn_decoder_forward.1} parent=1 // pred_check
      _
    $region63: #{cnn_decoder_forward.1} parent=1 // pred_check_branch
      %95 = sbr.rel (0) target = $region65
    $region64: #{cnn_decoder_forward.1} parent=1 // pred_region
      _
    $region65: #{cnn_decoder_forward.1} parent=1 // pred_fallthru
      _
    // Predicated region
    $region66: #{cnn_decoder_forward.1} parent=1 // pred_check
      _
    $region67: #{cnn_decoder_forward.1} parent=1 // pred_check_branch
      %97 = sbr.rel (0) target = $region69
    $region68: #{cnn_decoder_forward.1} parent=1 // pred_region
      _
    $region69: #{cnn_decoder_forward.1} parent=1 // pred_fallthru
      _
    // Predicated region
    $region70: #{cnn_decoder_forward.1} parent=1 // pred_check
      _
    $region71: #{cnn_decoder_forward.1} parent=1 // pred_check_branch
      %99 = sbr.rel (0) target = $region73
    $region72: #{cnn_decoder_forward.1} parent=1 // pred_region
      %s101 = ssub.s32 36864, 36864
      %102 = vsyncadd [#allocation8], %s101
      %s103 = sshll.u32 [#allocation7], 4
      %s104 = int_to_ptr.vmem [resolvable:$true] %s103
      %109 = dma.hbm_to_vmem [thread:$0]  %s17, 36864, %s104, [#allocation8], 128, 128, 8
    $region73: #{cnn_decoder_forward.1} parent=1 // pred_fallthru
      _
    // Predicated region
    $region74: #{cnn_decoder_forward.1} parent=1 // pred_check
      _
    $region75: #{cnn_decoder_forward.1} parent=1 // pred_check_branch
      %111 = sbr.rel (0) target = $region77
    $region76: #{cnn_decoder_forward.1} parent=1 // pred_region
      _
    $region77: #{cnn_decoder_forward.1} parent=1 // pred_fallthru
      _
    // Predicated region
    $region78: #{cnn_decoder_forward.1} parent=1 // pred_check
      _
    $region79: #{cnn_decoder_forward.1} parent=1 // pred_check_branch
      %113 = sbr.rel (0) target = $region81
    $region80: #{cnn_decoder_forward.1} parent=1 // pred_region
      _
    $region81: #{cnn_decoder_forward.1} parent=1 // pred_fallthru
      _
    // Predicated region
    $region82: #{cnn_decoder_forward.1} parent=1 // pred_check
      _
    $region83: #{cnn_decoder_forward.1} parent=1 // pred_check_branch
      %115 = sbr.rel (0) target = $region85
    $region84: #{cnn_decoder_forward.1} parent=1 // pred_region
      _
    $region85: #{cnn_decoder_forward.1} parent=1 // pred_fallthru
      _
    // Predicated region
    $region86: #{cnn_decoder_forward.1} parent=1 // pred_check
      _
    $region87: #{cnn_decoder_forward.1} parent=1 // pred_check_branch
      %117 = sbr.rel (0) target = $region89
    $region88: #{cnn_decoder_forward.1} parent=1 // pred_region
      _
    $region89: #{cnn_decoder_forward.1} parent=1 // pred_fallthru
      _
    // Predicated region
    $region90: #{cnn_decoder_forward.1} parent=1 // pred_check
      _
    $region91: #{cnn_decoder_forward.1} parent=1 // pred_check_branch
      %119 = sbr.rel (0) target = $region93
    $region92: #{cnn_decoder_forward.1} parent=1 // pred_region
      %s121 = ssub.s32 256, 256
      %122 = vsyncadd [#allocation8], %s121
      %s123 = sshll.u32 [#allocation9], 4
      %s124 = int_to_ptr.vmem [resolvable:$true] %s123
      %129 = dma.hbm_to_vmem [thread:$0]  %s22, 256, %s124, [#allocation8], 128, 128, 8
    $region93: #{cnn_decoder_forward.1} parent=1 // pred_fallthru
      _
    // Predicated region
    $region94: #{cnn_decoder_forward.1} parent=1 // pred_check
      _
    $region95: #{cnn_decoder_forward.1} parent=1 // pred_check_branch
      %131 = sbr.rel (0) target = $region97
    $region96: #{cnn_decoder_forward.1} parent=1 // pred_region
      %s133 = ssub.s32 64, 64
      %134 = vsyncadd [#allocation11], %s133
      %s136 = sshll.u32 [#allocation10], 4
      %s137 = int_to_ptr.vmem [resolvable:$true] %s136
      %139 = dma.hbm_to_vmem [thread:$0]  %s23, 64, %s137, [#allocation11]
    $region97: #{cnn_decoder_forward.1} parent=1 // pred_fallthru
      _
    // Predicated region
    $region98: #{cnn_decoder_forward.1} parent=1 // pred_check
      _
    $region99: #{cnn_decoder_forward.1} parent=1 // pred_check_branch
      %141 = sbr.rel (0) target = $region101
    $region100: #{cnn_decoder_forward.1} parent=1 // pred_region
      _
    $region101: #{cnn_decoder_forward.1} parent=1 // pred_fallthru
      _
    // Predicated region
    $region102: #{cnn_decoder_forward.1} parent=1 // pred_check
      _
    $region103: #{cnn_decoder_forward.1} parent=1 // pred_check_branch
      %143 = sbr.rel (0) target = $region105
    $region104: #{cnn_decoder_forward.1} parent=1 // pred_region
      %144 = dma.done [#allocation3], 1152
    $region105: #{cnn_decoder_forward.1} parent=1 // pred_fallthru
      _
    // Predicated region
    $region106: #{cnn_decoder_forward.1} parent=1 // pred_check
      _
    $region107: #{cnn_decoder_forward.1} parent=1 // pred_check_branch
      %146 = sbr.rel (0) target = $region109
    $region108: #{cnn_decoder_forward.1} parent=1 // pred_region
      %147 = dma.done [#allocation5], 4608
    $region109: #{cnn_decoder_forward.1} parent=1 // pred_fallthru
      _
    // Predicated region
    $region110: #{cnn_decoder_forward.1} parent=1 // pred_check
      _
    $region111: #{cnn_decoder_forward.1} parent=1 // pred_check_branch
      %149 = sbr.rel (0) target = $region113
    $region112: #{cnn_decoder_forward.1} parent=1 // pred_region
      %150 = dma.done [#allocation5], 9216
    $region113: #{cnn_decoder_forward.1} parent=1 // pred_fallthru
      _
    // Predicated region
    $region114: #{cnn_decoder_forward.1} parent=1 // pred_check
      _
    $region115: #{cnn_decoder_forward.1} parent=1 // pred_check_branch
      %152 = sbr.rel (0) target = $region117
    $region116: #{cnn_decoder_forward.1} parent=1 // pred_region
      %153 = dma.done [#allocation8], 36864
    $region117: #{cnn_decoder_forward.1} parent=1 // pred_fallthru
      _
    // Predicated region
    $region118: #{cnn_decoder_forward.1} parent=1 // pred_check
      _
    $region119: #{cnn_decoder_forward.1} parent=1 // pred_check_branch
      %155 = sbr.rel (0) target = $region121
    $region120: #{cnn_decoder_forward.1} parent=1 // pred_region
      %156 = dma.done [#allocation8], 256
    $region121: #{cnn_decoder_forward.1} parent=1 // pred_fallthru
      _
    // Predicated region
    $region122: #{cnn_decoder_forward.1} parent=1 // pred_check
      _
    $region123: #{cnn_decoder_forward.1} parent=1 // pred_check_branch
      %158 = sbr.rel (0) target = $region125
    $region124: #{cnn_decoder_forward.1} parent=1 // pred_region
      %159 = dma.done [#allocation11], 64
    $region125: #{cnn_decoder_forward.1} parent=1 // pred_fallthru
      _
    %v161 = vld [vmem:[%s0] sm:$0xff]
    %v162 = vld [vmem:[%s1] sm:$0xff]
    %v163 = vld [vmem:[%s1 + $0x8] sm:$0xff]
    %v164 = vld [vmem:[%s3] sm:$0xf]
    %v165 = vld [vmem:[%s3 + $0x4] sm:$0xf]
    %v166 = vld [vmem:[%s3 + $0x8] sm:$0xf]
    %v167 = vld [vmem:[%s3 + $0xc] sm:$0xf]
    %v168 = vld [vmem:[%s3 + $0x10] sm:$0xf]
    %v169 = vld [vmem:[%s3 + $0x14] sm:$0xf]
    %v170 = vld [vmem:[%s3 + $0x18] sm:$0xf]
    %v171 = vld [vmem:[%s3 + $0x1c] sm:$0xf]
    %v172 = vld [vmem:[%s3 + $0x20] sm:$0xf]
    %v173 = vpack.c.bf16 %v161, %v161
    %v183 = vunpack.c.l.b16 %v164
    %v184 = vunpack.c.l.b16 %v165
    %v185 = vunpack.c.l.b16 %v166
    %v186 = vunpack.c.l.b16 %v167
    %v187 = vunpack.c.l.b16 %v168
    %v188 = vunpack.c.l.b16 %v169
    %v189 = vunpack.c.l.b16 %v170
    %v190 = vunpack.c.l.b16 %v171
    %v191 = vunpack.c.l.b16 %v172
    %v192 = vpack.c.b16 %v184, %v183
    %v193 = vpack.c.b16 %v186, %v185
    %v194 = vpack.c.b16 %v188, %v187
    %v195 = vpack.c.b16 %v190, %v189
    %v196 = vpack.c.b16 %v191, %v191
    %vm197 = vcmask 64512
    %v199 = vsel %vm197, %v192, 0
    %v202 = vsel %vm197, %v193, 0
    %v205 = vsel %vm197, %v194, 0
    %v208 = vsel %vm197, %v195, 0
    %v211 = vsel %vm197, %v196, 0
    %vm213 = vcmask 1043456
    %v215 = vsel %vm213, %v173, 0
    %217 = vmatprep.subr.bf16.mxu0 0
    %218 = vmatpush1.bf16.msra.mxu0 0
    %219 = vmatprep.subr.bf16.mxu0 0
    %220 = vmatpush1.bf16.msra.mxu0 0
    %221 = vmatprep.subr.bf16.mxu0 0
    %222 = vmatpush1.bf16.msra.mxu0 0
    %223 = vmatprep.subr.bf16.mxu0 0
    %224 = vmatpush1.bf16.msra.mxu0 0
    %225 = vmatprep.subr.bf16.mxu0 0
    %226 = vmatpush1.bf16.msra.mxu0 0
    %227 = vmatprep.subr.bf16.mxu0 0
    %228 = vmatpush1.bf16.msra.mxu0 0
    %229 = vmatprep.subr.bf16.mxu0 0
    %230 = vmatpush1.bf16.msra.mxu0 0
    %231 = vmatprep.subr.bf16.mxu0 0
    %232 = vmatpush1.bf16.msra.mxu0 %v215
    %233 = vmatprep.subr.bf16.mxu0 0
    %234 = vmatpush2.bf16.msra.mxu0 0
    %235 = vmatprep.subr.bf16.mxu0 0
    %236 = vmatpush2.bf16.msra.mxu0 0
    %237 = vmatprep.subr.bf16.mxu0 0
    %238 = vmatpush2.bf16.msra.mxu0 0
    %239 = vmatprep.subr.bf16.mxu0 0
    %240 = vmatpush2.bf16.msra.mxu0 0
    %241 = vmatprep.subr.bf16.mxu0 0
    %242 = vmatpush2.bf16.msra.mxu0 0
    %243 = vmatprep.subr.bf16.mxu0 0
    %244 = vmatpush2.bf16.msra.mxu0 0
    %245 = vmatprep.subr.bf16.mxu0 0
    %246 = vmatpush2.bf16.msra.mxu0 0
    %247 = vmatprep.subr.bf16.mxu0 0
    %248 = vmatpush2.bf16.msra.mxu0 0
    %249 = vmatprep.mubr.bf16.mxu0 0
    %250 = vmatmul.mubr.bf16.gmra.mxu0 %v199
    %v251 = vpop.f32.mrf.mxu0
    %v252 = vadd.f32 0.0, %v251
    %v253 = vpop.f32.mrf.mxu0
    %v254 = vpop.f32.mrf.mxu0
    %v255 = vadd.f32 0.0, %v254
    %v256 = vpop.f32.mrf.mxu0
    %257 = vmatprep.mubr.bf16.mxu0 0
    %258 = vmatmul.mubr.bf16.gmra.mxu0 %v202
    %v259 = vpop.f32.mrf.mxu0
    %v260 = vadd.f32 0.0, %v259
    %v261 = vpop.f32.mrf.mxu0
    %v262 = vpop.f32.mrf.mxu0
    %v263 = vadd.f32 0.0, %v262
    %v264 = vpop.f32.mrf.mxu0
    %265 = vmatprep.mubr.bf16.mxu0 0
    %266 = vmatmul.mubr.bf16.gmra.mxu0 %v205
    %v267 = vpop.f32.mrf.mxu0
    %v268 = vadd.f32 0.0, %v267
    %v269 = vpop.f32.mrf.mxu0
    %v270 = vpop.f32.mrf.mxu0
    %v271 = vadd.f32 0.0, %v270
    %v272 = vpop.f32.mrf.mxu0
    %273 = vmatprep.mubr.bf16.mxu0 0
    %274 = vmatmul.mubr.bf16.gmra.mxu0 %v208
    %v275 = vpop.f32.mrf.mxu0
    %v276 = vadd.f32 0.0, %v275
    %v277 = vpop.f32.mrf.mxu0
    %v278 = vpop.f32.mrf.mxu0
    %v279 = vadd.f32 0.0, %v278
    %v280 = vpop.f32.mrf.mxu0
    %281 = vmatprep.mubr.bf16.mxu0 0
    %282 = vmatmul.mubr.bf16.gmra.mxu0 %v211
    %v283 = vpop.f32.mrf.mxu0
    %v284 = vadd.f32 0.0, %v283
    %v285 = vpop.f32.mrf.mxu0
    %v286 = vpop.f32.mrf.mxu0
    %v287 = vpop.f32.mrf.mxu0
    %288 = vdwg.mxu0
    %290 = vrot.lane.b32.xlu0 %v255, 16
    %v291 = vpop.permute.xlu0 %290
    %294 = vrot.lane.b32.xlu0 %v260, 32
    %v295 = vpop.permute.xlu0 %294
    %298 = vrot.lane.b32.xlu0 %v263, 48
    %v299 = vpop.permute.xlu0 %298
    %302 = vrot.lane.b32.xlu0 %v268, 64
    %v303 = vpop.permute.xlu0 %302
    %306 = vrot.lane.b32.xlu0 %v271, 80
    %v307 = vpop.permute.xlu0 %306
    %310 = vrot.lane.b32.xlu0 %v276, 96
    %v311 = vpop.permute.xlu0 %310
    %314 = vrot.lane.b32.xlu0 %v279, 112
    %v315 = vpop.permute.xlu0 %314
    %vm317 = vcmask 130048
    %v318 = vsel %vm317, %v252, %v291
    %vm319 = vcmask 261120
    %v320 = vsel %vm319, %v318, %v295
    %vm321 = vcmask 392192
    %v322 = vsel %vm321, %v320, %v299
    %vm323 = vcmask 523264
    %v324 = vsel %vm323, %v322, %v303
    %vm325 = vcmask 654336
    %v326 = vsel %vm325, %v324, %v307
    %vm327 = vcmask 785408
    %v328 = vsel %vm327, %v326, %v311
    %vm329 = vcmask 916480
    %v330 = vsel %vm329, %v328, %v315
    %v331 = vpack.c.bf16 %v330, %v330
    %v332 = vpack.c.bf16 %v284, %v284
    %v333 = vld [vmem:[#allocation2] sm:$0xf]
    %v334 = vld [vmem:[#allocation2 + $0x4] sm:$0xf]
    %v335 = vld [vmem:[#allocation2 + $0x8] sm:$0xf]
    %v336 = vld [vmem:[#allocation2 + $0xc] sm:$0xf]
    %v337 = vld [vmem:[#allocation2 + $0x10] sm:$0xf]
    %v338 = vld [vmem:[#allocation2 + $0x14] sm:$0xf]
    %v339 = vld [vmem:[#allocation2 + $0x18] sm:$0xf]
    %v340 = vld [vmem:[#allocation2 + $0x1c] sm:$0xf]
    %v341 = vld [vmem:[#allocation2 + $0x20] sm:$0xf]
    %v342 = vld [vmem:[#allocation2 + $0x24] sm:$0xf]
    %v343 = vld [vmem:[#allocation2 + $0x28] sm:$0xf]
    %v344 = vld [vmem:[#allocation2 + $0x2c] sm:$0xf]
    %v345 = vld [vmem:[#allocation2 + $0x30] sm:$0xf]
    %v346 = vld [vmem:[#allocation2 + $0x34] sm:$0xf]
    %v347 = vld [vmem:[#allocation2 + $0x38] sm:$0xf]
    %v348 = vld [vmem:[#allocation2 + $0x3c] sm:$0xf]
    %v349 = vld [vmem:[#allocation2 + $0x40] sm:$0xf]
    %v350 = vld [vmem:[#allocation2 + $0x44] sm:$0xf]
    %v351 = vld [vmem:[%s4] sm:$0xff]
    %353 = vset.pattern.permute.xlu0 0
    %354 = vperm.xlu0 %353, %v351
    %v355 = vpop.permute.xlu0 %354
    %v375 = vunpack.c.l.b16 %v333
    %v376 = vunpack.c.l.b16 %v334
    %v377 = vunpack.c.l.b16 %v335
    %v378 = vunpack.c.l.b16 %v336
    %v379 = vunpack.c.l.b16 %v337
    %v380 = vunpack.c.l.b16 %v338
    %v381 = vunpack.c.l.b16 %v339
    %v382 = vunpack.c.l.b16 %v340
    %v383 = vunpack.c.l.b16 %v341
    %v384 = vunpack.c.l.b16 %v342
    %v385 = vunpack.c.l.b16 %v343
    %v386 = vunpack.c.l.b16 %v344
    %v387 = vunpack.c.l.b16 %v345
    %v388 = vunpack.c.l.b16 %v346
    %v389 = vunpack.c.l.b16 %v347
    %v390 = vunpack.c.l.b16 %v348
    %v391 = vunpack.c.l.b16 %v349
    %v392 = vunpack.c.l.b16 %v350
    %v393 = vpack.c.b16 %v376, %v375
    %v394 = vpack.c.b16 %v378, %v377
    %v395 = vpack.c.b16 %v380, %v379
    %v396 = vpack.c.b16 %v382, %v381
    %v397 = vpack.c.b16 %v384, %v383
    %v398 = vpack.c.b16 %v386, %v385
    %v399 = vpack.c.b16 %v388, %v387
    %v400 = vpack.c.b16 %v390, %v389
    %v401 = vpack.c.b16 %v392, %v391
    %v412 = vsel %vm317, %v332, 0
    %414 = vmatprep.subr.bf16.mxu0 0
    %415 = vmatpush1.bf16.msra.mxu0 %v400
    %416 = vmatprep.subr.bf16.mxu0 0
    %417 = vmatpush1.bf16.msra.mxu0 %v399
    %418 = vmatprep.subr.bf16.mxu0 0
    %419 = vmatpush1.bf16.msra.mxu0 %v398
    %420 = vmatprep.subr.bf16.mxu0 0
    %421 = vmatpush1.bf16.msra.mxu0 %v397
    %422 = vmatprep.subr.bf16.mxu0 0
    %423 = vmatpush1.bf16.msra.mxu0 %v396
    %424 = vmatprep.subr.bf16.mxu0 0
    %425 = vmatpush1.bf16.msra.mxu0 %v395
    %426 = vmatprep.subr.bf16.mxu0 0
    %427 = vmatpush1.bf16.msra.mxu0 %v394
    %428 = vmatprep.subr.bf16.mxu0 0
    %429 = vmatpush1.bf16.msra.mxu0 %v393
    %430 = vmatprep.subr.bf16.mxu0 0
    %431 = vmatpush2.bf16.msra.mxu0 0
    %432 = vmatprep.subr.bf16.mxu0 0
    %433 = vmatpush2.bf16.msra.mxu0 0
    %434 = vmatprep.subr.bf16.mxu0 0
    %435 = vmatpush2.bf16.msra.mxu0 0
    %436 = vmatprep.subr.bf16.mxu0 0
    %437 = vmatpush2.bf16.msra.mxu0 0
    %438 = vmatprep.subr.bf16.mxu0 0
    %439 = vmatpush2.bf16.msra.mxu0 0
    %440 = vmatprep.subr.bf16.mxu0 0
    %441 = vmatpush2.bf16.msra.mxu0 0
    %442 = vmatprep.subr.bf16.mxu0 0
    %443 = vmatpush2.bf16.msra.mxu0 0
    %444 = vmatprep.subr.bf16.mxu0 0
    %445 = vmatpush2.bf16.msra.mxu0 %v401
    %446 = vmatprep.mubr.bf16.mxu0 %v412
    %447 = vmatmul.mubr.bf16.gmra.mxu0 %v331
    %v448 = vpop.f32.mrf.mxu0
    %v449 = vadd.f32 %v355, %v448
    %v450 = vpop.f32.mrf.mxu0
    %v451 = vpop.f32.mrf.mxu0
    %v452 = vpop.f32.mrf.mxu0
    %453 = vdwg.mxu0
    %v454 = vld [vmem:[%s5] sm:$0xff]
    %v455 = vld [vmem:[%s6] sm:$0xff]
    %v456 = vsel %vm323, %v449, 0.0
    %457 = vadd.xlane.f32.xlu0 %v456
    %v458 = vpop.xlane.xlu0 %457
    %v459 = vmul.f32 %v449, %v449
    %v460 = vsel %vm323, %v459, 0.0
    %461 = vadd.xlane.f32.xlu0 %v460
    %v462 = vpop.xlane.xlu0 %461
    %v463 = vld [vmem:[#allocation9] sm:$0xff]
    %v464 = vmul.f32 %v458, %v463
    %vm465 = vcmask 7168
    %v466 = vsel %vm465, %v464, 0.0
    %467 = vadd.xlane.f32.xlu0 %v466
    %v468 = vpop.xlane.xlu0 %467
    %v469 = vrot.slane %v468, 4
    %v470 = vadd.f32 %v468, %v469
    %v471 = vrot.slane %v470, 2
    %v472 = vadd.f32 %v470, %v471
    %v473 = vrot.slane %v472, 1
    %v474 = vadd.f32 %v472, %v473
    %s475 = vtos %v474
    %s476 = smul.f32 %s475, 0.00390625
    %v477 = vmul.f32 %v462, %v463
    %v478 = vsel %vm465, %v477, 0.0
    %479 = vadd.xlane.f32.xlu0 %v478
    %v480 = vpop.xlane.xlu0 %479
    %v481 = vrot.slane %v480, 4
    %v482 = vadd.f32 %v480, %v481
    %v483 = vrot.slane %v482, 2
    %v484 = vadd.f32 %v482, %v483
    %v485 = vrot.slane %v484, 1
    %v486 = vadd.f32 %v484, %v485
    %s487 = vtos %v486
    %s488 = smul.f32 %s487, 0.00390625
    %s489 = smul.f32 %s476, %s476
    %s490 = ssub.f32 %s488, %s489
    %v491 = vstv %s476
    %v492 = vmul.f32 %v463, %v491
    %v493 = vadd.f32 %v492, 0.0
    %v494 = vstv %s490
    %v495 = vmul.f32 %v463, %v494
    %v496 = vadd.f32 %v495, 0.0
    %s497 = scalar_lea.vmem [#allocation9], 8
    %v498 = vld [vmem:[%s497] sm:$0xff]
    %v499 = vmul.f32 %v458, %v498
    %v500 = vsel %vm465, %v499, 0.0
    %501 = vadd.xlane.f32.xlu0 %v500
    %v502 = vpop.xlane.xlu0 %501
    %v503 = vrot.slane %v502, 4
    %v504 = vadd.f32 %v502, %v503
    %v505 = vrot.slane %v504, 2
    %v506 = vadd.f32 %v504, %v505
    %v507 = vrot.slane %v506, 1
    %v508 = vadd.f32 %v506, %v507
    %s509 = vtos %v508
    %s510 = smul.f32 %s509, 0.00390625
    %v511 = vmul.f32 %v462, %v498
    %v512 = vsel %vm465, %v511, 0.0
    %513 = vadd.xlane.f32.xlu0 %v512
    %v514 = vpop.xlane.xlu0 %513
    %v515 = vrot.slane %v514, 4
    %v516 = vadd.f32 %v514, %v515
    %v517 = vrot.slane %v516, 2
    %v518 = vadd.f32 %v516, %v517
    %v519 = vrot.slane %v518, 1
    %v520 = vadd.f32 %v518, %v519
    %s521 = vtos %v520
    %s522 = smul.f32 %s521, 0.00390625
    %s523 = smul.f32 %s510, %s510
    %s524 = ssub.f32 %s522, %s523
    %v525 = vstv %s510
    %v526 = vmul.f32 %v498, %v525
    %v527 = vadd.f32 %v493, %v526
    %v528 = vstv %s524
    %v529 = vmul.f32 %v498, %v528
    %v530 = vadd.f32 %v496, %v529
    %v531 = vadd.f32 %v530, 1e-05
    %v532 = vrsqrt.pop %v531
    %v533 = vmul.f32 %v532, %v454
    %535 = vset.pattern.permute.xlu0 0
    %536 = vperm.xlu0 %535, %v527
    %v537 = vpop.permute.xlu0 %536
    %v539 = vsub.f32 %v449, %v537
    %541 = vset.pattern.permute.xlu0 0
    %542 = vperm.xlu0 %541, %v533
    %v543 = vpop.permute.xlu0 %542
    %v545 = vmul.f32 %v539, %v543
    %547 = vset.pattern.permute.xlu0 0
    %548 = vperm.xlu0 %547, %v455
    %v549 = vpop.permute.xlu0 %548
    %v551 = vadd.f32 %v545, %v549
    %vm552 = vcmp.ge.f32.partialorder %v551, 0.0
    %v553 = vmul.f32 %v551, 0.2
    %v554 = vsel %vm552, %v551, %v553
    %v555 = vld [vmem:[%s8] sm:$0xf]
    %v556 = vld [vmem:[%s8 + $0x4] sm:$0xf]
    %v557 = vld [vmem:[%s8 + $0x8] sm:$0xf]
    %v558 = vld [vmem:[%s8 + $0xc] sm:$0xf]
    %v559 = vld [vmem:[%s8 + $0x10] sm:$0xf]
    %v560 = vld [vmem:[%s8 + $0x14] sm:$0xf]
    %v561 = vld [vmem:[%s8 + $0x18] sm:$0xf]
    %v562 = vld [vmem:[%s8 + $0x1c] sm:$0xf]
    %v563 = vld [vmem:[%s8 + $0x20] sm:$0xf]
    %v564 = vpack.c.bf16 %v554, %v554
    %v574 = vunpack.c.l.b16 %v555
    %v575 = vunpack.c.l.b16 %v556
    %v576 = vunpack.c.l.b16 %v557
    %v577 = vunpack.c.l.b16 %v558
    %v578 = vunpack.c.l.b16 %v559
    %v579 = vunpack.c.l.b16 %v560
    %v580 = vunpack.c.l.b16 %v561
    %v581 = vunpack.c.l.b16 %v562
    %v582 = vunpack.c.l.b16 %v563
    %v583 = vpack.c.b16 %v575, %v574
    %v584 = vpack.c.b16 %v577, %v576
    %v585 = vpack.c.b16 %v579, %v578
    %v586 = vpack.c.b16 %v581, %v580
    %v587 = vpack.c.b16 %v582, %v582
    %v589 = vsel %vm197, %v583, 0
    %v592 = vsel %vm197, %v584, 0
    %v595 = vsel %vm197, %v585, 0
    %v598 = vsel %vm197, %v586, 0
    %v601 = vsel %vm197, %v587, 0
    %v604 = vsel %vm213, %v564, 0
    %606 = vmatprep.subr.bf16.mxu0 0
    %607 = vmatpush1.bf16.msra.mxu0 0
    %608 = vmatprep.subr.bf16.mxu0 0
    %609 = vmatpush1.bf16.msra.mxu0 0
    %610 = vmatprep.subr.bf16.mxu0 0
    %611 = vmatpush1.bf16.msra.mxu0 0
    %612 = vmatprep.subr.bf16.mxu0 0
    %613 = vmatpush1.bf16.msra.mxu0 0
    %614 = vmatprep.subr.bf16.mxu0 0
    %615 = vmatpush1.bf16.msra.mxu0 0
    %616 = vmatprep.subr.bf16.mxu0 0
    %617 = vmatpush1.bf16.msra.mxu0 0
    %618 = vmatprep.subr.bf16.mxu0 0
    %619 = vmatpush1.bf16.msra.mxu0 0
    %620 = vmatprep.subr.bf16.mxu0 0
    %621 = vmatpush1.bf16.msra.mxu0 %v604
    %622 = vmatprep.subr.bf16.mxu0 0
    %623 = vmatpush2.bf16.msra.mxu0 0
    %624 = vmatprep.subr.bf16.mxu0 0
    %625 = vmatpush2.bf16.msra.mxu0 0
    %626 = vmatprep.subr.bf16.mxu0 0
    %627 = vmatpush2.bf16.msra.mxu0 0
    %628 = vmatprep.subr.bf16.mxu0 0
    %629 = vmatpush2.bf16.msra.mxu0 0
    %630 = vmatprep.subr.bf16.mxu0 0
    %631 = vmatpush2.bf16.msra.mxu0 0
    %632 = vmatprep.subr.bf16.mxu0 0
    %633 = vmatpush2.bf16.msra.mxu0 0
    %634 = vmatprep.subr.bf16.mxu0 0
    %635 = vmatpush2.bf16.msra.mxu0 0
    %636 = vmatprep.subr.bf16.mxu0 0
    %637 = vmatpush2.bf16.msra.mxu0 0
    %638 = vmatprep.mubr.bf16.mxu0 0
    %639 = vmatmul.mubr.bf16.gmra.mxu0 %v589
    %v640 = vpop.f32.mrf.mxu0
    %v641 = vadd.f32 0.0, %v640
    %v642 = vpop.f32.mrf.mxu0
    %v643 = vpop.f32.mrf.mxu0
    %v644 = vadd.f32 0.0, %v643
    %v645 = vpop.f32.mrf.mxu0
    %646 = vmatprep.mubr.bf16.mxu0 0
    %647 = vmatmul.mubr.bf16.gmra.mxu0 %v592
    %v648 = vpop.f32.mrf.mxu0
    %v649 = vadd.f32 0.0, %v648
    %v650 = vpop.f32.mrf.mxu0
    %v651 = vpop.f32.mrf.mxu0
    %v652 = vadd.f32 0.0, %v651
    %v653 = vpop.f32.mrf.mxu0
    %654 = vmatprep.mubr.bf16.mxu0 0
    %655 = vmatmul.mubr.bf16.gmra.mxu0 %v595
    %v656 = vpop.f32.mrf.mxu0
    %v657 = vadd.f32 0.0, %v656
    %v658 = vpop.f32.mrf.mxu0
    %v659 = vpop.f32.mrf.mxu0
    %v660 = vadd.f32 0.0, %v659
    %v661 = vpop.f32.mrf.mxu0
    %662 = vmatprep.mubr.bf16.mxu0 0
    %663 = vmatmul.mubr.bf16.gmra.mxu0 %v598
    %v664 = vpop.f32.mrf.mxu0
    %v665 = vadd.f32 0.0, %v664
    %v666 = vpop.f32.mrf.mxu0
    %v667 = vpop.f32.mrf.mxu0
    %v668 = vadd.f32 0.0, %v667
    %v669 = vpop.f32.mrf.mxu0
    %670 = vmatprep.mubr.bf16.mxu0 0
    %671 = vmatmul.mubr.bf16.gmra.mxu0 %v601
    %v672 = vpop.f32.mrf.mxu0
    %v673 = vadd.f32 0.0, %v672
    %v674 = vpop.f32.mrf.mxu0
    %v675 = vpop.f32.mrf.mxu0
    %v676 = vpop.f32.mrf.mxu0
    %677 = vdwg.mxu0
    %679 = vrot.lane.b32.xlu0 %v644, 64
    %v680 = vpop.permute.xlu0 %679
    %683 = vrot.lane.b32.xlu0 %v652, 64
    %v684 = vpop.permute.xlu0 %683
    %687 = vrot.lane.b32.xlu0 %v660, 64
    %v688 = vpop.permute.xlu0 %687
    %691 = vrot.lane.b32.xlu0 %v668, 64
    %v692 = vpop.permute.xlu0 %691
    %v694 = vsel %vm323, %v641, %v680
    %v695 = vsel %vm323, %v649, %v684
    %v696 = vsel %vm323, %v657, %v688
    %v697 = vsel %vm323, %v665, %v692
    %v698 = vpack.c.bf16 %v694, %v694
    %v699 = vpack.c.bf16 %v695, %v695
    %v700 = vpack.c.bf16 %v696, %v696
    %v701 = vpack.c.bf16 %v697, %v697
    %v702 = vpack.c.bf16 %v673, %v673
    %v703 = vld [vmem:[#allocation4] sm:$0xf]
    %v704 = vld [vmem:[#allocation4 + $0x4] sm:$0xf]
    %v705 = vld [vmem:[#allocation4 + $0x8] sm:$0xf]
    %v706 = vld [vmem:[#allocation4 + $0xc] sm:$0xf]
    %v707 = vld [vmem:[#allocation4 + $0x10] sm:$0xf]
    %v708 = vld [vmem:[#allocation4 + $0x14] sm:$0xf]
    %v709 = vld [vmem:[#allocation4 + $0x18] sm:$0xf]
    %v710 = vld [vmem:[#allocation4 + $0x1c] sm:$0xf]
    %v711 = vld [vmem:[#allocation4 + $0x20] sm:$0xf]
    %v712 = vld [vmem:[#allocation4 + $0x24] sm:$0xf]
    %v713 = vld [vmem:[#allocation4 + $0x28] sm:$0xf]
    %v714 = vld [vmem:[#allocation4 + $0x2c] sm:$0xf]
    %v715 = vld [vmem:[#allocation4 + $0x30] sm:$0xf]
    %v716 = vld [vmem:[#allocation4 + $0x34] sm:$0xf]
    %v717 = vld [vmem:[#allocation4 + $0x38] sm:$0xf]
    %v718 = vld [vmem:[#allocation4 + $0x3c] sm:$0xf]
    %v719 = vld [vmem:[#allocation4 + $0x40] sm:$0xf]
    %v720 = vld [vmem:[#allocation4 + $0x44] sm:$0xf]
    %v721 = vld [vmem:[#allocation4 + $0x48] sm:$0xf]
    %v722 = vld [vmem:[#allocation4 + $0x4c] sm:$0xf]
    %v723 = vld [vmem:[#allocation4 + $0x50] sm:$0xf]
    %v724 = vld [vmem:[#allocation4 + $0x54] sm:$0xf]
    %v725 = vld [vmem:[#allocation4 + $0x58] sm:$0xf]
    %v726 = vld [vmem:[#allocation4 + $0x5c] sm:$0xf]
    %v727 = vld [vmem:[#allocation4 + $0x60] sm:$0xf]
    %v728 = vld [vmem:[#allocation4 + $0x64] sm:$0xf]
    %v729 = vld [vmem:[#allocation4 + $0x68] sm:$0xf]
    %v730 = vld [vmem:[#allocation4 + $0x6c] sm:$0xf]
    %v731 = vld [vmem:[#allocation4 + $0x70] sm:$0xf]
    %v732 = vld [vmem:[#allocation4 + $0x74] sm:$0xf]
    %v733 = vld [vmem:[#allocation4 + $0x78] sm:$0xf]
    %v734 = vld [vmem:[#allocation4 + $0x7c] sm:$0xf]
    %v735 = vld [vmem:[#allocation4 + $0x80] sm:$0xf]
    %v736 = vld [vmem:[#allocation4 + $0x84] sm:$0xf]
    %v737 = vld [vmem:[#allocation4 + $0x88] sm:$0xf]
    %v738 = vld [vmem:[#allocation4 + $0x8c] sm:$0xf]
    %v739 = vld [vmem:[#allocation4 + $0x90] sm:$0xf]
    %v740 = vld [vmem:[#allocation4 + $0x94] sm:$0xf]
    %v741 = vld [vmem:[#allocation4 + $0x98] sm:$0xf]
    %v742 = vld [vmem:[#allocation4 + $0x9c] sm:$0xf]
    %v743 = vld [vmem:[#allocation4 + $0xa0] sm:$0xf]
    %v744 = vld [vmem:[#allocation4 + $0xa4] sm:$0xf]
    %v745 = vld [vmem:[#allocation4 + $0xa8] sm:$0xf]
    %v746 = vld [vmem:[#allocation4 + $0xac] sm:$0xf]
    %v747 = vld [vmem:[#allocation4 + $0xb0] sm:$0xf]
    %v748 = vld [vmem:[#allocation4 + $0xb4] sm:$0xf]
    %v749 = vld [vmem:[#allocation4 + $0xb8] sm:$0xf]
    %v750 = vld [vmem:[#allocation4 + $0xbc] sm:$0xf]
    %v751 = vld [vmem:[#allocation4 + $0xc0] sm:$0xf]
    %v752 = vld [vmem:[#allocation4 + $0xc4] sm:$0xf]
    %v753 = vld [vmem:[#allocation4 + $0xc8] sm:$0xf]
    %v754 = vld [vmem:[#allocation4 + $0xcc] sm:$0xf]
    %v755 = vld [vmem:[#allocation4 + $0xd0] sm:$0xf]
    %v756 = vld [vmem:[#allocation4 + $0xd4] sm:$0xf]
    %v757 = vld [vmem:[#allocation4 + $0xd8] sm:$0xf]
    %v758 = vld [vmem:[#allocation4 + $0xdc] sm:$0xf]
    %v759 = vld [vmem:[#allocation4 + $0xe0] sm:$0xf]
    %v760 = vld [vmem:[#allocation4 + $0xe4] sm:$0xf]
    %v761 = vld [vmem:[#allocation4 + $0xe8] sm:$0xf]
    %v762 = vld [vmem:[#allocation4 + $0xec] sm:$0xf]
    %v763 = vld [vmem:[#allocation4 + $0xf0] sm:$0xf]
    %v764 = vld [vmem:[#allocation4 + $0xf4] sm:$0xf]
    %v765 = vld [vmem:[#allocation4 + $0xf8] sm:$0xf]
    %v766 = vld [vmem:[#allocation4 + $0xfc] sm:$0xf]
    %v767 = vld [vmem:[#allocation4 + $0x100] sm:$0xf]
    %v768 = vld [vmem:[#allocation4 + $0x104] sm:$0xf]
    %v769 = vld [vmem:[#allocation4 + $0x108] sm:$0xf]
    %v770 = vld [vmem:[#allocation4 + $0x10c] sm:$0xf]
    %v771 = vld [vmem:[#allocation4 + $0x110] sm:$0xf]
    %v772 = vld [vmem:[#allocation4 + $0x114] sm:$0xf]
    %v773 = vld [vmem:[#allocation4 + $0x118] sm:$0xf]
    %v774 = vld [vmem:[#allocation4 + $0x11c] sm:$0xf]
    %v775 = vld [vmem:[%s9] sm:$0xff]
    %777 = vset.pattern.permute.xlu0 0
    %778 = vperm.xlu0 %777, %v775
    %v779 = vpop.permute.xlu0 %778
    %v853 = vunpack.c.l.b16 %v703
    %v854 = vunpack.c.l.b16 %v704
    %v855 = vunpack.c.l.b16 %v705
    %v856 = vunpack.c.l.b16 %v706
    %v857 = vunpack.c.l.b16 %v707
    %v858 = vunpack.c.l.b16 %v708
    %v859 = vunpack.c.l.b16 %v709
    %v860 = vunpack.c.l.b16 %v710
    %v861 = vunpack.c.l.b16 %v711
    %v862 = vunpack.c.l.b16 %v712
    %v863 = vunpack.c.l.b16 %v713
    %v864 = vunpack.c.l.b16 %v714
    %v865 = vunpack.c.l.b16 %v715
    %v866 = vunpack.c.l.b16 %v716
    %v867 = vunpack.c.l.b16 %v717
    %v868 = vunpack.c.l.b16 %v718
    %v869 = vunpack.c.l.b16 %v719
    %v870 = vunpack.c.l.b16 %v720
    %v871 = vunpack.c.l.b16 %v721
    %v872 = vunpack.c.l.b16 %v722
    %v873 = vunpack.c.l.b16 %v723
    %v874 = vunpack.c.l.b16 %v724
    %v875 = vunpack.c.l.b16 %v725
    %v876 = vunpack.c.l.b16 %v726
    %v877 = vunpack.c.l.b16 %v727
    %v878 = vunpack.c.l.b16 %v728
    %v879 = vunpack.c.l.b16 %v729
    %v880 = vunpack.c.l.b16 %v730
    %v881 = vunpack.c.l.b16 %v731
    %v882 = vunpack.c.l.b16 %v732
    %v883 = vunpack.c.l.b16 %v733
    %v884 = vunpack.c.l.b16 %v734
    %v885 = vunpack.c.l.b16 %v735
    %v886 = vunpack.c.l.b16 %v736
    %v887 = vunpack.c.l.b16 %v737
    %v888 = vunpack.c.l.b16 %v738
    %v889 = vunpack.c.l.b16 %v739
    %v890 = vunpack.c.l.b16 %v740
    %v891 = vunpack.c.l.b16 %v741
    %v892 = vunpack.c.l.b16 %v742
    %v893 = vunpack.c.l.b16 %v743
    %v894 = vunpack.c.l.b16 %v744
    %v895 = vunpack.c.l.b16 %v745
    %v896 = vunpack.c.l.b16 %v746
    %v897 = vunpack.c.l.b16 %v747
    %v898 = vunpack.c.l.b16 %v748
    %v899 = vunpack.c.l.b16 %v749
    %v900 = vunpack.c.l.b16 %v750
    %v901 = vunpack.c.l.b16 %v751
    %v902 = vunpack.c.l.b16 %v752
    %v903 = vunpack.c.l.b16 %v753
    %v904 = vunpack.c.l.b16 %v754
    %v905 = vunpack.c.l.b16 %v755
    %v906 = vunpack.c.l.b16 %v756
    %v907 = vunpack.c.l.b16 %v757
    %v908 = vunpack.c.l.b16 %v758
    %v909 = vunpack.c.l.b16 %v759
    %v910 = vunpack.c.l.b16 %v760
    %v911 = vunpack.c.l.b16 %v761
    %v912 = vunpack.c.l.b16 %v762
    %v913 = vunpack.c.l.b16 %v763
    %v914 = vunpack.c.l.b16 %v764
    %v915 = vunpack.c.l.b16 %v765
    %v916 = vunpack.c.l.b16 %v766
    %v917 = vunpack.c.l.b16 %v767
    %v918 = vunpack.c.l.b16 %v768
    %v919 = vunpack.c.l.b16 %v769
    %v920 = vunpack.c.l.b16 %v770
    %v921 = vunpack.c.l.b16 %v771
    %v922 = vunpack.c.l.b16 %v772
    %v923 = vunpack.c.l.b16 %v773
    %v924 = vunpack.c.l.b16 %v774
    %v925 = vpack.c.b16 %v854, %v853
    %v926 = vpack.c.b16 %v856, %v855
    %v927 = vpack.c.b16 %v858, %v857
    %v928 = vpack.c.b16 %v860, %v859
    %v929 = vpack.c.b16 %v862, %v861
    %v930 = vpack.c.b16 %v864, %v863
    %v931 = vpack.c.b16 %v866, %v865
    %v932 = vpack.c.b16 %v868, %v867
    %v933 = vpack.c.b16 %v870, %v869
    %v934 = vpack.c.b16 %v872, %v871
    %v935 = vpack.c.b16 %v874, %v873
    %v936 = vpack.c.b16 %v876, %v875
    %v937 = vpack.c.b16 %v878, %v877
    %v938 = vpack.c.b16 %v880, %v879
    %v939 = vpack.c.b16 %v882, %v881
    %v940 = vpack.c.b16 %v884, %v883
    %v941 = vpack.c.b16 %v886, %v885
    %v942 = vpack.c.b16 %v888, %v887
    %v943 = vpack.c.b16 %v890, %v889
    %v944 = vpack.c.b16 %v892, %v891
    %v945 = vpack.c.b16 %v894, %v893
    %v946 = vpack.c.b16 %v896, %v895
    %v947 = vpack.c.b16 %v898, %v897
    %v948 = vpack.c.b16 %v900, %v899
    %v949 = vpack.c.b16 %v902, %v901
    %v950 = vpack.c.b16 %v904, %v903
    %v951 = vpack.c.b16 %v906, %v905
    %v952 = vpack.c.b16 %v908, %v907
    %v953 = vpack.c.b16 %v910, %v909
    %v954 = vpack.c.b16 %v912, %v911
    %v955 = vpack.c.b16 %v914, %v913
    %v956 = vpack.c.b16 %v916, %v915
    %v957 = vpack.c.b16 %v918, %v917
    %v958 = vpack.c.b16 %v920, %v919
    %v959 = vpack.c.b16 %v922, %v921
    %v960 = vpack.c.b16 %v924, %v923
    %v998 = vsel %vm323, %v702, 0
    %1000 = vmatprep.subr.bf16.mxu0 0
    %1001 = vmatpush1.bf16.msra.mxu0 %v932
    %1002 = vmatprep.subr.bf16.mxu0 0
    %1003 = vmatpush1.bf16.msra.mxu0 %v931
    %1004 = vmatprep.subr.bf16.mxu0 0
    %1005 = vmatpush1.bf16.msra.mxu0 %v930
    %1006 = vmatprep.subr.bf16.mxu0 0
    %1007 = vmatpush1.bf16.msra.mxu0 %v929
    %1008 = vmatprep.subr.bf16.mxu0 0
    %1009 = vmatpush1.bf16.msra.mxu0 %v928
    %1010 = vmatprep.subr.bf16.mxu0 0
    %1011 = vmatpush1.bf16.msra.mxu0 %v927
    %1012 = vmatprep.subr.bf16.mxu0 0
    %1013 = vmatpush1.bf16.msra.mxu0 %v926
    %1014 = vmatprep.subr.bf16.mxu0 0
    %1015 = vmatpush1.bf16.msra.mxu0 %v925
    %1016 = vmatprep.subr.bf16.mxu0 0
    %1017 = vmatpush2.bf16.msra.mxu0 %v940
    %1018 = vmatprep.subr.bf16.mxu0 0
    %1019 = vmatpush2.bf16.msra.mxu0 %v939
    %1020 = vmatprep.subr.bf16.mxu0 0
    %1021 = vmatpush2.bf16.msra.mxu0 %v938
    %1022 = vmatprep.subr.bf16.mxu0 0
    %1023 = vmatpush2.bf16.msra.mxu0 %v937
    %1024 = vmatprep.subr.bf16.mxu0 0
    %1025 = vmatpush2.bf16.msra.mxu0 %v936
    %1026 = vmatprep.subr.bf16.mxu0 0
    %1027 = vmatpush2.bf16.msra.mxu0 %v935
    %1028 = vmatprep.subr.bf16.mxu0 0
    %1029 = vmatpush2.bf16.msra.mxu0 %v934
    %1030 = vmatprep.subr.bf16.mxu0 0
    %1031 = vmatpush2.bf16.msra.mxu0 %v933
    %1032 = vmatprep.mubr.bf16.mxu0 %v699
    %1033 = vmatmul.mubr.bf16.gmra.mxu0 %v698
    %v1034 = vpop.f32.mrf.mxu0
    %v1035 = vadd.f32 %v779, %v1034
    %v1036 = vpop.f32.mrf.mxu0
    %v1037 = vpop.f32.mrf.mxu0
    %v1038 = vpop.f32.mrf.mxu0
    %1039 = vdwg.mxu0
    %1040 = vmatprep.subr.bf16.mxu0 0
    %1041 = vmatpush1.bf16.msra.mxu0 %v948
    %1042 = vmatprep.subr.bf16.mxu0 0
    %1043 = vmatpush1.bf16.msra.mxu0 %v947
    %1044 = vmatprep.subr.bf16.mxu0 0
    %1045 = vmatpush1.bf16.msra.mxu0 %v946
    %1046 = vmatprep.subr.bf16.mxu0 0
    %1047 = vmatpush1.bf16.msra.mxu0 %v945
    %1048 = vmatprep.subr.bf16.mxu0 0
    %1049 = vmatpush1.bf16.msra.mxu0 %v944
    %1050 = vmatprep.subr.bf16.mxu0 0
    %1051 = vmatpush1.bf16.msra.mxu0 %v943
    %1052 = vmatprep.subr.bf16.mxu0 0
    %1053 = vmatpush1.bf16.msra.mxu0 %v942
    %1054 = vmatprep.subr.bf16.mxu0 0
    %1055 = vmatpush1.bf16.msra.mxu0 %v941
    %1056 = vmatprep.subr.bf16.mxu0 0
    %1057 = vmatpush2.bf16.msra.mxu0 %v956
    %1058 = vmatprep.subr.bf16.mxu0 0
    %1059 = vmatpush2.bf16.msra.mxu0 %v955
    %1060 = vmatprep.subr.bf16.mxu0 0
    %1061 = vmatpush2.bf16.msra.mxu0 %v954
    %1062 = vmatprep.subr.bf16.mxu0 0
    %1063 = vmatpush2.bf16.msra.mxu0 %v953
    %1064 = vmatprep.subr.bf16.mxu0 0
    %1065 = vmatpush2.bf16.msra.mxu0 %v952
    %1066 = vmatprep.subr.bf16.mxu0 0
    %1067 = vmatpush2.bf16.msra.mxu0 %v951
    %1068 = vmatprep.subr.bf16.mxu0 0
    %1069 = vmatpush2.bf16.msra.mxu0 %v950
    %1070 = vmatprep.subr.bf16.mxu0 0
    %1071 = vmatpush2.bf16.msra.mxu0 %v949
    %1072 = vmatprep.mubr.bf16.mxu0 %v701
    %1073 = vmatmul.mubr.bf16.gmra.mxu0 %v700
    %v1074 = vpop.f32.mrf.mxu0
    %v1075 = vadd.f32 %v1035, %v1074
    %v1076 = vpop.f32.mrf.mxu0
    %v1077 = vpop.f32.mrf.mxu0
    %v1078 = vpop.f32.mrf.mxu0
    %1079 = vdwg.mxu0
    %1080 = vmatprep.subr.bf16.mxu0 0
    %1081 = vmatpush1.bf16.msra.mxu0 0
    %1082 = vmatprep.subr.bf16.mxu0 0
    %1083 = vmatpush1.bf16.msra.mxu0 0
    %1084 = vmatprep.subr.bf16.mxu0 0
    %1085 = vmatpush1.bf16.msra.mxu0 0
    %1086 = vmatprep.subr.bf16.mxu0 0
    %1087 = vmatpush1.bf16.msra.mxu0 0
    %1088 = vmatprep.subr.bf16.mxu0 0
    %1089 = vmatpush1.bf16.msra.mxu0 %v960
    %1090 = vmatprep.subr.bf16.mxu0 0
    %1091 = vmatpush1.bf16.msra.mxu0 %v959
    %1092 = vmatprep.subr.bf16.mxu0 0
    %1093 = vmatpush1.bf16.msra.mxu0 %v958
    %1094 = vmatprep.subr.bf16.mxu0 0
    %1095 = vmatpush1.bf16.msra.mxu0 %v957
    %1096 = vmatprep.subr.bf16.mxu0 0
    %1097 = vmatpush2.bf16.msra.mxu0 0
    %1098 = vmatprep.subr.bf16.mxu0 0
    %1099 = vmatpush2.bf16.msra.mxu0 0
    %1100 = vmatprep.subr.bf16.mxu0 0
    %1101 = vmatpush2.bf16.msra.mxu0 0
    %1102 = vmatprep.subr.bf16.mxu0 0
    %1103 = vmatpush2.bf16.msra.mxu0 0
    %1104 = vmatprep.subr.bf16.mxu0 0
    %1105 = vmatpush2.bf16.msra.mxu0 0
    %1106 = vmatprep.subr.bf16.mxu0 0
    %1107 = vmatpush2.bf16.msra.mxu0 0
    %1108 = vmatprep.subr.bf16.mxu0 0
    %1109 = vmatpush2.bf16.msra.mxu0 0
    %1110 = vmatprep.subr.bf16.mxu0 0
    %1111 = vmatpush2.bf16.msra.mxu0 0
    %1112 = vmatprep.mubr.bf16.mxu0 0
    %1113 = vmatmul.mubr.bf16.gmra.mxu0 %v998
    %v1114 = vpop.f32.mrf.mxu0
    %v1115 = vadd.f32 %v1075, %v1114
    %v1116 = vpop.f32.mrf.mxu0
    %v1117 = vpop.f32.mrf.mxu0
    %v1118 = vpop.f32.mrf.mxu0
    %1119 = vdwg.mxu0
    %v1120 = vld [vmem:[%s10] sm:$0xff]
    %v1121 = vld [vmem:[%s11] sm:$0xff]
    %v1122 = vsel %vm323, %v1115, 0.0
    %1123 = vadd.xlane.f32.xlu0 %v1122
    %v1124 = vpop.xlane.xlu0 %1123
    %v1125 = vmul.f32 %v1115, %v1115
    %v1126 = vsel %vm323, %v1125, 0.0
    %1127 = vadd.xlane.f32.xlu0 %v1126
    %v1128 = vpop.xlane.xlu0 %1127
    %v1129 = vmul.f32 %v1124, %v463
    %v1130 = vsel %vm465, %v1129, 0.0
    %1131 = vadd.xlane.f32.xlu0 %v1130
    %v1132 = vpop.xlane.xlu0 %1131
    %v1133 = vrot.slane %v1132, 4
    %v1134 = vadd.f32 %v1132, %v1133
    %v1135 = vrot.slane %v1134, 2
    %v1136 = vadd.f32 %v1134, %v1135
    %v1137 = vrot.slane %v1136, 1
    %v1138 = vadd.f32 %v1136, %v1137
    %s1139 = vtos %v1138
    %s1140 = smul.f32 %s1139, 0.00390625
    %v1141 = vmul.f32 %v1128, %v463
    %v1142 = vsel %vm465, %v1141, 0.0
    %1143 = vadd.xlane.f32.xlu0 %v1142
    %v1144 = vpop.xlane.xlu0 %1143
    %v1145 = vrot.slane %v1144, 4
    %v1146 = vadd.f32 %v1144, %v1145
    %v1147 = vrot.slane %v1146, 2
    %v1148 = vadd.f32 %v1146, %v1147
    %v1149 = vrot.slane %v1148, 1
    %v1150 = vadd.f32 %v1148, %v1149
    %s1151 = vtos %v1150
    %s1152 = smul.f32 %s1151, 0.00390625
    %s1153 = smul.f32 %s1140, %s1140
    %s1154 = ssub.f32 %s1152, %s1153
    %v1155 = vstv %s1140
    %v1156 = vmul.f32 %v463, %v1155
    %v1157 = vadd.f32 %v1156, 0.0
    %v1158 = vstv %s1154
    %v1159 = vmul.f32 %v463, %v1158
    %v1160 = vadd.f32 %v1159, 0.0
    %v1161 = vmul.f32 %v1124, %v498
    %v1162 = vsel %vm465, %v1161, 0.0
    %1163 = vadd.xlane.f32.xlu0 %v1162
    %v1164 = vpop.xlane.xlu0 %1163
    %v1165 = vrot.slane %v1164, 4
    %v1166 = vadd.f32 %v1164, %v1165
    %v1167 = vrot.slane %v1166, 2
    %v1168 = vadd.f32 %v1166, %v1167
    %v1169 = vrot.slane %v1168, 1
    %v1170 = vadd.f32 %v1168, %v1169
    %s1171 = vtos %v1170
    %s1172 = smul.f32 %s1171, 0.00390625
    %v1173 = vmul.f32 %v1128, %v498
    %v1174 = vsel %vm465, %v1173, 0.0
    %1175 = vadd.xlane.f32.xlu0 %v1174
    %v1176 = vpop.xlane.xlu0 %1175
    %v1177 = vrot.slane %v1176, 4
    %v1178 = vadd.f32 %v1176, %v1177
    %v1179 = vrot.slane %v1178, 2
    %v1180 = vadd.f32 %v1178, %v1179
    %v1181 = vrot.slane %v1180, 1
    %v1182 = vadd.f32 %v1180, %v1181
    %s1183 = vtos %v1182
    %s1184 = smul.f32 %s1183, 0.00390625
    %s1185 = smul.f32 %s1172, %s1172
    %s1186 = ssub.f32 %s1184, %s1185
    %v1187 = vstv %s1172
    %v1188 = vmul.f32 %v498, %v1187
    %v1189 = vadd.f32 %v1157, %v1188
    %v1190 = vstv %s1186
    %v1191 = vmul.f32 %v498, %v1190
    %v1192 = vadd.f32 %v1160, %v1191
    %v1193 = vadd.f32 %v1192, 1e-05
    %v1194 = vrsqrt.pop %v1193
    %v1195 = vmul.f32 %v1194, %v1120
    %1197 = vset.pattern.permute.xlu0 0
    %1198 = vperm.xlu0 %1197, %v1189
    %v1199 = vpop.permute.xlu0 %1198
    %v1201 = vsub.f32 %v1115, %v1199
    %1203 = vset.pattern.permute.xlu0 0
    %1204 = vperm.xlu0 %1203, %v1195
    %v1205 = vpop.permute.xlu0 %1204
    %v1207 = vmul.f32 %v1201, %v1205
    %1209 = vset.pattern.permute.xlu0 0
    %1210 = vperm.xlu0 %1209, %v1121
    %v1211 = vpop.permute.xlu0 %1210
    %v1213 = vadd.f32 %v1207, %v1211
    %vm1214 = vcmp.ge.f32.partialorder %v1213, 0.0
    %v1215 = vmul.f32 %v1213, 0.2
    %v1216 = vsel %vm1214, %v1213, %v1215
    %v1217 = vld [vmem:[%s13] sm:$0xf]
    %v1218 = vld [vmem:[%s13 + $0x4] sm:$0xf]
    %v1219 = vld [vmem:[%s13 + $0x8] sm:$0xf]
    %v1220 = vld [vmem:[%s13 + $0xc] sm:$0xf]
    %v1221 = vld [vmem:[%s13 + $0x10] sm:$0xf]
    %v1222 = vld [vmem:[%s13 + $0x14] sm:$0xf]
    %v1223 = vld [vmem:[%s13 + $0x18] sm:$0xf]
    %v1224 = vld [vmem:[%s13 + $0x1c] sm:$0xf]
    %v1225 = vld [vmem:[%s13 + $0x20] sm:$0xf]
    %v1226 = vpack.c.bf16 %v1216, %v1216
    %v1236 = vunpack.c.l.b16 %v1217
    %v1237 = vunpack.c.l.b16 %v1218
    %v1238 = vunpack.c.l.b16 %v1219
    %v1239 = vunpack.c.l.b16 %v1220
    %v1240 = vunpack.c.l.b16 %v1221
    %v1241 = vunpack.c.l.b16 %v1222
    %v1242 = vunpack.c.l.b16 %v1223
    %v1243 = vunpack.c.l.b16 %v1224
    %v1244 = vunpack.c.l.b16 %v1225
    %v1245 = vpack.c.b16 %v1237, %v1236
    %v1246 = vpack.c.b16 %v1239, %v1238
    %v1247 = vpack.c.b16 %v1241, %v1240
    %v1248 = vpack.c.b16 %v1243, %v1242
    %v1249 = vpack.c.b16 %v1244, %v1244
    %v1251 = vsel %vm197, %v1245, 0
    %v1254 = vsel %vm197, %v1246, 0
    %v1257 = vsel %vm197, %v1247, 0
    %v1260 = vsel %vm197, %v1248, 0
    %v1263 = vsel %vm197, %v1249, 0
    %v1266 = vsel %vm213, %v1226, 0
    %1268 = vmatprep.subr.bf16.mxu0 0
    %1269 = vmatpush1.bf16.msra.mxu0 0
    %1270 = vmatprep.subr.bf16.mxu0 0
    %1271 = vmatpush1.bf16.msra.mxu0 0
    %1272 = vmatprep.subr.bf16.mxu0 0
    %1273 = vmatpush1.bf16.msra.mxu0 0
    %1274 = vmatprep.subr.bf16.mxu0 0
    %1275 = vmatpush1.bf16.msra.mxu0 0
    %1276 = vmatprep.subr.bf16.mxu0 0
    %1277 = vmatpush1.bf16.msra.mxu0 0
    %1278 = vmatprep.subr.bf16.mxu0 0
    %1279 = vmatpush1.bf16.msra.mxu0 0
    %1280 = vmatprep.subr.bf16.mxu0 0
    %1281 = vmatpush1.bf16.msra.mxu0 0
    %1282 = vmatprep.subr.bf16.mxu0 0
    %1283 = vmatpush1.bf16.msra.mxu0 %v1266
    %1284 = vmatprep.subr.bf16.mxu0 0
    %1285 = vmatpush2.bf16.msra.mxu0 0
    %1286 = vmatprep.subr.bf16.mxu0 0
    %1287 = vmatpush2.bf16.msra.mxu0 0
    %1288 = vmatprep.subr.bf16.mxu0 0
    %1289 = vmatpush2.bf16.msra.mxu0 0
    %1290 = vmatprep.subr.bf16.mxu0 0
    %1291 = vmatpush2.bf16.msra.mxu0 0
    %1292 = vmatprep.subr.bf16.mxu0 0
    %1293 = vmatpush2.bf16.msra.mxu0 0
    %1294 = vmatprep.subr.bf16.mxu0 0
    %1295 = vmatpush2.bf16.msra.mxu0 0
    %1296 = vmatprep.subr.bf16.mxu0 0
    %1297 = vmatpush2.bf16.msra.mxu0 0
    %1298 = vmatprep.subr.bf16.mxu0 0
    %1299 = vmatpush2.bf16.msra.mxu0 0
    %1300 = vmatprep.mubr.bf16.mxu0 0
    %1301 = vmatmul.mubr.bf16.gmra.mxu0 %v1251
    %v1302 = vpop.f32.mrf.mxu0
    %v1303 = vadd.f32 0.0, %v1302
    %v1304 = vpop.f32.mrf.mxu0
    %v1305 = vpop.f32.mrf.mxu0
    %v1306 = vadd.f32 0.0, %v1305
    %v1307 = vpop.f32.mrf.mxu0
    %1308 = vmatprep.mubr.bf16.mxu0 0
    %1309 = vmatmul.mubr.bf16.gmra.mxu0 %v1254
    %v1310 = vpop.f32.mrf.mxu0
    %v1311 = vadd.f32 0.0, %v1310
    %v1312 = vpop.f32.mrf.mxu0
    %v1313 = vpop.f32.mrf.mxu0
    %v1314 = vadd.f32 0.0, %v1313
    %v1315 = vpop.f32.mrf.mxu0
    %1316 = vmatprep.mubr.bf16.mxu0 0
    %1317 = vmatmul.mubr.bf16.gmra.mxu0 %v1257
    %v1318 = vpop.f32.mrf.mxu0
    %v1319 = vadd.f32 0.0, %v1318
    %v1320 = vpop.f32.mrf.mxu0
    %v1321 = vpop.f32.mrf.mxu0
    %v1322 = vadd.f32 0.0, %v1321
    %v1323 = vpop.f32.mrf.mxu0
    %1324 = vmatprep.mubr.bf16.mxu0 0
    %1325 = vmatmul.mubr.bf16.gmra.mxu0 %v1260
    %v1326 = vpop.f32.mrf.mxu0
    %v1327 = vadd.f32 0.0, %v1326
    %v1328 = vpop.f32.mrf.mxu0
    %v1329 = vpop.f32.mrf.mxu0
    %v1330 = vadd.f32 0.0, %v1329
    %v1331 = vpop.f32.mrf.mxu0
    %1332 = vmatprep.mubr.bf16.mxu0 0
    %1333 = vmatmul.mubr.bf16.gmra.mxu0 %v1263
    %v1334 = vpop.f32.mrf.mxu0
    %v1335 = vadd.f32 0.0, %v1334
    %v1336 = vpop.f32.mrf.mxu0
    %v1337 = vpop.f32.mrf.mxu0
    %v1338 = vpop.f32.mrf.mxu0
    %1339 = vdwg.mxu0
    %1341 = vrot.lane.b32.xlu0 %v1306, 64
    %v1342 = vpop.permute.xlu0 %1341
    %1345 = vrot.lane.b32.xlu0 %v1314, 64
    %v1346 = vpop.permute.xlu0 %1345
    %1349 = vrot.lane.b32.xlu0 %v1322, 64
    %v1350 = vpop.permute.xlu0 %1349
    %1353 = vrot.lane.b32.xlu0 %v1330, 64
    %v1354 = vpop.permute.xlu0 %1353
    %v1356 = vsel %vm323, %v1303, %v1342
    %v1357 = vsel %vm323, %v1311, %v1346
    %v1358 = vsel %vm323, %v1319, %v1350
    %v1359 = vsel %vm323, %v1327, %v1354
    %v1360 = vpack.c.bf16 %v1356, %v1356
    %v1361 = vpack.c.bf16 %v1357, %v1357
    %v1362 = vpack.c.bf16 %v1358, %v1358
    %v1363 = vpack.c.bf16 %v1359, %v1359
    %v1364 = vpack.c.bf16 %v1335, %v1335
    %v1365 = vld [vmem:[#allocation6] sm:$0xff]
    %v1366 = vld [vmem:[#allocation6 + $0x8] sm:$0xff]
    %v1367 = vld [vmem:[#allocation6 + $0x10] sm:$0xff]
    %v1368 = vld [vmem:[#allocation6 + $0x18] sm:$0xff]
    %v1369 = vld [vmem:[#allocation6 + $0x20] sm:$0xff]
    %v1370 = vld [vmem:[#allocation6 + $0x28] sm:$0xff]
    %v1371 = vld [vmem:[#allocation6 + $0x30] sm:$0xff]
    %v1372 = vld [vmem:[#allocation6 + $0x38] sm:$0xff]
    %v1373 = vld [vmem:[#allocation6 + $0x40] sm:$0xff]
    %v1374 = vld [vmem:[#allocation6 + $0x48] sm:$0xff]
    %v1375 = vld [vmem:[#allocation6 + $0x50] sm:$0xff]
    %v1376 = vld [vmem:[#allocation6 + $0x58] sm:$0xff]
    %v1377 = vld [vmem:[#allocation6 + $0x60] sm:$0xff]
    %v1378 = vld [vmem:[#allocation6 + $0x68] sm:$0xff]
    %v1379 = vld [vmem:[#allocation6 + $0x70] sm:$0xff]
    %v1380 = vld [vmem:[#allocation6 + $0x78] sm:$0xff]
    %v1381 = vld [vmem:[#allocation6 + $0x80] sm:$0xff]
    %v1382 = vld [vmem:[#allocation6 + $0x88] sm:$0xff]
    %v1383 = vld [vmem:[#allocation6 + $0x90] sm:$0xff]
    %v1384 = vld [vmem:[#allocation6 + $0x98] sm:$0xff]
    %v1385 = vld [vmem:[#allocation6 + $0xa0] sm:$0xff]
    %v1386 = vld [vmem:[#allocation6 + $0xa8] sm:$0xff]
    %v1387 = vld [vmem:[#allocation6 + $0xb0] sm:$0xff]
    %v1388 = vld [vmem:[#allocation6 + $0xb8] sm:$0xff]
    %v1389 = vld [vmem:[#allocation6 + $0xc0] sm:$0xff]
    %v1390 = vld [vmem:[#allocation6 + $0xc8] sm:$0xff]
    %v1391 = vld [vmem:[#allocation6 + $0xd0] sm:$0xff]
    %v1392 = vld [vmem:[#allocation6 + $0xd8] sm:$0xff]
    %v1393 = vld [vmem:[#allocation6 + $0xe0] sm:$0xff]
    %v1394 = vld [vmem:[#allocation6 + $0xe8] sm:$0xff]
    %v1395 = vld [vmem:[#allocation6 + $0xf0] sm:$0xff]
    %v1396 = vld [vmem:[#allocation6 + $0xf8] sm:$0xff]
    %v1397 = vld [vmem:[#allocation6 + $0x100] sm:$0xff]
    %v1398 = vld [vmem:[#allocation6 + $0x108] sm:$0xff]
    %v1399 = vld [vmem:[#allocation6 + $0x110] sm:$0xff]
    %v1400 = vld [vmem:[#allocation6 + $0x118] sm:$0xff]
    %v1401 = vld [vmem:[#allocation6 + $0x120] sm:$0xff]
    %v1402 = vld [vmem:[#allocation6 + $0x128] sm:$0xff]
    %v1403 = vld [vmem:[#allocation6 + $0x130] sm:$0xff]
    %v1404 = vld [vmem:[#allocation6 + $0x138] sm:$0xff]
    %v1405 = vld [vmem:[#allocation6 + $0x140] sm:$0xff]
    %v1406 = vld [vmem:[#allocation6 + $0x148] sm:$0xff]
    %v1407 = vld [vmem:[#allocation6 + $0x150] sm:$0xff]
    %v1408 = vld [vmem:[#allocation6 + $0x158] sm:$0xff]
    %v1409 = vld [vmem:[#allocation6 + $0x160] sm:$0xff]
    %v1410 = vld [vmem:[#allocation6 + $0x168] sm:$0xff]
    %v1411 = vld [vmem:[#allocation6 + $0x170] sm:$0xff]
    %v1412 = vld [vmem:[#allocation6 + $0x178] sm:$0xff]
    %v1413 = vld [vmem:[#allocation6 + $0x180] sm:$0xff]
    %v1414 = vld [vmem:[#allocation6 + $0x188] sm:$0xff]
    %v1415 = vld [vmem:[#allocation6 + $0x190] sm:$0xff]
    %v1416 = vld [vmem:[#allocation6 + $0x198] sm:$0xff]
    %v1417 = vld [vmem:[#allocation6 + $0x1a0] sm:$0xff]
    %v1418 = vld [vmem:[#allocation6 + $0x1a8] sm:$0xff]
    %v1419 = vld [vmem:[#allocation6 + $0x1b0] sm:$0xff]
    %v1420 = vld [vmem:[#allocation6 + $0x1b8] sm:$0xff]
    %v1421 = vld [vmem:[#allocation6 + $0x1c0] sm:$0xff]
    %v1422 = vld [vmem:[#allocation6 + $0x1c8] sm:$0xff]
    %v1423 = vld [vmem:[#allocation6 + $0x1d0] sm:$0xff]
    %v1424 = vld [vmem:[#allocation6 + $0x1d8] sm:$0xff]
    %v1425 = vld [vmem:[#allocation6 + $0x1e0] sm:$0xff]
    %v1426 = vld [vmem:[#allocation6 + $0x1e8] sm:$0xff]
    %v1427 = vld [vmem:[#allocation6 + $0x1f0] sm:$0xff]
    %v1428 = vld [vmem:[#allocation6 + $0x1f8] sm:$0xff]
    %v1429 = vld [vmem:[#allocation6 + $0x200] sm:$0xff]
    %v1430 = vld [vmem:[#allocation6 + $0x208] sm:$0xff]
    %v1431 = vld [vmem:[#allocation6 + $0x210] sm:$0xff]
    %v1432 = vld [vmem:[#allocation6 + $0x218] sm:$0xff]
    %v1433 = vld [vmem:[#allocation6 + $0x220] sm:$0xff]
    %v1434 = vld [vmem:[#allocation6 + $0x228] sm:$0xff]
    %v1435 = vld [vmem:[#allocation6 + $0x230] sm:$0xff]
    %v1436 = vld [vmem:[#allocation6 + $0x238] sm:$0xff]
    %v1437 = vld [vmem:[%s14] sm:$0xff]
    %1439 = vset.pattern.permute.xlu0 0
    %1440 = vperm.xlu0 %1439, %v1437
    %v1441 = vpop.permute.xlu0 %1440
    %v1515 = vunpack.c.l.b16 %v1365
    %v1516 = vunpack.c.h.b16 %v1365
    %v1517 = vunpack.c.l.b16 %v1366
    %v1518 = vunpack.c.h.b16 %v1366
    %v1519 = vunpack.c.l.b16 %v1367
    %v1520 = vunpack.c.h.b16 %v1367
    %v1521 = vunpack.c.l.b16 %v1368
    %v1522 = vunpack.c.h.b16 %v1368
    %v1523 = vunpack.c.l.b16 %v1369
    %v1524 = vunpack.c.h.b16 %v1369
    %v1525 = vunpack.c.l.b16 %v1370
    %v1526 = vunpack.c.h.b16 %v1370
    %v1527 = vunpack.c.l.b16 %v1371
    %v1528 = vunpack.c.h.b16 %v1371
    %v1529 = vunpack.c.l.b16 %v1372
    %v1530 = vunpack.c.h.b16 %v1372
    %v1531 = vunpack.c.l.b16 %v1373
    %v1532 = vunpack.c.h.b16 %v1373
    %v1533 = vunpack.c.l.b16 %v1374
    %v1534 = vunpack.c.h.b16 %v1374
    %v1535 = vunpack.c.l.b16 %v1375
    %v1536 = vunpack.c.h.b16 %v1375
    %v1537 = vunpack.c.l.b16 %v1376
    %v1538 = vunpack.c.h.b16 %v1376
    %v1539 = vunpack.c.l.b16 %v1377
    %v1540 = vunpack.c.h.b16 %v1377
    %v1541 = vunpack.c.l.b16 %v1378
    %v1542 = vunpack.c.h.b16 %v1378
    %v1543 = vunpack.c.l.b16 %v1379
    %v1544 = vunpack.c.h.b16 %v1379
    %v1545 = vunpack.c.l.b16 %v1380
    %v1546 = vunpack.c.h.b16 %v1380
    %v1547 = vunpack.c.l.b16 %v1381
    %v1548 = vunpack.c.h.b16 %v1381
    %v1549 = vunpack.c.l.b16 %v1382
    %v1550 = vunpack.c.h.b16 %v1382
    %v1551 = vunpack.c.l.b16 %v1383
    %v1552 = vunpack.c.h.b16 %v1383
    %v1553 = vunpack.c.l.b16 %v1384
    %v1554 = vunpack.c.h.b16 %v1384
    %v1555 = vunpack.c.l.b16 %v1385
    %v1556 = vunpack.c.h.b16 %v1385
    %v1557 = vunpack.c.l.b16 %v1386
    %v1558 = vunpack.c.h.b16 %v1386
    %v1559 = vunpack.c.l.b16 %v1387
    %v1560 = vunpack.c.h.b16 %v1387
    %v1561 = vunpack.c.l.b16 %v1388
    %v1562 = vunpack.c.h.b16 %v1388
    %v1563 = vunpack.c.l.b16 %v1389
    %v1564 = vunpack.c.h.b16 %v1389
    %v1565 = vunpack.c.l.b16 %v1390
    %v1566 = vunpack.c.h.b16 %v1390
    %v1567 = vunpack.c.l.b16 %v1391
    %v1568 = vunpack.c.h.b16 %v1391
    %v1569 = vunpack.c.l.b16 %v1392
    %v1570 = vunpack.c.h.b16 %v1392
    %v1571 = vunpack.c.l.b16 %v1393
    %v1572 = vunpack.c.h.b16 %v1393
    %v1573 = vunpack.c.l.b16 %v1394
    %v1574 = vunpack.c.h.b16 %v1394
    %v1575 = vunpack.c.l.b16 %v1395
    %v1576 = vunpack.c.h.b16 %v1395
    %v1577 = vunpack.c.l.b16 %v1396
    %v1578 = vunpack.c.h.b16 %v1396
    %v1579 = vunpack.c.l.b16 %v1397
    %v1580 = vunpack.c.h.b16 %v1397
    %v1581 = vunpack.c.l.b16 %v1398
    %v1582 = vunpack.c.h.b16 %v1398
    %v1583 = vunpack.c.l.b16 %v1399
    %v1584 = vunpack.c.h.b16 %v1399
    %v1585 = vunpack.c.l.b16 %v1400
    %v1586 = vunpack.c.h.b16 %v1400
    %v1587 = vunpack.c.l.b16 %v1401
    %v1588 = vunpack.c.h.b16 %v1401
    %v1589 = vunpack.c.l.b16 %v1402
    %v1590 = vunpack.c.h.b16 %v1402
    %v1591 = vunpack.c.l.b16 %v1403
    %v1592 = vunpack.c.h.b16 %v1403
    %v1593 = vunpack.c.l.b16 %v1404
    %v1594 = vunpack.c.h.b16 %v1404
    %v1595 = vunpack.c.l.b16 %v1405
    %v1596 = vunpack.c.h.b16 %v1405
    %v1597 = vunpack.c.l.b16 %v1406
    %v1598 = vunpack.c.h.b16 %v1406
    %v1599 = vunpack.c.l.b16 %v1407
    %v1600 = vunpack.c.h.b16 %v1407
    %v1601 = vunpack.c.l.b16 %v1408
    %v1602 = vunpack.c.h.b16 %v1408
    %v1603 = vunpack.c.l.b16 %v1409
    %v1604 = vunpack.c.h.b16 %v1409
    %v1605 = vunpack.c.l.b16 %v1410
    %v1606 = vunpack.c.h.b16 %v1410
    %v1607 = vunpack.c.l.b16 %v1411
    %v1608 = vunpack.c.h.b16 %v1411
    %v1609 = vunpack.c.l.b16 %v1412
    %v1610 = vunpack.c.h.b16 %v1412
    %v1611 = vunpack.c.l.b16 %v1413
    %v1612 = vunpack.c.h.b16 %v1413
    %v1613 = vunpack.c.l.b16 %v1414
    %v1614 = vunpack.c.h.b16 %v1414
    %v1615 = vunpack.c.l.b16 %v1415
    %v1616 = vunpack.c.h.b16 %v1415
    %v1617 = vunpack.c.l.b16 %v1416
    %v1618 = vunpack.c.h.b16 %v1416
    %v1619 = vunpack.c.l.b16 %v1417
    %v1620 = vunpack.c.h.b16 %v1417
    %v1621 = vunpack.c.l.b16 %v1418
    %v1622 = vunpack.c.h.b16 %v1418
    %v1623 = vunpack.c.l.b16 %v1419
    %v1624 = vunpack.c.h.b16 %v1419
    %v1625 = vunpack.c.l.b16 %v1420
    %v1626 = vunpack.c.h.b16 %v1420
    %v1627 = vunpack.c.l.b16 %v1421
    %v1628 = vunpack.c.h.b16 %v1421
    %v1629 = vunpack.c.l.b16 %v1422
    %v1630 = vunpack.c.h.b16 %v1422
    %v1631 = vunpack.c.l.b16 %v1423
    %v1632 = vunpack.c.h.b16 %v1423
    %v1633 = vunpack.c.l.b16 %v1424
    %v1634 = vunpack.c.h.b16 %v1424
    %v1635 = vunpack.c.l.b16 %v1425
    %v1636 = vunpack.c.h.b16 %v1425
    %v1637 = vunpack.c.l.b16 %v1426
    %v1638 = vunpack.c.h.b16 %v1426
    %v1639 = vunpack.c.l.b16 %v1427
    %v1640 = vunpack.c.h.b16 %v1427
    %v1641 = vunpack.c.l.b16 %v1428
    %v1642 = vunpack.c.h.b16 %v1428
    %v1643 = vunpack.c.l.b16 %v1429
    %v1644 = vunpack.c.h.b16 %v1429
    %v1645 = vunpack.c.l.b16 %v1430
    %v1646 = vunpack.c.h.b16 %v1430
    %v1647 = vunpack.c.l.b16 %v1431
    %v1648 = vunpack.c.h.b16 %v1431
    %v1649 = vunpack.c.l.b16 %v1432
    %v1650 = vunpack.c.h.b16 %v1432
    %v1651 = vunpack.c.l.b16 %v1433
    %v1652 = vunpack.c.h.b16 %v1433
    %v1653 = vunpack.c.l.b16 %v1434
    %v1654 = vunpack.c.h.b16 %v1434
    %v1655 = vunpack.c.l.b16 %v1435
    %v1656 = vunpack.c.h.b16 %v1435
    %v1657 = vunpack.c.l.b16 %v1436
    %v1658 = vunpack.c.h.b16 %v1436
    %v1659 = vpack.c.b16 %v1517, %v1515
    %v1660 = vpack.c.b16 %v1518, %v1516
    %v1661 = vpack.c.b16 %v1521, %v1519
    %v1662 = vpack.c.b16 %v1522, %v1520
    %v1663 = vpack.c.b16 %v1525, %v1523
    %v1664 = vpack.c.b16 %v1526, %v1524
    %v1665 = vpack.c.b16 %v1529, %v1527
    %v1666 = vpack.c.b16 %v1530, %v1528
    %v1667 = vpack.c.b16 %v1533, %v1531
    %v1668 = vpack.c.b16 %v1534, %v1532
    %v1669 = vpack.c.b16 %v1537, %v1535
    %v1670 = vpack.c.b16 %v1538, %v1536
    %v1671 = vpack.c.b16 %v1541, %v1539
    %v1672 = vpack.c.b16 %v1542, %v1540
    %v1673 = vpack.c.b16 %v1545, %v1543
    %v1674 = vpack.c.b16 %v1546, %v1544
    %v1675 = vpack.c.b16 %v1549, %v1547
    %v1676 = vpack.c.b16 %v1550, %v1548
    %v1677 = vpack.c.b16 %v1553, %v1551
    %v1678 = vpack.c.b16 %v1554, %v1552
    %v1679 = vpack.c.b16 %v1557, %v1555
    %v1680 = vpack.c.b16 %v1558, %v1556
    %v1681 = vpack.c.b16 %v1561, %v1559
    %v1682 = vpack.c.b16 %v1562, %v1560
    %v1683 = vpack.c.b16 %v1565, %v1563
    %v1684 = vpack.c.b16 %v1566, %v1564
    %v1685 = vpack.c.b16 %v1569, %v1567
    %v1686 = vpack.c.b16 %v1570, %v1568
    %v1687 = vpack.c.b16 %v1573, %v1571
    %v1688 = vpack.c.b16 %v1574, %v1572
    %v1689 = vpack.c.b16 %v1577, %v1575
    %v1690 = vpack.c.b16 %v1578, %v1576
    %v1691 = vpack.c.b16 %v1581, %v1579
    %v1692 = vpack.c.b16 %v1582, %v1580
    %v1693 = vpack.c.b16 %v1585, %v1583
    %v1694 = vpack.c.b16 %v1586, %v1584
    %v1695 = vpack.c.b16 %v1589, %v1587
    %v1696 = vpack.c.b16 %v1590, %v1588
    %v1697 = vpack.c.b16 %v1593, %v1591
    %v1698 = vpack.c.b16 %v1594, %v1592
    %v1699 = vpack.c.b16 %v1597, %v1595
    %v1700 = vpack.c.b16 %v1598, %v1596
    %v1701 = vpack.c.b16 %v1601, %v1599
    %v1702 = vpack.c.b16 %v1602, %v1600
    %v1703 = vpack.c.b16 %v1605, %v1603
    %v1704 = vpack.c.b16 %v1606, %v1604
    %v1705 = vpack.c.b16 %v1609, %v1607
    %v1706 = vpack.c.b16 %v1610, %v1608
    %v1707 = vpack.c.b16 %v1613, %v1611
    %v1708 = vpack.c.b16 %v1614, %v1612
    %v1709 = vpack.c.b16 %v1617, %v1615
    %v1710 = vpack.c.b16 %v1618, %v1616
    %v1711 = vpack.c.b16 %v1621, %v1619
    %v1712 = vpack.c.b16 %v1622, %v1620
    %v1713 = vpack.c.b16 %v1625, %v1623
    %v1714 = vpack.c.b16 %v1626, %v1624
    %v1715 = vpack.c.b16 %v1629, %v1627
    %v1716 = vpack.c.b16 %v1630, %v1628
    %v1717 = vpack.c.b16 %v1633, %v1631
    %v1718 = vpack.c.b16 %v1634, %v1632
    %v1719 = vpack.c.b16 %v1637, %v1635
    %v1720 = vpack.c.b16 %v1638, %v1636
    %v1721 = vpack.c.b16 %v1641, %v1639
    %v1722 = vpack.c.b16 %v1642, %v1640
    %v1723 = vpack.c.b16 %v1645, %v1643
    %v1724 = vpack.c.b16 %v1646, %v1644
    %v1725 = vpack.c.b16 %v1649, %v1647
    %v1726 = vpack.c.b16 %v1650, %v1648
    %v1727 = vpack.c.b16 %v1653, %v1651
    %v1728 = vpack.c.b16 %v1654, %v1652
    %v1729 = vpack.c.b16 %v1657, %v1655
    %v1730 = vpack.c.b16 %v1658, %v1656
    %v1804 = vsel %vm323, %v1364, 0
    %1806 = vmatprep.subr.bf16.mxu0 %v1674
    %1807 = vmatpush1.bf16.msra.mxu0 %v1673
    %1808 = vmatprep.subr.bf16.mxu0 %v1672
    %1809 = vmatpush1.bf16.msra.mxu0 %v1671
    %1810 = vmatprep.subr.bf16.mxu0 %v1670
    %1811 = vmatpush1.bf16.msra.mxu0 %v1669
    %1812 = vmatprep.subr.bf16.mxu0 %v1668
    %1813 = vmatpush1.bf16.msra.mxu0 %v1667
    %1814 = vmatprep.subr.bf16.mxu0 %v1666
    %1815 = vmatpush1.bf16.msra.mxu0 %v1665
    %1816 = vmatprep.subr.bf16.mxu0 %v1664
    %1817 = vmatpush1.bf16.msra.mxu0 %v1663
    %1818 = vmatprep.subr.bf16.mxu0 %v1662
    %1819 = vmatpush1.bf16.msra.mxu0 %v1661
    %1820 = vmatprep.subr.bf16.mxu0 %v1660
    %1821 = vmatpush1.bf16.msra.mxu0 %v1659
    %1822 = vmatprep.subr.bf16.mxu0 %v1690
    %1823 = vmatpush2.bf16.msra.mxu0 %v1689
    %1824 = vmatprep.subr.bf16.mxu0 %v1688
    %1825 = vmatpush2.bf16.msra.mxu0 %v1687
    %1826 = vmatprep.subr.bf16.mxu0 %v1686
    %1827 = vmatpush2.bf16.msra.mxu0 %v1685
    %1828 = vmatprep.subr.bf16.mxu0 %v1684
    %1829 = vmatpush2.bf16.msra.mxu0 %v1683
    %1830 = vmatprep.subr.bf16.mxu0 %v1682
    %1831 = vmatpush2.bf16.msra.mxu0 %v1681
    %1832 = vmatprep.subr.bf16.mxu0 %v1680
    %1833 = vmatpush2.bf16.msra.mxu0 %v1679
    %1834 = vmatprep.subr.bf16.mxu0 %v1678
    %1835 = vmatpush2.bf16.msra.mxu0 %v1677
    %1836 = vmatprep.subr.bf16.mxu0 %v1676
    %1837 = vmatpush2.bf16.msra.mxu0 %v1675
    %1838 = vmatprep.mubr.bf16.mxu0 %v1361
    %1839 = vmatmul.mubr.bf16.gmra.mxu0 %v1360
    %v1840 = vpop.f32.mrf.mxu0
    %v1841 = vadd.f32 %v1441, %v1840
    %v1842 = vpop.f32.mrf.mxu0
    %v1843 = vadd.f32 %v1441, %v1842
    %v1844 = vpop.f32.mrf.mxu0
    %v1845 = vpop.f32.mrf.mxu0
    %1846 = vdwg.mxu0
    %1847 = vmatprep.subr.bf16.mxu0 %v1706
    %1848 = vmatpush1.bf16.msra.mxu0 %v1705
    %1849 = vmatprep.subr.bf16.mxu0 %v1704
    %1850 = vmatpush1.bf16.msra.mxu0 %v1703
    %1851 = vmatprep.subr.bf16.mxu0 %v1702
    %1852 = vmatpush1.bf16.msra.mxu0 %v1701
    %1853 = vmatprep.subr.bf16.mxu0 %v1700
    %1854 = vmatpush1.bf16.msra.mxu0 %v1699
    %1855 = vmatprep.subr.bf16.mxu0 %v1698
    %1856 = vmatpush1.bf16.msra.mxu0 %v1697
    %1857 = vmatprep.subr.bf16.mxu0 %v1696
    %1858 = vmatpush1.bf16.msra.mxu0 %v1695
    %1859 = vmatprep.subr.bf16.mxu0 %v1694
    %1860 = vmatpush1.bf16.msra.mxu0 %v1693
    %1861 = vmatprep.subr.bf16.mxu0 %v1692
    %1862 = vmatpush1.bf16.msra.mxu0 %v1691
    %1863 = vmatprep.subr.bf16.mxu0 %v1722
    %1864 = vmatpush2.bf16.msra.mxu0 %v1721
    %1865 = vmatprep.subr.bf16.mxu0 %v1720
    %1866 = vmatpush2.bf16.msra.mxu0 %v1719
    %1867 = vmatprep.subr.bf16.mxu0 %v1718
    %1868 = vmatpush2.bf16.msra.mxu0 %v1717
    %1869 = vmatprep.subr.bf16.mxu0 %v1716
    %1870 = vmatpush2.bf16.msra.mxu0 %v1715
    %1871 = vmatprep.subr.bf16.mxu0 %v1714
    %1872 = vmatpush2.bf16.msra.mxu0 %v1713
    %1873 = vmatprep.subr.bf16.mxu0 %v1712
    %1874 = vmatpush2.bf16.msra.mxu0 %v1711
    %1875 = vmatprep.subr.bf16.mxu0 %v1710
    %1876 = vmatpush2.bf16.msra.mxu0 %v1709
    %1877 = vmatprep.subr.bf16.mxu0 %v1708
    %1878 = vmatpush2.bf16.msra.mxu0 %v1707
    %1879 = vmatprep.mubr.bf16.mxu0 %v1363
    %1880 = vmatmul.mubr.bf16.gmra.mxu0 %v1362
    %v1881 = vpop.f32.mrf.mxu0
    %v1882 = vadd.f32 %v1841, %v1881
    %v1883 = vpop.f32.mrf.mxu0
    %v1884 = vadd.f32 %v1843, %v1883
    %v1885 = vpop.f32.mrf.mxu0
    %v1886 = vpop.f32.mrf.mxu0
    %1887 = vdwg.mxu0
    %1888 = vmatprep.subr.bf16.mxu0 0
    %1889 = vmatpush1.bf16.msra.mxu0 0
    %1890 = vmatprep.subr.bf16.mxu0 0
    %1891 = vmatpush1.bf16.msra.mxu0 0
    %1892 = vmatprep.subr.bf16.mxu0 0
    %1893 = vmatpush1.bf16.msra.mxu0 0
    %1894 = vmatprep.subr.bf16.mxu0 0
    %1895 = vmatpush1.bf16.msra.mxu0 0
    %1896 = vmatprep.subr.bf16.mxu0 %v1730
    %1897 = vmatpush1.bf16.msra.mxu0 %v1729
    %1898 = vmatprep.subr.bf16.mxu0 %v1728
    %1899 = vmatpush1.bf16.msra.mxu0 %v1727
    %1900 = vmatprep.subr.bf16.mxu0 %v1726
    %1901 = vmatpush1.bf16.msra.mxu0 %v1725
    %1902 = vmatprep.subr.bf16.mxu0 %v1724
    %1903 = vmatpush1.bf16.msra.mxu0 %v1723
    %1904 = vmatprep.subr.bf16.mxu0 0
    %1905 = vmatpush2.bf16.msra.mxu0 0
    %1906 = vmatprep.subr.bf16.mxu0 0
    %1907 = vmatpush2.bf16.msra.mxu0 0
    %1908 = vmatprep.subr.bf16.mxu0 0
    %1909 = vmatpush2.bf16.msra.mxu0 0
    %1910 = vmatprep.subr.bf16.mxu0 0
    %1911 = vmatpush2.bf16.msra.mxu0 0
    %1912 = vmatprep.subr.bf16.mxu0 0
    %1913 = vmatpush2.bf16.msra.mxu0 0
    %1914 = vmatprep.subr.bf16.mxu0 0
    %1915 = vmatpush2.bf16.msra.mxu0 0
    %1916 = vmatprep.subr.bf16.mxu0 0
    %1917 = vmatpush2.bf16.msra.mxu0 0
    %1918 = vmatprep.subr.bf16.mxu0 0
    %1919 = vmatpush2.bf16.msra.mxu0 0
    %1920 = vmatprep.mubr.bf16.mxu0 0
    %1921 = vmatmul.mubr.bf16.gmra.mxu0 %v1804
    %v1922 = vpop.f32.mrf.mxu0
    %v1923 = vadd.f32 %v1882, %v1922
    %v1924 = vpop.f32.mrf.mxu0
    %v1925 = vadd.f32 %v1884, %v1924
    %v1926 = vpop.f32.mrf.mxu0
    %v1927 = vpop.f32.mrf.mxu0
    %1928 = vdwg.mxu0
    %v1929 = vld [vmem:[%s15] sm:$0xff]
    %v1930 = vld [vmem:[%s16] sm:$0xff]
    %v1931 = vadd.f32 %v1923, %v1925
    %1932 = vadd.xlane.f32.xlu0 %v1931
    %v1933 = vpop.xlane.xlu0 %1932
    %v1934 = vmul.f32 %v1923, %v1923
    %v1935 = vmul.f32 %v1925, %v1925
    %v1936 = vadd.f32 %v1934, %v1935
    %1937 = vadd.xlane.f32.xlu0 %v1936
    %v1938 = vpop.xlane.xlu0 %1937
    %v1939 = vmul.f32 %v1933, %v463
    %v1940 = vsel %vm465, %v1939, 0.0
    %1941 = vadd.xlane.f32.xlu0 %v1940
    %v1942 = vpop.xlane.xlu0 %1941
    %v1943 = vrot.slane %v1942, 4
    %v1944 = vadd.f32 %v1942, %v1943
    %v1945 = vrot.slane %v1944, 2
    %v1946 = vadd.f32 %v1944, %v1945
    %v1947 = vrot.slane %v1946, 1
    %v1948 = vadd.f32 %v1946, %v1947
    %s1949 = vtos %v1948
    %s1950 = smul.f32 %s1949, 0.0009765625
    %v1951 = vmul.f32 %v1938, %v463
    %v1952 = vsel %vm465, %v1951, 0.0
    %1953 = vadd.xlane.f32.xlu0 %v1952
    %v1954 = vpop.xlane.xlu0 %1953
    %v1955 = vrot.slane %v1954, 4
    %v1956 = vadd.f32 %v1954, %v1955
    %v1957 = vrot.slane %v1956, 2
    %v1958 = vadd.f32 %v1956, %v1957
    %v1959 = vrot.slane %v1958, 1
    %v1960 = vadd.f32 %v1958, %v1959
    %s1961 = vtos %v1960
    %s1962 = smul.f32 %s1961, 0.0009765625
    %s1963 = smul.f32 %s1950, %s1950
    %s1964 = ssub.f32 %s1962, %s1963
    %v1965 = vstv %s1950
    %v1966 = vmul.f32 %v463, %v1965
    %v1967 = vadd.f32 %v1966, 0.0
    %v1968 = vstv %s1964
    %v1969 = vmul.f32 %v463, %v1968
    %v1970 = vadd.f32 %v1969, 0.0
    %v1971 = vmul.f32 %v1933, %v498
    %v1972 = vsel %vm465, %v1971, 0.0
    %1973 = vadd.xlane.f32.xlu0 %v1972
    %v1974 = vpop.xlane.xlu0 %1973
    %v1975 = vrot.slane %v1974, 4
    %v1976 = vadd.f32 %v1974, %v1975
    %v1977 = vrot.slane %v1976, 2
    %v1978 = vadd.f32 %v1976, %v1977
    %v1979 = vrot.slane %v1978, 1
    %v1980 = vadd.f32 %v1978, %v1979
    %s1981 = vtos %v1980
    %s1982 = smul.f32 %s1981, 0.0009765625
    %v1983 = vmul.f32 %v1938, %v498
    %v1984 = vsel %vm465, %v1983, 0.0
    %1985 = vadd.xlane.f32.xlu0 %v1984
    %v1986 = vpop.xlane.xlu0 %1985
    %v1987 = vrot.slane %v1986, 4
    %v1988 = vadd.f32 %v1986, %v1987
    %v1989 = vrot.slane %v1988, 2
    %v1990 = vadd.f32 %v1988, %v1989
    %v1991 = vrot.slane %v1990, 1
    %v1992 = vadd.f32 %v1990, %v1991
    %s1993 = vtos %v1992
    %s1994 = smul.f32 %s1993, 0.0009765625
    %s1995 = smul.f32 %s1982, %s1982
    %s1996 = ssub.f32 %s1994, %s1995
    %v1997 = vstv %s1982
    %v1998 = vmul.f32 %v498, %v1997
    %v1999 = vadd.f32 %v1967, %v1998
    %v2000 = vstv %s1996
    %v2001 = vmul.f32 %v498, %v2000
    %v2002 = vadd.f32 %v1970, %v2001
    %v2003 = vadd.f32 %v2002, 1e-05
    %v2004 = vrsqrt.pop %v2003
    %v2005 = vmul.f32 %v2004, %v1929
    %2007 = vset.pattern.permute.xlu0 0
    %2008 = vperm.xlu0 %2007, %v1999
    %v2009 = vpop.permute.xlu0 %2008
    %v2011 = vsub.f32 %v1923, %v2009
    %v2012 = vsub.f32 %v1925, %v2009
    %2014 = vset.pattern.permute.xlu0 0
    %2015 = vperm.xlu0 %2014, %v2005
    %v2016 = vpop.permute.xlu0 %2015
    %v2018 = vmul.f32 %v2011, %v2016
    %v2019 = vmul.f32 %v2012, %v2016
    %2021 = vset.pattern.permute.xlu0 0
    %2022 = vperm.xlu0 %2021, %v1930
    %v2023 = vpop.permute.xlu0 %2022
    %v2025 = vadd.f32 %v2018, %v2023
    %v2026 = vadd.f32 %v2019, %v2023
    %vm2027 = vcmp.ge.f32.partialorder %v2025, 0.0
    %vm2028 = vcmp.ge.f32.partialorder %v2026, 0.0
    %v2029 = vmul.f32 %v2025, 0.2
    %v2030 = vmul.f32 %v2026, 0.2
    %v2031 = vsel %vm2027, %v2025, %v2029
    %v2032 = vsel %vm2028, %v2026, %v2030
    %v2033 = vld [vmem:[%s18] sm:$0xf]
    %v2034 = vld [vmem:[%s18 + $0x4] sm:$0xf]
    %v2035 = vld [vmem:[%s18 + $0x8] sm:$0xf]
    %v2036 = vld [vmem:[%s18 + $0xc] sm:$0xf]
    %v2037 = vld [vmem:[%s18 + $0x10] sm:$0xf]
    %v2038 = vld [vmem:[%s18 + $0x14] sm:$0xf]
    %v2039 = vld [vmem:[%s18 + $0x18] sm:$0xf]
    %v2040 = vld [vmem:[%s18 + $0x1c] sm:$0xf]
    %v2041 = vld [vmem:[%s18 + $0x20] sm:$0xf]
    %v2042 = vpack.c.bf16 %v162, %v2031
    %v2043 = vpack.c.bf16 %v163, %v2032
    %v2053 = vunpack.c.l.b16 %v2033
    %v2054 = vunpack.c.l.b16 %v2034
    %v2055 = vunpack.c.l.b16 %v2035
    %v2056 = vunpack.c.l.b16 %v2036
    %v2057 = vunpack.c.l.b16 %v2037
    %v2058 = vunpack.c.l.b16 %v2038
    %v2059 = vunpack.c.l.b16 %v2039
    %v2060 = vunpack.c.l.b16 %v2040
    %v2061 = vunpack.c.l.b16 %v2041
    %v2062 = vpack.c.b16 %v2054, %v2053
    %v2063 = vpack.c.b16 %v2056, %v2055
    %v2064 = vpack.c.b16 %v2058, %v2057
    %v2065 = vpack.c.b16 %v2060, %v2059
    %v2066 = vpack.c.b16 %v2061, %v2061
    %v2068 = vsel %vm317, %v2062, 0
    %v2071 = vsel %vm317, %v2063, 0
    %v2074 = vsel %vm317, %v2064, 0
    %v2077 = vsel %vm317, %v2065, 0
    %v2080 = vsel %vm317, %v2066, 0
    %2082 = vmatprep.subr.bf16.mxu0 0
    %2083 = vmatpush1.bf16.msra.mxu0 0
    %2084 = vmatprep.subr.bf16.mxu0 0
    %2085 = vmatpush1.bf16.msra.mxu0 0
    %2086 = vmatprep.subr.bf16.mxu0 0
    %2087 = vmatpush1.bf16.msra.mxu0 0
    %2088 = vmatprep.subr.bf16.mxu0 0
    %2089 = vmatpush1.bf16.msra.mxu0 0
    %2090 = vmatprep.subr.bf16.mxu0 0
    %2091 = vmatpush1.bf16.msra.mxu0 0
    %2092 = vmatprep.subr.bf16.mxu0 0
    %2093 = vmatpush1.bf16.msra.mxu0 0
    %2094 = vmatprep.subr.bf16.mxu0 0
    %2095 = vmatpush1.bf16.msra.mxu0 0
    %2096 = vmatprep.subr.bf16.mxu0 %v2043
    %2097 = vmatpush1.bf16.msra.mxu0 %v2042
    %2098 = vmatprep.subr.bf16.mxu0 0
    %2099 = vmatpush2.bf16.msra.mxu0 0
    %2100 = vmatprep.subr.bf16.mxu0 0
    %2101 = vmatpush2.bf16.msra.mxu0 0
    %2102 = vmatprep.subr.bf16.mxu0 0
    %2103 = vmatpush2.bf16.msra.mxu0 0
    %2104 = vmatprep.subr.bf16.mxu0 0
    %2105 = vmatpush2.bf16.msra.mxu0 0
    %2106 = vmatprep.subr.bf16.mxu0 0
    %2107 = vmatpush2.bf16.msra.mxu0 0
    %2108 = vmatprep.subr.bf16.mxu0 0
    %2109 = vmatpush2.bf16.msra.mxu0 0
    %2110 = vmatprep.subr.bf16.mxu0 0
    %2111 = vmatpush2.bf16.msra.mxu0 0
    %2112 = vmatprep.subr.bf16.mxu0 0
    %2113 = vmatpush2.bf16.msra.mxu0 0
    %2114 = vmatprep.mubr.bf16.mxu0 0
    %2115 = vmatmul.mubr.bf16.gmra.mxu0 %v2068
    %v2116 = vpop.f32.mrf.mxu0
    %v2117 = vadd.f32 0.0, %v2116
    %v2118 = vpop.f32.mrf.mxu0
    %v2119 = vadd.f32 0.0, %v2118
    %v2120 = vpop.f32.mrf.mxu0
    %v2121 = vadd.f32 0.0, %v2120
    %v2122 = vpop.f32.mrf.mxu0
    %v2123 = vadd.f32 0.0, %v2122
    %2124 = vmatprep.mubr.bf16.mxu0 0
    %2125 = vmatmul.mubr.bf16.gmra.mxu0 %v2071
    %v2126 = vpop.f32.mrf.mxu0
    %v2127 = vadd.f32 0.0, %v2126
    %v2128 = vpop.f32.mrf.mxu0
    %v2129 = vadd.f32 0.0, %v2128
    %v2130 = vpop.f32.mrf.mxu0
    %v2131 = vadd.f32 0.0, %v2130
    %v2132 = vpop.f32.mrf.mxu0
    %v2133 = vadd.f32 0.0, %v2132
    %2134 = vmatprep.mubr.bf16.mxu0 0
    %2135 = vmatmul.mubr.bf16.gmra.mxu0 %v2074
    %v2136 = vpop.f32.mrf.mxu0
    %v2137 = vadd.f32 0.0, %v2136
    %v2138 = vpop.f32.mrf.mxu0
    %v2139 = vadd.f32 0.0, %v2138
    %v2140 = vpop.f32.mrf.mxu0
    %v2141 = vadd.f32 0.0, %v2140
    %v2142 = vpop.f32.mrf.mxu0
    %v2143 = vadd.f32 0.0, %v2142
    %2144 = vmatprep.mubr.bf16.mxu0 0
    %2145 = vmatmul.mubr.bf16.gmra.mxu0 %v2077
    %v2146 = vpop.f32.mrf.mxu0
    %v2147 = vadd.f32 0.0, %v2146
    %v2148 = vpop.f32.mrf.mxu0
    %v2149 = vadd.f32 0.0, %v2148
    %v2150 = vpop.f32.mrf.mxu0
    %v2151 = vadd.f32 0.0, %v2150
    %v2152 = vpop.f32.mrf.mxu0
    %v2153 = vadd.f32 0.0, %v2152
    %2154 = vmatprep.mubr.bf16.mxu0 0
    %2155 = vmatmul.mubr.bf16.gmra.mxu0 %v2080
    %v2156 = vpop.f32.mrf.mxu0
    %v2157 = vadd.f32 0.0, %v2156
    %v2158 = vpop.f32.mrf.mxu0
    %v2159 = vadd.f32 0.0, %v2158
    %v2160 = vpop.f32.mrf.mxu0
    %v2161 = vpop.f32.mrf.mxu0
    %2162 = vdwg.mxu0
    %v2163 = vpack.c.bf16 %v2117, %v2117
    %v2164 = vpack.c.bf16 %v2119, %v2119
    %v2165 = vpack.c.bf16 %v2121, %v2121
    %v2166 = vpack.c.bf16 %v2123, %v2123
    %v2167 = vpack.c.bf16 %v2127, %v2127
    %v2168 = vpack.c.bf16 %v2129, %v2129
    %v2169 = vpack.c.bf16 %v2131, %v2131
    %v2170 = vpack.c.bf16 %v2133, %v2133
    %v2171 = vpack.c.bf16 %v2137, %v2137
    %v2172 = vpack.c.bf16 %v2139, %v2139
    %v2173 = vpack.c.bf16 %v2141, %v2141
    %v2174 = vpack.c.bf16 %v2143, %v2143
    %v2175 = vpack.c.bf16 %v2147, %v2147
    %v2176 = vpack.c.bf16 %v2149, %v2149
    %v2177 = vpack.c.bf16 %v2151, %v2151
    %v2178 = vpack.c.bf16 %v2153, %v2153
    %v2179 = vpack.c.bf16 %v2157, %v2157
    %v2180 = vpack.c.bf16 %v2159, %v2159
    %v2181 = vld [vmem:[#allocation7] sm:$0xff]
    %v2182 = vld [vmem:[#allocation7 + $0x8] sm:$0xff]
    %v2183 = vld [vmem:[#allocation7 + $0x10] sm:$0xff]
    %v2184 = vld [vmem:[#allocation7 + $0x18] sm:$0xff]
    %v2185 = vld [vmem:[#allocation7 + $0x20] sm:$0xff]
    %v2186 = vld [vmem:[#allocation7 + $0x28] sm:$0xff]
    %v2187 = vld [vmem:[#allocation7 + $0x30] sm:$0xff]
    %v2188 = vld [vmem:[#allocation7 + $0x38] sm:$0xff]
    %v2189 = vld [vmem:[#allocation7 + $0x40] sm:$0xff]
    %v2190 = vld [vmem:[#allocation7 + $0x48] sm:$0xff]
    %v2191 = vld [vmem:[#allocation7 + $0x50] sm:$0xff]
    %v2192 = vld [vmem:[#allocation7 + $0x58] sm:$0xff]
    %v2193 = vld [vmem:[#allocation7 + $0x60] sm:$0xff]
    %v2194 = vld [vmem:[#allocation7 + $0x68] sm:$0xff]
    %v2195 = vld [vmem:[#allocation7 + $0x70] sm:$0xff]
    %v2196 = vld [vmem:[#allocation7 + $0x78] sm:$0xff]
    %v2197 = vld [vmem:[#allocation7 + $0x80] sm:$0xff]
    %v2198 = vld [vmem:[#allocation7 + $0x88] sm:$0xff]
    %v2199 = vld [vmem:[#allocation7 + $0x90] sm:$0xff]
    %v2200 = vld [vmem:[#allocation7 + $0x98] sm:$0xff]
    %v2201 = vld [vmem:[#allocation7 + $0xa0] sm:$0xff]
    %v2202 = vld [vmem:[#allocation7 + $0xa8] sm:$0xff]
    %v2203 = vld [vmem:[#allocation7 + $0xb0] sm:$0xff]
    %v2204 = vld [vmem:[#allocation7 + $0xb8] sm:$0xff]
    %v2205 = vld [vmem:[#allocation7 + $0xc0] sm:$0xff]
    %v2206 = vld [vmem:[#allocation7 + $0xc8] sm:$0xff]
    %v2207 = vld [vmem:[#allocation7 + $0xd0] sm:$0xff]
    %v2208 = vld [vmem:[#allocation7 + $0xd8] sm:$0xff]
    %v2209 = vld [vmem:[#allocation7 + $0xe0] sm:$0xff]
    %v2210 = vld [vmem:[#allocation7 + $0xe8] sm:$0xff]
    %v2211 = vld [vmem:[#allocation7 + $0xf0] sm:$0xff]
    %v2212 = vld [vmem:[#allocation7 + $0xf8] sm:$0xff]
    %v2213 = vld [vmem:[#allocation7 + $0x100] sm:$0xff]
    %v2214 = vld [vmem:[#allocation7 + $0x108] sm:$0xff]
    %v2215 = vld [vmem:[#allocation7 + $0x110] sm:$0xff]
    %v2216 = vld [vmem:[#allocation7 + $0x118] sm:$0xff]
    %v2217 = vld [vmem:[#allocation7 + $0x120] sm:$0xff]
    %v2218 = vld [vmem:[#allocation7 + $0x128] sm:$0xff]
    %v2219 = vld [vmem:[#allocation7 + $0x130] sm:$0xff]
    %v2220 = vld [vmem:[#allocation7 + $0x138] sm:$0xff]
    %v2221 = vld [vmem:[#allocation7 + $0x140] sm:$0xff]
    %v2222 = vld [vmem:[#allocation7 + $0x148] sm:$0xff]
    %v2223 = vld [vmem:[#allocation7 + $0x150] sm:$0xff]
    %v2224 = vld [vmem:[#allocation7 + $0x158] sm:$0xff]
    %v2225 = vld [vmem:[#allocation7 + $0x160] sm:$0xff]
    %v2226 = vld [vmem:[#allocation7 + $0x168] sm:$0xff]
    %v2227 = vld [vmem:[#allocation7 + $0x170] sm:$0xff]
    %v2228 = vld [vmem:[#allocation7 + $0x178] sm:$0xff]
    %v2229 = vld [vmem:[#allocation7 + $0x180] sm:$0xff]
    %v2230 = vld [vmem:[#allocation7 + $0x188] sm:$0xff]
    %v2231 = vld [vmem:[#allocation7 + $0x190] sm:$0xff]
    %v2232 = vld [vmem:[#allocation7 + $0x198] sm:$0xff]
    %v2233 = vld [vmem:[#allocation7 + $0x1a0] sm:$0xff]
    %v2234 = vld [vmem:[#allocation7 + $0x1a8] sm:$0xff]
    %v2235 = vld [vmem:[#allocation7 + $0x1b0] sm:$0xff]
    %v2236 = vld [vmem:[#allocation7 + $0x1b8] sm:$0xff]
    %v2237 = vld [vmem:[#allocation7 + $0x1c0] sm:$0xff]
    %v2238 = vld [vmem:[#allocation7 + $0x1c8] sm:$0xff]
    %v2239 = vld [vmem:[#allocation7 + $0x1d0] sm:$0xff]
    %v2240 = vld [vmem:[#allocation7 + $0x1d8] sm:$0xff]
    %v2241 = vld [vmem:[#allocation7 + $0x1e0] sm:$0xff]
    %v2242 = vld [vmem:[#allocation7 + $0x1e8] sm:$0xff]
    %v2243 = vld [vmem:[#allocation7 + $0x1f0] sm:$0xff]
    %v2244 = vld [vmem:[#allocation7 + $0x1f8] sm:$0xff]
    %v2245 = vld [vmem:[#allocation7 + $0x200] sm:$0xff]
    %v2246 = vld [vmem:[#allocation7 + $0x208] sm:$0xff]
    %v2247 = vld [vmem:[#allocation7 + $0x210] sm:$0xff]
    %v2248 = vld [vmem:[#allocation7 + $0x218] sm:$0xff]
    %v2249 = vld [vmem:[#allocation7 + $0x220] sm:$0xff]
    %v2250 = vld [vmem:[#allocation7 + $0x228] sm:$0xff]
    %v2251 = vld [vmem:[#allocation7 + $0x230] sm:$0xff]
    %v2252 = vld [vmem:[#allocation7 + $0x238] sm:$0xff]
    %v2253 = vld [vmem:[#allocation7 + $0x240] sm:$0xff]
    %v2254 = vld [vmem:[#allocation7 + $0x248] sm:$0xff]
    %v2255 = vld [vmem:[#allocation7 + $0x250] sm:$0xff]
    %v2256 = vld [vmem:[#allocation7 + $0x258] sm:$0xff]
    %v2257 = vld [vmem:[#allocation7 + $0x260] sm:$0xff]
    %v2258 = vld [vmem:[#allocation7 + $0x268] sm:$0xff]
    %v2259 = vld [vmem:[#allocation7 + $0x270] sm:$0xff]
    %v2260 = vld [vmem:[#allocation7 + $0x278] sm:$0xff]
    %v2261 = vld [vmem:[#allocation7 + $0x280] sm:$0xff]
    %v2262 = vld [vmem:[#allocation7 + $0x288] sm:$0xff]
    %v2263 = vld [vmem:[#allocation7 + $0x290] sm:$0xff]
    %v2264 = vld [vmem:[#allocation7 + $0x298] sm:$0xff]
    %v2265 = vld [vmem:[#allocation7 + $0x2a0] sm:$0xff]
    %v2266 = vld [vmem:[#allocation7 + $0x2a8] sm:$0xff]
    %v2267 = vld [vmem:[#allocation7 + $0x2b0] sm:$0xff]
    %v2268 = vld [vmem:[#allocation7 + $0x2b8] sm:$0xff]
    %v2269 = vld [vmem:[#allocation7 + $0x2c0] sm:$0xff]
    %v2270 = vld [vmem:[#allocation7 + $0x2c8] sm:$0xff]
    %v2271 = vld [vmem:[#allocation7 + $0x2d0] sm:$0xff]
    %v2272 = vld [vmem:[#allocation7 + $0x2d8] sm:$0xff]
    %v2273 = vld [vmem:[#allocation7 + $0x2e0] sm:$0xff]
    %v2274 = vld [vmem:[#allocation7 + $0x2e8] sm:$0xff]
    %v2275 = vld [vmem:[#allocation7 + $0x2f0] sm:$0xff]
    %v2276 = vld [vmem:[#allocation7 + $0x2f8] sm:$0xff]
    %v2277 = vld [vmem:[#allocation7 + $0x300] sm:$0xff]
    %v2278 = vld [vmem:[#allocation7 + $0x308] sm:$0xff]
    %v2279 = vld [vmem:[#allocation7 + $0x310] sm:$0xff]
    %v2280 = vld [vmem:[#allocation7 + $0x318] sm:$0xff]
    %v2281 = vld [vmem:[#allocation7 + $0x320] sm:$0xff]
    %v2282 = vld [vmem:[#allocation7 + $0x328] sm:$0xff]
    %v2283 = vld [vmem:[#allocation7 + $0x330] sm:$0xff]
    %v2284 = vld [vmem:[#allocation7 + $0x338] sm:$0xff]
    %v2285 = vld [vmem:[#allocation7 + $0x340] sm:$0xff]
    %v2286 = vld [vmem:[#allocation7 + $0x348] sm:$0xff]
    %v2287 = vld [vmem:[#allocation7 + $0x350] sm:$0xff]
    %v2288 = vld [vmem:[#allocation7 + $0x358] sm:$0xff]
    %v2289 = vld [vmem:[#allocation7 + $0x360] sm:$0xff]
    %v2290 = vld [vmem:[#allocation7 + $0x368] sm:$0xff]
    %v2291 = vld [vmem:[#allocation7 + $0x370] sm:$0xff]
    %v2292 = vld [vmem:[#allocation7 + $0x378] sm:$0xff]
    %v2293 = vld [vmem:[#allocation7 + $0x380] sm:$0xff]
    %v2294 = vld [vmem:[#allocation7 + $0x388] sm:$0xff]
    %v2295 = vld [vmem:[#allocation7 + $0x390] sm:$0xff]
    %v2296 = vld [vmem:[#allocation7 + $0x398] sm:$0xff]
    %v2297 = vld [vmem:[#allocation7 + $0x3a0] sm:$0xff]
    %v2298 = vld [vmem:[#allocation7 + $0x3a8] sm:$0xff]
    %v2299 = vld [vmem:[#allocation7 + $0x3b0] sm:$0xff]
    %v2300 = vld [vmem:[#allocation7 + $0x3b8] sm:$0xff]
    %v2301 = vld [vmem:[#allocation7 + $0x3c0] sm:$0xff]
    %v2302 = vld [vmem:[#allocation7 + $0x3c8] sm:$0xff]
    %v2303 = vld [vmem:[#allocation7 + $0x3d0] sm:$0xff]
    %v2304 = vld [vmem:[#allocation7 + $0x3d8] sm:$0xff]
    %v2305 = vld [vmem:[#allocation7 + $0x3e0] sm:$0xff]
    %v2306 = vld [vmem:[#allocation7 + $0x3e8] sm:$0xff]
    %v2307 = vld [vmem:[#allocation7 + $0x3f0] sm:$0xff]
    %v2308 = vld [vmem:[#allocation7 + $0x3f8] sm:$0xff]
    %v2309 = vld [vmem:[#allocation7 + $0x400] sm:$0xff]
    %v2310 = vld [vmem:[#allocation7 + $0x408] sm:$0xff]
    %v2311 = vld [vmem:[#allocation7 + $0x410] sm:$0xff]
    %v2312 = vld [vmem:[#allocation7 + $0x418] sm:$0xff]
    %v2313 = vld [vmem:[#allocation7 + $0x420] sm:$0xff]
    %v2314 = vld [vmem:[#allocation7 + $0x428] sm:$0xff]
    %v2315 = vld [vmem:[#allocation7 + $0x430] sm:$0xff]
    %v2316 = vld [vmem:[#allocation7 + $0x438] sm:$0xff]
    %v2317 = vld [vmem:[#allocation7 + $0x440] sm:$0xff]
    %v2318 = vld [vmem:[#allocation7 + $0x448] sm:$0xff]
    %v2319 = vld [vmem:[#allocation7 + $0x450] sm:$0xff]
    %v2320 = vld [vmem:[#allocation7 + $0x458] sm:$0xff]
    %v2321 = vld [vmem:[#allocation7 + $0x460] sm:$0xff]
    %v2322 = vld [vmem:[#allocation7 + $0x468] sm:$0xff]
    %v2323 = vld [vmem:[#allocation7 + $0x470] sm:$0xff]
    %v2324 = vld [vmem:[#allocation7 + $0x478] sm:$0xff]
    %v2325 = vld [vmem:[#allocation7 + $0x480] sm:$0xff]
    %v2326 = vld [vmem:[#allocation7 + $0x488] sm:$0xff]
    %v2327 = vld [vmem:[#allocation7 + $0x490] sm:$0xff]
    %v2328 = vld [vmem:[#allocation7 + $0x498] sm:$0xff]
    %v2329 = vld [vmem:[#allocation7 + $0x4a0] sm:$0xff]
    %v2330 = vld [vmem:[#allocation7 + $0x4a8] sm:$0xff]
    %v2331 = vld [vmem:[#allocation7 + $0x4b0] sm:$0xff]
    %v2332 = vld [vmem:[#allocation7 + $0x4b8] sm:$0xff]
    %v2333 = vld [vmem:[#allocation7 + $0x4c0] sm:$0xff]
    %v2334 = vld [vmem:[#allocation7 + $0x4c8] sm:$0xff]
    %v2335 = vld [vmem:[#allocation7 + $0x4d0] sm:$0xff]
    %v2336 = vld [vmem:[#allocation7 + $0x4d8] sm:$0xff]
    %v2337 = vld [vmem:[#allocation7 + $0x4e0] sm:$0xff]
    %v2338 = vld [vmem:[#allocation7 + $0x4e8] sm:$0xff]
    %v2339 = vld [vmem:[#allocation7 + $0x4f0] sm:$0xff]
    %v2340 = vld [vmem:[#allocation7 + $0x4f8] sm:$0xff]
    %v2341 = vld [vmem:[#allocation7 + $0x500] sm:$0xff]
    %v2342 = vld [vmem:[#allocation7 + $0x508] sm:$0xff]
    %v2343 = vld [vmem:[#allocation7 + $0x510] sm:$0xff]
    %v2344 = vld [vmem:[#allocation7 + $0x518] sm:$0xff]
    %v2345 = vld [vmem:[#allocation7 + $0x520] sm:$0xff]
    %v2346 = vld [vmem:[#allocation7 + $0x528] sm:$0xff]
    %v2347 = vld [vmem:[#allocation7 + $0x530] sm:$0xff]
    %v2348 = vld [vmem:[#allocation7 + $0x538] sm:$0xff]
    %v2349 = vld [vmem:[#allocation7 + $0x540] sm:$0xff]
    %v2350 = vld [vmem:[#allocation7 + $0x548] sm:$0xff]
    %v2351 = vld [vmem:[#allocation7 + $0x550] sm:$0xff]
    %v2352 = vld [vmem:[#allocation7 + $0x558] sm:$0xff]
    %v2353 = vld [vmem:[#allocation7 + $0x560] sm:$0xff]
    %v2354 = vld [vmem:[#allocation7 + $0x568] sm:$0xff]
    %v2355 = vld [vmem:[#allocation7 + $0x570] sm:$0xff]
    %v2356 = vld [vmem:[#allocation7 + $0x578] sm:$0xff]
    %v2357 = vld [vmem:[#allocation7 + $0x580] sm:$0xff]
    %v2358 = vld [vmem:[#allocation7 + $0x588] sm:$0xff]
    %v2359 = vld [vmem:[#allocation7 + $0x590] sm:$0xff]
    %v2360 = vld [vmem:[#allocation7 + $0x598] sm:$0xff]
    %v2361 = vld [vmem:[#allocation7 + $0x5a0] sm:$0xff]
    %v2362 = vld [vmem:[#allocation7 + $0x5a8] sm:$0xff]
    %v2363 = vld [vmem:[#allocation7 + $0x5b0] sm:$0xff]
    %v2364 = vld [vmem:[#allocation7 + $0x5b8] sm:$0xff]
    %v2365 = vld [vmem:[#allocation7 + $0x5c0] sm:$0xff]
    %v2366 = vld [vmem:[#allocation7 + $0x5c8] sm:$0xff]
    %v2367 = vld [vmem:[#allocation7 + $0x5d0] sm:$0xff]
    %v2368 = vld [vmem:[#allocation7 + $0x5d8] sm:$0xff]
    %v2369 = vld [vmem:[#allocation7 + $0x5e0] sm:$0xff]
    %v2370 = vld [vmem:[#allocation7 + $0x5e8] sm:$0xff]
    %v2371 = vld [vmem:[#allocation7 + $0x5f0] sm:$0xff]
    %v2372 = vld [vmem:[#allocation7 + $0x5f8] sm:$0xff]
    %v2373 = vld [vmem:[#allocation7 + $0x600] sm:$0xff]
    %v2374 = vld [vmem:[#allocation7 + $0x608] sm:$0xff]
    %v2375 = vld [vmem:[#allocation7 + $0x610] sm:$0xff]
    %v2376 = vld [vmem:[#allocation7 + $0x618] sm:$0xff]
    %v2377 = vld [vmem:[#allocation7 + $0x620] sm:$0xff]
    %v2378 = vld [vmem:[#allocation7 + $0x628] sm:$0xff]
    %v2379 = vld [vmem:[#allocation7 + $0x630] sm:$0xff]
    %v2380 = vld [vmem:[#allocation7 + $0x638] sm:$0xff]
    %v2381 = vld [vmem:[#allocation7 + $0x640] sm:$0xff]
    %v2382 = vld [vmem:[#allocation7 + $0x648] sm:$0xff]
    %v2383 = vld [vmem:[#allocation7 + $0x650] sm:$0xff]
    %v2384 = vld [vmem:[#allocation7 + $0x658] sm:$0xff]
    %v2385 = vld [vmem:[#allocation7 + $0x660] sm:$0xff]
    %v2386 = vld [vmem:[#allocation7 + $0x668] sm:$0xff]
    %v2387 = vld [vmem:[#allocation7 + $0x670] sm:$0xff]
    %v2388 = vld [vmem:[#allocation7 + $0x678] sm:$0xff]
    %v2389 = vld [vmem:[#allocation7 + $0x680] sm:$0xff]
    %v2390 = vld [vmem:[#allocation7 + $0x688] sm:$0xff]
    %v2391 = vld [vmem:[#allocation7 + $0x690] sm:$0xff]
    %v2392 = vld [vmem:[#allocation7 + $0x698] sm:$0xff]
    %v2393 = vld [vmem:[#allocation7 + $0x6a0] sm:$0xff]
    %v2394 = vld [vmem:[#allocation7 + $0x6a8] sm:$0xff]
    %v2395 = vld [vmem:[#allocation7 + $0x6b0] sm:$0xff]
    %v2396 = vld [vmem:[#allocation7 + $0x6b8] sm:$0xff]
    %v2397 = vld [vmem:[#allocation7 + $0x6c0] sm:$0xff]
    %v2398 = vld [vmem:[#allocation7 + $0x6c8] sm:$0xff]
    %v2399 = vld [vmem:[#allocation7 + $0x6d0] sm:$0xff]
    %v2400 = vld [vmem:[#allocation7 + $0x6d8] sm:$0xff]
    %v2401 = vld [vmem:[#allocation7 + $0x6e0] sm:$0xff]
    %v2402 = vld [vmem:[#allocation7 + $0x6e8] sm:$0xff]
    %v2403 = vld [vmem:[#allocation7 + $0x6f0] sm:$0xff]
    %v2404 = vld [vmem:[#allocation7 + $0x6f8] sm:$0xff]
    %v2405 = vld [vmem:[#allocation7 + $0x700] sm:$0xff]
    %v2406 = vld [vmem:[#allocation7 + $0x708] sm:$0xff]
    %v2407 = vld [vmem:[#allocation7 + $0x710] sm:$0xff]
    %v2408 = vld [vmem:[#allocation7 + $0x718] sm:$0xff]
    %v2409 = vld [vmem:[#allocation7 + $0x720] sm:$0xff]
    %v2410 = vld [vmem:[#allocation7 + $0x728] sm:$0xff]
    %v2411 = vld [vmem:[#allocation7 + $0x730] sm:$0xff]
    %v2412 = vld [vmem:[#allocation7 + $0x738] sm:$0xff]
    %v2413 = vld [vmem:[#allocation7 + $0x740] sm:$0xff]
    %v2414 = vld [vmem:[#allocation7 + $0x748] sm:$0xff]
    %v2415 = vld [vmem:[#allocation7 + $0x750] sm:$0xff]
    %v2416 = vld [vmem:[#allocation7 + $0x758] sm:$0xff]
    %v2417 = vld [vmem:[#allocation7 + $0x760] sm:$0xff]
    %v2418 = vld [vmem:[#allocation7 + $0x768] sm:$0xff]
    %v2419 = vld [vmem:[#allocation7 + $0x770] sm:$0xff]
    %v2420 = vld [vmem:[#allocation7 + $0x778] sm:$0xff]
    %v2421 = vld [vmem:[#allocation7 + $0x780] sm:$0xff]
    %v2422 = vld [vmem:[#allocation7 + $0x788] sm:$0xff]
    %v2423 = vld [vmem:[#allocation7 + $0x790] sm:$0xff]
    %v2424 = vld [vmem:[#allocation7 + $0x798] sm:$0xff]
    %v2425 = vld [vmem:[#allocation7 + $0x7a0] sm:$0xff]
    %v2426 = vld [vmem:[#allocation7 + $0x7a8] sm:$0xff]
    %v2427 = vld [vmem:[#allocation7 + $0x7b0] sm:$0xff]
    %v2428 = vld [vmem:[#allocation7 + $0x7b8] sm:$0xff]
    %v2429 = vld [vmem:[#allocation7 + $0x7c0] sm:$0xff]
    %v2430 = vld [vmem:[#allocation7 + $0x7c8] sm:$0xff]
    %v2431 = vld [vmem:[#allocation7 + $0x7d0] sm:$0xff]
    %v2432 = vld [vmem:[#allocation7 + $0x7d8] sm:$0xff]
    %v2433 = vld [vmem:[#allocation7 + $0x7e0] sm:$0xff]
    %v2434 = vld [vmem:[#allocation7 + $0x7e8] sm:$0xff]
    %v2435 = vld [vmem:[#allocation7 + $0x7f0] sm:$0xff]
    %v2436 = vld [vmem:[#allocation7 + $0x7f8] sm:$0xff]
    %v2437 = vld [vmem:[#allocation7 + $0x800] sm:$0xff]
    %v2438 = vld [vmem:[#allocation7 + $0x808] sm:$0xff]
    %v2439 = vld [vmem:[#allocation7 + $0x810] sm:$0xff]
    %v2440 = vld [vmem:[#allocation7 + $0x818] sm:$0xff]
    %v2441 = vld [vmem:[#allocation7 + $0x820] sm:$0xff]
    %v2442 = vld [vmem:[#allocation7 + $0x828] sm:$0xff]
    %v2443 = vld [vmem:[#allocation7 + $0x830] sm:$0xff]
    %v2444 = vld [vmem:[#allocation7 + $0x838] sm:$0xff]
    %v2445 = vld [vmem:[#allocation7 + $0x840] sm:$0xff]
    %v2446 = vld [vmem:[#allocation7 + $0x848] sm:$0xff]
    %v2447 = vld [vmem:[#allocation7 + $0x850] sm:$0xff]
    %v2448 = vld [vmem:[#allocation7 + $0x858] sm:$0xff]
    %v2449 = vld [vmem:[#allocation7 + $0x860] sm:$0xff]
    %v2450 = vld [vmem:[#allocation7 + $0x868] sm:$0xff]
    %v2451 = vld [vmem:[#allocation7 + $0x870] sm:$0xff]
    %v2452 = vld [vmem:[#allocation7 + $0x878] sm:$0xff]
    %v2453 = vld [vmem:[#allocation7 + $0x880] sm:$0xff]
    %v2454 = vld [vmem:[#allocation7 + $0x888] sm:$0xff]
    %v2455 = vld [vmem:[#allocation7 + $0x890] sm:$0xff]
    %v2456 = vld [vmem:[#allocation7 + $0x898] sm:$0xff]
    %v2457 = vld [vmem:[#allocation7 + $0x8a0] sm:$0xff]
    %v2458 = vld [vmem:[#allocation7 + $0x8a8] sm:$0xff]
    %v2459 = vld [vmem:[#allocation7 + $0x8b0] sm:$0xff]
    %v2460 = vld [vmem:[#allocation7 + $0x8b8] sm:$0xff]
    %v2461 = vld [vmem:[#allocation7 + $0x8c0] sm:$0xff]
    %v2462 = vld [vmem:[#allocation7 + $0x8c8] sm:$0xff]
    %v2463 = vld [vmem:[#allocation7 + $0x8d0] sm:$0xff]
    %v2464 = vld [vmem:[#allocation7 + $0x8d8] sm:$0xff]
    %v2465 = vld [vmem:[#allocation7 + $0x8e0] sm:$0xff]
    %v2466 = vld [vmem:[#allocation7 + $0x8e8] sm:$0xff]
    %v2467 = vld [vmem:[#allocation7 + $0x8f0] sm:$0xff]
    %v2468 = vld [vmem:[#allocation7 + $0x8f8] sm:$0xff]
    %v2469 = vld [vmem:[%s19] sm:$0xff]
    %2471 = vset.pattern.permute.xlu0 0
    %2472 = vperm.xlu0 %2471, %v2469
    %v2473 = vpop.permute.xlu0 %2472
    %v2763 = vunpack.c.l.b16 %v2181
    %v2764 = vunpack.c.h.b16 %v2181
    %v2765 = vunpack.c.l.b16 %v2182
    %v2766 = vunpack.c.h.b16 %v2182
    %v2767 = vunpack.c.l.b16 %v2183
    %v2768 = vunpack.c.h.b16 %v2183
    %v2769 = vunpack.c.l.b16 %v2184
    %v2770 = vunpack.c.h.b16 %v2184
    %v2771 = vunpack.c.l.b16 %v2185
    %v2772 = vunpack.c.h.b16 %v2185
    %v2773 = vunpack.c.l.b16 %v2186
    %v2774 = vunpack.c.h.b16 %v2186
    %v2775 = vunpack.c.l.b16 %v2187
    %v2776 = vunpack.c.h.b16 %v2187
    %v2777 = vunpack.c.l.b16 %v2188
    %v2778 = vunpack.c.h.b16 %v2188
    %v2779 = vunpack.c.l.b16 %v2189
    %v2780 = vunpack.c.h.b16 %v2189
    %v2781 = vunpack.c.l.b16 %v2190
    %v2782 = vunpack.c.h.b16 %v2190
    %v2783 = vunpack.c.l.b16 %v2191
    %v2784 = vunpack.c.h.b16 %v2191
    %v2785 = vunpack.c.l.b16 %v2192
    %v2786 = vunpack.c.h.b16 %v2192
    %v2787 = vunpack.c.l.b16 %v2193
    %v2788 = vunpack.c.h.b16 %v2193
    %v2789 = vunpack.c.l.b16 %v2194
    %v2790 = vunpack.c.h.b16 %v2194
    %v2791 = vunpack.c.l.b16 %v2195
    %v2792 = vunpack.c.h.b16 %v2195
    %v2793 = vunpack.c.l.b16 %v2196
    %v2794 = vunpack.c.h.b16 %v2196
    %v2795 = vunpack.c.l.b16 %v2197
    %v2796 = vunpack.c.h.b16 %v2197
    %v2797 = vunpack.c.l.b16 %v2198
    %v2798 = vunpack.c.h.b16 %v2198
    %v2799 = vunpack.c.l.b16 %v2199
    %v2800 = vunpack.c.h.b16 %v2199
    %v2801 = vunpack.c.l.b16 %v2200
    %v2802 = vunpack.c.h.b16 %v2200
    %v2803 = vunpack.c.l.b16 %v2201
    %v2804 = vunpack.c.h.b16 %v2201
    %v2805 = vunpack.c.l.b16 %v2202
    %v2806 = vunpack.c.h.b16 %v2202
    %v2807 = vunpack.c.l.b16 %v2203
    %v2808 = vunpack.c.h.b16 %v2203
    %v2809 = vunpack.c.l.b16 %v2204
    %v2810 = vunpack.c.h.b16 %v2204
    %v2811 = vunpack.c.l.b16 %v2205
    %v2812 = vunpack.c.h.b16 %v2205
    %v2813 = vunpack.c.l.b16 %v2206
    %v2814 = vunpack.c.h.b16 %v2206
    %v2815 = vunpack.c.l.b16 %v2207
    %v2816 = vunpack.c.h.b16 %v2207
    %v2817 = vunpack.c.l.b16 %v2208
    %v2818 = vunpack.c.h.b16 %v2208
    %v2819 = vunpack.c.l.b16 %v2209
    %v2820 = vunpack.c.h.b16 %v2209
    %v2821 = vunpack.c.l.b16 %v2210
    %v2822 = vunpack.c.h.b16 %v2210
    %v2823 = vunpack.c.l.b16 %v2211
    %v2824 = vunpack.c.h.b16 %v2211
    %v2825 = vunpack.c.l.b16 %v2212
    %v2826 = vunpack.c.h.b16 %v2212
    %v2827 = vunpack.c.l.b16 %v2213
    %v2828 = vunpack.c.h.b16 %v2213
    %v2829 = vunpack.c.l.b16 %v2214
    %v2830 = vunpack.c.h.b16 %v2214
    %v2831 = vunpack.c.l.b16 %v2215
    %v2832 = vunpack.c.h.b16 %v2215
    %v2833 = vunpack.c.l.b16 %v2216
    %v2834 = vunpack.c.h.b16 %v2216
    %v2835 = vunpack.c.l.b16 %v2217
    %v2836 = vunpack.c.h.b16 %v2217
    %v2837 = vunpack.c.l.b16 %v2218
    %v2838 = vunpack.c.h.b16 %v2218
    %v2839 = vunpack.c.l.b16 %v2219
    %v2840 = vunpack.c.h.b16 %v2219
    %v2841 = vunpack.c.l.b16 %v2220
    %v2842 = vunpack.c.h.b16 %v2220
    %v2843 = vunpack.c.l.b16 %v2221
    %v2844 = vunpack.c.h.b16 %v2221
    %v2845 = vunpack.c.l.b16 %v2222
    %v2846 = vunpack.c.h.b16 %v2222
    %v2847 = vunpack.c.l.b16 %v2223
    %v2848 = vunpack.c.h.b16 %v2223
    %v2849 = vunpack.c.l.b16 %v2224
    %v2850 = vunpack.c.h.b16 %v2224
    %v2851 = vunpack.c.l.b16 %v2225
    %v2852 = vunpack.c.h.b16 %v2225
    %v2853 = vunpack.c.l.b16 %v2226
    %v2854 = vunpack.c.h.b16 %v2226
    %v2855 = vunpack.c.l.b16 %v2227
    %v2856 = vunpack.c.h.b16 %v2227
    %v2857 = vunpack.c.l.b16 %v2228
    %v2858 = vunpack.c.h.b16 %v2228
    %v2859 = vunpack.c.l.b16 %v2229
    %v2860 = vunpack.c.h.b16 %v2229
    %v2861 = vunpack.c.l.b16 %v2230
    %v2862 = vunpack.c.h.b16 %v2230
    %v2863 = vunpack.c.l.b16 %v2231
    %v2864 = vunpack.c.h.b16 %v2231
    %v2865 = vunpack.c.l.b16 %v2232
    %v2866 = vunpack.c.h.b16 %v2232
    %v2867 = vunpack.c.l.b16 %v2233
    %v2868 = vunpack.c.h.b16 %v2233
    %v2869 = vunpack.c.l.b16 %v2234
    %v2870 = vunpack.c.h.b16 %v2234
    %v2871 = vunpack.c.l.b16 %v2235
    %v2872 = vunpack.c.h.b16 %v2235
    %v2873 = vunpack.c.l.b16 %v2236
    %v2874 = vunpack.c.h.b16 %v2236
    %v2875 = vunpack.c.l.b16 %v2237
    %v2876 = vunpack.c.h.b16 %v2237
    %v2877 = vunpack.c.l.b16 %v2238
    %v2878 = vunpack.c.h.b16 %v2238
    %v2879 = vunpack.c.l.b16 %v2239
    %v2880 = vunpack.c.h.b16 %v2239
    %v2881 = vunpack.c.l.b16 %v2240
    %v2882 = vunpack.c.h.b16 %v2240
    %v2883 = vunpack.c.l.b16 %v2241
    %v2884 = vunpack.c.h.b16 %v2241
    %v2885 = vunpack.c.l.b16 %v2242
    %v2886 = vunpack.c.h.b16 %v2242
    %v2887 = vunpack.c.l.b16 %v2243
    %v2888 = vunpack.c.h.b16 %v2243
    %v2889 = vunpack.c.l.b16 %v2244
    %v2890 = vunpack.c.h.b16 %v2244
    %v2891 = vunpack.c.l.b16 %v2245
    %v2892 = vunpack.c.h.b16 %v2245
    %v2893 = vunpack.c.l.b16 %v2246
    %v2894 = vunpack.c.h.b16 %v2246
    %v2895 = vunpack.c.l.b16 %v2247
    %v2896 = vunpack.c.h.b16 %v2247
    %v2897 = vunpack.c.l.b16 %v2248
    %v2898 = vunpack.c.h.b16 %v2248
    %v2899 = vunpack.c.l.b16 %v2249
    %v2900 = vunpack.c.h.b16 %v2249
    %v2901 = vunpack.c.l.b16 %v2250
    %v2902 = vunpack.c.h.b16 %v2250
    %v2903 = vunpack.c.l.b16 %v2251
    %v2904 = vunpack.c.h.b16 %v2251
    %v2905 = vunpack.c.l.b16 %v2252
    %v2906 = vunpack.c.h.b16 %v2252
    %v2907 = vunpack.c.l.b16 %v2253
    %v2908 = vunpack.c.h.b16 %v2253
    %v2909 = vunpack.c.l.b16 %v2254
    %v2910 = vunpack.c.h.b16 %v2254
    %v2911 = vunpack.c.l.b16 %v2255
    %v2912 = vunpack.c.h.b16 %v2255
    %v2913 = vunpack.c.l.b16 %v2256
    %v2914 = vunpack.c.h.b16 %v2256
    %v2915 = vunpack.c.l.b16 %v2257
    %v2916 = vunpack.c.h.b16 %v2257
    %v2917 = vunpack.c.l.b16 %v2258
    %v2918 = vunpack.c.h.b16 %v2258
    %v2919 = vunpack.c.l.b16 %v2259
    %v2920 = vunpack.c.h.b16 %v2259
    %v2921 = vunpack.c.l.b16 %v2260
    %v2922 = vunpack.c.h.b16 %v2260
    %v2923 = vunpack.c.l.b16 %v2261
    %v2924 = vunpack.c.h.b16 %v2261
    %v2925 = vunpack.c.l.b16 %v2262
    %v2926 = vunpack.c.h.b16 %v2262
    %v2927 = vunpack.c.l.b16 %v2263
    %v2928 = vunpack.c.h.b16 %v2263
    %v2929 = vunpack.c.l.b16 %v2264
    %v2930 = vunpack.c.h.b16 %v2264
    %v2931 = vunpack.c.l.b16 %v2265
    %v2932 = vunpack.c.h.b16 %v2265
    %v2933 = vunpack.c.l.b16 %v2266
    %v2934 = vunpack.c.h.b16 %v2266
    %v2935 = vunpack.c.l.b16 %v2267
    %v2936 = vunpack.c.h.b16 %v2267
    %v2937 = vunpack.c.l.b16 %v2268
    %v2938 = vunpack.c.h.b16 %v2268
    %v2939 = vunpack.c.l.b16 %v2269
    %v2940 = vunpack.c.h.b16 %v2269
    %v2941 = vunpack.c.l.b16 %v2270
    %v2942 = vunpack.c.h.b16 %v2270
    %v2943 = vunpack.c.l.b16 %v2271
    %v2944 = vunpack.c.h.b16 %v2271
    %v2945 = vunpack.c.l.b16 %v2272
    %v2946 = vunpack.c.h.b16 %v2272
    %v2947 = vunpack.c.l.b16 %v2273
    %v2948 = vunpack.c.h.b16 %v2273
    %v2949 = vunpack.c.l.b16 %v2274
    %v2950 = vunpack.c.h.b16 %v2274
    %v2951 = vunpack.c.l.b16 %v2275
    %v2952 = vunpack.c.h.b16 %v2275
    %v2953 = vunpack.c.l.b16 %v2276
    %v2954 = vunpack.c.h.b16 %v2276
    %v2955 = vunpack.c.l.b16 %v2277
    %v2956 = vunpack.c.h.b16 %v2277
    %v2957 = vunpack.c.l.b16 %v2278
    %v2958 = vunpack.c.h.b16 %v2278
    %v2959 = vunpack.c.l.b16 %v2279
    %v2960 = vunpack.c.h.b16 %v2279
    %v2961 = vunpack.c.l.b16 %v2280
    %v2962 = vunpack.c.h.b16 %v2280
    %v2963 = vunpack.c.l.b16 %v2281
    %v2964 = vunpack.c.h.b16 %v2281
    %v2965 = vunpack.c.l.b16 %v2282
    %v2966 = vunpack.c.h.b16 %v2282
    %v2967 = vunpack.c.l.b16 %v2283
    %v2968 = vunpack.c.h.b16 %v2283
    %v2969 = vunpack.c.l.b16 %v2284
    %v2970 = vunpack.c.h.b16 %v2284
    %v2971 = vunpack.c.l.b16 %v2285
    %v2972 = vunpack.c.h.b16 %v2285
    %v2973 = vunpack.c.l.b16 %v2286
    %v2974 = vunpack.c.h.b16 %v2286
    %v2975 = vunpack.c.l.b16 %v2287
    %v2976 = vunpack.c.h.b16 %v2287
    %v2977 = vunpack.c.l.b16 %v2288
    %v2978 = vunpack.c.h.b16 %v2288
    %v2979 = vunpack.c.l.b16 %v2289
    %v2980 = vunpack.c.h.b16 %v2289
    %v2981 = vunpack.c.l.b16 %v2290
    %v2982 = vunpack.c.h.b16 %v2290
    %v2983 = vunpack.c.l.b16 %v2291
    %v2984 = vunpack.c.h.b16 %v2291
    %v2985 = vunpack.c.l.b16 %v2292
    %v2986 = vunpack.c.h.b16 %v2292
    %v2987 = vunpack.c.l.b16 %v2293
    %v2988 = vunpack.c.h.b16 %v2293
    %v2989 = vunpack.c.l.b16 %v2294
    %v2990 = vunpack.c.h.b16 %v2294
    %v2991 = vunpack.c.l.b16 %v2295
    %v2992 = vunpack.c.h.b16 %v2295
    %v2993 = vunpack.c.l.b16 %v2296
    %v2994 = vunpack.c.h.b16 %v2296
    %v2995 = vunpack.c.l.b16 %v2297
    %v2996 = vunpack.c.h.b16 %v2297
    %v2997 = vunpack.c.l.b16 %v2298
    %v2998 = vunpack.c.h.b16 %v2298
    %v2999 = vunpack.c.l.b16 %v2299
    %v3000 = vunpack.c.h.b16 %v2299
    %v3001 = vunpack.c.l.b16 %v2300
    %v3002 = vunpack.c.h.b16 %v2300
    %v3003 = vunpack.c.l.b16 %v2301
    %v3004 = vunpack.c.h.b16 %v2301
    %v3005 = vunpack.c.l.b16 %v2302
    %v3006 = vunpack.c.h.b16 %v2302
    %v3007 = vunpack.c.l.b16 %v2303
    %v3008 = vunpack.c.h.b16 %v2303
    %v3009 = vunpack.c.l.b16 %v2304
    %v3010 = vunpack.c.h.b16 %v2304
    %v3011 = vunpack.c.l.b16 %v2305
    %v3012 = vunpack.c.h.b16 %v2305
    %v3013 = vunpack.c.l.b16 %v2306
    %v3014 = vunpack.c.h.b16 %v2306
    %v3015 = vunpack.c.l.b16 %v2307
    %v3016 = vunpack.c.h.b16 %v2307
    %v3017 = vunpack.c.l.b16 %v2308
    %v3018 = vunpack.c.h.b16 %v2308
    %v3019 = vunpack.c.l.b16 %v2309
    %v3020 = vunpack.c.h.b16 %v2309
    %v3021 = vunpack.c.l.b16 %v2310
    %v3022 = vunpack.c.h.b16 %v2310
    %v3023 = vunpack.c.l.b16 %v2311
    %v3024 = vunpack.c.h.b16 %v2311
    %v3025 = vunpack.c.l.b16 %v2312
    %v3026 = vunpack.c.h.b16 %v2312
    %v3027 = vunpack.c.l.b16 %v2313
    %v3028 = vunpack.c.h.b16 %v2313
    %v3029 = vunpack.c.l.b16 %v2314
    %v3030 = vunpack.c.h.b16 %v2314
    %v3031 = vunpack.c.l.b16 %v2315
    %v3032 = vunpack.c.h.b16 %v2315
    %v3033 = vunpack.c.l.b16 %v2316
    %v3034 = vunpack.c.h.b16 %v2316
    %v3035 = vunpack.c.l.b16 %v2317
    %v3036 = vunpack.c.h.b16 %v2317
    %v3037 = vunpack.c.l.b16 %v2318
    %v3038 = vunpack.c.h.b16 %v2318
    %v3039 = vunpack.c.l.b16 %v2319
    %v3040 = vunpack.c.h.b16 %v2319
    %v3041 = vunpack.c.l.b16 %v2320
    %v3042 = vunpack.c.h.b16 %v2320
    %v3043 = vunpack.c.l.b16 %v2321
    %v3044 = vunpack.c.h.b16 %v2321
    %v3045 = vunpack.c.l.b16 %v2322
    %v3046 = vunpack.c.h.b16 %v2322
    %v3047 = vunpack.c.l.b16 %v2323
    %v3048 = vunpack.c.h.b16 %v2323
    %v3049 = vunpack.c.l.b16 %v2324
    %v3050 = vunpack.c.h.b16 %v2324
    %v3051 = vunpack.c.l.b16 %v2325
    %v3052 = vunpack.c.h.b16 %v2325
    %v3053 = vunpack.c.l.b16 %v2326
    %v3054 = vunpack.c.h.b16 %v2326
    %v3055 = vunpack.c.l.b16 %v2327
    %v3056 = vunpack.c.h.b16 %v2327
    %v3057 = vunpack.c.l.b16 %v2328
    %v3058 = vunpack.c.h.b16 %v2328
    %v3059 = vunpack.c.l.b16 %v2329
    %v3060 = vunpack.c.h.b16 %v2329
    %v3061 = vunpack.c.l.b16 %v2330
    %v3062 = vunpack.c.h.b16 %v2330
    %v3063 = vunpack.c.l.b16 %v2331
    %v3064 = vunpack.c.h.b16 %v2331
    %v3065 = vunpack.c.l.b16 %v2332
    %v3066 = vunpack.c.h.b16 %v2332
    %v3067 = vunpack.c.l.b16 %v2333
    %v3068 = vunpack.c.h.b16 %v2333
    %v3069 = vunpack.c.l.b16 %v2334
    %v3070 = vunpack.c.h.b16 %v2334
    %v3071 = vunpack.c.l.b16 %v2335
    %v3072 = vunpack.c.h.b16 %v2335
    %v3073 = vunpack.c.l.b16 %v2336
    %v3074 = vunpack.c.h.b16 %v2336
    %v3075 = vunpack.c.l.b16 %v2337
    %v3076 = vunpack.c.h.b16 %v2337
    %v3077 = vunpack.c.l.b16 %v2338
    %v3078 = vunpack.c.h.b16 %v2338
    %v3079 = vunpack.c.l.b16 %v2339
    %v3080 = vunpack.c.h.b16 %v2339
    %v3081 = vunpack.c.l.b16 %v2340
    %v3082 = vunpack.c.h.b16 %v2340
    %v3083 = vunpack.c.l.b16 %v2341
    %v3084 = vunpack.c.h.b16 %v2341
    %v3085 = vunpack.c.l.b16 %v2342
    %v3086 = vunpack.c.h.b16 %v2342
    %v3087 = vunpack.c.l.b16 %v2343
    %v3088 = vunpack.c.h.b16 %v2343
    %v3089 = vunpack.c.l.b16 %v2344
    %v3090 = vunpack.c.h.b16 %v2344
    %v3091 = vunpack.c.l.b16 %v2345
    %v3092 = vunpack.c.h.b16 %v2345
    %v3093 = vunpack.c.l.b16 %v2346
    %v3094 = vunpack.c.h.b16 %v2346
    %v3095 = vunpack.c.l.b16 %v2347
    %v3096 = vunpack.c.h.b16 %v2347
    %v3097 = vunpack.c.l.b16 %v2348
    %v3098 = vunpack.c.h.b16 %v2348
    %v3099 = vunpack.c.l.b16 %v2349
    %v3100 = vunpack.c.h.b16 %v2349
    %v3101 = vunpack.c.l.b16 %v2350
    %v3102 = vunpack.c.h.b16 %v2350
    %v3103 = vunpack.c.l.b16 %v2351
    %v3104 = vunpack.c.h.b16 %v2351
    %v3105 = vunpack.c.l.b16 %v2352
    %v3106 = vunpack.c.h.b16 %v2352
    %v3107 = vunpack.c.l.b16 %v2353
    %v3108 = vunpack.c.h.b16 %v2353
    %v3109 = vunpack.c.l.b16 %v2354
    %v3110 = vunpack.c.h.b16 %v2354
    %v3111 = vunpack.c.l.b16 %v2355
    %v3112 = vunpack.c.h.b16 %v2355
    %v3113 = vunpack.c.l.b16 %v2356
    %v3114 = vunpack.c.h.b16 %v2356
    %v3115 = vunpack.c.l.b16 %v2357
    %v3116 = vunpack.c.h.b16 %v2357
    %v3117 = vunpack.c.l.b16 %v2358
    %v3118 = vunpack.c.h.b16 %v2358
    %v3119 = vunpack.c.l.b16 %v2359
    %v3120 = vunpack.c.h.b16 %v2359
    %v3121 = vunpack.c.l.b16 %v2360
    %v3122 = vunpack.c.h.b16 %v2360
    %v3123 = vunpack.c.l.b16 %v2361
    %v3124 = vunpack.c.h.b16 %v2361
    %v3125 = vunpack.c.l.b16 %v2362
    %v3126 = vunpack.c.h.b16 %v2362
    %v3127 = vunpack.c.l.b16 %v2363
    %v3128 = vunpack.c.h.b16 %v2363
    %v3129 = vunpack.c.l.b16 %v2364
    %v3130 = vunpack.c.h.b16 %v2364
    %v3131 = vunpack.c.l.b16 %v2365
    %v3132 = vunpack.c.h.b16 %v2365
    %v3133 = vunpack.c.l.b16 %v2366
    %v3134 = vunpack.c.h.b16 %v2366
    %v3135 = vunpack.c.l.b16 %v2367
    %v3136 = vunpack.c.h.b16 %v2367
    %v3137 = vunpack.c.l.b16 %v2368
    %v3138 = vunpack.c.h.b16 %v2368
    %v3139 = vunpack.c.l.b16 %v2369
    %v3140 = vunpack.c.h.b16 %v2369
    %v3141 = vunpack.c.l.b16 %v2370
    %v3142 = vunpack.c.h.b16 %v2370
    %v3143 = vunpack.c.l.b16 %v2371
    %v3144 = vunpack.c.h.b16 %v2371
    %v3145 = vunpack.c.l.b16 %v2372
    %v3146 = vunpack.c.h.b16 %v2372
    %v3147 = vunpack.c.l.b16 %v2373
    %v3148 = vunpack.c.h.b16 %v2373
    %v3149 = vunpack.c.l.b16 %v2374
    %v3150 = vunpack.c.h.b16 %v2374
    %v3151 = vunpack.c.l.b16 %v2375
    %v3152 = vunpack.c.h.b16 %v2375
    %v3153 = vunpack.c.l.b16 %v2376
    %v3154 = vunpack.c.h.b16 %v2376
    %v3155 = vunpack.c.l.b16 %v2377
    %v3156 = vunpack.c.h.b16 %v2377
    %v3157 = vunpack.c.l.b16 %v2378
    %v3158 = vunpack.c.h.b16 %v2378
    %v3159 = vunpack.c.l.b16 %v2379
    %v3160 = vunpack.c.h.b16 %v2379
    %v3161 = vunpack.c.l.b16 %v2380
    %v3162 = vunpack.c.h.b16 %v2380
    %v3163 = vunpack.c.l.b16 %v2381
    %v3164 = vunpack.c.h.b16 %v2381
    %v3165 = vunpack.c.l.b16 %v2382
    %v3166 = vunpack.c.h.b16 %v2382
    %v3167 = vunpack.c.l.b16 %v2383
    %v3168 = vunpack.c.h.b16 %v2383
    %v3169 = vunpack.c.l.b16 %v2384
    %v3170 = vunpack.c.h.b16 %v2384
    %v3171 = vunpack.c.l.b16 %v2385
    %v3172 = vunpack.c.h.b16 %v2385
    %v3173 = vunpack.c.l.b16 %v2386
    %v3174 = vunpack.c.h.b16 %v2386
    %v3175 = vunpack.c.l.b16 %v2387
    %v3176 = vunpack.c.h.b16 %v2387
    %v3177 = vunpack.c.l.b16 %v2388
    %v3178 = vunpack.c.h.b16 %v2388
    %v3179 = vunpack.c.l.b16 %v2389
    %v3180 = vunpack.c.h.b16 %v2389
    %v3181 = vunpack.c.l.b16 %v2390
    %v3182 = vunpack.c.h.b16 %v2390
    %v3183 = vunpack.c.l.b16 %v2391
    %v3184 = vunpack.c.h.b16 %v2391
    %v3185 = vunpack.c.l.b16 %v2392
    %v3186 = vunpack.c.h.b16 %v2392
    %v3187 = vunpack.c.l.b16 %v2393
    %v3188 = vunpack.c.h.b16 %v2393
    %v3189 = vunpack.c.l.b16 %v2394
    %v3190 = vunpack.c.h.b16 %v2394
    %v3191 = vunpack.c.l.b16 %v2395
    %v3192 = vunpack.c.h.b16 %v2395
    %v3193 = vunpack.c.l.b16 %v2396
    %v3194 = vunpack.c.h.b16 %v2396
    %v3195 = vunpack.c.l.b16 %v2397
    %v3196 = vunpack.c.h.b16 %v2397
    %v3197 = vunpack.c.l.b16 %v2398
    %v3198 = vunpack.c.h.b16 %v2398
    %v3199 = vunpack.c.l.b16 %v2399
    %v3200 = vunpack.c.h.b16 %v2399
    %v3201 = vunpack.c.l.b16 %v2400
    %v3202 = vunpack.c.h.b16 %v2400
    %v3203 = vunpack.c.l.b16 %v2401
    %v3204 = vunpack.c.h.b16 %v2401
    %v3205 = vunpack.c.l.b16 %v2402
    %v3206 = vunpack.c.h.b16 %v2402
    %v3207 = vunpack.c.l.b16 %v2403
    %v3208 = vunpack.c.h.b16 %v2403
    %v3209 = vunpack.c.l.b16 %v2404
    %v3210 = vunpack.c.h.b16 %v2404
    %v3211 = vunpack.c.l.b16 %v2405
    %v3212 = vunpack.c.h.b16 %v2405
    %v3213 = vunpack.c.l.b16 %v2406
    %v3214 = vunpack.c.h.b16 %v2406
    %v3215 = vunpack.c.l.b16 %v2407
    %v3216 = vunpack.c.h.b16 %v2407
    %v3217 = vunpack.c.l.b16 %v2408
    %v3218 = vunpack.c.h.b16 %v2408
    %v3219 = vunpack.c.l.b16 %v2409
    %v3220 = vunpack.c.h.b16 %v2409
    %v3221 = vunpack.c.l.b16 %v2410
    %v3222 = vunpack.c.h.b16 %v2410
    %v3223 = vunpack.c.l.b16 %v2411
    %v3224 = vunpack.c.h.b16 %v2411
    %v3225 = vunpack.c.l.b16 %v2412
    %v3226 = vunpack.c.h.b16 %v2412
    %v3227 = vunpack.c.l.b16 %v2413
    %v3228 = vunpack.c.h.b16 %v2413
    %v3229 = vunpack.c.l.b16 %v2414
    %v3230 = vunpack.c.h.b16 %v2414
    %v3231 = vunpack.c.l.b16 %v2415
    %v3232 = vunpack.c.h.b16 %v2415
    %v3233 = vunpack.c.l.b16 %v2416
    %v3234 = vunpack.c.h.b16 %v2416
    %v3235 = vunpack.c.l.b16 %v2417
    %v3236 = vunpack.c.h.b16 %v2417
    %v3237 = vunpack.c.l.b16 %v2418
    %v3238 = vunpack.c.h.b16 %v2418
    %v3239 = vunpack.c.l.b16 %v2419
    %v3240 = vunpack.c.h.b16 %v2419
    %v3241 = vunpack.c.l.b16 %v2420
    %v3242 = vunpack.c.h.b16 %v2420
    %v3243 = vunpack.c.l.b16 %v2421
    %v3244 = vunpack.c.h.b16 %v2421
    %v3245 = vunpack.c.l.b16 %v2422
    %v3246 = vunpack.c.h.b16 %v2422
    %v3247 = vunpack.c.l.b16 %v2423
    %v3248 = vunpack.c.h.b16 %v2423
    %v3249 = vunpack.c.l.b16 %v2424
    %v3250 = vunpack.c.h.b16 %v2424
    %v3251 = vunpack.c.l.b16 %v2425
    %v3252 = vunpack.c.h.b16 %v2425
    %v3253 = vunpack.c.l.b16 %v2426
    %v3254 = vunpack.c.h.b16 %v2426
    %v3255 = vunpack.c.l.b16 %v2427
    %v3256 = vunpack.c.h.b16 %v2427
    %v3257 = vunpack.c.l.b16 %v2428
    %v3258 = vunpack.c.h.b16 %v2428
    %v3259 = vunpack.c.l.b16 %v2429
    %v3260 = vunpack.c.h.b16 %v2429
    %v3261 = vunpack.c.l.b16 %v2430
    %v3262 = vunpack.c.h.b16 %v2430
    %v3263 = vunpack.c.l.b16 %v2431
    %v3264 = vunpack.c.h.b16 %v2431
    %v3265 = vunpack.c.l.b16 %v2432
    %v3266 = vunpack.c.h.b16 %v2432
    %v3267 = vunpack.c.l.b16 %v2433
    %v3268 = vunpack.c.h.b16 %v2433
    %v3269 = vunpack.c.l.b16 %v2434
    %v3270 = vunpack.c.h.b16 %v2434
    %v3271 = vunpack.c.l.b16 %v2435
    %v3272 = vunpack.c.h.b16 %v2435
    %v3273 = vunpack.c.l.b16 %v2436
    %v3274 = vunpack.c.h.b16 %v2436
    %v3275 = vunpack.c.l.b16 %v2437
    %v3276 = vunpack.c.h.b16 %v2437
    %v3277 = vunpack.c.l.b16 %v2438
    %v3278 = vunpack.c.h.b16 %v2438
    %v3279 = vunpack.c.l.b16 %v2439
    %v3280 = vunpack.c.h.b16 %v2439
    %v3281 = vunpack.c.l.b16 %v2440
    %v3282 = vunpack.c.h.b16 %v2440
    %v3283 = vunpack.c.l.b16 %v2441
    %v3284 = vunpack.c.h.b16 %v2441
    %v3285 = vunpack.c.l.b16 %v2442
    %v3286 = vunpack.c.h.b16 %v2442
    %v3287 = vunpack.c.l.b16 %v2443
    %v3288 = vunpack.c.h.b16 %v2443
    %v3289 = vunpack.c.l.b16 %v2444
    %v3290 = vunpack.c.h.b16 %v2444
    %v3291 = vunpack.c.l.b16 %v2445
    %v3292 = vunpack.c.h.b16 %v2445
    %v3293 = vunpack.c.l.b16 %v2446
    %v3294 = vunpack.c.h.b16 %v2446
    %v3295 = vunpack.c.l.b16 %v2447
    %v3296 = vunpack.c.h.b16 %v2447
    %v3297 = vunpack.c.l.b16 %v2448
    %v3298 = vunpack.c.h.b16 %v2448
    %v3299 = vunpack.c.l.b16 %v2449
    %v3300 = vunpack.c.h.b16 %v2449
    %v3301 = vunpack.c.l.b16 %v2450
    %v3302 = vunpack.c.h.b16 %v2450
    %v3303 = vunpack.c.l.b16 %v2451
    %v3304 = vunpack.c.h.b16 %v2451
    %v3305 = vunpack.c.l.b16 %v2452
    %v3306 = vunpack.c.h.b16 %v2452
    %v3307 = vunpack.c.l.b16 %v2453
    %v3308 = vunpack.c.h.b16 %v2453
    %v3309 = vunpack.c.l.b16 %v2454
    %v3310 = vunpack.c.h.b16 %v2454
    %v3311 = vunpack.c.l.b16 %v2455
    %v3312 = vunpack.c.h.b16 %v2455
    %v3313 = vunpack.c.l.b16 %v2456
    %v3314 = vunpack.c.h.b16 %v2456
    %v3315 = vunpack.c.l.b16 %v2457
    %v3316 = vunpack.c.h.b16 %v2457
    %v3317 = vunpack.c.l.b16 %v2458
    %v3318 = vunpack.c.h.b16 %v2458
    %v3319 = vunpack.c.l.b16 %v2459
    %v3320 = vunpack.c.h.b16 %v2459
    %v3321 = vunpack.c.l.b16 %v2460
    %v3322 = vunpack.c.h.b16 %v2460
    %v3323 = vunpack.c.l.b16 %v2461
    %v3324 = vunpack.c.h.b16 %v2461
    %v3325 = vunpack.c.l.b16 %v2462
    %v3326 = vunpack.c.h.b16 %v2462
    %v3327 = vunpack.c.l.b16 %v2463
    %v3328 = vunpack.c.h.b16 %v2463
    %v3329 = vunpack.c.l.b16 %v2464
    %v3330 = vunpack.c.h.b16 %v2464
    %v3331 = vunpack.c.l.b16 %v2465
    %v3332 = vunpack.c.h.b16 %v2465
    %v3333 = vunpack.c.l.b16 %v2466
    %v3334 = vunpack.c.h.b16 %v2466
    %v3335 = vunpack.c.l.b16 %v2467
    %v3336 = vunpack.c.h.b16 %v2467
    %v3337 = vunpack.c.l.b16 %v2468
    %v3338 = vunpack.c.h.b16 %v2468
    %v3339 = vpack.c.b16 %v2765, %v2763
    %v3340 = vpack.c.b16 %v2766, %v2764
    %v3341 = vpack.c.b16 %v2769, %v2767
    %v3342 = vpack.c.b16 %v2770, %v2768
    %v3343 = vpack.c.b16 %v2773, %v2771
    %v3344 = vpack.c.b16 %v2774, %v2772
    %v3345 = vpack.c.b16 %v2777, %v2775
    %v3346 = vpack.c.b16 %v2778, %v2776
    %v3347 = vpack.c.b16 %v2781, %v2779
    %v3348 = vpack.c.b16 %v2782, %v2780
    %v3349 = vpack.c.b16 %v2785, %v2783
    %v3350 = vpack.c.b16 %v2786, %v2784
    %v3351 = vpack.c.b16 %v2789, %v2787
    %v3352 = vpack.c.b16 %v2790, %v2788
    %v3353 = vpack.c.b16 %v2793, %v2791
    %v3354 = vpack.c.b16 %v2794, %v2792
    %v3355 = vpack.c.b16 %v2797, %v2795
    %v3356 = vpack.c.b16 %v2798, %v2796
    %v3357 = vpack.c.b16 %v2801, %v2799
    %v3358 = vpack.c.b16 %v2802, %v2800
    %v3359 = vpack.c.b16 %v2805, %v2803
    %v3360 = vpack.c.b16 %v2806, %v2804
    %v3361 = vpack.c.b16 %v2809, %v2807
    %v3362 = vpack.c.b16 %v2810, %v2808
    %v3363 = vpack.c.b16 %v2813, %v2811
    %v3364 = vpack.c.b16 %v2814, %v2812
    %v3365 = vpack.c.b16 %v2817, %v2815
    %v3366 = vpack.c.b16 %v2818, %v2816
    %v3367 = vpack.c.b16 %v2821, %v2819
    %v3368 = vpack.c.b16 %v2822, %v2820
    %v3369 = vpack.c.b16 %v2825, %v2823
    %v3370 = vpack.c.b16 %v2826, %v2824
    %v3371 = vpack.c.b16 %v2829, %v2827
    %v3372 = vpack.c.b16 %v2830, %v2828
    %v3373 = vpack.c.b16 %v2833, %v2831
    %v3374 = vpack.c.b16 %v2834, %v2832
    %v3375 = vpack.c.b16 %v2837, %v2835
    %v3376 = vpack.c.b16 %v2838, %v2836
    %v3377 = vpack.c.b16 %v2841, %v2839
    %v3378 = vpack.c.b16 %v2842, %v2840
    %v3379 = vpack.c.b16 %v2845, %v2843
    %v3380 = vpack.c.b16 %v2846, %v2844
    %v3381 = vpack.c.b16 %v2849, %v2847
    %v3382 = vpack.c.b16 %v2850, %v2848
    %v3383 = vpack.c.b16 %v2853, %v2851
    %v3384 = vpack.c.b16 %v2854, %v2852
    %v3385 = vpack.c.b16 %v2857, %v2855
    %v3386 = vpack.c.b16 %v2858, %v2856
    %v3387 = vpack.c.b16 %v2861, %v2859
    %v3388 = vpack.c.b16 %v2862, %v2860
    %v3389 = vpack.c.b16 %v2865, %v2863
    %v3390 = vpack.c.b16 %v2866, %v2864
    %v3391 = vpack.c.b16 %v2869, %v2867
    %v3392 = vpack.c.b16 %v2870, %v2868
    %v3393 = vpack.c.b16 %v2873, %v2871
    %v3394 = vpack.c.b16 %v2874, %v2872
    %v3395 = vpack.c.b16 %v2877, %v2875
    %v3396 = vpack.c.b16 %v2878, %v2876
    %v3397 = vpack.c.b16 %v2881, %v2879
    %v3398 = vpack.c.b16 %v2882, %v2880
    %v3399 = vpack.c.b16 %v2885, %v2883
    %v3400 = vpack.c.b16 %v2886, %v2884
    %v3401 = vpack.c.b16 %v2889, %v2887
    %v3402 = vpack.c.b16 %v2890, %v2888
    %v3403 = vpack.c.b16 %v2893, %v2891
    %v3404 = vpack.c.b16 %v2894, %v2892
    %v3405 = vpack.c.b16 %v2897, %v2895
    %v3406 = vpack.c.b16 %v2898, %v2896
    %v3407 = vpack.c.b16 %v2901, %v2899
    %v3408 = vpack.c.b16 %v2902, %v2900
    %v3409 = vpack.c.b16 %v2905, %v2903
    %v3410 = vpack.c.b16 %v2906, %v2904
    %v3411 = vpack.c.b16 %v2909, %v2907
    %v3412 = vpack.c.b16 %v2910, %v2908
    %v3413 = vpack.c.b16 %v2913, %v2911
    %v3414 = vpack.c.b16 %v2914, %v2912
    %v3415 = vpack.c.b16 %v2917, %v2915
    %v3416 = vpack.c.b16 %v2918, %v2916
    %v3417 = vpack.c.b16 %v2921, %v2919
    %v3418 = vpack.c.b16 %v2922, %v2920
    %v3419 = vpack.c.b16 %v2925, %v2923
    %v3420 = vpack.c.b16 %v2926, %v2924
    %v3421 = vpack.c.b16 %v2929, %v2927
    %v3422 = vpack.c.b16 %v2930, %v2928
    %v3423 = vpack.c.b16 %v2933, %v2931
    %v3424 = vpack.c.b16 %v2934, %v2932
    %v3425 = vpack.c.b16 %v2937, %v2935
    %v3426 = vpack.c.b16 %v2938, %v2936
    %v3427 = vpack.c.b16 %v2941, %v2939
    %v3428 = vpack.c.b16 %v2942, %v2940
    %v3429 = vpack.c.b16 %v2945, %v2943
    %v3430 = vpack.c.b16 %v2946, %v2944
    %v3431 = vpack.c.b16 %v2949, %v2947
    %v3432 = vpack.c.b16 %v2950, %v2948
    %v3433 = vpack.c.b16 %v2953, %v2951
    %v3434 = vpack.c.b16 %v2954, %v2952
    %v3435 = vpack.c.b16 %v2957, %v2955
    %v3436 = vpack.c.b16 %v2958, %v2956
    %v3437 = vpack.c.b16 %v2961, %v2959
    %v3438 = vpack.c.b16 %v2962, %v2960
    %v3439 = vpack.c.b16 %v2965, %v2963
    %v3440 = vpack.c.b16 %v2966, %v2964
    %v3441 = vpack.c.b16 %v2969, %v2967
    %v3442 = vpack.c.b16 %v2970, %v2968
    %v3443 = vpack.c.b16 %v2973, %v2971
    %v3444 = vpack.c.b16 %v2974, %v2972
    %v3445 = vpack.c.b16 %v2977, %v2975
    %v3446 = vpack.c.b16 %v2978, %v2976
    %v3447 = vpack.c.b16 %v2981, %v2979
    %v3448 = vpack.c.b16 %v2982, %v2980
    %v3449 = vpack.c.b16 %v2985, %v2983
    %v3450 = vpack.c.b16 %v2986, %v2984
    %v3451 = vpack.c.b16 %v2989, %v2987
    %v3452 = vpack.c.b16 %v2990, %v2988
    %v3453 = vpack.c.b16 %v2993, %v2991
    %v3454 = vpack.c.b16 %v2994, %v2992
    %v3455 = vpack.c.b16 %v2997, %v2995
    %v3456 = vpack.c.b16 %v2998, %v2996
    %v3457 = vpack.c.b16 %v3001, %v2999
    %v3458 = vpack.c.b16 %v3002, %v3000
    %v3459 = vpack.c.b16 %v3005, %v3003
    %v3460 = vpack.c.b16 %v3006, %v3004
    %v3461 = vpack.c.b16 %v3009, %v3007
    %v3462 = vpack.c.b16 %v3010, %v3008
    %v3463 = vpack.c.b16 %v3013, %v3011
    %v3464 = vpack.c.b16 %v3014, %v3012
    %v3465 = vpack.c.b16 %v3017, %v3015
    %v3466 = vpack.c.b16 %v3018, %v3016
    %v3467 = vpack.c.b16 %v3021, %v3019
    %v3468 = vpack.c.b16 %v3022, %v3020
    %v3469 = vpack.c.b16 %v3025, %v3023
    %v3470 = vpack.c.b16 %v3026, %v3024
    %v3471 = vpack.c.b16 %v3029, %v3027
    %v3472 = vpack.c.b16 %v3030, %v3028
    %v3473 = vpack.c.b16 %v3033, %v3031
    %v3474 = vpack.c.b16 %v3034, %v3032
    %v3475 = vpack.c.b16 %v3037, %v3035
    %v3476 = vpack.c.b16 %v3038, %v3036
    %v3477 = vpack.c.b16 %v3041, %v3039
    %v3478 = vpack.c.b16 %v3042, %v3040
    %v3479 = vpack.c.b16 %v3045, %v3043
    %v3480 = vpack.c.b16 %v3046, %v3044
    %v3481 = vpack.c.b16 %v3049, %v3047
    %v3482 = vpack.c.b16 %v3050, %v3048
    %v3483 = vpack.c.b16 %v3053, %v3051
    %v3484 = vpack.c.b16 %v3054, %v3052
    %v3485 = vpack.c.b16 %v3057, %v3055
    %v3486 = vpack.c.b16 %v3058, %v3056
    %v3487 = vpack.c.b16 %v3061, %v3059
    %v3488 = vpack.c.b16 %v3062, %v3060
    %v3489 = vpack.c.b16 %v3065, %v3063
    %v3490 = vpack.c.b16 %v3066, %v3064
    %v3491 = vpack.c.b16 %v3069, %v3067
    %v3492 = vpack.c.b16 %v3070, %v3068
    %v3493 = vpack.c.b16 %v3073, %v3071
    %v3494 = vpack.c.b16 %v3074, %v3072
    %v3495 = vpack.c.b16 %v3077, %v3075
    %v3496 = vpack.c.b16 %v3078, %v3076
    %v3497 = vpack.c.b16 %v3081, %v3079
    %v3498 = vpack.c.b16 %v3082, %v3080
    %v3499 = vpack.c.b16 %v3085, %v3083
    %v3500 = vpack.c.b16 %v3086, %v3084
    %v3501 = vpack.c.b16 %v3089, %v3087
    %v3502 = vpack.c.b16 %v3090, %v3088
    %v3503 = vpack.c.b16 %v3093, %v3091
    %v3504 = vpack.c.b16 %v3094, %v3092
    %v3505 = vpack.c.b16 %v3097, %v3095
    %v3506 = vpack.c.b16 %v3098, %v3096
    %v3507 = vpack.c.b16 %v3101, %v3099
    %v3508 = vpack.c.b16 %v3102, %v3100
    %v3509 = vpack.c.b16 %v3105, %v3103
    %v3510 = vpack.c.b16 %v3106, %v3104
    %v3511 = vpack.c.b16 %v3109, %v3107
    %v3512 = vpack.c.b16 %v3110, %v3108
    %v3513 = vpack.c.b16 %v3113, %v3111
    %v3514 = vpack.c.b16 %v3114, %v3112
    %v3515 = vpack.c.b16 %v3117, %v3115
    %v3516 = vpack.c.b16 %v3118, %v3116
    %v3517 = vpack.c.b16 %v3121, %v3119
    %v3518 = vpack.c.b16 %v3122, %v3120
    %v3519 = vpack.c.b16 %v3125, %v3123
    %v3520 = vpack.c.b16 %v3126, %v3124
    %v3521 = vpack.c.b16 %v3129, %v3127
    %v3522 = vpack.c.b16 %v3130, %v3128
    %v3523 = vpack.c.b16 %v3133, %v3131
    %v3524 = vpack.c.b16 %v3134, %v3132
    %v3525 = vpack.c.b16 %v3137, %v3135
    %v3526 = vpack.c.b16 %v3138, %v3136
    %v3527 = vpack.c.b16 %v3141, %v3139
    %v3528 = vpack.c.b16 %v3142, %v3140
    %v3529 = vpack.c.b16 %v3145, %v3143
    %v3530 = vpack.c.b16 %v3146, %v3144
    %v3531 = vpack.c.b16 %v3149, %v3147
    %v3532 = vpack.c.b16 %v3150, %v3148
    %v3533 = vpack.c.b16 %v3153, %v3151
    %v3534 = vpack.c.b16 %v3154, %v3152
    %v3535 = vpack.c.b16 %v3157, %v3155
    %v3536 = vpack.c.b16 %v3158, %v3156
    %v3537 = vpack.c.b16 %v3161, %v3159
    %v3538 = vpack.c.b16 %v3162, %v3160
    %v3539 = vpack.c.b16 %v3165, %v3163
    %v3540 = vpack.c.b16 %v3166, %v3164
    %v3541 = vpack.c.b16 %v3169, %v3167
    %v3542 = vpack.c.b16 %v3170, %v3168
    %v3543 = vpack.c.b16 %v3173, %v3171
    %v3544 = vpack.c.b16 %v3174, %v3172
    %v3545 = vpack.c.b16 %v3177, %v3175
    %v3546 = vpack.c.b16 %v3178, %v3176
    %v3547 = vpack.c.b16 %v3181, %v3179
    %v3548 = vpack.c.b16 %v3182, %v3180
    %v3549 = vpack.c.b16 %v3185, %v3183
    %v3550 = vpack.c.b16 %v3186, %v3184
    %v3551 = vpack.c.b16 %v3189, %v3187
    %v3552 = vpack.c.b16 %v3190, %v3188
    %v3553 = vpack.c.b16 %v3193, %v3191
    %v3554 = vpack.c.b16 %v3194, %v3192
    %v3555 = vpack.c.b16 %v3197, %v3195
    %v3556 = vpack.c.b16 %v3198, %v3196
    %v3557 = vpack.c.b16 %v3201, %v3199
    %v3558 = vpack.c.b16 %v3202, %v3200
    %v3559 = vpack.c.b16 %v3205, %v3203
    %v3560 = vpack.c.b16 %v3206, %v3204
    %v3561 = vpack.c.b16 %v3209, %v3207
    %v3562 = vpack.c.b16 %v3210, %v3208
    %v3563 = vpack.c.b16 %v3213, %v3211
    %v3564 = vpack.c.b16 %v3214, %v3212
    %v3565 = vpack.c.b16 %v3217, %v3215
    %v3566 = vpack.c.b16 %v3218, %v3216
    %v3567 = vpack.c.b16 %v3221, %v3219
    %v3568 = vpack.c.b16 %v3222, %v3220
    %v3569 = vpack.c.b16 %v3225, %v3223
    %v3570 = vpack.c.b16 %v3226, %v3224
    %v3571 = vpack.c.b16 %v3229, %v3227
    %v3572 = vpack.c.b16 %v3230, %v3228
    %v3573 = vpack.c.b16 %v3233, %v3231
    %v3574 = vpack.c.b16 %v3234, %v3232
    %v3575 = vpack.c.b16 %v3237, %v3235
    %v3576 = vpack.c.b16 %v3238, %v3236
    %v3577 = vpack.c.b16 %v3241, %v3239
    %v3578 = vpack.c.b16 %v3242, %v3240
    %v3579 = vpack.c.b16 %v3245, %v3243
    %v3580 = vpack.c.b16 %v3246, %v3244
    %v3581 = vpack.c.b16 %v3249, %v3247
    %v3582 = vpack.c.b16 %v3250, %v3248
    %v3583 = vpack.c.b16 %v3253, %v3251
    %v3584 = vpack.c.b16 %v3254, %v3252
    %v3585 = vpack.c.b16 %v3257, %v3255
    %v3586 = vpack.c.b16 %v3258, %v3256
    %v3587 = vpack.c.b16 %v3261, %v3259
    %v3588 = vpack.c.b16 %v3262, %v3260
    %v3589 = vpack.c.b16 %v3265, %v3263
    %v3590 = vpack.c.b16 %v3266, %v3264
    %v3591 = vpack.c.b16 %v3269, %v3267
    %v3592 = vpack.c.b16 %v3270, %v3268
    %v3593 = vpack.c.b16 %v3273, %v3271
    %v3594 = vpack.c.b16 %v3274, %v3272
    %v3595 = vpack.c.b16 %v3277, %v3275
    %v3596 = vpack.c.b16 %v3278, %v3276
    %v3597 = vpack.c.b16 %v3281, %v3279
    %v3598 = vpack.c.b16 %v3282, %v3280
    %v3599 = vpack.c.b16 %v3285, %v3283
    %v3600 = vpack.c.b16 %v3286, %v3284
    %v3601 = vpack.c.b16 %v3289, %v3287
    %v3602 = vpack.c.b16 %v3290, %v3288
    %v3603 = vpack.c.b16 %v3293, %v3291
    %v3604 = vpack.c.b16 %v3294, %v3292
    %v3605 = vpack.c.b16 %v3297, %v3295
    %v3606 = vpack.c.b16 %v3298, %v3296
    %v3607 = vpack.c.b16 %v3301, %v3299
    %v3608 = vpack.c.b16 %v3302, %v3300
    %v3609 = vpack.c.b16 %v3305, %v3303
    %v3610 = vpack.c.b16 %v3306, %v3304
    %v3611 = vpack.c.b16 %v3309, %v3307
    %v3612 = vpack.c.b16 %v3310, %v3308
    %v3613 = vpack.c.b16 %v3313, %v3311
    %v3614 = vpack.c.b16 %v3314, %v3312
    %v3615 = vpack.c.b16 %v3317, %v3315
    %v3616 = vpack.c.b16 %v3318, %v3316
    %v3617 = vpack.c.b16 %v3321, %v3319
    %v3618 = vpack.c.b16 %v3322, %v3320
    %v3619 = vpack.c.b16 %v3325, %v3323
    %v3620 = vpack.c.b16 %v3326, %v3324
    %v3621 = vpack.c.b16 %v3329, %v3327
    %v3622 = vpack.c.b16 %v3330, %v3328
    %v3623 = vpack.c.b16 %v3333, %v3331
    %v3624 = vpack.c.b16 %v3334, %v3332
    %v3625 = vpack.c.b16 %v3337, %v3335
    %v3626 = vpack.c.b16 %v3338, %v3336
    %3915 = vmatprep.subr.bf16.mxu0 %v3354
    %3916 = vmatpush1.bf16.msra.mxu0 %v3353
    %3917 = vmatprep.subr.bf16.mxu0 %v3352
    %3918 = vmatpush1.bf16.msra.mxu0 %v3351
    %3919 = vmatprep.subr.bf16.mxu0 %v3350
    %3920 = vmatpush1.bf16.msra.mxu0 %v3349
    %3921 = vmatprep.subr.bf16.mxu0 %v3348
    %3922 = vmatpush1.bf16.msra.mxu0 %v3347
    %3923 = vmatprep.subr.bf16.mxu0 %v3346
    %3924 = vmatpush1.bf16.msra.mxu0 %v3345
    %3925 = vmatprep.subr.bf16.mxu0 %v3344
    %3926 = vmatpush1.bf16.msra.mxu0 %v3343
    %3927 = vmatprep.subr.bf16.mxu0 %v3342
    %3928 = vmatpush1.bf16.msra.mxu0 %v3341
    %3929 = vmatprep.subr.bf16.mxu0 %v3340
    %3930 = vmatpush1.bf16.msra.mxu0 %v3339
    %3931 = vmatprep.subr.bf16.mxu0 %v3370
    %3932 = vmatpush2.bf16.msra.mxu0 %v3369
    %3933 = vmatprep.subr.bf16.mxu0 %v3368
    %3934 = vmatpush2.bf16.msra.mxu0 %v3367
    %3935 = vmatprep.subr.bf16.mxu0 %v3366
    %3936 = vmatpush2.bf16.msra.mxu0 %v3365
    %3937 = vmatprep.subr.bf16.mxu0 %v3364
    %3938 = vmatpush2.bf16.msra.mxu0 %v3363
    %3939 = vmatprep.subr.bf16.mxu0 %v3362
    %3940 = vmatpush2.bf16.msra.mxu0 %v3361
    %3941 = vmatprep.subr.bf16.mxu0 %v3360
    %3942 = vmatpush2.bf16.msra.mxu0 %v3359
    %3943 = vmatprep.subr.bf16.mxu0 %v3358
    %3944 = vmatpush2.bf16.msra.mxu0 %v3357
    %3945 = vmatprep.subr.bf16.mxu0 %v3356
    %3946 = vmatpush2.bf16.msra.mxu0 %v3355
    %3947 = vmatprep.mubr.bf16.mxu0 %v2164
    %3948 = vmatmul.mubr.bf16.gmra.mxu0 %v2163
    %v3949 = vpop.f32.mrf.mxu0
    %v3950 = vadd.f32 %v2473, %v3949
    %v3951 = vpop.f32.mrf.mxu0
    %v3952 = vadd.f32 %v2473, %v3951
    %v3953 = vpop.f32.mrf.mxu0
    %v3954 = vpop.f32.mrf.mxu0
    %3955 = vdwg.mxu0
    %3956 = vmatprep.subr.bf16.mxu0 %v3386
    %3957 = vmatpush1.bf16.msra.mxu0 %v3385
    %3958 = vmatprep.subr.bf16.mxu0 %v3384
    %3959 = vmatpush1.bf16.msra.mxu0 %v3383
    %3960 = vmatprep.subr.bf16.mxu0 %v3382
    %3961 = vmatpush1.bf16.msra.mxu0 %v3381
    %3962 = vmatprep.subr.bf16.mxu0 %v3380
    %3963 = vmatpush1.bf16.msra.mxu0 %v3379
    %3964 = vmatprep.subr.bf16.mxu0 %v3378
    %3965 = vmatpush1.bf16.msra.mxu0 %v3377
    %3966 = vmatprep.subr.bf16.mxu0 %v3376
    %3967 = vmatpush1.bf16.msra.mxu0 %v3375
    %3968 = vmatprep.subr.bf16.mxu0 %v3374
    %3969 = vmatpush1.bf16.msra.mxu0 %v3373
    %3970 = vmatprep.subr.bf16.mxu0 %v3372
    %3971 = vmatpush1.bf16.msra.mxu0 %v3371
    %3972 = vmatprep.subr.bf16.mxu0 %v3402
    %3973 = vmatpush2.bf16.msra.mxu0 %v3401
    %3974 = vmatprep.subr.bf16.mxu0 %v3400
    %3975 = vmatpush2.bf16.msra.mxu0 %v3399
    %3976 = vmatprep.subr.bf16.mxu0 %v3398
    %3977 = vmatpush2.bf16.msra.mxu0 %v3397
    %3978 = vmatprep.subr.bf16.mxu0 %v3396
    %3979 = vmatpush2.bf16.msra.mxu0 %v3395
    %3980 = vmatprep.subr.bf16.mxu0 %v3394
    %3981 = vmatpush2.bf16.msra.mxu0 %v3393
    %3982 = vmatprep.subr.bf16.mxu0 %v3392
    %3983 = vmatpush2.bf16.msra.mxu0 %v3391
    %3984 = vmatprep.subr.bf16.mxu0 %v3390
    %3985 = vmatpush2.bf16.msra.mxu0 %v3389
    %3986 = vmatprep.subr.bf16.mxu0 %v3388
    %3987 = vmatpush2.bf16.msra.mxu0 %v3387
    %3988 = vmatprep.mubr.bf16.mxu0 %v2166
    %3989 = vmatmul.mubr.bf16.gmra.mxu0 %v2165
    %v3990 = vpop.f32.mrf.mxu0
    %v3991 = vadd.f32 %v3950, %v3990
    %v3992 = vpop.f32.mrf.mxu0
    %v3993 = vadd.f32 %v3952, %v3992
    %v3994 = vpop.f32.mrf.mxu0
    %v3995 = vpop.f32.mrf.mxu0
    %3996 = vdwg.mxu0
    %3997 = vmatprep.subr.bf16.mxu0 %v3418
    %3998 = vmatpush1.bf16.msra.mxu0 %v3417
    %3999 = vmatprep.subr.bf16.mxu0 %v3416
    %4000 = vmatpush1.bf16.msra.mxu0 %v3415
    %4001 = vmatprep.subr.bf16.mxu0 %v3414
    %4002 = vmatpush1.bf16.msra.mxu0 %v3413
    %4003 = vmatprep.subr.bf16.mxu0 %v3412
    %4004 = vmatpush1.bf16.msra.mxu0 %v3411
    %4005 = vmatprep.subr.bf16.mxu0 %v3410
    %4006 = vmatpush1.bf16.msra.mxu0 %v3409
    %4007 = vmatprep.subr.bf16.mxu0 %v3408
    %4008 = vmatpush1.bf16.msra.mxu0 %v3407
    %4009 = vmatprep.subr.bf16.mxu0 %v3406
    %4010 = vmatpush1.bf16.msra.mxu0 %v3405
    %4011 = vmatprep.subr.bf16.mxu0 %v3404
    %4012 = vmatpush1.bf16.msra.mxu0 %v3403
    %4013 = vmatprep.subr.bf16.mxu0 %v3434
    %4014 = vmatpush2.bf16.msra.mxu0 %v3433
    %4015 = vmatprep.subr.bf16.mxu0 %v3432
    %4016 = vmatpush2.bf16.msra.mxu0 %v3431
    %4017 = vmatprep.subr.bf16.mxu0 %v3430
    %4018 = vmatpush2.bf16.msra.mxu0 %v3429
    %4019 = vmatprep.subr.bf16.mxu0 %v3428
    %4020 = vmatpush2.bf16.msra.mxu0 %v3427
    %4021 = vmatprep.subr.bf16.mxu0 %v3426
    %4022 = vmatpush2.bf16.msra.mxu0 %v3425
    %4023 = vmatprep.subr.bf16.mxu0 %v3424
    %4024 = vmatpush2.bf16.msra.mxu0 %v3423
    %4025 = vmatprep.subr.bf16.mxu0 %v3422
    %4026 = vmatpush2.bf16.msra.mxu0 %v3421
    %4027 = vmatprep.subr.bf16.mxu0 %v3420
    %4028 = vmatpush2.bf16.msra.mxu0 %v3419
    %4029 = vmatprep.mubr.bf16.mxu0 %v2168
    %4030 = vmatmul.mubr.bf16.gmra.mxu0 %v2167
    %v4031 = vpop.f32.mrf.mxu0
    %v4032 = vadd.f32 %v3991, %v4031
    %v4033 = vpop.f32.mrf.mxu0
    %v4034 = vadd.f32 %v3993, %v4033
    %v4035 = vpop.f32.mrf.mxu0
    %v4036 = vpop.f32.mrf.mxu0
    %4037 = vdwg.mxu0
    %4038 = vmatprep.subr.bf16.mxu0 %v3450
    %4039 = vmatpush1.bf16.msra.mxu0 %v3449
    %4040 = vmatprep.subr.bf16.mxu0 %v3448
    %4041 = vmatpush1.bf16.msra.mxu0 %v3447
    %4042 = vmatprep.subr.bf16.mxu0 %v3446
    %4043 = vmatpush1.bf16.msra.mxu0 %v3445
    %4044 = vmatprep.subr.bf16.mxu0 %v3444
    %4045 = vmatpush1.bf16.msra.mxu0 %v3443
    %4046 = vmatprep.subr.bf16.mxu0 %v3442
    %4047 = vmatpush1.bf16.msra.mxu0 %v3441
    %4048 = vmatprep.subr.bf16.mxu0 %v3440
    %4049 = vmatpush1.bf16.msra.mxu0 %v3439
    %4050 = vmatprep.subr.bf16.mxu0 %v3438
    %4051 = vmatpush1.bf16.msra.mxu0 %v3437
    %4052 = vmatprep.subr.bf16.mxu0 %v3436
    %4053 = vmatpush1.bf16.msra.mxu0 %v3435
    %4054 = vmatprep.subr.bf16.mxu0 %v3466
    %4055 = vmatpush2.bf16.msra.mxu0 %v3465
    %4056 = vmatprep.subr.bf16.mxu0 %v3464
    %4057 = vmatpush2.bf16.msra.mxu0 %v3463
    %4058 = vmatprep.subr.bf16.mxu0 %v3462
    %4059 = vmatpush2.bf16.msra.mxu0 %v3461
    %4060 = vmatprep.subr.bf16.mxu0 %v3460
    %4061 = vmatpush2.bf16.msra.mxu0 %v3459
    %4062 = vmatprep.subr.bf16.mxu0 %v3458
    %4063 = vmatpush2.bf16.msra.mxu0 %v3457
    %4064 = vmatprep.subr.bf16.mxu0 %v3456
    %4065 = vmatpush2.bf16.msra.mxu0 %v3455
    %4066 = vmatprep.subr.bf16.mxu0 %v3454
    %4067 = vmatpush2.bf16.msra.mxu0 %v3453
    %4068 = vmatprep.subr.bf16.mxu0 %v3452
    %4069 = vmatpush2.bf16.msra.mxu0 %v3451
    %4070 = vmatprep.mubr.bf16.mxu0 %v2170
    %4071 = vmatmul.mubr.bf16.gmra.mxu0 %v2169
    %v4072 = vpop.f32.mrf.mxu0
    %v4073 = vadd.f32 %v4032, %v4072
    %v4074 = vpop.f32.mrf.mxu0
    %v4075 = vadd.f32 %v4034, %v4074
    %v4076 = vpop.f32.mrf.mxu0
    %v4077 = vpop.f32.mrf.mxu0
    %4078 = vdwg.mxu0
    %4079 = vmatprep.subr.bf16.mxu0 %v3482
    %4080 = vmatpush1.bf16.msra.mxu0 %v3481
    %4081 = vmatprep.subr.bf16.mxu0 %v3480
    %4082 = vmatpush1.bf16.msra.mxu0 %v3479
    %4083 = vmatprep.subr.bf16.mxu0 %v3478
    %4084 = vmatpush1.bf16.msra.mxu0 %v3477
    %4085 = vmatprep.subr.bf16.mxu0 %v3476
    %4086 = vmatpush1.bf16.msra.mxu0 %v3475
    %4087 = vmatprep.subr.bf16.mxu0 %v3474
    %4088 = vmatpush1.bf16.msra.mxu0 %v3473
    %4089 = vmatprep.subr.bf16.mxu0 %v3472
    %4090 = vmatpush1.bf16.msra.mxu0 %v3471
    %4091 = vmatprep.subr.bf16.mxu0 %v3470
    %4092 = vmatpush1.bf16.msra.mxu0 %v3469
    %4093 = vmatprep.subr.bf16.mxu0 %v3468
    %4094 = vmatpush1.bf16.msra.mxu0 %v3467
    %4095 = vmatprep.subr.bf16.mxu0 %v3498
    %4096 = vmatpush2.bf16.msra.mxu0 %v3497
    %4097 = vmatprep.subr.bf16.mxu0 %v3496
    %4098 = vmatpush2.bf16.msra.mxu0 %v3495
    %4099 = vmatprep.subr.bf16.mxu0 %v3494
    %4100 = vmatpush2.bf16.msra.mxu0 %v3493
    %4101 = vmatprep.subr.bf16.mxu0 %v3492
    %4102 = vmatpush2.bf16.msra.mxu0 %v3491
    %4103 = vmatprep.subr.bf16.mxu0 %v3490
    %4104 = vmatpush2.bf16.msra.mxu0 %v3489
    %4105 = vmatprep.subr.bf16.mxu0 %v3488
    %4106 = vmatpush2.bf16.msra.mxu0 %v3487
    %4107 = vmatprep.subr.bf16.mxu0 %v3486
    %4108 = vmatpush2.bf16.msra.mxu0 %v3485
    %4109 = vmatprep.subr.bf16.mxu0 %v3484
    %4110 = vmatpush2.bf16.msra.mxu0 %v3483
    %4111 = vmatprep.mubr.bf16.mxu0 %v2172
    %4112 = vmatmul.mubr.bf16.gmra.mxu0 %v2171
    %v4113 = vpop.f32.mrf.mxu0
    %v4114 = vadd.f32 %v4073, %v4113
    %v4115 = vpop.f32.mrf.mxu0
    %v4116 = vadd.f32 %v4075, %v4115
    %v4117 = vpop.f32.mrf.mxu0
    %v4118 = vpop.f32.mrf.mxu0
    %4119 = vdwg.mxu0
    %4120 = vmatprep.subr.bf16.mxu0 %v3514
    %4121 = vmatpush1.bf16.msra.mxu0 %v3513
    %4122 = vmatprep.subr.bf16.mxu0 %v3512
    %4123 = vmatpush1.bf16.msra.mxu0 %v3511
    %4124 = vmatprep.subr.bf16.mxu0 %v3510
    %4125 = vmatpush1.bf16.msra.mxu0 %v3509
    %4126 = vmatprep.subr.bf16.mxu0 %v3508
    %4127 = vmatpush1.bf16.msra.mxu0 %v3507
    %4128 = vmatprep.subr.bf16.mxu0 %v3506
    %4129 = vmatpush1.bf16.msra.mxu0 %v3505
    %4130 = vmatprep.subr.bf16.mxu0 %v3504
    %4131 = vmatpush1.bf16.msra.mxu0 %v3503
    %4132 = vmatprep.subr.bf16.mxu0 %v3502
    %4133 = vmatpush1.bf16.msra.mxu0 %v3501
    %4134 = vmatprep.subr.bf16.mxu0 %v3500
    %4135 = vmatpush1.bf16.msra.mxu0 %v3499
    %4136 = vmatprep.subr.bf16.mxu0 %v3530
    %4137 = vmatpush2.bf16.msra.mxu0 %v3529
    %4138 = vmatprep.subr.bf16.mxu0 %v3528
    %4139 = vmatpush2.bf16.msra.mxu0 %v3527
    %4140 = vmatprep.subr.bf16.mxu0 %v3526
    %4141 = vmatpush2.bf16.msra.mxu0 %v3525
    %4142 = vmatprep.subr.bf16.mxu0 %v3524
    %4143 = vmatpush2.bf16.msra.mxu0 %v3523
    %4144 = vmatprep.subr.bf16.mxu0 %v3522
    %4145 = vmatpush2.bf16.msra.mxu0 %v3521
    %4146 = vmatprep.subr.bf16.mxu0 %v3520
    %4147 = vmatpush2.bf16.msra.mxu0 %v3519
    %4148 = vmatprep.subr.bf16.mxu0 %v3518
    %4149 = vmatpush2.bf16.msra.mxu0 %v3517
    %4150 = vmatprep.subr.bf16.mxu0 %v3516
    %4151 = vmatpush2.bf16.msra.mxu0 %v3515
    %4152 = vmatprep.mubr.bf16.mxu0 %v2174
    %4153 = vmatmul.mubr.bf16.gmra.mxu0 %v2173
    %v4154 = vpop.f32.mrf.mxu0
    %v4155 = vadd.f32 %v4114, %v4154
    %v4156 = vpop.f32.mrf.mxu0
    %v4157 = vadd.f32 %v4116, %v4156
    %v4158 = vpop.f32.mrf.mxu0
    %v4159 = vpop.f32.mrf.mxu0
    %4160 = vdwg.mxu0
    %4161 = vmatprep.subr.bf16.mxu0 %v3546
    %4162 = vmatpush1.bf16.msra.mxu0 %v3545
    %4163 = vmatprep.subr.bf16.mxu0 %v3544
    %4164 = vmatpush1.bf16.msra.mxu0 %v3543
    %4165 = vmatprep.subr.bf16.mxu0 %v3542
    %4166 = vmatpush1.bf16.msra.mxu0 %v3541
    %4167 = vmatprep.subr.bf16.mxu0 %v3540
    %4168 = vmatpush1.bf16.msra.mxu0 %v3539
    %4169 = vmatprep.subr.bf16.mxu0 %v3538
    %4170 = vmatpush1.bf16.msra.mxu0 %v3537
    %4171 = vmatprep.subr.bf16.mxu0 %v3536
    %4172 = vmatpush1.bf16.msra.mxu0 %v3535
    %4173 = vmatprep.subr.bf16.mxu0 %v3534
    %4174 = vmatpush1.bf16.msra.mxu0 %v3533
    %4175 = vmatprep.subr.bf16.mxu0 %v3532
    %4176 = vmatpush1.bf16.msra.mxu0 %v3531
    %4177 = vmatprep.subr.bf16.mxu0 %v3562
    %4178 = vmatpush2.bf16.msra.mxu0 %v3561
    %4179 = vmatprep.subr.bf16.mxu0 %v3560
    %4180 = vmatpush2.bf16.msra.mxu0 %v3559
    %4181 = vmatprep.subr.bf16.mxu0 %v3558
    %4182 = vmatpush2.bf16.msra.mxu0 %v3557
    %4183 = vmatprep.subr.bf16.mxu0 %v3556
    %4184 = vmatpush2.bf16.msra.mxu0 %v3555
    %4185 = vmatprep.subr.bf16.mxu0 %v3554
    %4186 = vmatpush2.bf16.msra.mxu0 %v3553
    %4187 = vmatprep.subr.bf16.mxu0 %v3552
    %4188 = vmatpush2.bf16.msra.mxu0 %v3551
    %4189 = vmatprep.subr.bf16.mxu0 %v3550
    %4190 = vmatpush2.bf16.msra.mxu0 %v3549
    %4191 = vmatprep.subr.bf16.mxu0 %v3548
    %4192 = vmatpush2.bf16.msra.mxu0 %v3547
    %4193 = vmatprep.mubr.bf16.mxu0 %v2176
    %4194 = vmatmul.mubr.bf16.gmra.mxu0 %v2175
    %v4195 = vpop.f32.mrf.mxu0
    %v4196 = vadd.f32 %v4155, %v4195
    %v4197 = vpop.f32.mrf.mxu0
    %v4198 = vadd.f32 %v4157, %v4197
    %v4199 = vpop.f32.mrf.mxu0
    %v4200 = vpop.f32.mrf.mxu0
    %4201 = vdwg.mxu0
    %4202 = vmatprep.subr.bf16.mxu0 %v3578
    %4203 = vmatpush1.bf16.msra.mxu0 %v3577
    %4204 = vmatprep.subr.bf16.mxu0 %v3576
    %4205 = vmatpush1.bf16.msra.mxu0 %v3575
    %4206 = vmatprep.subr.bf16.mxu0 %v3574
    %4207 = vmatpush1.bf16.msra.mxu0 %v3573
    %4208 = vmatprep.subr.bf16.mxu0 %v3572
    %4209 = vmatpush1.bf16.msra.mxu0 %v3571
    %4210 = vmatprep.subr.bf16.mxu0 %v3570
    %4211 = vmatpush1.bf16.msra.mxu0 %v3569
    %4212 = vmatprep.subr.bf16.mxu0 %v3568
    %4213 = vmatpush1.bf16.msra.mxu0 %v3567
    %4214 = vmatprep.subr.bf16.mxu0 %v3566
    %4215 = vmatpush1.bf16.msra.mxu0 %v3565
    %4216 = vmatprep.subr.bf16.mxu0 %v3564
    %4217 = vmatpush1.bf16.msra.mxu0 %v3563
    %4218 = vmatprep.subr.bf16.mxu0 %v3594
    %4219 = vmatpush2.bf16.msra.mxu0 %v3593
    %4220 = vmatprep.subr.bf16.mxu0 %v3592
    %4221 = vmatpush2.bf16.msra.mxu0 %v3591
    %4222 = vmatprep.subr.bf16.mxu0 %v3590
    %4223 = vmatpush2.bf16.msra.mxu0 %v3589
    %4224 = vmatprep.subr.bf16.mxu0 %v3588
    %4225 = vmatpush2.bf16.msra.mxu0 %v3587
    %4226 = vmatprep.subr.bf16.mxu0 %v3586
    %4227 = vmatpush2.bf16.msra.mxu0 %v3585
    %4228 = vmatprep.subr.bf16.mxu0 %v3584
    %4229 = vmatpush2.bf16.msra.mxu0 %v3583
    %4230 = vmatprep.subr.bf16.mxu0 %v3582
    %4231 = vmatpush2.bf16.msra.mxu0 %v3581
    %4232 = vmatprep.subr.bf16.mxu0 %v3580
    %4233 = vmatpush2.bf16.msra.mxu0 %v3579
    %4234 = vmatprep.mubr.bf16.mxu0 %v2178
    %4235 = vmatmul.mubr.bf16.gmra.mxu0 %v2177
    %v4236 = vpop.f32.mrf.mxu0
    %v4237 = vadd.f32 %v4196, %v4236
    %v4238 = vpop.f32.mrf.mxu0
    %v4239 = vadd.f32 %v4198, %v4238
    %v4240 = vpop.f32.mrf.mxu0
    %v4241 = vpop.f32.mrf.mxu0
    %4242 = vdwg.mxu0
    %4243 = vmatprep.subr.bf16.mxu0 %v3610
    %4244 = vmatpush1.bf16.msra.mxu0 %v3609
    %4245 = vmatprep.subr.bf16.mxu0 %v3608
    %4246 = vmatpush1.bf16.msra.mxu0 %v3607
    %4247 = vmatprep.subr.bf16.mxu0 %v3606
    %4248 = vmatpush1.bf16.msra.mxu0 %v3605
    %4249 = vmatprep.subr.bf16.mxu0 %v3604
    %4250 = vmatpush1.bf16.msra.mxu0 %v3603
    %4251 = vmatprep.subr.bf16.mxu0 %v3602
    %4252 = vmatpush1.bf16.msra.mxu0 %v3601
    %4253 = vmatprep.subr.bf16.mxu0 %v3600
    %4254 = vmatpush1.bf16.msra.mxu0 %v3599
    %4255 = vmatprep.subr.bf16.mxu0 %v3598
    %4256 = vmatpush1.bf16.msra.mxu0 %v3597
    %4257 = vmatprep.subr.bf16.mxu0 %v3596
    %4258 = vmatpush1.bf16.msra.mxu0 %v3595
    %4259 = vmatprep.subr.bf16.mxu0 %v3626
    %4260 = vmatpush2.bf16.msra.mxu0 %v3625
    %4261 = vmatprep.subr.bf16.mxu0 %v3624
    %4262 = vmatpush2.bf16.msra.mxu0 %v3623
    %4263 = vmatprep.subr.bf16.mxu0 %v3622
    %4264 = vmatpush2.bf16.msra.mxu0 %v3621
    %4265 = vmatprep.subr.bf16.mxu0 %v3620
    %4266 = vmatpush2.bf16.msra.mxu0 %v3619
    %4267 = vmatprep.subr.bf16.mxu0 %v3618
    %4268 = vmatpush2.bf16.msra.mxu0 %v3617
    %4269 = vmatprep.subr.bf16.mxu0 %v3616
    %4270 = vmatpush2.bf16.msra.mxu0 %v3615
    %4271 = vmatprep.subr.bf16.mxu0 %v3614
    %4272 = vmatpush2.bf16.msra.mxu0 %v3613
    %4273 = vmatprep.subr.bf16.mxu0 %v3612
    %4274 = vmatpush2.bf16.msra.mxu0 %v3611
    %4275 = vmatprep.mubr.bf16.mxu0 %v2180
    %4276 = vmatmul.mubr.bf16.gmra.mxu0 %v2179
    %v4277 = vpop.f32.mrf.mxu0
    %v4278 = vadd.f32 %v4237, %v4277
    %v4279 = vpop.f32.mrf.mxu0
    %v4280 = vadd.f32 %v4239, %v4279
    %v4281 = vpop.f32.mrf.mxu0
    %v4282 = vpop.f32.mrf.mxu0
    %4283 = vdwg.mxu0
    %v4284 = vld [vmem:[%s20] sm:$0xff]
    %v4285 = vld [vmem:[%s21] sm:$0xff]
    %v4286 = vadd.f32 %v4278, %v4280
    %4287 = vadd.xlane.f32.xlu0 %v4286
    %v4288 = vpop.xlane.xlu0 %4287
    %v4289 = vmul.f32 %v4278, %v4278
    %v4290 = vmul.f32 %v4280, %v4280
    %v4291 = vadd.f32 %v4289, %v4290
    %4292 = vadd.xlane.f32.xlu0 %v4291
    %v4293 = vpop.xlane.xlu0 %4292
    %v4294 = vmul.f32 %v4288, %v463
    %v4295 = vsel %vm465, %v4294, 0.0
    %4296 = vadd.xlane.f32.xlu0 %v4295
    %v4297 = vpop.xlane.xlu0 %4296
    %v4298 = vrot.slane %v4297, 4
    %v4299 = vadd.f32 %v4297, %v4298
    %v4300 = vrot.slane %v4299, 2
    %v4301 = vadd.f32 %v4299, %v4300
    %v4302 = vrot.slane %v4301, 1
    %v4303 = vadd.f32 %v4301, %v4302
    %s4304 = vtos %v4303
    %s4305 = smul.f32 %s4304, 0.0009765625
    %v4306 = vmul.f32 %v4293, %v463
    %v4307 = vsel %vm465, %v4306, 0.0
    %4308 = vadd.xlane.f32.xlu0 %v4307
    %v4309 = vpop.xlane.xlu0 %4308
    %v4310 = vrot.slane %v4309, 4
    %v4311 = vadd.f32 %v4309, %v4310
    %v4312 = vrot.slane %v4311, 2
    %v4313 = vadd.f32 %v4311, %v4312
    %v4314 = vrot.slane %v4313, 1
    %v4315 = vadd.f32 %v4313, %v4314
    %s4316 = vtos %v4315
    %s4317 = smul.f32 %s4316, 0.0009765625
    %s4318 = smul.f32 %s4305, %s4305
    %s4319 = ssub.f32 %s4317, %s4318
    %v4320 = vstv %s4305
    %v4321 = vmul.f32 %v463, %v4320
    %v4322 = vadd.f32 %v4321, 0.0
    %v4323 = vstv %s4319
    %v4324 = vmul.f32 %v463, %v4323
    %v4325 = vadd.f32 %v4324, 0.0
    %v4326 = vmul.f32 %v4288, %v498
    %v4327 = vsel %vm465, %v4326, 0.0
    %4328 = vadd.xlane.f32.xlu0 %v4327
    %v4329 = vpop.xlane.xlu0 %4328
    %v4330 = vrot.slane %v4329, 4
    %v4331 = vadd.f32 %v4329, %v4330
    %v4332 = vrot.slane %v4331, 2
    %v4333 = vadd.f32 %v4331, %v4332
    %v4334 = vrot.slane %v4333, 1
    %v4335 = vadd.f32 %v4333, %v4334
    %s4336 = vtos %v4335
    %s4337 = smul.f32 %s4336, 0.0009765625
    %v4338 = vmul.f32 %v4293, %v498
    %v4339 = vsel %vm465, %v4338, 0.0
    %4340 = vadd.xlane.f32.xlu0 %v4339
    %v4341 = vpop.xlane.xlu0 %4340
    %v4342 = vrot.slane %v4341, 4
    %v4343 = vadd.f32 %v4341, %v4342
    %v4344 = vrot.slane %v4343, 2
    %v4345 = vadd.f32 %v4343, %v4344
    %v4346 = vrot.slane %v4345, 1
    %v4347 = vadd.f32 %v4345, %v4346
    %s4348 = vtos %v4347
    %s4349 = smul.f32 %s4348, 0.0009765625
    %s4350 = smul.f32 %s4337, %s4337
    %s4351 = ssub.f32 %s4349, %s4350
    %v4352 = vstv %s4337
    %v4353 = vmul.f32 %v498, %v4352
    %v4354 = vadd.f32 %v4322, %v4353
    %v4355 = vstv %s4351
    %v4356 = vmul.f32 %v498, %v4355
    %v4357 = vadd.f32 %v4325, %v4356
    %v4358 = vadd.f32 %v4357, 1e-05
    %v4359 = vrsqrt.pop %v4358
    %v4360 = vmul.f32 %v4359, %v4284
    %4362 = vset.pattern.permute.xlu0 0
    %4363 = vperm.xlu0 %4362, %v4354
    %v4364 = vpop.permute.xlu0 %4363
    %v4366 = vsub.f32 %v4278, %v4364
    %v4367 = vsub.f32 %v4280, %v4364
    %4369 = vset.pattern.permute.xlu0 0
    %4370 = vperm.xlu0 %4369, %v4360
    %v4371 = vpop.permute.xlu0 %4370
    %v4373 = vmul.f32 %v4366, %v4371
    %v4374 = vmul.f32 %v4367, %v4371
    %4376 = vset.pattern.permute.xlu0 0
    %4377 = vperm.xlu0 %4376, %v4285
    %v4378 = vpop.permute.xlu0 %4377
    %v4380 = vadd.f32 %v4373, %v4378
    %v4381 = vadd.f32 %v4374, %v4378
    %vm4382 = vcmp.ge.f32.partialorder %v4380, 0.0
    %vm4383 = vcmp.ge.f32.partialorder %v4381, 0.0
    %v4384 = vmul.f32 %v4380, 0.2
    %v4385 = vmul.f32 %v4381, 0.2
    %v4386 = vsel %vm4382, %v4380, %v4384
    %v4387 = vsel %vm4383, %v4381, %v4385
    %v4388 = vld [vmem:[#allocation10] sm:$0x7]
    %v4389 = vld [vmem:[%s24] sm:$0x7]
    %4391 = vset.pattern.permute.xlu0 0
    %4392 = vperm.xlu0 %4391, %v4389
    %v4393 = vpop.permute.xlu0 %4392
    %v4396 = vsel %vm197, %v4388, 0
    %4398 = vmatprep.subr.mxu0 0.0
    %4399 = vmatpush1.msra.mxu0 0.0
    %4400 = vmatprep.subr.mxu0 0.0
    %4401 = vmatpush1.msra.mxu0 0.0
    %4402 = vmatprep.subr.mxu0 0.0
    %4403 = vmatpush1.msra.mxu0 0.0
    %4404 = vmatprep.subr.mxu0 0.0
    %4405 = vmatpush1.msra.mxu0 0.0
    %4406 = vmatprep.subr.mxu0 0.0
    %4407 = vmatpush1.msra.mxu0 0.0
    %4408 = vmatprep.subr.mxu0 0.0
    %4409 = vmatpush1.msra.mxu0 0.0
    %4410 = vmatprep.subr.mxu0 0.0
    %4411 = vmatpush1.msra.mxu0 0.0
    %4412 = vmatprep.subr.mxu0 0.0
    %4413 = vmatpush1.msra.mxu0 0.0
    %4414 = vmatprep.subr.mxu0 0.0
    %4415 = vmatpush1.msra.mxu0 0.0
    %4416 = vmatprep.subr.mxu0 0.0
    %4417 = vmatpush1.msra.mxu0 0.0
    %4418 = vmatprep.subr.mxu0 0.0
    %4419 = vmatpush1.msra.mxu0 0.0
    %4420 = vmatprep.subr.mxu0 0.0
    %4421 = vmatpush1.msra.mxu0 0.0
    %4422 = vmatprep.subr.mxu0 0.0
    %4423 = vmatpush1.msra.mxu0 0.0
    %4424 = vmatprep.subr.mxu0 0.0
    %4425 = vmatpush1.msra.mxu0 0.0
    %4426 = vmatprep.subr.mxu0 0.0
    %4427 = vmatpush1.msra.mxu0 0.0
    %4428 = vmatprep.subr.mxu0 %v4387
    %4429 = vmatpush1.msra.mxu0 %v4386
    %4430 = vmatprep.subr.mxu0 0.0
    %4431 = vmatpush2.msra.mxu0 0.0
    %4432 = vmatprep.subr.mxu0 0.0
    %4433 = vmatpush2.msra.mxu0 0.0
    %4434 = vmatprep.subr.mxu0 0.0
    %4435 = vmatpush2.msra.mxu0 0.0
    %4436 = vmatprep.subr.mxu0 0.0
    %4437 = vmatpush2.msra.mxu0 0.0
    %4438 = vmatprep.subr.mxu0 0.0
    %4439 = vmatpush2.msra.mxu0 0.0
    %4440 = vmatprep.subr.mxu0 0.0
    %4441 = vmatpush2.msra.mxu0 0.0
    %4442 = vmatprep.subr.mxu0 0.0
    %4443 = vmatpush2.msra.mxu0 0.0
    %4444 = vmatprep.subr.mxu0 0.0
    %4445 = vmatpush2.msra.mxu0 0.0
    %4446 = vmatprep.subr.mxu0 0.0
    %4447 = vmatpush2.msra.mxu0 0.0
    %4448 = vmatprep.subr.mxu0 0.0
    %4449 = vmatpush2.msra.mxu0 0.0
    %4450 = vmatprep.subr.mxu0 0.0
    %4451 = vmatpush2.msra.mxu0 0.0
    %4452 = vmatprep.subr.mxu0 0.0
    %4453 = vmatpush2.msra.mxu0 0.0
    %4454 = vmatprep.subr.mxu0 0.0
    %4455 = vmatpush2.msra.mxu0 0.0
    %4456 = vmatprep.subr.mxu0 0.0
    %4457 = vmatpush2.msra.mxu0 0.0
    %4458 = vmatprep.subr.mxu0 0.0
    %4459 = vmatpush2.msra.mxu0 0.0
    %4460 = vmatprep.subr.mxu0 0.0
    %4461 = vmatpush2.msra.mxu0 0.0
    %4462 = vmatprep.mubr.f32.mxu0 0.0
    %4463 = vmatmul.mubr.f32.gmra.mxu0 %v4396
    %v4464 = vpop.f32.mrf.mxu0
    %v4465 = vadd.f32 %v4393, %v4464
    %v4466 = vpop.f32.mrf.mxu0
    %v4467 = vadd.f32 %v4393, %v4466
    %4468 = vdwg.mxu0
    %v4471 = vcombine.low %v4465, %v4467
    %4473 = vst [vmem:[%s25] sm:$0x77] %v4471
    %s4474 = scalar_lea.vmem %s0, 8
    %v4475 = vld [vmem:[%s4474] sm:$0xff]
    %s4476 = scalar_lea.vmem %s1, 16
    %v4477 = vld [vmem:[%s4476] sm:$0xff]
    %v4478 = vld [vmem:[%s4476 + $0x8] sm:$0xff]
    %v4479 = vld [vmem:[%s3] sm:$0xf]
    %v4480 = vld [vmem:[%s3 + $0x4] sm:$0xf]
    %v4481 = vld [vmem:[%s3 + $0x8] sm:$0xf]
    %v4482 = vld [vmem:[%s3 + $0xc] sm:$0xf]
    %v4483 = vld [vmem:[%s3 + $0x10] sm:$0xf]
    %v4484 = vld [vmem:[%s3 + $0x14] sm:$0xf]
    %v4485 = vld [vmem:[%s3 + $0x18] sm:$0xf]
    %v4486 = vld [vmem:[%s3 + $0x1c] sm:$0xf]
    %v4487 = vld [vmem:[%s3 + $0x20] sm:$0xf]
    %v4488 = vpack.c.bf16 %v4475, %v4475
    %v4498 = vunpack.c.l.b16 %v4479
    %v4499 = vunpack.c.l.b16 %v4480
    %v4500 = vunpack.c.l.b16 %v4481
    %v4501 = vunpack.c.l.b16 %v4482
    %v4502 = vunpack.c.l.b16 %v4483
    %v4503 = vunpack.c.l.b16 %v4484
    %v4504 = vunpack.c.l.b16 %v4485
    %v4505 = vunpack.c.l.b16 %v4486
    %v4506 = vunpack.c.l.b16 %v4487
    %v4507 = vpack.c.b16 %v4499, %v4498
    %v4508 = vpack.c.b16 %v4501, %v4500
    %v4509 = vpack.c.b16 %v4503, %v4502
    %v4510 = vpack.c.b16 %v4505, %v4504
    %v4511 = vpack.c.b16 %v4506, %v4506
    %v4513 = vsel %vm197, %v4507, 0
    %v4516 = vsel %vm197, %v4508, 0
    %v4519 = vsel %vm197, %v4509, 0
    %v4522 = vsel %vm197, %v4510, 0
    %v4525 = vsel %vm197, %v4511, 0
    %v4528 = vsel %vm213, %v4488, 0
    %4530 = vmatprep.subr.bf16.mxu0 0
    %4531 = vmatpush1.bf16.msra.mxu0 0
    %4532 = vmatprep.subr.bf16.mxu0 0
    %4533 = vmatpush1.bf16.msra.mxu0 0
    %4534 = vmatprep.subr.bf16.mxu0 0
    %4535 = vmatpush1.bf16.msra.mxu0 0
    %4536 = vmatprep.subr.bf16.mxu0 0
    %4537 = vmatpush1.bf16.msra.mxu0 0
    %4538 = vmatprep.subr.bf16.mxu0 0
    %4539 = vmatpush1.bf16.msra.mxu0 0
    %4540 = vmatprep.subr.bf16.mxu0 0
    %4541 = vmatpush1.bf16.msra.mxu0 0
    %4542 = vmatprep.subr.bf16.mxu0 0
    %4543 = vmatpush1.bf16.msra.mxu0 0
    %4544 = vmatprep.subr.bf16.mxu0 0
    %4545 = vmatpush1.bf16.msra.mxu0 %v4528
    %4546 = vmatprep.subr.bf16.mxu0 0
    %4547 = vmatpush2.bf16.msra.mxu0 0
    %4548 = vmatprep.subr.bf16.mxu0 0
    %4549 = vmatpush2.bf16.msra.mxu0 0
    %4550 = vmatprep.subr.bf16.mxu0 0
    %4551 = vmatpush2.bf16.msra.mxu0 0
    %4552 = vmatprep.subr.bf16.mxu0 0
    %4553 = vmatpush2.bf16.msra.mxu0 0
    %4554 = vmatprep.subr.bf16.mxu0 0
    %4555 = vmatpush2.bf16.msra.mxu0 0
    %4556 = vmatprep.subr.bf16.mxu0 0
    %4557 = vmatpush2.bf16.msra.mxu0 0
    %4558 = vmatprep.subr.bf16.mxu0 0
    %4559 = vmatpush2.bf16.msra.mxu0 0
    %4560 = vmatprep.subr.bf16.mxu0 0
    %4561 = vmatpush2.bf16.msra.mxu0 0
    %4562 = vmatprep.mubr.bf16.mxu0 0
    %4563 = vmatmul.mubr.bf16.gmra.mxu0 %v4513
    %v4564 = vpop.f32.mrf.mxu0
    %v4565 = vadd.f32 0.0, %v4564
    %v4566 = vpop.f32.mrf.mxu0
    %v4567 = vpop.f32.mrf.mxu0
    %v4568 = vadd.f32 0.0, %v4567
    %v4569 = vpop.f32.mrf.mxu0
    %4570 = vmatprep.mubr.bf16.mxu0 0
    %4571 = vmatmul.mubr.bf16.gmra.mxu0 %v4516
    %v4572 = vpop.f32.mrf.mxu0
    %v4573 = vadd.f32 0.0, %v4572
    %v4574 = vpop.f32.mrf.mxu0
    %v4575 = vpop.f32.mrf.mxu0
    %v4576 = vadd.f32 0.0, %v4575
    %v4577 = vpop.f32.mrf.mxu0
    %4578 = vmatprep.mubr.bf16.mxu0 0
    %4579 = vmatmul.mubr.bf16.gmra.mxu0 %v4519
    %v4580 = vpop.f32.mrf.mxu0
    %v4581 = vadd.f32 0.0, %v4580
    %v4582 = vpop.f32.mrf.mxu0
    %v4583 = vpop.f32.mrf.mxu0
    %v4584 = vadd.f32 0.0, %v4583
    %v4585 = vpop.f32.mrf.mxu0
    %4586 = vmatprep.mubr.bf16.mxu0 0
    %4587 = vmatmul.mubr.bf16.gmra.mxu0 %v4522
    %v4588 = vpop.f32.mrf.mxu0
    %v4589 = vadd.f32 0.0, %v4588
    %v4590 = vpop.f32.mrf.mxu0
    %v4591 = vpop.f32.mrf.mxu0
    %v4592 = vadd.f32 0.0, %v4591
    %v4593 = vpop.f32.mrf.mxu0
    %4594 = vmatprep.mubr.bf16.mxu0 0
    %4595 = vmatmul.mubr.bf16.gmra.mxu0 %v4525
    %v4596 = vpop.f32.mrf.mxu0
    %v4597 = vadd.f32 0.0, %v4596
    %v4598 = vpop.f32.mrf.mxu0
    %v4599 = vpop.f32.mrf.mxu0
    %v4600 = vpop.f32.mrf.mxu0
    %4601 = vdwg.mxu0
    %4603 = vrot.lane.b32.xlu0 %v4568, 16
    %v4604 = vpop.permute.xlu0 %4603
    %4607 = vrot.lane.b32.xlu0 %v4573, 32
    %v4608 = vpop.permute.xlu0 %4607
    %4611 = vrot.lane.b32.xlu0 %v4576, 48
    %v4612 = vpop.permute.xlu0 %4611
    %4615 = vrot.lane.b32.xlu0 %v4581, 64
    %v4616 = vpop.permute.xlu0 %4615
    %4619 = vrot.lane.b32.xlu0 %v4584, 80
    %v4620 = vpop.permute.xlu0 %4619
    %4623 = vrot.lane.b32.xlu0 %v4589, 96
    %v4624 = vpop.permute.xlu0 %4623
    %4627 = vrot.lane.b32.xlu0 %v4592, 112
    %v4628 = vpop.permute.xlu0 %4627
    %v4630 = vsel %vm317, %v4565, %v4604
    %v4631 = vsel %vm319, %v4630, %v4608
    %v4632 = vsel %vm321, %v4631, %v4612
    %v4633 = vsel %vm323, %v4632, %v4616
    %v4634 = vsel %vm325, %v4633, %v4620
    %v4635 = vsel %vm327, %v4634, %v4624
    %v4636 = vsel %vm329, %v4635, %v4628
    %v4637 = vpack.c.bf16 %v4636, %v4636
    %v4638 = vpack.c.bf16 %v4597, %v4597
    %v4639 = vld [vmem:[#allocation2] sm:$0xf]
    %v4640 = vld [vmem:[#allocation2 + $0x4] sm:$0xf]
    %v4641 = vld [vmem:[#allocation2 + $0x8] sm:$0xf]
    %v4642 = vld [vmem:[#allocation2 + $0xc] sm:$0xf]
    %v4643 = vld [vmem:[#allocation2 + $0x10] sm:$0xf]
    %v4644 = vld [vmem:[#allocation2 + $0x14] sm:$0xf]
    %v4645 = vld [vmem:[#allocation2 + $0x18] sm:$0xf]
    %v4646 = vld [vmem:[#allocation2 + $0x1c] sm:$0xf]
    %v4647 = vld [vmem:[#allocation2 + $0x20] sm:$0xf]
    %v4648 = vld [vmem:[#allocation2 + $0x24] sm:$0xf]
    %v4649 = vld [vmem:[#allocation2 + $0x28] sm:$0xf]
    %v4650 = vld [vmem:[#allocation2 + $0x2c] sm:$0xf]
    %v4651 = vld [vmem:[#allocation2 + $0x30] sm:$0xf]
    %v4652 = vld [vmem:[#allocation2 + $0x34] sm:$0xf]
    %v4653 = vld [vmem:[#allocation2 + $0x38] sm:$0xf]
    %v4654 = vld [vmem:[#allocation2 + $0x3c] sm:$0xf]
    %v4655 = vld [vmem:[#allocation2 + $0x40] sm:$0xf]
    %v4656 = vld [vmem:[#allocation2 + $0x44] sm:$0xf]
    %v4657 = vld [vmem:[%s4] sm:$0xff]
    %4659 = vset.pattern.permute.xlu0 0
    %4660 = vperm.xlu0 %4659, %v4657
    %v4661 = vpop.permute.xlu0 %4660
    %v4681 = vunpack.c.l.b16 %v4639
    %v4682 = vunpack.c.l.b16 %v4640
    %v4683 = vunpack.c.l.b16 %v4641
    %v4684 = vunpack.c.l.b16 %v4642
    %v4685 = vunpack.c.l.b16 %v4643
    %v4686 = vunpack.c.l.b16 %v4644
    %v4687 = vunpack.c.l.b16 %v4645
    %v4688 = vunpack.c.l.b16 %v4646
    %v4689 = vunpack.c.l.b16 %v4647
    %v4690 = vunpack.c.l.b16 %v4648
    %v4691 = vunpack.c.l.b16 %v4649
    %v4692 = vunpack.c.l.b16 %v4650
    %v4693 = vunpack.c.l.b16 %v4651
    %v4694 = vunpack.c.l.b16 %v4652
    %v4695 = vunpack.c.l.b16 %v4653
    %v4696 = vunpack.c.l.b16 %v4654
    %v4697 = vunpack.c.l.b16 %v4655
    %v4698 = vunpack.c.l.b16 %v4656
    %v4699 = vpack.c.b16 %v4682, %v4681
    %v4700 = vpack.c.b16 %v4684, %v4683
    %v4701 = vpack.c.b16 %v4686, %v4685
    %v4702 = vpack.c.b16 %v4688, %v4687
    %v4703 = vpack.c.b16 %v4690, %v4689
    %v4704 = vpack.c.b16 %v4692, %v4691
    %v4705 = vpack.c.b16 %v4694, %v4693
    %v4706 = vpack.c.b16 %v4696, %v4695
    %v4707 = vpack.c.b16 %v4698, %v4697
    %v4718 = vsel %vm317, %v4638, 0
    %4720 = vmatprep.subr.bf16.mxu0 0
    %4721 = vmatpush1.bf16.msra.mxu0 %v4706
    %4722 = vmatprep.subr.bf16.mxu0 0
    %4723 = vmatpush1.bf16.msra.mxu0 %v4705
    %4724 = vmatprep.subr.bf16.mxu0 0
    %4725 = vmatpush1.bf16.msra.mxu0 %v4704
    %4726 = vmatprep.subr.bf16.mxu0 0
    %4727 = vmatpush1.bf16.msra.mxu0 %v4703
    %4728 = vmatprep.subr.bf16.mxu0 0
    %4729 = vmatpush1.bf16.msra.mxu0 %v4702
    %4730 = vmatprep.subr.bf16.mxu0 0
    %4731 = vmatpush1.bf16.msra.mxu0 %v4701
    %4732 = vmatprep.subr.bf16.mxu0 0
    %4733 = vmatpush1.bf16.msra.mxu0 %v4700
    %4734 = vmatprep.subr.bf16.mxu0 0
    %4735 = vmatpush1.bf16.msra.mxu0 %v4699
    %4736 = vmatprep.subr.bf16.mxu0 0
    %4737 = vmatpush2.bf16.msra.mxu0 0
    %4738 = vmatprep.subr.bf16.mxu0 0
    %4739 = vmatpush2.bf16.msra.mxu0 0
    %4740 = vmatprep.subr.bf16.mxu0 0
    %4741 = vmatpush2.bf16.msra.mxu0 0
    %4742 = vmatprep.subr.bf16.mxu0 0
    %4743 = vmatpush2.bf16.msra.mxu0 0
    %4744 = vmatprep.subr.bf16.mxu0 0
    %4745 = vmatpush2.bf16.msra.mxu0 0
    %4746 = vmatprep.subr.bf16.mxu0 0
    %4747 = vmatpush2.bf16.msra.mxu0 0
    %4748 = vmatprep.subr.bf16.mxu0 0
    %4749 = vmatpush2.bf16.msra.mxu0 0
    %4750 = vmatprep.subr.bf16.mxu0 0
    %4751 = vmatpush2.bf16.msra.mxu0 %v4707
    %4752 = vmatprep.mubr.bf16.mxu0 %v4718
    %4753 = vmatmul.mubr.bf16.gmra.mxu0 %v4637
    %v4754 = vpop.f32.mrf.mxu0
    %v4755 = vadd.f32 %v4661, %v4754
    %v4756 = vpop.f32.mrf.mxu0
    %v4757 = vpop.f32.mrf.mxu0
    %v4758 = vpop.f32.mrf.mxu0
    %4759 = vdwg.mxu0
    %v4760 = vld [vmem:[%s5] sm:$0xff]
    %v4761 = vld [vmem:[%s6] sm:$0xff]
    %v4762 = vsel %vm323, %v4755, 0.0
    %4763 = vadd.xlane.f32.xlu0 %v4762
    %v4764 = vpop.xlane.xlu0 %4763
    %v4765 = vmul.f32 %v4755, %v4755
    %v4766 = vsel %vm323, %v4765, 0.0
    %4767 = vadd.xlane.f32.xlu0 %v4766
    %v4768 = vpop.xlane.xlu0 %4767
    %v4769 = vld [vmem:[#allocation9] sm:$0xff]
    %v4770 = vmul.f32 %v4764, %v4769
    %v4771 = vsel %vm465, %v4770, 0.0
    %4772 = vadd.xlane.f32.xlu0 %v4771
    %v4773 = vpop.xlane.xlu0 %4772
    %v4774 = vrot.slane %v4773, 4
    %v4775 = vadd.f32 %v4773, %v4774
    %v4776 = vrot.slane %v4775, 2
    %v4777 = vadd.f32 %v4775, %v4776
    %v4778 = vrot.slane %v4777, 1
    %v4779 = vadd.f32 %v4777, %v4778
    %s4780 = vtos %v4779
    %s4781 = smul.f32 %s4780, 0.00390625
    %v4782 = vmul.f32 %v4768, %v4769
    %v4783 = vsel %vm465, %v4782, 0.0
    %4784 = vadd.xlane.f32.xlu0 %v4783
    %v4785 = vpop.xlane.xlu0 %4784
    %v4786 = vrot.slane %v4785, 4
    %v4787 = vadd.f32 %v4785, %v4786
    %v4788 = vrot.slane %v4787, 2
    %v4789 = vadd.f32 %v4787, %v4788
    %v4790 = vrot.slane %v4789, 1
    %v4791 = vadd.f32 %v4789, %v4790
    %s4792 = vtos %v4791
    %s4793 = smul.f32 %s4792, 0.00390625
    %s4794 = smul.f32 %s4781, %s4781
    %s4795 = ssub.f32 %s4793, %s4794
    %v4796 = vstv %s4781
    %v4797 = vmul.f32 %v4769, %v4796
    %v4798 = vadd.f32 %v4797, 0.0
    %v4799 = vstv %s4795
    %v4800 = vmul.f32 %v4769, %v4799
    %v4801 = vadd.f32 %v4800, 0.0
    %v4802 = vld [vmem:[%s497] sm:$0xff]
    %v4803 = vmul.f32 %v4764, %v4802
    %v4804 = vsel %vm465, %v4803, 0.0
    %4805 = vadd.xlane.f32.xlu0 %v4804
    %v4806 = vpop.xlane.xlu0 %4805
    %v4807 = vrot.slane %v4806, 4
    %v4808 = vadd.f32 %v4806, %v4807
    %v4809 = vrot.slane %v4808, 2
    %v4810 = vadd.f32 %v4808, %v4809
    %v4811 = vrot.slane %v4810, 1
    %v4812 = vadd.f32 %v4810, %v4811
    %s4813 = vtos %v4812
    %s4814 = smul.f32 %s4813, 0.00390625
    %v4815 = vmul.f32 %v4768, %v4802
    %v4816 = vsel %vm465, %v4815, 0.0
    %4817 = vadd.xlane.f32.xlu0 %v4816
    %v4818 = vpop.xlane.xlu0 %4817
    %v4819 = vrot.slane %v4818, 4
    %v4820 = vadd.f32 %v4818, %v4819
    %v4821 = vrot.slane %v4820, 2
    %v4822 = vadd.f32 %v4820, %v4821
    %v4823 = vrot.slane %v4822, 1
    %v4824 = vadd.f32 %v4822, %v4823
    %s4825 = vtos %v4824
    %s4826 = smul.f32 %s4825, 0.00390625
    %s4827 = smul.f32 %s4814, %s4814
    %s4828 = ssub.f32 %s4826, %s4827
    %v4829 = vstv %s4814
    %v4830 = vmul.f32 %v4802, %v4829
    %v4831 = vadd.f32 %v4798, %v4830
    %v4832 = vstv %s4828
    %v4833 = vmul.f32 %v4802, %v4832
    %v4834 = vadd.f32 %v4801, %v4833
    %v4835 = vadd.f32 %v4834, 1e-05
    %v4836 = vrsqrt.pop %v4835
    %v4837 = vmul.f32 %v4836, %v4760
    %4839 = vset.pattern.permute.xlu0 0
    %4840 = vperm.xlu0 %4839, %v4831
    %v4841 = vpop.permute.xlu0 %4840
    %v4843 = vsub.f32 %v4755, %v4841
    %4845 = vset.pattern.permute.xlu0 0
    %4846 = vperm.xlu0 %4845, %v4837
    %v4847 = vpop.permute.xlu0 %4846
    %v4849 = vmul.f32 %v4843, %v4847
    %4851 = vset.pattern.permute.xlu0 0
    %4852 = vperm.xlu0 %4851, %v4761
    %v4853 = vpop.permute.xlu0 %4852
    %v4855 = vadd.f32 %v4849, %v4853
    %vm4856 = vcmp.ge.f32.partialorder %v4855, 0.0
    %v4857 = vmul.f32 %v4855, 0.2
    %v4858 = vsel %vm4856, %v4855, %v4857
    %v4859 = vld [vmem:[%s8] sm:$0xf]
    %v4860 = vld [vmem:[%s8 + $0x4] sm:$0xf]
    %v4861 = vld [vmem:[%s8 + $0x8] sm:$0xf]
    %v4862 = vld [vmem:[%s8 + $0xc] sm:$0xf]
    %v4863 = vld [vmem:[%s8 + $0x10] sm:$0xf]
    %v4864 = vld [vmem:[%s8 + $0x14] sm:$0xf]
    %v4865 = vld [vmem:[%s8 + $0x18] sm:$0xf]
    %v4866 = vld [vmem:[%s8 + $0x1c] sm:$0xf]
    %v4867 = vld [vmem:[%s8 + $0x20] sm:$0xf]
    %v4868 = vpack.c.bf16 %v4858, %v4858
    %v4878 = vunpack.c.l.b16 %v4859
    %v4879 = vunpack.c.l.b16 %v4860
    %v4880 = vunpack.c.l.b16 %v4861
    %v4881 = vunpack.c.l.b16 %v4862
    %v4882 = vunpack.c.l.b16 %v4863
    %v4883 = vunpack.c.l.b16 %v4864
    %v4884 = vunpack.c.l.b16 %v4865
    %v4885 = vunpack.c.l.b16 %v4866
    %v4886 = vunpack.c.l.b16 %v4867
    %v4887 = vpack.c.b16 %v4879, %v4878
    %v4888 = vpack.c.b16 %v4881, %v4880
    %v4889 = vpack.c.b16 %v4883, %v4882
    %v4890 = vpack.c.b16 %v4885, %v4884
    %v4891 = vpack.c.b16 %v4886, %v4886
    %v4893 = vsel %vm197, %v4887, 0
    %v4896 = vsel %vm197, %v4888, 0
    %v4899 = vsel %vm197, %v4889, 0
    %v4902 = vsel %vm197, %v4890, 0
    %v4905 = vsel %vm197, %v4891, 0
    %v4908 = vsel %vm213, %v4868, 0
    %4910 = vmatprep.subr.bf16.mxu0 0
    %4911 = vmatpush1.bf16.msra.mxu0 0
    %4912 = vmatprep.subr.bf16.mxu0 0
    %4913 = vmatpush1.bf16.msra.mxu0 0
    %4914 = vmatprep.subr.bf16.mxu0 0
    %4915 = vmatpush1.bf16.msra.mxu0 0
    %4916 = vmatprep.subr.bf16.mxu0 0
    %4917 = vmatpush1.bf16.msra.mxu0 0
    %4918 = vmatprep.subr.bf16.mxu0 0
    %4919 = vmatpush1.bf16.msra.mxu0 0
    %4920 = vmatprep.subr.bf16.mxu0 0
    %4921 = vmatpush1.bf16.msra.mxu0 0
    %4922 = vmatprep.subr.bf16.mxu0 0
    %4923 = vmatpush1.bf16.msra.mxu0 0
    %4924 = vmatprep.subr.bf16.mxu0 0
    %4925 = vmatpush1.bf16.msra.mxu0 %v4908
    %4926 = vmatprep.subr.bf16.mxu0 0
    %4927 = vmatpush2.bf16.msra.mxu0 0
    %4928 = vmatprep.subr.bf16.mxu0 0
    %4929 = vmatpush2.bf16.msra.mxu0 0
    %4930 = vmatprep.subr.bf16.mxu0 0
    %4931 = vmatpush2.bf16.msra.mxu0 0
    %4932 = vmatprep.subr.bf16.mxu0 0
    %4933 = vmatpush2.bf16.msra.mxu0 0
    %4934 = vmatprep.subr.bf16.mxu0 0
    %4935 = vmatpush2.bf16.msra.mxu0 0
    %4936 = vmatprep.subr.bf16.mxu0 0
    %4937 = vmatpush2.bf16.msra.mxu0 0
    %4938 = vmatprep.subr.bf16.mxu0 0
    %4939 = vmatpush2.bf16.msra.mxu0 0
    %4940 = vmatprep.subr.bf16.mxu0 0
    %4941 = vmatpush2.bf16.msra.mxu0 0
    %4942 = vmatprep.mubr.bf16.mxu0 0
    %4943 = vmatmul.mubr.bf16.gmra.mxu0 %v4893
    %v4944 = vpop.f32.mrf.mxu0
    %v4945 = vadd.f32 0.0, %v4944
    %v4946 = vpop.f32.mrf.mxu0
    %v4947 = vpop.f32.mrf.mxu0
    %v4948 = vadd.f32 0.0, %v4947
    %v4949 = vpop.f32.mrf.mxu0
    %4950 = vmatprep.mubr.bf16.mxu0 0
    %4951 = vmatmul.mubr.bf16.gmra.mxu0 %v4896
    %v4952 = vpop.f32.mrf.mxu0
    %v4953 = vadd.f32 0.0, %v4952
    %v4954 = vpop.f32.mrf.mxu0
    %v4955 = vpop.f32.mrf.mxu0
    %v4956 = vadd.f32 0.0, %v4955
    %v4957 = vpop.f32.mrf.mxu0
    %4958 = vmatprep.mubr.bf16.mxu0 0
    %4959 = vmatmul.mubr.bf16.gmra.mxu0 %v4899
    %v4960 = vpop.f32.mrf.mxu0
    %v4961 = vadd.f32 0.0, %v4960
    %v4962 = vpop.f32.mrf.mxu0
    %v4963 = vpop.f32.mrf.mxu0
    %v4964 = vadd.f32 0.0, %v4963
    %v4965 = vpop.f32.mrf.mxu0
    %4966 = vmatprep.mubr.bf16.mxu0 0
    %4967 = vmatmul.mubr.bf16.gmra.mxu0 %v4902
    %v4968 = vpop.f32.mrf.mxu0
    %v4969 = vadd.f32 0.0, %v4968
    %v4970 = vpop.f32.mrf.mxu0
    %v4971 = vpop.f32.mrf.mxu0
    %v4972 = vadd.f32 0.0, %v4971
    %v4973 = vpop.f32.mrf.mxu0
    %4974 = vmatprep.mubr.bf16.mxu0 0
    %4975 = vmatmul.mubr.bf16.gmra.mxu0 %v4905
    %v4976 = vpop.f32.mrf.mxu0
    %v4977 = vadd.f32 0.0, %v4976
    %v4978 = vpop.f32.mrf.mxu0
    %v4979 = vpop.f32.mrf.mxu0
    %v4980 = vpop.f32.mrf.mxu0
    %4981 = vdwg.mxu0
    %4983 = vrot.lane.b32.xlu0 %v4948, 64
    %v4984 = vpop.permute.xlu0 %4983
    %4987 = vrot.lane.b32.xlu0 %v4956, 64
    %v4988 = vpop.permute.xlu0 %4987
    %4991 = vrot.lane.b32.xlu0 %v4964, 64
    %v4992 = vpop.permute.xlu0 %4991
    %4995 = vrot.lane.b32.xlu0 %v4972, 64
    %v4996 = vpop.permute.xlu0 %4995
    %v4998 = vsel %vm323, %v4945, %v4984
    %v4999 = vsel %vm323, %v4953, %v4988
    %v5000 = vsel %vm323, %v4961, %v4992
    %v5001 = vsel %vm323, %v4969, %v4996
    %v5002 = vpack.c.bf16 %v4998, %v4998
    %v5003 = vpack.c.bf16 %v4999, %v4999
    %v5004 = vpack.c.bf16 %v5000, %v5000
    %v5005 = vpack.c.bf16 %v5001, %v5001
    %v5006 = vpack.c.bf16 %v4977, %v4977
    %v5007 = vld [vmem:[#allocation4] sm:$0xf]
    %v5008 = vld [vmem:[#allocation4 + $0x4] sm:$0xf]
    %v5009 = vld [vmem:[#allocation4 + $0x8] sm:$0xf]
    %v5010 = vld [vmem:[#allocation4 + $0xc] sm:$0xf]
    %v5011 = vld [vmem:[#allocation4 + $0x10] sm:$0xf]
    %v5012 = vld [vmem:[#allocation4 + $0x14] sm:$0xf]
    %v5013 = vld [vmem:[#allocation4 + $0x18] sm:$0xf]
    %v5014 = vld [vmem:[#allocation4 + $0x1c] sm:$0xf]
    %v5015 = vld [vmem:[#allocation4 + $0x20] sm:$0xf]
    %v5016 = vld [vmem:[#allocation4 + $0x24] sm:$0xf]
    %v5017 = vld [vmem:[#allocation4 + $0x28] sm:$0xf]
    %v5018 = vld [vmem:[#allocation4 + $0x2c] sm:$0xf]
    %v5019 = vld [vmem:[#allocation4 + $0x30] sm:$0xf]
    %v5020 = vld [vmem:[#allocation4 + $0x34] sm:$0xf]
    %v5021 = vld [vmem:[#allocation4 + $0x38] sm:$0xf]
    %v5022 = vld [vmem:[#allocation4 + $0x3c] sm:$0xf]
    %v5023 = vld [vmem:[#allocation4 + $0x40] sm:$0xf]
    %v5024 = vld [vmem:[#allocation4 + $0x44] sm:$0xf]
    %v5025 = vld [vmem:[#allocation4 + $0x48] sm:$0xf]
    %v5026 = vld [vmem:[#allocation4 + $0x4c] sm:$0xf]
    %v5027 = vld [vmem:[#allocation4 + $0x50] sm:$0xf]
    %v5028 = vld [vmem:[#allocation4 + $0x54] sm:$0xf]
    %v5029 = vld [vmem:[#allocation4 + $0x58] sm:$0xf]
    %v5030 = vld [vmem:[#allocation4 + $0x5c] sm:$0xf]
    %v5031 = vld [vmem:[#allocation4 + $0x60] sm:$0xf]
    %v5032 = vld [vmem:[#allocation4 + $0x64] sm:$0xf]
    %v5033 = vld [vmem:[#allocation4 + $0x68] sm:$0xf]
    %v5034 = vld [vmem:[#allocation4 + $0x6c] sm:$0xf]
    %v5035 = vld [vmem:[#allocation4 + $0x70] sm:$0xf]
    %v5036 = vld [vmem:[#allocation4 + $0x74] sm:$0xf]
    %v5037 = vld [vmem:[#allocation4 + $0x78] sm:$0xf]
    %v5038 = vld [vmem:[#allocation4 + $0x7c] sm:$0xf]
    %v5039 = vld [vmem:[#allocation4 + $0x80] sm:$0xf]
    %v5040 = vld [vmem:[#allocation4 + $0x84] sm:$0xf]
    %v5041 = vld [vmem:[#allocation4 + $0x88] sm:$0xf]
    %v5042 = vld [vmem:[#allocation4 + $0x8c] sm:$0xf]
    %v5043 = vld [vmem:[#allocation4 + $0x90] sm:$0xf]
    %v5044 = vld [vmem:[#allocation4 + $0x94] sm:$0xf]
    %v5045 = vld [vmem:[#allocation4 + $0x98] sm:$0xf]
    %v5046 = vld [vmem:[#allocation4 + $0x9c] sm:$0xf]
    %v5047 = vld [vmem:[#allocation4 + $0xa0] sm:$0xf]
    %v5048 = vld [vmem:[#allocation4 + $0xa4] sm:$0xf]
    %v5049 = vld [vmem:[#allocation4 + $0xa8] sm:$0xf]
    %v5050 = vld [vmem:[#allocation4 + $0xac] sm:$0xf]
    %v5051 = vld [vmem:[#allocation4 + $0xb0] sm:$0xf]
    %v5052 = vld [vmem:[#allocation4 + $0xb4] sm:$0xf]
    %v5053 = vld [vmem:[#allocation4 + $0xb8] sm:$0xf]
    %v5054 = vld [vmem:[#allocation4 + $0xbc] sm:$0xf]
    %v5055 = vld [vmem:[#allocation4 + $0xc0] sm:$0xf]
    %v5056 = vld [vmem:[#allocation4 + $0xc4] sm:$0xf]
    %v5057 = vld [vmem:[#allocation4 + $0xc8] sm:$0xf]
    %v5058 = vld [vmem:[#allocation4 + $0xcc] sm:$0xf]
    %v5059 = vld [vmem:[#allocation4 + $0xd0] sm:$0xf]
    %v5060 = vld [vmem:[#allocation4 + $0xd4] sm:$0xf]
    %v5061 = vld [vmem:[#allocation4 + $0xd8] sm:$0xf]
    %v5062 = vld [vmem:[#allocation4 + $0xdc] sm:$0xf]
    %v5063 = vld [vmem:[#allocation4 + $0xe0] sm:$0xf]
    %v5064 = vld [vmem:[#allocation4 + $0xe4] sm:$0xf]
    %v5065 = vld [vmem:[#allocation4 + $0xe8] sm:$0xf]
    %v5066 = vld [vmem:[#allocation4 + $0xec] sm:$0xf]
    %v5067 = vld [vmem:[#allocation4 + $0xf0] sm:$0xf]
    %v5068 = vld [vmem:[#allocation4 + $0xf4] sm:$0xf]
    %v5069 = vld [vmem:[#allocation4 + $0xf8] sm:$0xf]
    %v5070 = vld [vmem:[#allocation4 + $0xfc] sm:$0xf]
    %v5071 = vld [vmem:[#allocation4 + $0x100] sm:$0xf]
    %v5072 = vld [vmem:[#allocation4 + $0x104] sm:$0xf]
    %v5073 = vld [vmem:[#allocation4 + $0x108] sm:$0xf]
    %v5074 = vld [vmem:[#allocation4 + $0x10c] sm:$0xf]
    %v5075 = vld [vmem:[#allocation4 + $0x110] sm:$0xf]
    %v5076 = vld [vmem:[#allocation4 + $0x114] sm:$0xf]
    %v5077 = vld [vmem:[#allocation4 + $0x118] sm:$0xf]
    %v5078 = vld [vmem:[#allocation4 + $0x11c] sm:$0xf]
    %v5079 = vld [vmem:[%s9] sm:$0xff]
    %5081 = vset.pattern.permute.xlu0 0
    %5082 = vperm.xlu0 %5081, %v5079
    %v5083 = vpop.permute.xlu0 %5082
    %v5157 = vunpack.c.l.b16 %v5007
    %v5158 = vunpack.c.l.b16 %v5008
    %v5159 = vunpack.c.l.b16 %v5009
    %v5160 = vunpack.c.l.b16 %v5010
    %v5161 = vunpack.c.l.b16 %v5011
    %v5162 = vunpack.c.l.b16 %v5012
    %v5163 = vunpack.c.l.b16 %v5013
    %v5164 = vunpack.c.l.b16 %v5014
    %v5165 = vunpack.c.l.b16 %v5015
    %v5166 = vunpack.c.l.b16 %v5016
    %v5167 = vunpack.c.l.b16 %v5017
    %v5168 = vunpack.c.l.b16 %v5018
    %v5169 = vunpack.c.l.b16 %v5019
    %v5170 = vunpack.c.l.b16 %v5020
    %v5171 = vunpack.c.l.b16 %v5021
    %v5172 = vunpack.c.l.b16 %v5022
    %v5173 = vunpack.c.l.b16 %v5023
    %v5174 = vunpack.c.l.b16 %v5024
    %v5175 = vunpack.c.l.b16 %v5025
    %v5176 = vunpack.c.l.b16 %v5026
    %v5177 = vunpack.c.l.b16 %v5027
    %v5178 = vunpack.c.l.b16 %v5028
    %v5179 = vunpack.c.l.b16 %v5029
    %v5180 = vunpack.c.l.b16 %v5030
    %v5181 = vunpack.c.l.b16 %v5031
    %v5182 = vunpack.c.l.b16 %v5032
    %v5183 = vunpack.c.l.b16 %v5033
    %v5184 = vunpack.c.l.b16 %v5034
    %v5185 = vunpack.c.l.b16 %v5035
    %v5186 = vunpack.c.l.b16 %v5036
    %v5187 = vunpack.c.l.b16 %v5037
    %v5188 = vunpack.c.l.b16 %v5038
    %v5189 = vunpack.c.l.b16 %v5039
    %v5190 = vunpack.c.l.b16 %v5040
    %v5191 = vunpack.c.l.b16 %v5041
    %v5192 = vunpack.c.l.b16 %v5042
    %v5193 = vunpack.c.l.b16 %v5043
    %v5194 = vunpack.c.l.b16 %v5044
    %v5195 = vunpack.c.l.b16 %v5045
    %v5196 = vunpack.c.l.b16 %v5046
    %v5197 = vunpack.c.l.b16 %v5047
    %v5198 = vunpack.c.l.b16 %v5048
    %v5199 = vunpack.c.l.b16 %v5049
    %v5200 = vunpack.c.l.b16 %v5050
    %v5201 = vunpack.c.l.b16 %v5051
    %v5202 = vunpack.c.l.b16 %v5052
    %v5203 = vunpack.c.l.b16 %v5053
    %v5204 = vunpack.c.l.b16 %v5054
    %v5205 = vunpack.c.l.b16 %v5055
    %v5206 = vunpack.c.l.b16 %v5056
    %v5207 = vunpack.c.l.b16 %v5057
    %v5208 = vunpack.c.l.b16 %v5058
    %v5209 = vunpack.c.l.b16 %v5059
    %v5210 = vunpack.c.l.b16 %v5060
    %v5211 = vunpack.c.l.b16 %v5061
    %v5212 = vunpack.c.l.b16 %v5062
    %v5213 = vunpack.c.l.b16 %v5063
    %v5214 = vunpack.c.l.b16 %v5064
    %v5215 = vunpack.c.l.b16 %v5065
    %v5216 = vunpack.c.l.b16 %v5066
    %v5217 = vunpack.c.l.b16 %v5067
    %v5218 = vunpack.c.l.b16 %v5068
    %v5219 = vunpack.c.l.b16 %v5069
    %v5220 = vunpack.c.l.b16 %v5070
    %v5221 = vunpack.c.l.b16 %v5071
    %v5222 = vunpack.c.l.b16 %v5072
    %v5223 = vunpack.c.l.b16 %v5073
    %v5224 = vunpack.c.l.b16 %v5074
    %v5225 = vunpack.c.l.b16 %v5075
    %v5226 = vunpack.c.l.b16 %v5076
    %v5227 = vunpack.c.l.b16 %v5077
    %v5228 = vunpack.c.l.b16 %v5078
    %v5229 = vpack.c.b16 %v5158, %v5157
    %v5230 = vpack.c.b16 %v5160, %v5159
    %v5231 = vpack.c.b16 %v5162, %v5161
    %v5232 = vpack.c.b16 %v5164, %v5163
    %v5233 = vpack.c.b16 %v5166, %v5165
    %v5234 = vpack.c.b16 %v5168, %v5167
    %v5235 = vpack.c.b16 %v5170, %v5169
    %v5236 = vpack.c.b16 %v5172, %v5171
    %v5237 = vpack.c.b16 %v5174, %v5173
    %v5238 = vpack.c.b16 %v5176, %v5175
    %v5239 = vpack.c.b16 %v5178, %v5177
    %v5240 = vpack.c.b16 %v5180, %v5179
    %v5241 = vpack.c.b16 %v5182, %v5181
    %v5242 = vpack.c.b16 %v5184, %v5183
    %v5243 = vpack.c.b16 %v5186, %v5185
    %v5244 = vpack.c.b16 %v5188, %v5187
    %v5245 = vpack.c.b16 %v5190, %v5189
    %v5246 = vpack.c.b16 %v5192, %v5191
    %v5247 = vpack.c.b16 %v5194, %v5193
    %v5248 = vpack.c.b16 %v5196, %v5195
    %v5249 = vpack.c.b16 %v5198, %v5197
    %v5250 = vpack.c.b16 %v5200, %v5199
    %v5251 = vpack.c.b16 %v5202, %v5201
    %v5252 = vpack.c.b16 %v5204, %v5203
    %v5253 = vpack.c.b16 %v5206, %v5205
    %v5254 = vpack.c.b16 %v5208, %v5207
    %v5255 = vpack.c.b16 %v5210, %v5209
    %v5256 = vpack.c.b16 %v5212, %v5211
    %v5257 = vpack.c.b16 %v5214, %v5213
    %v5258 = vpack.c.b16 %v5216, %v5215
    %v5259 = vpack.c.b16 %v5218, %v5217
    %v5260 = vpack.c.b16 %v5220, %v5219
    %v5261 = vpack.c.b16 %v5222, %v5221
    %v5262 = vpack.c.b16 %v5224, %v5223
    %v5263 = vpack.c.b16 %v5226, %v5225
    %v5264 = vpack.c.b16 %v5228, %v5227
    %v5302 = vsel %vm323, %v5006, 0
    %5304 = vmatprep.subr.bf16.mxu0 0
    %5305 = vmatpush1.bf16.msra.mxu0 %v5236
    %5306 = vmatprep.subr.bf16.mxu0 0
    %5307 = vmatpush1.bf16.msra.mxu0 %v5235
    %5308 = vmatprep.subr.bf16.mxu0 0
    %5309 = vmatpush1.bf16.msra.mxu0 %v5234
    %5310 = vmatprep.subr.bf16.mxu0 0
    %5311 = vmatpush1.bf16.msra.mxu0 %v5233
    %5312 = vmatprep.subr.bf16.mxu0 0
    %5313 = vmatpush1.bf16.msra.mxu0 %v5232
    %5314 = vmatprep.subr.bf16.mxu0 0
    %5315 = vmatpush1.bf16.msra.mxu0 %v5231
    %5316 = vmatprep.subr.bf16.mxu0 0
    %5317 = vmatpush1.bf16.msra.mxu0 %v5230
    %5318 = vmatprep.subr.bf16.mxu0 0
    %5319 = vmatpush1.bf16.msra.mxu0 %v5229
    %5320 = vmatprep.subr.bf16.mxu0 0
    %5321 = vmatpush2.bf16.msra.mxu0 %v5244
    %5322 = vmatprep.subr.bf16.mxu0 0
    %5323 = vmatpush2.bf16.msra.mxu0 %v5243
    %5324 = vmatprep.subr.bf16.mxu0 0
    %5325 = vmatpush2.bf16.msra.mxu0 %v5242
    %5326 = vmatprep.subr.bf16.mxu0 0
    %5327 = vmatpush2.bf16.msra.mxu0 %v5241
    %5328 = vmatprep.subr.bf16.mxu0 0
    %5329 = vmatpush2.bf16.msra.mxu0 %v5240
    %5330 = vmatprep.subr.bf16.mxu0 0
    %5331 = vmatpush2.bf16.msra.mxu0 %v5239
    %5332 = vmatprep.subr.bf16.mxu0 0
    %5333 = vmatpush2.bf16.msra.mxu0 %v5238
    %5334 = vmatprep.subr.bf16.mxu0 0
    %5335 = vmatpush2.bf16.msra.mxu0 %v5237
    %5336 = vmatprep.mubr.bf16.mxu0 %v5003
    %5337 = vmatmul.mubr.bf16.gmra.mxu0 %v5002
    %v5338 = vpop.f32.mrf.mxu0
    %v5339 = vadd.f32 %v5083, %v5338
    %v5340 = vpop.f32.mrf.mxu0
    %v5341 = vpop.f32.mrf.mxu0
    %v5342 = vpop.f32.mrf.mxu0
    %5343 = vdwg.mxu0
    %5344 = vmatprep.subr.bf16.mxu0 0
    %5345 = vmatpush1.bf16.msra.mxu0 %v5252
    %5346 = vmatprep.subr.bf16.mxu0 0
    %5347 = vmatpush1.bf16.msra.mxu0 %v5251
    %5348 = vmatprep.subr.bf16.mxu0 0
    %5349 = vmatpush1.bf16.msra.mxu0 %v5250
    %5350 = vmatprep.subr.bf16.mxu0 0
    %5351 = vmatpush1.bf16.msra.mxu0 %v5249
    %5352 = vmatprep.subr.bf16.mxu0 0
    %5353 = vmatpush1.bf16.msra.mxu0 %v5248
    %5354 = vmatprep.subr.bf16.mxu0 0
    %5355 = vmatpush1.bf16.msra.mxu0 %v5247
    %5356 = vmatprep.subr.bf16.mxu0 0
    %5357 = vmatpush1.bf16.msra.mxu0 %v5246
    %5358 = vmatprep.subr.bf16.mxu0 0
    %5359 = vmatpush1.bf16.msra.mxu0 %v5245
    %5360 = vmatprep.subr.bf16.mxu0 0
    %5361 = vmatpush2.bf16.msra.mxu0 %v5260
    %5362 = vmatprep.subr.bf16.mxu0 0
    %5363 = vmatpush2.bf16.msra.mxu0 %v5259
    %5364 = vmatprep.subr.bf16.mxu0 0
    %5365 = vmatpush2.bf16.msra.mxu0 %v5258
    %5366 = vmatprep.subr.bf16.mxu0 0
    %5367 = vmatpush2.bf16.msra.mxu0 %v5257
    %5368 = vmatprep.subr.bf16.mxu0 0
    %5369 = vmatpush2.bf16.msra.mxu0 %v5256
    %5370 = vmatprep.subr.bf16.mxu0 0
    %5371 = vmatpush2.bf16.msra.mxu0 %v5255
    %5372 = vmatprep.subr.bf16.mxu0 0
    %5373 = vmatpush2.bf16.msra.mxu0 %v5254
    %5374 = vmatprep.subr.bf16.mxu0 0
    %5375 = vmatpush2.bf16.msra.mxu0 %v5253
    %5376 = vmatprep.mubr.bf16.mxu0 %v5005
    %5377 = vmatmul.mubr.bf16.gmra.mxu0 %v5004
    %v5378 = vpop.f32.mrf.mxu0
    %v5379 = vadd.f32 %v5339, %v5378
    %v5380 = vpop.f32.mrf.mxu0
    %v5381 = vpop.f32.mrf.mxu0
    %v5382 = vpop.f32.mrf.mxu0
    %5383 = vdwg.mxu0
    %5384 = vmatprep.subr.bf16.mxu0 0
    %5385 = vmatpush1.bf16.msra.mxu0 0
    %5386 = vmatprep.subr.bf16.mxu0 0
    %5387 = vmatpush1.bf16.msra.mxu0 0
    %5388 = vmatprep.subr.bf16.mxu0 0
    %5389 = vmatpush1.bf16.msra.mxu0 0
    %5390 = vmatprep.subr.bf16.mxu0 0
    %5391 = vmatpush1.bf16.msra.mxu0 0
    %5392 = vmatprep.subr.bf16.mxu0 0
    %5393 = vmatpush1.bf16.msra.mxu0 %v5264
    %5394 = vmatprep.subr.bf16.mxu0 0
    %5395 = vmatpush1.bf16.msra.mxu0 %v5263
    %5396 = vmatprep.subr.bf16.mxu0 0
    %5397 = vmatpush1.bf16.msra.mxu0 %v5262
    %5398 = vmatprep.subr.bf16.mxu0 0
    %5399 = vmatpush1.bf16.msra.mxu0 %v5261
    %5400 = vmatprep.subr.bf16.mxu0 0
    %5401 = vmatpush2.bf16.msra.mxu0 0
    %5402 = vmatprep.subr.bf16.mxu0 0
    %5403 = vmatpush2.bf16.msra.mxu0 0
    %5404 = vmatprep.subr.bf16.mxu0 0
    %5405 = vmatpush2.bf16.msra.mxu0 0
    %5406 = vmatprep.subr.bf16.mxu0 0
    %5407 = vmatpush2.bf16.msra.mxu0 0
    %5408 = vmatprep.subr.bf16.mxu0 0
    %5409 = vmatpush2.bf16.msra.mxu0 0
    %5410 = vmatprep.subr.bf16.mxu0 0
    %5411 = vmatpush2.bf16.msra.mxu0 0
    %5412 = vmatprep.subr.bf16.mxu0 0
    %5413 = vmatpush2.bf16.msra.mxu0 0
    %5414 = vmatprep.subr.bf16.mxu0 0
    %5415 = vmatpush2.bf16.msra.mxu0 0
    %5416 = vmatprep.mubr.bf16.mxu0 0
    %5417 = vmatmul.mubr.bf16.gmra.mxu0 %v5302
    %v5418 = vpop.f32.mrf.mxu0
    %v5419 = vadd.f32 %v5379, %v5418
    %v5420 = vpop.f32.mrf.mxu0
    %v5421 = vpop.f32.mrf.mxu0
    %v5422 = vpop.f32.mrf.mxu0
    %5423 = vdwg.mxu0
    %v5424 = vld [vmem:[%s10] sm:$0xff]
    %v5425 = vld [vmem:[%s11] sm:$0xff]
    %v5426 = vsel %vm323, %v5419, 0.0
    %5427 = vadd.xlane.f32.xlu0 %v5426
    %v5428 = vpop.xlane.xlu0 %5427
    %v5429 = vmul.f32 %v5419, %v5419
    %v5430 = vsel %vm323, %v5429, 0.0
    %5431 = vadd.xlane.f32.xlu0 %v5430
    %v5432 = vpop.xlane.xlu0 %5431
    %v5433 = vmul.f32 %v5428, %v4769
    %v5434 = vsel %vm465, %v5433, 0.0
    %5435 = vadd.xlane.f32.xlu0 %v5434
    %v5436 = vpop.xlane.xlu0 %5435
    %v5437 = vrot.slane %v5436, 4
    %v5438 = vadd.f32 %v5436, %v5437
    %v5439 = vrot.slane %v5438, 2
    %v5440 = vadd.f32 %v5438, %v5439
    %v5441 = vrot.slane %v5440, 1
    %v5442 = vadd.f32 %v5440, %v5441
    %s5443 = vtos %v5442
    %s5444 = smul.f32 %s5443, 0.00390625
    %v5445 = vmul.f32 %v5432, %v4769
    %v5446 = vsel %vm465, %v5445, 0.0
    %5447 = vadd.xlane.f32.xlu0 %v5446
    %v5448 = vpop.xlane.xlu0 %5447
    %v5449 = vrot.slane %v5448, 4
    %v5450 = vadd.f32 %v5448, %v5449
    %v5451 = vrot.slane %v5450, 2
    %v5452 = vadd.f32 %v5450, %v5451
    %v5453 = vrot.slane %v5452, 1
    %v5454 = vadd.f32 %v5452, %v5453
    %s5455 = vtos %v5454
    %s5456 = smul.f32 %s5455, 0.00390625
    %s5457 = smul.f32 %s5444, %s5444
    %s5458 = ssub.f32 %s5456, %s5457
    %v5459 = vstv %s5444
    %v5460 = vmul.f32 %v4769, %v5459
    %v5461 = vadd.f32 %v5460, 0.0
    %v5462 = vstv %s5458
    %v5463 = vmul.f32 %v4769, %v5462
    %v5464 = vadd.f32 %v5463, 0.0
    %v5465 = vmul.f32 %v5428, %v4802
    %v5466 = vsel %vm465, %v5465, 0.0
    %5467 = vadd.xlane.f32.xlu0 %v5466
    %v5468 = vpop.xlane.xlu0 %5467
    %v5469 = vrot.slane %v5468, 4
    %v5470 = vadd.f32 %v5468, %v5469
    %v5471 = vrot.slane %v5470, 2
    %v5472 = vadd.f32 %v5470, %v5471
    %v5473 = vrot.slane %v5472, 1
    %v5474 = vadd.f32 %v5472, %v5473
    %s5475 = vtos %v5474
    %s5476 = smul.f32 %s5475, 0.00390625
    %v5477 = vmul.f32 %v5432, %v4802
    %v5478 = vsel %vm465, %v5477, 0.0
    %5479 = vadd.xlane.f32.xlu0 %v5478
    %v5480 = vpop.xlane.xlu0 %5479
    %v5481 = vrot.slane %v5480, 4
    %v5482 = vadd.f32 %v5480, %v5481
    %v5483 = vrot.slane %v5482, 2
    %v5484 = vadd.f32 %v5482, %v5483
    %v5485 = vrot.slane %v5484, 1
    %v5486 = vadd.f32 %v5484, %v5485
    %s5487 = vtos %v5486
    %s5488 = smul.f32 %s5487, 0.00390625
    %s5489 = smul.f32 %s5476, %s5476
    %s5490 = ssub.f32 %s5488, %s5489
    %v5491 = vstv %s5476
    %v5492 = vmul.f32 %v4802, %v5491
    %v5493 = vadd.f32 %v5461, %v5492
    %v5494 = vstv %s5490
    %v5495 = vmul.f32 %v4802, %v5494
    %v5496 = vadd.f32 %v5464, %v5495
    %v5497 = vadd.f32 %v5496, 1e-05
    %v5498 = vrsqrt.pop %v5497
    %v5499 = vmul.f32 %v5498, %v5424
    %5501 = vset.pattern.permute.xlu0 0
    %5502 = vperm.xlu0 %5501, %v5493
    %v5503 = vpop.permute.xlu0 %5502
    %v5505 = vsub.f32 %v5419, %v5503
    %5507 = vset.pattern.permute.xlu0 0
    %5508 = vperm.xlu0 %5507, %v5499
    %v5509 = vpop.permute.xlu0 %5508
    %v5511 = vmul.f32 %v5505, %v5509
    %5513 = vset.pattern.permute.xlu0 0
    %5514 = vperm.xlu0 %5513, %v5425
    %v5515 = vpop.permute.xlu0 %5514
    %v5517 = vadd.f32 %v5511, %v5515
    %vm5518 = vcmp.ge.f32.partialorder %v5517, 0.0
    %v5519 = vmul.f32 %v5517, 0.2
    %v5520 = vsel %vm5518, %v5517, %v5519
    %v5521 = vld [vmem:[%s13] sm:$0xf]
    %v5522 = vld [vmem:[%s13 + $0x4] sm:$0xf]
    %v5523 = vld [vmem:[%s13 + $0x8] sm:$0xf]
    %v5524 = vld [vmem:[%s13 + $0xc] sm:$0xf]
    %v5525 = vld [vmem:[%s13 + $0x10] sm:$0xf]
    %v5526 = vld [vmem:[%s13 + $0x14] sm:$0xf]
    %v5527 = vld [vmem:[%s13 + $0x18] sm:$0xf]
    %v5528 = vld [vmem:[%s13 + $0x1c] sm:$0xf]
    %v5529 = vld [vmem:[%s13 + $0x20] sm:$0xf]
    %v5530 = vpack.c.bf16 %v5520, %v5520
    %v5540 = vunpack.c.l.b16 %v5521
    %v5541 = vunpack.c.l.b16 %v5522
    %v5542 = vunpack.c.l.b16 %v5523
    %v5543 = vunpack.c.l.b16 %v5524
    %v5544 = vunpack.c.l.b16 %v5525
    %v5545 = vunpack.c.l.b16 %v5526
    %v5546 = vunpack.c.l.b16 %v5527
    %v5547 = vunpack.c.l.b16 %v5528
    %v5548 = vunpack.c.l.b16 %v5529
    %v5549 = vpack.c.b16 %v5541, %v5540
    %v5550 = vpack.c.b16 %v5543, %v5542
    %v5551 = vpack.c.b16 %v5545, %v5544
    %v5552 = vpack.c.b16 %v5547, %v5546
    %v5553 = vpack.c.b16 %v5548, %v5548
    %v5555 = vsel %vm197, %v5549, 0
    %v5558 = vsel %vm197, %v5550, 0
    %v5561 = vsel %vm197, %v5551, 0
    %v5564 = vsel %vm197, %v5552, 0
    %v5567 = vsel %vm197, %v5553, 0
    %v5570 = vsel %vm213, %v5530, 0
    %5572 = vmatprep.subr.bf16.mxu0 0
    %5573 = vmatpush1.bf16.msra.mxu0 0
    %5574 = vmatprep.subr.bf16.mxu0 0
    %5575 = vmatpush1.bf16.msra.mxu0 0
    %5576 = vmatprep.subr.bf16.mxu0 0
    %5577 = vmatpush1.bf16.msra.mxu0 0
    %5578 = vmatprep.subr.bf16.mxu0 0
    %5579 = vmatpush1.bf16.msra.mxu0 0
    %5580 = vmatprep.subr.bf16.mxu0 0
    %5581 = vmatpush1.bf16.msra.mxu0 0
    %5582 = vmatprep.subr.bf16.mxu0 0
    %5583 = vmatpush1.bf16.msra.mxu0 0
    %5584 = vmatprep.subr.bf16.mxu0 0
    %5585 = vmatpush1.bf16.msra.mxu0 0
    %5586 = vmatprep.subr.bf16.mxu0 0
    %5587 = vmatpush1.bf16.msra.mxu0 %v5570
    %5588 = vmatprep.subr.bf16.mxu0 0
    %5589 = vmatpush2.bf16.msra.mxu0 0
    %5590 = vmatprep.subr.bf16.mxu0 0
    %5591 = vmatpush2.bf16.msra.mxu0 0
    %5592 = vmatprep.subr.bf16.mxu0 0
    %5593 = vmatpush2.bf16.msra.mxu0 0
    %5594 = vmatprep.subr.bf16.mxu0 0
    %5595 = vmatpush2.bf16.msra.mxu0 0
    %5596 = vmatprep.subr.bf16.mxu0 0
    %5597 = vmatpush2.bf16.msra.mxu0 0
    %5598 = vmatprep.subr.bf16.mxu0 0
    %5599 = vmatpush2.bf16.msra.mxu0 0
    %5600 = vmatprep.subr.bf16.mxu0 0
    %5601 = vmatpush2.bf16.msra.mxu0 0
    %5602 = vmatprep.subr.bf16.mxu0 0
    %5603 = vmatpush2.bf16.msra.mxu0 0
    %5604 = vmatprep.mubr.bf16.mxu0 0
    %5605 = vmatmul.mubr.bf16.gmra.mxu0 %v5555
    %v5606 = vpop.f32.mrf.mxu0
    %v5607 = vadd.f32 0.0, %v5606
    %v5608 = vpop.f32.mrf.mxu0
    %v5609 = vpop.f32.mrf.mxu0
    %v5610 = vadd.f32 0.0, %v5609
    %v5611 = vpop.f32.mrf.mxu0
    %5612 = vmatprep.mubr.bf16.mxu0 0
    %5613 = vmatmul.mubr.bf16.gmra.mxu0 %v5558
    %v5614 = vpop.f32.mrf.mxu0
    %v5615 = vadd.f32 0.0, %v5614
    %v5616 = vpop.f32.mrf.mxu0
    %v5617 = vpop.f32.mrf.mxu0
    %v5618 = vadd.f32 0.0, %v5617
    %v5619 = vpop.f32.mrf.mxu0
    %5620 = vmatprep.mubr.bf16.mxu0 0
    %5621 = vmatmul.mubr.bf16.gmra.mxu0 %v5561
    %v5622 = vpop.f32.mrf.mxu0
    %v5623 = vadd.f32 0.0, %v5622
    %v5624 = vpop.f32.mrf.mxu0
    %v5625 = vpop.f32.mrf.mxu0
    %v5626 = vadd.f32 0.0, %v5625
    %v5627 = vpop.f32.mrf.mxu0
    %5628 = vmatprep.mubr.bf16.mxu0 0
    %5629 = vmatmul.mubr.bf16.gmra.mxu0 %v5564
    %v5630 = vpop.f32.mrf.mxu0
    %v5631 = vadd.f32 0.0, %v5630
    %v5632 = vpop.f32.mrf.mxu0
    %v5633 = vpop.f32.mrf.mxu0
    %v5634 = vadd.f32 0.0, %v5633
    %v5635 = vpop.f32.mrf.mxu0
    %5636 = vmatprep.mubr.bf16.mxu0 0
    %5637 = vmatmul.mubr.bf16.gmra.mxu0 %v5567
    %v5638 = vpop.f32.mrf.mxu0
    %v5639 = vadd.f32 0.0, %v5638
    %v5640 = vpop.f32.mrf.mxu0
    %v5641 = vpop.f32.mrf.mxu0
    %v5642 = vpop.f32.mrf.mxu0
    %5643 = vdwg.mxu0
    %5645 = vrot.lane.b32.xlu0 %v5610, 64
    %v5646 = vpop.permute.xlu0 %5645
    %5649 = vrot.lane.b32.xlu0 %v5618, 64
    %v5650 = vpop.permute.xlu0 %5649
    %5653 = vrot.lane.b32.xlu0 %v5626, 64
    %v5654 = vpop.permute.xlu0 %5653
    %5657 = vrot.lane.b32.xlu0 %v5634, 64
    %v5658 = vpop.permute.xlu0 %5657
    %v5660 = vsel %vm323, %v5607, %v5646
    %v5661 = vsel %vm323, %v5615, %v5650
    %v5662 = vsel %vm323, %v5623, %v5654
    %v5663 = vsel %vm323, %v5631, %v5658
    %v5664 = vpack.c.bf16 %v5660, %v5660
    %v5665 = vpack.c.bf16 %v5661, %v5661
    %v5666 = vpack.c.bf16 %v5662, %v5662
    %v5667 = vpack.c.bf16 %v5663, %v5663
    %v5668 = vpack.c.bf16 %v5639, %v5639
    %v5669 = vld [vmem:[#allocation6] sm:$0xff]
    %v5670 = vld [vmem:[#allocation6 + $0x8] sm:$0xff]
    %v5671 = vld [vmem:[#allocation6 + $0x10] sm:$0xff]
    %v5672 = vld [vmem:[#allocation6 + $0x18] sm:$0xff]
    %v5673 = vld [vmem:[#allocation6 + $0x20] sm:$0xff]
    %v5674 = vld [vmem:[#allocation6 + $0x28] sm:$0xff]
    %v5675 = vld [vmem:[#allocation6 + $0x30] sm:$0xff]
    %v5676 = vld [vmem:[#allocation6 + $0x38] sm:$0xff]
    %v5677 = vld [vmem:[#allocation6 + $0x40] sm:$0xff]
    %v5678 = vld [vmem:[#allocation6 + $0x48] sm:$0xff]
    %v5679 = vld [vmem:[#allocation6 + $0x50] sm:$0xff]
    %v5680 = vld [vmem:[#allocation6 + $0x58] sm:$0xff]
    %v5681 = vld [vmem:[#allocation6 + $0x60] sm:$0xff]
    %v5682 = vld [vmem:[#allocation6 + $0x68] sm:$0xff]
    %v5683 = vld [vmem:[#allocation6 + $0x70] sm:$0xff]
    %v5684 = vld [vmem:[#allocation6 + $0x78] sm:$0xff]
    %v5685 = vld [vmem:[#allocation6 + $0x80] sm:$0xff]
    %v5686 = vld [vmem:[#allocation6 + $0x88] sm:$0xff]
    %v5687 = vld [vmem:[#allocation6 + $0x90] sm:$0xff]
    %v5688 = vld [vmem:[#allocation6 + $0x98] sm:$0xff]
    %v5689 = vld [vmem:[#allocation6 + $0xa0] sm:$0xff]
    %v5690 = vld [vmem:[#allocation6 + $0xa8] sm:$0xff]
    %v5691 = vld [vmem:[#allocation6 + $0xb0] sm:$0xff]
    %v5692 = vld [vmem:[#allocation6 + $0xb8] sm:$0xff]
    %v5693 = vld [vmem:[#allocation6 + $0xc0] sm:$0xff]
    %v5694 = vld [vmem:[#allocation6 + $0xc8] sm:$0xff]
    %v5695 = vld [vmem:[#allocation6 + $0xd0] sm:$0xff]
    %v5696 = vld [vmem:[#allocation6 + $0xd8] sm:$0xff]
    %v5697 = vld [vmem:[#allocation6 + $0xe0] sm:$0xff]
    %v5698 = vld [vmem:[#allocation6 + $0xe8] sm:$0xff]
    %v5699 = vld [vmem:[#allocation6 + $0xf0] sm:$0xff]
    %v5700 = vld [vmem:[#allocation6 + $0xf8] sm:$0xff]
    %v5701 = vld [vmem:[#allocation6 + $0x100] sm:$0xff]
    %v5702 = vld [vmem:[#allocation6 + $0x108] sm:$0xff]
    %v5703 = vld [vmem:[#allocation6 + $0x110] sm:$0xff]
    %v5704 = vld [vmem:[#allocation6 + $0x118] sm:$0xff]
    %v5705 = vld [vmem:[#allocation6 + $0x120] sm:$0xff]
    %v5706 = vld [vmem:[#allocation6 + $0x128] sm:$0xff]
    %v5707 = vld [vmem:[#allocation6 + $0x130] sm:$0xff]
    %v5708 = vld [vmem:[#allocation6 + $0x138] sm:$0xff]
    %v5709 = vld [vmem:[#allocation6 + $0x140] sm:$0xff]
    %v5710 = vld [vmem:[#allocation6 + $0x148] sm:$0xff]
    %v5711 = vld [vmem:[#allocation6 + $0x150] sm:$0xff]
    %v5712 = vld [vmem:[#allocation6 + $0x158] sm:$0xff]
    %v5713 = vld [vmem:[#allocation6 + $0x160] sm:$0xff]
    %v5714 = vld [vmem:[#allocation6 + $0x168] sm:$0xff]
    %v5715 = vld [vmem:[#allocation6 + $0x170] sm:$0xff]
    %v5716 = vld [vmem:[#allocation6 + $0x178] sm:$0xff]
    %v5717 = vld [vmem:[#allocation6 + $0x180] sm:$0xff]
    %v5718 = vld [vmem:[#allocation6 + $0x188] sm:$0xff]
    %v5719 = vld [vmem:[#allocation6 + $0x190] sm:$0xff]
    %v5720 = vld [vmem:[#allocation6 + $0x198] sm:$0xff]
    %v5721 = vld [vmem:[#allocation6 + $0x1a0] sm:$0xff]
    %v5722 = vld [vmem:[#allocation6 + $0x1a8] sm:$0xff]
    %v5723 = vld [vmem:[#allocation6 + $0x1b0] sm:$0xff]
    %v5724 = vld [vmem:[#allocation6 + $0x1b8] sm:$0xff]
    %v5725 = vld [vmem:[#allocation6 + $0x1c0] sm:$0xff]
    %v5726 = vld [vmem:[#allocation6 + $0x1c8] sm:$0xff]
    %v5727 = vld [vmem:[#allocation6 + $0x1d0] sm:$0xff]
    %v5728 = vld [vmem:[#allocation6 + $0x1d8] sm:$0xff]
    %v5729 = vld [vmem:[#allocation6 + $0x1e0] sm:$0xff]
    %v5730 = vld [vmem:[#allocation6 + $0x1e8] sm:$0xff]
    %v5731 = vld [vmem:[#allocation6 + $0x1f0] sm:$0xff]
    %v5732 = vld [vmem:[#allocation6 + $0x1f8] sm:$0xff]
    %v5733 = vld [vmem:[#allocation6 + $0x200] sm:$0xff]
    %v5734 = vld [vmem:[#allocation6 + $0x208] sm:$0xff]
    %v5735 = vld [vmem:[#allocation6 + $0x210] sm:$0xff]
    %v5736 = vld [vmem:[#allocation6 + $0x218] sm:$0xff]
    %v5737 = vld [vmem:[#allocation6 + $0x220] sm:$0xff]
    %v5738 = vld [vmem:[#allocation6 + $0x228] sm:$0xff]
    %v5739 = vld [vmem:[#allocation6 + $0x230] sm:$0xff]
    %v5740 = vld [vmem:[#allocation6 + $0x238] sm:$0xff]
    %v5741 = vld [vmem:[%s14] sm:$0xff]
    %5743 = vset.pattern.permute.xlu0 0
    %5744 = vperm.xlu0 %5743, %v5741
    %v5745 = vpop.permute.xlu0 %5744
    %v5819 = vunpack.c.l.b16 %v5669
    %v5820 = vunpack.c.h.b16 %v5669
    %v5821 = vunpack.c.l.b16 %v5670
    %v5822 = vunpack.c.h.b16 %v5670
    %v5823 = vunpack.c.l.b16 %v5671
    %v5824 = vunpack.c.h.b16 %v5671
    %v5825 = vunpack.c.l.b16 %v5672
    %v5826 = vunpack.c.h.b16 %v5672
    %v5827 = vunpack.c.l.b16 %v5673
    %v5828 = vunpack.c.h.b16 %v5673
    %v5829 = vunpack.c.l.b16 %v5674
    %v5830 = vunpack.c.h.b16 %v5674
    %v5831 = vunpack.c.l.b16 %v5675
    %v5832 = vunpack.c.h.b16 %v5675
    %v5833 = vunpack.c.l.b16 %v5676
    %v5834 = vunpack.c.h.b16 %v5676
    %v5835 = vunpack.c.l.b16 %v5677
    %v5836 = vunpack.c.h.b16 %v5677
    %v5837 = vunpack.c.l.b16 %v5678
    %v5838 = vunpack.c.h.b16 %v5678
    %v5839 = vunpack.c.l.b16 %v5679
    %v5840 = vunpack.c.h.b16 %v5679
    %v5841 = vunpack.c.l.b16 %v5680
    %v5842 = vunpack.c.h.b16 %v5680
    %v5843 = vunpack.c.l.b16 %v5681
    %v5844 = vunpack.c.h.b16 %v5681
    %v5845 = vunpack.c.l.b16 %v5682
    %v5846 = vunpack.c.h.b16 %v5682
    %v5847 = vunpack.c.l.b16 %v5683
    %v5848 = vunpack.c.h.b16 %v5683
    %v5849 = vunpack.c.l.b16 %v5684
    %v5850 = vunpack.c.h.b16 %v5684
    %v5851 = vunpack.c.l.b16 %v5685
    %v5852 = vunpack.c.h.b16 %v5685
    %v5853 = vunpack.c.l.b16 %v5686
    %v5854 = vunpack.c.h.b16 %v5686
    %v5855 = vunpack.c.l.b16 %v5687
    %v5856 = vunpack.c.h.b16 %v5687
    %v5857 = vunpack.c.l.b16 %v5688
    %v5858 = vunpack.c.h.b16 %v5688
    %v5859 = vunpack.c.l.b16 %v5689
    %v5860 = vunpack.c.h.b16 %v5689
    %v5861 = vunpack.c.l.b16 %v5690
    %v5862 = vunpack.c.h.b16 %v5690
    %v5863 = vunpack.c.l.b16 %v5691
    %v5864 = vunpack.c.h.b16 %v5691
    %v5865 = vunpack.c.l.b16 %v5692
    %v5866 = vunpack.c.h.b16 %v5692
    %v5867 = vunpack.c.l.b16 %v5693
    %v5868 = vunpack.c.h.b16 %v5693
    %v5869 = vunpack.c.l.b16 %v5694
    %v5870 = vunpack.c.h.b16 %v5694
    %v5871 = vunpack.c.l.b16 %v5695
    %v5872 = vunpack.c.h.b16 %v5695
    %v5873 = vunpack.c.l.b16 %v5696
    %v5874 = vunpack.c.h.b16 %v5696
    %v5875 = vunpack.c.l.b16 %v5697
    %v5876 = vunpack.c.h.b16 %v5697
    %v5877 = vunpack.c.l.b16 %v5698
    %v5878 = vunpack.c.h.b16 %v5698
    %v5879 = vunpack.c.l.b16 %v5699
    %v5880 = vunpack.c.h.b16 %v5699
    %v5881 = vunpack.c.l.b16 %v5700
    %v5882 = vunpack.c.h.b16 %v5700
    %v5883 = vunpack.c.l.b16 %v5701
    %v5884 = vunpack.c.h.b16 %v5701
    %v5885 = vunpack.c.l.b16 %v5702
    %v5886 = vunpack.c.h.b16 %v5702
    %v5887 = vunpack.c.l.b16 %v5703
    %v5888 = vunpack.c.h.b16 %v5703
    %v5889 = vunpack.c.l.b16 %v5704
    %v5890 = vunpack.c.h.b16 %v5704
    %v5891 = vunpack.c.l.b16 %v5705
    %v5892 = vunpack.c.h.b16 %v5705
    %v5893 = vunpack.c.l.b16 %v5706
    %v5894 = vunpack.c.h.b16 %v5706
    %v5895 = vunpack.c.l.b16 %v5707
    %v5896 = vunpack.c.h.b16 %v5707
    %v5897 = vunpack.c.l.b16 %v5708
    %v5898 = vunpack.c.h.b16 %v5708
    %v5899 = vunpack.c.l.b16 %v5709
    %v5900 = vunpack.c.h.b16 %v5709
    %v5901 = vunpack.c.l.b16 %v5710
    %v5902 = vunpack.c.h.b16 %v5710
    %v5903 = vunpack.c.l.b16 %v5711
    %v5904 = vunpack.c.h.b16 %v5711
    %v5905 = vunpack.c.l.b16 %v5712
    %v5906 = vunpack.c.h.b16 %v5712
    %v5907 = vunpack.c.l.b16 %v5713
    %v5908 = vunpack.c.h.b16 %v5713
    %v5909 = vunpack.c.l.b16 %v5714
    %v5910 = vunpack.c.h.b16 %v5714
    %v5911 = vunpack.c.l.b16 %v5715
    %v5912 = vunpack.c.h.b16 %v5715
    %v5913 = vunpack.c.l.b16 %v5716
    %v5914 = vunpack.c.h.b16 %v5716
    %v5915 = vunpack.c.l.b16 %v5717
    %v5916 = vunpack.c.h.b16 %v5717
    %v5917 = vunpack.c.l.b16 %v5718
    %v5918 = vunpack.c.h.b16 %v5718
    %v5919 = vunpack.c.l.b16 %v5719
    %v5920 = vunpack.c.h.b16 %v5719
    %v5921 = vunpack.c.l.b16 %v5720
    %v5922 = vunpack.c.h.b16 %v5720
    %v5923 = vunpack.c.l.b16 %v5721
    %v5924 = vunpack.c.h.b16 %v5721
    %v5925 = vunpack.c.l.b16 %v5722
    %v5926 = vunpack.c.h.b16 %v5722
    %v5927 = vunpack.c.l.b16 %v5723
    %v5928 = vunpack.c.h.b16 %v5723
    %v5929 = vunpack.c.l.b16 %v5724
    %v5930 = vunpack.c.h.b16 %v5724
    %v5931 = vunpack.c.l.b16 %v5725
    %v5932 = vunpack.c.h.b16 %v5725
    %v5933 = vunpack.c.l.b16 %v5726
    %v5934 = vunpack.c.h.b16 %v5726
    %v5935 = vunpack.c.l.b16 %v5727
    %v5936 = vunpack.c.h.b16 %v5727
    %v5937 = vunpack.c.l.b16 %v5728
    %v5938 = vunpack.c.h.b16 %v5728
    %v5939 = vunpack.c.l.b16 %v5729
    %v5940 = vunpack.c.h.b16 %v5729
    %v5941 = vunpack.c.l.b16 %v5730
    %v5942 = vunpack.c.h.b16 %v5730
    %v5943 = vunpack.c.l.b16 %v5731
    %v5944 = vunpack.c.h.b16 %v5731
    %v5945 = vunpack.c.l.b16 %v5732
    %v5946 = vunpack.c.h.b16 %v5732
    %v5947 = vunpack.c.l.b16 %v5733
    %v5948 = vunpack.c.h.b16 %v5733
    %v5949 = vunpack.c.l.b16 %v5734
    %v5950 = vunpack.c.h.b16 %v5734
    %v5951 = vunpack.c.l.b16 %v5735
    %v5952 = vunpack.c.h.b16 %v5735
    %v5953 = vunpack.c.l.b16 %v5736
    %v5954 = vunpack.c.h.b16 %v5736
    %v5955 = vunpack.c.l.b16 %v5737
    %v5956 = vunpack.c.h.b16 %v5737
    %v5957 = vunpack.c.l.b16 %v5738
    %v5958 = vunpack.c.h.b16 %v5738
    %v5959 = vunpack.c.l.b16 %v5739
    %v5960 = vunpack.c.h.b16 %v5739
    %v5961 = vunpack.c.l.b16 %v5740
    %v5962 = vunpack.c.h.b16 %v5740
    %v5963 = vpack.c.b16 %v5821, %v5819
    %v5964 = vpack.c.b16 %v5822, %v5820
    %v5965 = vpack.c.b16 %v5825, %v5823
    %v5966 = vpack.c.b16 %v5826, %v5824
    %v5967 = vpack.c.b16 %v5829, %v5827
    %v5968 = vpack.c.b16 %v5830, %v5828
    %v5969 = vpack.c.b16 %v5833, %v5831
    %v5970 = vpack.c.b16 %v5834, %v5832
    %v5971 = vpack.c.b16 %v5837, %v5835
    %v5972 = vpack.c.b16 %v5838, %v5836
    %v5973 = vpack.c.b16 %v5841, %v5839
    %v5974 = vpack.c.b16 %v5842, %v5840
    %v5975 = vpack.c.b16 %v5845, %v5843
    %v5976 = vpack.c.b16 %v5846, %v5844
    %v5977 = vpack.c.b16 %v5849, %v5847
    %v5978 = vpack.c.b16 %v5850, %v5848
    %v5979 = vpack.c.b16 %v5853, %v5851
    %v5980 = vpack.c.b16 %v5854, %v5852
    %v5981 = vpack.c.b16 %v5857, %v5855
    %v5982 = vpack.c.b16 %v5858, %v5856
    %v5983 = vpack.c.b16 %v5861, %v5859
    %v5984 = vpack.c.b16 %v5862, %v5860
    %v5985 = vpack.c.b16 %v5865, %v5863
    %v5986 = vpack.c.b16 %v5866, %v5864
    %v5987 = vpack.c.b16 %v5869, %v5867
    %v5988 = vpack.c.b16 %v5870, %v5868
    %v5989 = vpack.c.b16 %v5873, %v5871
    %v5990 = vpack.c.b16 %v5874, %v5872
    %v5991 = vpack.c.b16 %v5877, %v5875
    %v5992 = vpack.c.b16 %v5878, %v5876
    %v5993 = vpack.c.b16 %v5881, %v5879
    %v5994 = vpack.c.b16 %v5882, %v5880
    %v5995 = vpack.c.b16 %v5885, %v5883
    %v5996 = vpack.c.b16 %v5886, %v5884
    %v5997 = vpack.c.b16 %v5889, %v5887
    %v5998 = vpack.c.b16 %v5890, %v5888
    %v5999 = vpack.c.b16 %v5893, %v5891
    %v6000 = vpack.c.b16 %v5894, %v5892
    %v6001 = vpack.c.b16 %v5897, %v5895
    %v6002 = vpack.c.b16 %v5898, %v5896
    %v6003 = vpack.c.b16 %v5901, %v5899
    %v6004 = vpack.c.b16 %v5902, %v5900
    %v6005 = vpack.c.b16 %v5905, %v5903
    %v6006 = vpack.c.b16 %v5906, %v5904
    %v6007 = vpack.c.b16 %v5909, %v5907
    %v6008 = vpack.c.b16 %v5910, %v5908
    %v6009 = vpack.c.b16 %v5913, %v5911
    %v6010 = vpack.c.b16 %v5914, %v5912
    %v6011 = vpack.c.b16 %v5917, %v5915
    %v6012 = vpack.c.b16 %v5918, %v5916
    %v6013 = vpack.c.b16 %v5921, %v5919
    %v6014 = vpack.c.b16 %v5922, %v5920
    %v6015 = vpack.c.b16 %v5925, %v5923
    %v6016 = vpack.c.b16 %v5926, %v5924
    %v6017 = vpack.c.b16 %v5929, %v5927
    %v6018 = vpack.c.b16 %v5930, %v5928
    %v6019 = vpack.c.b16 %v5933, %v5931
    %v6020 = vpack.c.b16 %v5934, %v5932
    %v6021 = vpack.c.b16 %v5937, %v5935
    %v6022 = vpack.c.b16 %v5938, %v5936
    %v6023 = vpack.c.b16 %v5941, %v5939
    %v6024 = vpack.c.b16 %v5942, %v5940
    %v6025 = vpack.c.b16 %v5945, %v5943
    %v6026 = vpack.c.b16 %v5946, %v5944
    %v6027 = vpack.c.b16 %v5949, %v5947
    %v6028 = vpack.c.b16 %v5950, %v5948
    %v6029 = vpack.c.b16 %v5953, %v5951
    %v6030 = vpack.c.b16 %v5954, %v5952
    %v6031 = vpack.c.b16 %v5957, %v5955
    %v6032 = vpack.c.b16 %v5958, %v5956
    %v6033 = vpack.c.b16 %v5961, %v5959
    %v6034 = vpack.c.b16 %v5962, %v5960
    %v6108 = vsel %vm323, %v5668, 0
    %6110 = vmatprep.subr.bf16.mxu0 %v5978
    %6111 = vmatpush1.bf16.msra.mxu0 %v5977
    %6112 = vmatprep.subr.bf16.mxu0 %v5976
    %6113 = vmatpush1.bf16.msra.mxu0 %v5975
    %6114 = vmatprep.subr.bf16.mxu0 %v5974
    %6115 = vmatpush1.bf16.msra.mxu0 %v5973
    %6116 = vmatprep.subr.bf16.mxu0 %v5972
    %6117 = vmatpush1.bf16.msra.mxu0 %v5971
    %6118 = vmatprep.subr.bf16.mxu0 %v5970
    %6119 = vmatpush1.bf16.msra.mxu0 %v5969
    %6120 = vmatprep.subr.bf16.mxu0 %v5968
    %6121 = vmatpush1.bf16.msra.mxu0 %v5967
    %6122 = vmatprep.subr.bf16.mxu0 %v5966
    %6123 = vmatpush1.bf16.msra.mxu0 %v5965
    %6124 = vmatprep.subr.bf16.mxu0 %v5964
    %6125 = vmatpush1.bf16.msra.mxu0 %v5963
    %6126 = vmatprep.subr.bf16.mxu0 %v5994
    %6127 = vmatpush2.bf16.msra.mxu0 %v5993
    %6128 = vmatprep.subr.bf16.mxu0 %v5992
    %6129 = vmatpush2.bf16.msra.mxu0 %v5991
    %6130 = vmatprep.subr.bf16.mxu0 %v5990
    %6131 = vmatpush2.bf16.msra.mxu0 %v5989
    %6132 = vmatprep.subr.bf16.mxu0 %v5988
    %6133 = vmatpush2.bf16.msra.mxu0 %v5987
    %6134 = vmatprep.subr.bf16.mxu0 %v5986
    %6135 = vmatpush2.bf16.msra.mxu0 %v5985
    %6136 = vmatprep.subr.bf16.mxu0 %v5984
    %6137 = vmatpush2.bf16.msra.mxu0 %v5983
    %6138 = vmatprep.subr.bf16.mxu0 %v5982
    %6139 = vmatpush2.bf16.msra.mxu0 %v5981
    %6140 = vmatprep.subr.bf16.mxu0 %v5980
    %6141 = vmatpush2.bf16.msra.mxu0 %v5979
    %6142 = vmatprep.mubr.bf16.mxu0 %v5665
    %6143 = vmatmul.mubr.bf16.gmra.mxu0 %v5664
    %v6144 = vpop.f32.mrf.mxu0
    %v6145 = vadd.f32 %v5745, %v6144
    %v6146 = vpop.f32.mrf.mxu0
    %v6147 = vadd.f32 %v5745, %v6146
    %v6148 = vpop.f32.mrf.mxu0
    %v6149 = vpop.f32.mrf.mxu0
    %6150 = vdwg.mxu0
    %6151 = vmatprep.subr.bf16.mxu0 %v6010
    %6152 = vmatpush1.bf16.msra.mxu0 %v6009
    %6153 = vmatprep.subr.bf16.mxu0 %v6008
    %6154 = vmatpush1.bf16.msra.mxu0 %v6007
    %6155 = vmatprep.subr.bf16.mxu0 %v6006
    %6156 = vmatpush1.bf16.msra.mxu0 %v6005
    %6157 = vmatprep.subr.bf16.mxu0 %v6004
    %6158 = vmatpush1.bf16.msra.mxu0 %v6003
    %6159 = vmatprep.subr.bf16.mxu0 %v6002
    %6160 = vmatpush1.bf16.msra.mxu0 %v6001
    %6161 = vmatprep.subr.bf16.mxu0 %v6000
    %6162 = vmatpush1.bf16.msra.mxu0 %v5999
    %6163 = vmatprep.subr.bf16.mxu0 %v5998
    %6164 = vmatpush1.bf16.msra.mxu0 %v5997
    %6165 = vmatprep.subr.bf16.mxu0 %v5996
    %6166 = vmatpush1.bf16.msra.mxu0 %v5995
    %6167 = vmatprep.subr.bf16.mxu0 %v6026
    %6168 = vmatpush2.bf16.msra.mxu0 %v6025
    %6169 = vmatprep.subr.bf16.mxu0 %v6024
    %6170 = vmatpush2.bf16.msra.mxu0 %v6023
    %6171 = vmatprep.subr.bf16.mxu0 %v6022
    %6172 = vmatpush2.bf16.msra.mxu0 %v6021
    %6173 = vmatprep.subr.bf16.mxu0 %v6020
    %6174 = vmatpush2.bf16.msra.mxu0 %v6019
    %6175 = vmatprep.subr.bf16.mxu0 %v6018
    %6176 = vmatpush2.bf16.msra.mxu0 %v6017
    %6177 = vmatprep.subr.bf16.mxu0 %v6016
    %6178 = vmatpush2.bf16.msra.mxu0 %v6015
    %6179 = vmatprep.subr.bf16.mxu0 %v6014
    %6180 = vmatpush2.bf16.msra.mxu0 %v6013
    %6181 = vmatprep.subr.bf16.mxu0 %v6012
    %6182 = vmatpush2.bf16.msra.mxu0 %v6011
    %6183 = vmatprep.mubr.bf16.mxu0 %v5667
    %6184 = vmatmul.mubr.bf16.gmra.mxu0 %v5666
    %v6185 = vpop.f32.mrf.mxu0
    %v6186 = vadd.f32 %v6145, %v6185
    %v6187 = vpop.f32.mrf.mxu0
    %v6188 = vadd.f32 %v6147, %v6187
    %v6189 = vpop.f32.mrf.mxu0
    %v6190 = vpop.f32.mrf.mxu0
    %6191 = vdwg.mxu0
    %6192 = vmatprep.subr.bf16.mxu0 0
    %6193 = vmatpush1.bf16.msra.mxu0 0
    %6194 = vmatprep.subr.bf16.mxu0 0
    %6195 = vmatpush1.bf16.msra.mxu0 0
    %6196 = vmatprep.subr.bf16.mxu0 0
    %6197 = vmatpush1.bf16.msra.mxu0 0
    %6198 = vmatprep.subr.bf16.mxu0 0
    %6199 = vmatpush1.bf16.msra.mxu0 0
    %6200 = vmatprep.subr.bf16.mxu0 %v6034
    %6201 = vmatpush1.bf16.msra.mxu0 %v6033
    %6202 = vmatprep.subr.bf16.mxu0 %v6032
    %6203 = vmatpush1.bf16.msra.mxu0 %v6031
    %6204 = vmatprep.subr.bf16.mxu0 %v6030
    %6205 = vmatpush1.bf16.msra.mxu0 %v6029
    %6206 = vmatprep.subr.bf16.mxu0 %v6028
    %6207 = vmatpush1.bf16.msra.mxu0 %v6027
    %6208 = vmatprep.subr.bf16.mxu0 0
    %6209 = vmatpush2.bf16.msra.mxu0 0
    %6210 = vmatprep.subr.bf16.mxu0 0
    %6211 = vmatpush2.bf16.msra.mxu0 0
    %6212 = vmatprep.subr.bf16.mxu0 0
    %6213 = vmatpush2.bf16.msra.mxu0 0
    %6214 = vmatprep.subr.bf16.mxu0 0
    %6215 = vmatpush2.bf16.msra.mxu0 0
    %6216 = vmatprep.subr.bf16.mxu0 0
    %6217 = vmatpush2.bf16.msra.mxu0 0
    %6218 = vmatprep.subr.bf16.mxu0 0
    %6219 = vmatpush2.bf16.msra.mxu0 0
    %6220 = vmatprep.subr.bf16.mxu0 0
    %6221 = vmatpush2.bf16.msra.mxu0 0
    %6222 = vmatprep.subr.bf16.mxu0 0
    %6223 = vmatpush2.bf16.msra.mxu0 0
    %6224 = vmatprep.mubr.bf16.mxu0 0
    %6225 = vmatmul.mubr.bf16.gmra.mxu0 %v6108
    %v6226 = vpop.f32.mrf.mxu0
    %v6227 = vadd.f32 %v6186, %v6226
    %v6228 = vpop.f32.mrf.mxu0
    %v6229 = vadd.f32 %v6188, %v6228
    %v6230 = vpop.f32.mrf.mxu0
    %v6231 = vpop.f32.mrf.mxu0
    %6232 = vdwg.mxu0
    %v6233 = vld [vmem:[%s15] sm:$0xff]
    %v6234 = vld [vmem:[%s16] sm:$0xff]
    %v6235 = vadd.f32 %v6227, %v6229
    %6236 = vadd.xlane.f32.xlu0 %v6235
    %v6237 = vpop.xlane.xlu0 %6236
    %v6238 = vmul.f32 %v6227, %v6227
    %v6239 = vmul.f32 %v6229, %v6229
    %v6240 = vadd.f32 %v6238, %v6239
    %6241 = vadd.xlane.f32.xlu0 %v6240
    %v6242 = vpop.xlane.xlu0 %6241
    %v6243 = vmul.f32 %v6237, %v4769
    %v6244 = vsel %vm465, %v6243, 0.0
    %6245 = vadd.xlane.f32.xlu0 %v6244
    %v6246 = vpop.xlane.xlu0 %6245
    %v6247 = vrot.slane %v6246, 4
    %v6248 = vadd.f32 %v6246, %v6247
    %v6249 = vrot.slane %v6248, 2
    %v6250 = vadd.f32 %v6248, %v6249
    %v6251 = vrot.slane %v6250, 1
    %v6252 = vadd.f32 %v6250, %v6251
    %s6253 = vtos %v6252
    %s6254 = smul.f32 %s6253, 0.0009765625
    %v6255 = vmul.f32 %v6242, %v4769
    %v6256 = vsel %vm465, %v6255, 0.0
    %6257 = vadd.xlane.f32.xlu0 %v6256
    %v6258 = vpop.xlane.xlu0 %6257
    %v6259 = vrot.slane %v6258, 4
    %v6260 = vadd.f32 %v6258, %v6259
    %v6261 = vrot.slane %v6260, 2
    %v6262 = vadd.f32 %v6260, %v6261
    %v6263 = vrot.slane %v6262, 1
    %v6264 = vadd.f32 %v6262, %v6263
    %s6265 = vtos %v6264
    %s6266 = smul.f32 %s6265, 0.0009765625
    %s6267 = smul.f32 %s6254, %s6254
    %s6268 = ssub.f32 %s6266, %s6267
    %v6269 = vstv %s6254
    %v6270 = vmul.f32 %v4769, %v6269
    %v6271 = vadd.f32 %v6270, 0.0
    %v6272 = vstv %s6268
    %v6273 = vmul.f32 %v4769, %v6272
    %v6274 = vadd.f32 %v6273, 0.0
    %v6275 = vmul.f32 %v6237, %v4802
    %v6276 = vsel %vm465, %v6275, 0.0
    %6277 = vadd.xlane.f32.xlu0 %v6276
    %v6278 = vpop.xlane.xlu0 %6277
    %v6279 = vrot.slane %v6278, 4
    %v6280 = vadd.f32 %v6278, %v6279
    %v6281 = vrot.slane %v6280, 2
    %v6282 = vadd.f32 %v6280, %v6281
    %v6283 = vrot.slane %v6282, 1
    %v6284 = vadd.f32 %v6282, %v6283
    %s6285 = vtos %v6284
    %s6286 = smul.f32 %s6285, 0.0009765625
    %v6287 = vmul.f32 %v6242, %v4802
    %v6288 = vsel %vm465, %v6287, 0.0
    %6289 = vadd.xlane.f32.xlu0 %v6288
    %v6290 = vpop.xlane.xlu0 %6289
    %v6291 = vrot.slane %v6290, 4
    %v6292 = vadd.f32 %v6290, %v6291
    %v6293 = vrot.slane %v6292, 2
    %v6294 = vadd.f32 %v6292, %v6293
    %v6295 = vrot.slane %v6294, 1
    %v6296 = vadd.f32 %v6294, %v6295
    %s6297 = vtos %v6296
    %s6298 = smul.f32 %s6297, 0.0009765625
    %s6299 = smul.f32 %s6286, %s6286
    %s6300 = ssub.f32 %s6298, %s6299
    %v6301 = vstv %s6286
    %v6302 = vmul.f32 %v4802, %v6301
    %v6303 = vadd.f32 %v6271, %v6302
    %v6304 = vstv %s6300
    %v6305 = vmul.f32 %v4802, %v6304
    %v6306 = vadd.f32 %v6274, %v6305
    %v6307 = vadd.f32 %v6306, 1e-05
    %v6308 = vrsqrt.pop %v6307
    %v6309 = vmul.f32 %v6308, %v6233
    %6311 = vset.pattern.permute.xlu0 0
    %6312 = vperm.xlu0 %6311, %v6303
    %v6313 = vpop.permute.xlu0 %6312
    %v6315 = vsub.f32 %v6227, %v6313
    %v6316 = vsub.f32 %v6229, %v6313
    %6318 = vset.pattern.permute.xlu0 0
    %6319 = vperm.xlu0 %6318, %v6309
    %v6320 = vpop.permute.xlu0 %6319
    %v6322 = vmul.f32 %v6315, %v6320
    %v6323 = vmul.f32 %v6316, %v6320
    %6325 = vset.pattern.permute.xlu0 0
    %6326 = vperm.xlu0 %6325, %v6234
    %v6327 = vpop.permute.xlu0 %6326
    %v6329 = vadd.f32 %v6322, %v6327
    %v6330 = vadd.f32 %v6323, %v6327
    %vm6331 = vcmp.ge.f32.partialorder %v6329, 0.0
    %vm6332 = vcmp.ge.f32.partialorder %v6330, 0.0
    %v6333 = vmul.f32 %v6329, 0.2
    %v6334 = vmul.f32 %v6330, 0.2
    %v6335 = vsel %vm6331, %v6329, %v6333
    %v6336 = vsel %vm6332, %v6330, %v6334
    %v6337 = vld [vmem:[%s18] sm:$0xf]
    %v6338 = vld [vmem:[%s18 + $0x4] sm:$0xf]
    %v6339 = vld [vmem:[%s18 + $0x8] sm:$0xf]
    %v6340 = vld [vmem:[%s18 + $0xc] sm:$0xf]
    %v6341 = vld [vmem:[%s18 + $0x10] sm:$0xf]
    %v6342 = vld [vmem:[%s18 + $0x14] sm:$0xf]
    %v6343 = vld [vmem:[%s18 + $0x18] sm:$0xf]
    %v6344 = vld [vmem:[%s18 + $0x1c] sm:$0xf]
    %v6345 = vld [vmem:[%s18 + $0x20] sm:$0xf]
    %v6346 = vpack.c.bf16 %v4477, %v6335
    %v6347 = vpack.c.bf16 %v4478, %v6336
    %v6357 = vunpack.c.l.b16 %v6337
    %v6358 = vunpack.c.l.b16 %v6338
    %v6359 = vunpack.c.l.b16 %v6339
    %v6360 = vunpack.c.l.b16 %v6340
    %v6361 = vunpack.c.l.b16 %v6341
    %v6362 = vunpack.c.l.b16 %v6342
    %v6363 = vunpack.c.l.b16 %v6343
    %v6364 = vunpack.c.l.b16 %v6344
    %v6365 = vunpack.c.l.b16 %v6345
    %v6366 = vpack.c.b16 %v6358, %v6357
    %v6367 = vpack.c.b16 %v6360, %v6359
    %v6368 = vpack.c.b16 %v6362, %v6361
    %v6369 = vpack.c.b16 %v6364, %v6363
    %v6370 = vpack.c.b16 %v6365, %v6365
    %v6372 = vsel %vm317, %v6366, 0
    %v6375 = vsel %vm317, %v6367, 0
    %v6378 = vsel %vm317, %v6368, 0
    %v6381 = vsel %vm317, %v6369, 0
    %v6384 = vsel %vm317, %v6370, 0
    %6386 = vmatprep.subr.bf16.mxu0 0
    %6387 = vmatpush1.bf16.msra.mxu0 0
    %6388 = vmatprep.subr.bf16.mxu0 0
    %6389 = vmatpush1.bf16.msra.mxu0 0
    %6390 = vmatprep.subr.bf16.mxu0 0
    %6391 = vmatpush1.bf16.msra.mxu0 0
    %6392 = vmatprep.subr.bf16.mxu0 0
    %6393 = vmatpush1.bf16.msra.mxu0 0
    %6394 = vmatprep.subr.bf16.mxu0 0
    %6395 = vmatpush1.bf16.msra.mxu0 0
    %6396 = vmatprep.subr.bf16.mxu0 0
    %6397 = vmatpush1.bf16.msra.mxu0 0
    %6398 = vmatprep.subr.bf16.mxu0 0
    %6399 = vmatpush1.bf16.msra.mxu0 0
    %6400 = vmatprep.subr.bf16.mxu0 %v6347
    %6401 = vmatpush1.bf16.msra.mxu0 %v6346
    %6402 = vmatprep.subr.bf16.mxu0 0
    %6403 = vmatpush2.bf16.msra.mxu0 0
    %6404 = vmatprep.subr.bf16.mxu0 0
    %6405 = vmatpush2.bf16.msra.mxu0 0
    %6406 = vmatprep.subr.bf16.mxu0 0
    %6407 = vmatpush2.bf16.msra.mxu0 0
    %6408 = vmatprep.subr.bf16.mxu0 0
    %6409 = vmatpush2.bf16.msra.mxu0 0
    %6410 = vmatprep.subr.bf16.mxu0 0
    %6411 = vmatpush2.bf16.msra.mxu0 0
    %6412 = vmatprep.subr.bf16.mxu0 0
    %6413 = vmatpush2.bf16.msra.mxu0 0
    %6414 = vmatprep.subr.bf16.mxu0 0
    %6415 = vmatpush2.bf16.msra.mxu0 0
    %6416 = vmatprep.subr.bf16.mxu0 0
    %6417 = vmatpush2.bf16.msra.mxu0 0
    %6418 = vmatprep.mubr.bf16.mxu0 0
    %6419 = vmatmul.mubr.bf16.gmra.mxu0 %v6372
    %v6420 = vpop.f32.mrf.mxu0
    %v6421 = vadd.f32 0.0, %v6420
    %v6422 = vpop.f32.mrf.mxu0
    %v6423 = vadd.f32 0.0, %v6422
    %v6424 = vpop.f32.mrf.mxu0
    %v6425 = vadd.f32 0.0, %v6424
    %v6426 = vpop.f32.mrf.mxu0
    %v6427 = vadd.f32 0.0, %v6426
    %6428 = vmatprep.mubr.bf16.mxu0 0
    %6429 = vmatmul.mubr.bf16.gmra.mxu0 %v6375
    %v6430 = vpop.f32.mrf.mxu0
    %v6431 = vadd.f32 0.0, %v6430
    %v6432 = vpop.f32.mrf.mxu0
    %v6433 = vadd.f32 0.0, %v6432
    %v6434 = vpop.f32.mrf.mxu0
    %v6435 = vadd.f32 0.0, %v6434
    %v6436 = vpop.f32.mrf.mxu0
    %v6437 = vadd.f32 0.0, %v6436
    %6438 = vmatprep.mubr.bf16.mxu0 0
    %6439 = vmatmul.mubr.bf16.gmra.mxu0 %v6378
    %v6440 = vpop.f32.mrf.mxu0
    %v6441 = vadd.f32 0.0, %v6440
    %v6442 = vpop.f32.mrf.mxu0
    %v6443 = vadd.f32 0.0, %v6442
    %v6444 = vpop.f32.mrf.mxu0
    %v6445 = vadd.f32 0.0, %v6444
    %v6446 = vpop.f32.mrf.mxu0
    %v6447 = vadd.f32 0.0, %v6446
    %6448 = vmatprep.mubr.bf16.mxu0 0
    %6449 = vmatmul.mubr.bf16.gmra.mxu0 %v6381
    %v6450 = vpop.f32.mrf.mxu0
    %v6451 = vadd.f32 0.0, %v6450
    %v6452 = vpop.f32.mrf.mxu0
    %v6453 = vadd.f32 0.0, %v6452
    %v6454 = vpop.f32.mrf.mxu0
    %v6455 = vadd.f32 0.0, %v6454
    %v6456 = vpop.f32.mrf.mxu0
    %v6457 = vadd.f32 0.0, %v6456
    %6458 = vmatprep.mubr.bf16.mxu0 0
    %6459 = vmatmul.mubr.bf16.gmra.mxu0 %v6384
    %v6460 = vpop.f32.mrf.mxu0
    %v6461 = vadd.f32 0.0, %v6460
    %v6462 = vpop.f32.mrf.mxu0
    %v6463 = vadd.f32 0.0, %v6462
    %v6464 = vpop.f32.mrf.mxu0
    %v6465 = vpop.f32.mrf.mxu0
    %6466 = vdwg.mxu0
    %v6467 = vpack.c.bf16 %v6421, %v6421
    %v6468 = vpack.c.bf16 %v6423, %v6423
    %v6469 = vpack.c.bf16 %v6425, %v6425
    %v6470 = vpack.c.bf16 %v6427, %v6427
    %v6471 = vpack.c.bf16 %v6431, %v6431
    %v6472 = vpack.c.bf16 %v6433, %v6433
    %v6473 = vpack.c.bf16 %v6435, %v6435
    %v6474 = vpack.c.bf16 %v6437, %v6437
    %v6475 = vpack.c.bf16 %v6441, %v6441
    %v6476 = vpack.c.bf16 %v6443, %v6443
    %v6477 = vpack.c.bf16 %v6445, %v6445
    %v6478 = vpack.c.bf16 %v6447, %v6447
    %v6479 = vpack.c.bf16 %v6451, %v6451
    %v6480 = vpack.c.bf16 %v6453, %v6453
    %v6481 = vpack.c.bf16 %v6455, %v6455
    %v6482 = vpack.c.bf16 %v6457, %v6457
    %v6483 = vpack.c.bf16 %v6461, %v6461
    %v6484 = vpack.c.bf16 %v6463, %v6463
    %v6485 = vld [vmem:[#allocation7] sm:$0xff]
    %v6486 = vld [vmem:[#allocation7 + $0x8] sm:$0xff]
    %v6487 = vld [vmem:[#allocation7 + $0x10] sm:$0xff]
    %v6488 = vld [vmem:[#allocation7 + $0x18] sm:$0xff]
    %v6489 = vld [vmem:[#allocation7 + $0x20] sm:$0xff]
    %v6490 = vld [vmem:[#allocation7 + $0x28] sm:$0xff]
    %v6491 = vld [vmem:[#allocation7 + $0x30] sm:$0xff]
    %v6492 = vld [vmem:[#allocation7 + $0x38] sm:$0xff]
    %v6493 = vld [vmem:[#allocation7 + $0x40] sm:$0xff]
    %v6494 = vld [vmem:[#allocation7 + $0x48] sm:$0xff]
    %v6495 = vld [vmem:[#allocation7 + $0x50] sm:$0xff]
    %v6496 = vld [vmem:[#allocation7 + $0x58] sm:$0xff]
    %v6497 = vld [vmem:[#allocation7 + $0x60] sm:$0xff]
    %v6498 = vld [vmem:[#allocation7 + $0x68] sm:$0xff]
    %v6499 = vld [vmem:[#allocation7 + $0x70] sm:$0xff]
    %v6500 = vld [vmem:[#allocation7 + $0x78] sm:$0xff]
    %v6501 = vld [vmem:[#allocation7 + $0x80] sm:$0xff]
    %v6502 = vld [vmem:[#allocation7 + $0x88] sm:$0xff]
    %v6503 = vld [vmem:[#allocation7 + $0x90] sm:$0xff]
    %v6504 = vld [vmem:[#allocation7 + $0x98] sm:$0xff]
    %v6505 = vld [vmem:[#allocation7 + $0xa0] sm:$0xff]
    %v6506 = vld [vmem:[#allocation7 + $0xa8] sm:$0xff]
    %v6507 = vld [vmem:[#allocation7 + $0xb0] sm:$0xff]
    %v6508 = vld [vmem:[#allocation7 + $0xb8] sm:$0xff]
    %v6509 = vld [vmem:[#allocation7 + $0xc0] sm:$0xff]
    %v6510 = vld [vmem:[#allocation7 + $0xc8] sm:$0xff]
    %v6511 = vld [vmem:[#allocation7 + $0xd0] sm:$0xff]
    %v6512 = vld [vmem:[#allocation7 + $0xd8] sm:$0xff]
    %v6513 = vld [vmem:[#allocation7 + $0xe0] sm:$0xff]
    %v6514 = vld [vmem:[#allocation7 + $0xe8] sm:$0xff]
    %v6515 = vld [vmem:[#allocation7 + $0xf0] sm:$0xff]
    %v6516 = vld [vmem:[#allocation7 + $0xf8] sm:$0xff]
    %v6517 = vld [vmem:[#allocation7 + $0x100] sm:$0xff]
    %v6518 = vld [vmem:[#allocation7 + $0x108] sm:$0xff]
    %v6519 = vld [vmem:[#allocation7 + $0x110] sm:$0xff]
    %v6520 = vld [vmem:[#allocation7 + $0x118] sm:$0xff]
    %v6521 = vld [vmem:[#allocation7 + $0x120] sm:$0xff]
    %v6522 = vld [vmem:[#allocation7 + $0x128] sm:$0xff]
    %v6523 = vld [vmem:[#allocation7 + $0x130] sm:$0xff]
    %v6524 = vld [vmem:[#allocation7 + $0x138] sm:$0xff]
    %v6525 = vld [vmem:[#allocation7 + $0x140] sm:$0xff]
    %v6526 = vld [vmem:[#allocation7 + $0x148] sm:$0xff]
    %v6527 = vld [vmem:[#allocation7 + $0x150] sm:$0xff]
    %v6528 = vld [vmem:[#allocation7 + $0x158] sm:$0xff]
    %v6529 = vld [vmem:[#allocation7 + $0x160] sm:$0xff]
    %v6530 = vld [vmem:[#allocation7 + $0x168] sm:$0xff]
    %v6531 = vld [vmem:[#allocation7 + $0x170] sm:$0xff]
    %v6532 = vld [vmem:[#allocation7 + $0x178] sm:$0xff]
    %v6533 = vld [vmem:[#allocation7 + $0x180] sm:$0xff]
    %v6534 = vld [vmem:[#allocation7 + $0x188] sm:$0xff]
    %v6535 = vld [vmem:[#allocation7 + $0x190] sm:$0xff]
    %v6536 = vld [vmem:[#allocation7 + $0x198] sm:$0xff]
    %v6537 = vld [vmem:[#allocation7 + $0x1a0] sm:$0xff]
    %v6538 = vld [vmem:[#allocation7 + $0x1a8] sm:$0xff]
    %v6539 = vld [vmem:[#allocation7 + $0x1b0] sm:$0xff]
    %v6540 = vld [vmem:[#allocation7 + $0x1b8] sm:$0xff]
    %v6541 = vld [vmem:[#allocation7 + $0x1c0] sm:$0xff]
    %v6542 = vld [vmem:[#allocation7 + $0x1c8] sm:$0xff]
    %v6543 = vld [vmem:[#allocation7 + $0x1d0] sm:$0xff]
    %v6544 = vld [vmem:[#allocation7 + $0x1d8] sm:$0xff]
    %v6545 = vld [vmem:[#allocation7 + $0x1e0] sm:$0xff]
    %v6546 = vld [vmem:[#allocation7 + $0x1e8] sm:$0xff]
    %v6547 = vld [vmem:[#allocation7 + $0x1f0] sm:$0xff]
    %v6548 = vld [vmem:[#allocation7 + $0x1f8] sm:$0xff]
    %v6549 = vld [vmem:[#allocation7 + $0x200] sm:$0xff]
    %v6550 = vld [vmem:[#allocation7 + $0x208] sm:$0xff]
    %v6551 = vld [vmem:[#allocation7 + $0x210] sm:$0xff]
    %v6552 = vld [vmem:[#allocation7 + $0x218] sm:$0xff]
    %v6553 = vld [vmem:[#allocation7 + $0x220] sm:$0xff]
    %v6554 = vld [vmem:[#allocation7 + $0x228] sm:$0xff]
    %v6555 = vld [vmem:[#allocation7 + $0x230] sm:$0xff]
    %v6556 = vld [vmem:[#allocation7 + $0x238] sm:$0xff]
    %v6557 = vld [vmem:[#allocation7 + $0x240] sm:$0xff]
    %v6558 = vld [vmem:[#allocation7 + $0x248] sm:$0xff]
    %v6559 = vld [vmem:[#allocation7 + $0x250] sm:$0xff]
    %v6560 = vld [vmem:[#allocation7 + $0x258] sm:$0xff]
    %v6561 = vld [vmem:[#allocation7 + $0x260] sm:$0xff]
    %v6562 = vld [vmem:[#allocation7 + $0x268] sm:$0xff]
    %v6563 = vld [vmem:[#allocation7 + $0x270] sm:$0xff]
    %v6564 = vld [vmem:[#allocation7 + $0x278] sm:$0xff]
    %v6565 = vld [vmem:[#allocation7 + $0x280] sm:$0xff]
    %v6566 = vld [vmem:[#allocation7 + $0x288] sm:$0xff]
    %v6567 = vld [vmem:[#allocation7 + $0x290] sm:$0xff]
    %v6568 = vld [vmem:[#allocation7 + $0x298] sm:$0xff]
    %v6569 = vld [vmem:[#allocation7 + $0x2a0] sm:$0xff]
    %v6570 = vld [vmem:[#allocation7 + $0x2a8] sm:$0xff]
    %v6571 = vld [vmem:[#allocation7 + $0x2b0] sm:$0xff]
    %v6572 = vld [vmem:[#allocation7 + $0x2b8] sm:$0xff]
    %v6573 = vld [vmem:[#allocation7 + $0x2c0] sm:$0xff]
    %v6574 = vld [vmem:[#allocation7 + $0x2c8] sm:$0xff]
    %v6575 = vld [vmem:[#allocation7 + $0x2d0] sm:$0xff]
    %v6576 = vld [vmem:[#allocation7 + $0x2d8] sm:$0xff]
    %v6577 = vld [vmem:[#allocation7 + $0x2e0] sm:$0xff]
    %v6578 = vld [vmem:[#allocation7 + $0x2e8] sm:$0xff]
    %v6579 = vld [vmem:[#allocation7 + $0x2f0] sm:$0xff]
    %v6580 = vld [vmem:[#allocation7 + $0x2f8] sm:$0xff]
    %v6581 = vld [vmem:[#allocation7 + $0x300] sm:$0xff]
    %v6582 = vld [vmem:[#allocation7 + $0x308] sm:$0xff]
    %v6583 = vld [vmem:[#allocation7 + $0x310] sm:$0xff]
    %v6584 = vld [vmem:[#allocation7 + $0x318] sm:$0xff]
    %v6585 = vld [vmem:[#allocation7 + $0x320] sm:$0xff]
    %v6586 = vld [vmem:[#allocation7 + $0x328] sm:$0xff]
    %v6587 = vld [vmem:[#allocation7 + $0x330] sm:$0xff]
    %v6588 = vld [vmem:[#allocation7 + $0x338] sm:$0xff]
    %v6589 = vld [vmem:[#allocation7 + $0x340] sm:$0xff]
    %v6590 = vld [vmem:[#allocation7 + $0x348] sm:$0xff]
    %v6591 = vld [vmem:[#allocation7 + $0x350] sm:$0xff]
    %v6592 = vld [vmem:[#allocation7 + $0x358] sm:$0xff]
    %v6593 = vld [vmem:[#allocation7 + $0x360] sm:$0xff]
    %v6594 = vld [vmem:[#allocation7 + $0x368] sm:$0xff]
    %v6595 = vld [vmem:[#allocation7 + $0x370] sm:$0xff]
    %v6596 = vld [vmem:[#allocation7 + $0x378] sm:$0xff]
    %v6597 = vld [vmem:[#allocation7 + $0x380] sm:$0xff]
    %v6598 = vld [vmem:[#allocation7 + $0x388] sm:$0xff]
    %v6599 = vld [vmem:[#allocation7 + $0x390] sm:$0xff]
    %v6600 = vld [vmem:[#allocation7 + $0x398] sm:$0xff]
    %v6601 = vld [vmem:[#allocation7 + $0x3a0] sm:$0xff]
    %v6602 = vld [vmem:[#allocation7 + $0x3a8] sm:$0xff]
    %v6603 = vld [vmem:[#allocation7 + $0x3b0] sm:$0xff]
    %v6604 = vld [vmem:[#allocation7 + $0x3b8] sm:$0xff]
    %v6605 = vld [vmem:[#allocation7 + $0x3c0] sm:$0xff]
    %v6606 = vld [vmem:[#allocation7 + $0x3c8] sm:$0xff]
    %v6607 = vld [vmem:[#allocation7 + $0x3d0] sm:$0xff]
    %v6608 = vld [vmem:[#allocation7 + $0x3d8] sm:$0xff]
    %v6609 = vld [vmem:[#allocation7 + $0x3e0] sm:$0xff]
    %v6610 = vld [vmem:[#allocation7 + $0x3e8] sm:$0xff]
    %v6611 = vld [vmem:[#allocation7 + $0x3f0] sm:$0xff]
    %v6612 = vld [vmem:[#allocation7 + $0x3f8] sm:$0xff]
    %v6613 = vld [vmem:[#allocation7 + $0x400] sm:$0xff]
    %v6614 = vld [vmem:[#allocation7 + $0x408] sm:$0xff]
    %v6615 = vld [vmem:[#allocation7 + $0x410] sm:$0xff]
    %v6616 = vld [vmem:[#allocation7 + $0x418] sm:$0xff]
    %v6617 = vld [vmem:[#allocation7 + $0x420] sm:$0xff]
    %v6618 = vld [vmem:[#allocation7 + $0x428] sm:$0xff]
    %v6619 = vld [vmem:[#allocation7 + $0x430] sm:$0xff]
    %v6620 = vld [vmem:[#allocation7 + $0x438] sm:$0xff]
    %v6621 = vld [vmem:[#allocation7 + $0x440] sm:$0xff]
    %v6622 = vld [vmem:[#allocation7 + $0x448] sm:$0xff]
    %v6623 = vld [vmem:[#allocation7 + $0x450] sm:$0xff]
    %v6624 = vld [vmem:[#allocation7 + $0x458] sm:$0xff]
    %v6625 = vld [vmem:[#allocation7 + $0x460] sm:$0xff]
    %v6626 = vld [vmem:[#allocation7 + $0x468] sm:$0xff]
    %v6627 = vld [vmem:[#allocation7 + $0x470] sm:$0xff]
    %v6628 = vld [vmem:[#allocation7 + $0x478] sm:$0xff]
    %v6629 = vld [vmem:[#allocation7 + $0x480] sm:$0xff]
    %v6630 = vld [vmem:[#allocation7 + $0x488] sm:$0xff]
    %v6631 = vld [vmem:[#allocation7 + $0x490] sm:$0xff]
    %v6632 = vld [vmem:[#allocation7 + $0x498] sm:$0xff]
    %v6633 = vld [vmem:[#allocation7 + $0x4a0] sm:$0xff]
    %v6634 = vld [vmem:[#allocation7 + $0x4a8] sm:$0xff]
    %v6635 = vld [vmem:[#allocation7 + $0x4b0] sm:$0xff]
    %v6636 = vld [vmem:[#allocation7 + $0x4b8] sm:$0xff]
    %v6637 = vld [vmem:[#allocation7 + $0x4c0] sm:$0xff]
    %v6638 = vld [vmem:[#allocation7 + $0x4c8] sm:$0xff]
    %v6639 = vld [vmem:[#allocation7 + $0x4d0] sm:$0xff]
    %v6640 = vld [vmem:[#allocation7 + $0x4d8] sm:$0xff]
    %v6641 = vld [vmem:[#allocation7 + $0x4e0] sm:$0xff]
    %v6642 = vld [vmem:[#allocation7 + $0x4e8] sm:$0xff]
    %v6643 = vld [vmem:[#allocation7 + $0x4f0] sm:$0xff]
    %v6644 = vld [vmem:[#allocation7 + $0x4f8] sm:$0xff]
    %v6645 = vld [vmem:[#allocation7 + $0x500] sm:$0xff]
    %v6646 = vld [vmem:[#allocation7 + $0x508] sm:$0xff]
    %v6647 = vld [vmem:[#allocation7 + $0x510] sm:$0xff]
    %v6648 = vld [vmem:[#allocation7 + $0x518] sm:$0xff]
    %v6649 = vld [vmem:[#allocation7 + $0x520] sm:$0xff]
    %v6650 = vld [vmem:[#allocation7 + $0x528] sm:$0xff]
    %v6651 = vld [vmem:[#allocation7 + $0x530] sm:$0xff]
    %v6652 = vld [vmem:[#allocation7 + $0x538] sm:$0xff]
    %v6653 = vld [vmem:[#allocation7 + $0x540] sm:$0xff]
    %v6654 = vld [vmem:[#allocation7 + $0x548] sm:$0xff]
    %v6655 = vld [vmem:[#allocation7 + $0x550] sm:$0xff]
    %v6656 = vld [vmem:[#allocation7 + $0x558] sm:$0xff]
    %v6657 = vld [vmem:[#allocation7 + $0x560] sm:$0xff]
    %v6658 = vld [vmem:[#allocation7 + $0x568] sm:$0xff]
    %v6659 = vld [vmem:[#allocation7 + $0x570] sm:$0xff]
    %v6660 = vld [vmem:[#allocation7 + $0x578] sm:$0xff]
    %v6661 = vld [vmem:[#allocation7 + $0x580] sm:$0xff]
    %v6662 = vld [vmem:[#allocation7 + $0x588] sm:$0xff]
    %v6663 = vld [vmem:[#allocation7 + $0x590] sm:$0xff]
    %v6664 = vld [vmem:[#allocation7 + $0x598] sm:$0xff]
    %v6665 = vld [vmem:[#allocation7 + $0x5a0] sm:$0xff]
    %v6666 = vld [vmem:[#allocation7 + $0x5a8] sm:$0xff]
    %v6667 = vld [vmem:[#allocation7 + $0x5b0] sm:$0xff]
    %v6668 = vld [vmem:[#allocation7 + $0x5b8] sm:$0xff]
    %v6669 = vld [vmem:[#allocation7 + $0x5c0] sm:$0xff]
    %v6670 = vld [vmem:[#allocation7 + $0x5c8] sm:$0xff]
    %v6671 = vld [vmem:[#allocation7 + $0x5d0] sm:$0xff]
    %v6672 = vld [vmem:[#allocation7 + $0x5d8] sm:$0xff]
    %v6673 = vld [vmem:[#allocation7 + $0x5e0] sm:$0xff]
    %v6674 = vld [vmem:[#allocation7 + $0x5e8] sm:$0xff]
    %v6675 = vld [vmem:[#allocation7 + $0x5f0] sm:$0xff]
    %v6676 = vld [vmem:[#allocation7 + $0x5f8] sm:$0xff]
    %v6677 = vld [vmem:[#allocation7 + $0x600] sm:$0xff]
    %v6678 = vld [vmem:[#allocation7 + $0x608] sm:$0xff]
    %v6679 = vld [vmem:[#allocation7 + $0x610] sm:$0xff]
    %v6680 = vld [vmem:[#allocation7 + $0x618] sm:$0xff]
    %v6681 = vld [vmem:[#allocation7 + $0x620] sm:$0xff]
    %v6682 = vld [vmem:[#allocation7 + $0x628] sm:$0xff]
    %v6683 = vld [vmem:[#allocation7 + $0x630] sm:$0xff]
    %v6684 = vld [vmem:[#allocation7 + $0x638] sm:$0xff]
    %v6685 = vld [vmem:[#allocation7 + $0x640] sm:$0xff]
    %v6686 = vld [vmem:[#allocation7 + $0x648] sm:$0xff]
    %v6687 = vld [vmem:[#allocation7 + $0x650] sm:$0xff]
    %v6688 = vld [vmem:[#allocation7 + $0x658] sm:$0xff]
    %v6689 = vld [vmem:[#allocation7 + $0x660] sm:$0xff]
    %v6690 = vld [vmem:[#allocation7 + $0x668] sm:$0xff]
    %v6691 = vld [vmem:[#allocation7 + $0x670] sm:$0xff]
    %v6692 = vld [vmem:[#allocation7 + $0x678] sm:$0xff]
    %v6693 = vld [vmem:[#allocation7 + $0x680] sm:$0xff]
    %v6694 = vld [vmem:[#allocation7 + $0x688] sm:$0xff]
    %v6695 = vld [vmem:[#allocation7 + $0x690] sm:$0xff]
    %v6696 = vld [vmem:[#allocation7 + $0x698] sm:$0xff]
    %v6697 = vld [vmem:[#allocation7 + $0x6a0] sm:$0xff]
    %v6698 = vld [vmem:[#allocation7 + $0x6a8] sm:$0xff]
    %v6699 = vld [vmem:[#allocation7 + $0x6b0] sm:$0xff]
    %v6700 = vld [vmem:[#allocation7 + $0x6b8] sm:$0xff]
    %v6701 = vld [vmem:[#allocation7 + $0x6c0] sm:$0xff]
    %v6702 = vld [vmem:[#allocation7 + $0x6c8] sm:$0xff]
    %v6703 = vld [vmem:[#allocation7 + $0x6d0] sm:$0xff]
    %v6704 = vld [vmem:[#allocation7 + $0x6d8] sm:$0xff]
    %v6705 = vld [vmem:[#allocation7 + $0x6e0] sm:$0xff]
    %v6706 = vld [vmem:[#allocation7 + $0x6e8] sm:$0xff]
    %v6707 = vld [vmem:[#allocation7 + $0x6f0] sm:$0xff]
    %v6708 = vld [vmem:[#allocation7 + $0x6f8] sm:$0xff]
    %v6709 = vld [vmem:[#allocation7 + $0x700] sm:$0xff]
    %v6710 = vld [vmem:[#allocation7 + $0x708] sm:$0xff]
    %v6711 = vld [vmem:[#allocation7 + $0x710] sm:$0xff]
    %v6712 = vld [vmem:[#allocation7 + $0x718] sm:$0xff]
    %v6713 = vld [vmem:[#allocation7 + $0x720] sm:$0xff]
    %v6714 = vld [vmem:[#allocation7 + $0x728] sm:$0xff]
    %v6715 = vld [vmem:[#allocation7 + $0x730] sm:$0xff]
    %v6716 = vld [vmem:[#allocation7 + $0x738] sm:$0xff]
    %v6717 = vld [vmem:[#allocation7 + $0x740] sm:$0xff]
    %v6718 = vld [vmem:[#allocation7 + $0x748] sm:$0xff]
    %v6719 = vld [vmem:[#allocation7 + $0x750] sm:$0xff]
    %v6720 = vld [vmem:[#allocation7 + $0x758] sm:$0xff]
    %v6721 = vld [vmem:[#allocation7 + $0x760] sm:$0xff]
    %v6722 = vld [vmem:[#allocation7 + $0x768] sm:$0xff]
    %v6723 = vld [vmem:[#allocation7 + $0x770] sm:$0xff]
    %v6724 = vld [vmem:[#allocation7 + $0x778] sm:$0xff]
    %v6725 = vld [vmem:[#allocation7 + $0x780] sm:$0xff]
    %v6726 = vld [vmem:[#allocation7 + $0x788] sm:$0xff]
    %v6727 = vld [vmem:[#allocation7 + $0x790] sm:$0xff]
    %v6728 = vld [vmem:[#allocation7 + $0x798] sm:$0xff]
    %v6729 = vld [vmem:[#allocation7 + $0x7a0] sm:$0xff]
    %v6730 = vld [vmem:[#allocation7 + $0x7a8] sm:$0xff]
    %v6731 = vld [vmem:[#allocation7 + $0x7b0] sm:$0xff]
    %v6732 = vld [vmem:[#allocation7 + $0x7b8] sm:$0xff]
    %v6733 = vld [vmem:[#allocation7 + $0x7c0] sm:$0xff]
    %v6734 = vld [vmem:[#allocation7 + $0x7c8] sm:$0xff]
    %v6735 = vld [vmem:[#allocation7 + $0x7d0] sm:$0xff]
    %v6736 = vld [vmem:[#allocation7 + $0x7d8] sm:$0xff]
    %v6737 = vld [vmem:[#allocation7 + $0x7e0] sm:$0xff]
    %v6738 = vld [vmem:[#allocation7 + $0x7e8] sm:$0xff]
    %v6739 = vld [vmem:[#allocation7 + $0x7f0] sm:$0xff]
    %v6740 = vld [vmem:[#allocation7 + $0x7f8] sm:$0xff]
    %v6741 = vld [vmem:[#allocation7 + $0x800] sm:$0xff]
    %v6742 = vld [vmem:[#allocation7 + $0x808] sm:$0xff]
    %v6743 = vld [vmem:[#allocation7 + $0x810] sm:$0xff]
    %v6744 = vld [vmem:[#allocation7 + $0x818] sm:$0xff]
    %v6745 = vld [vmem:[#allocation7 + $0x820] sm:$0xff]
    %v6746 = vld [vmem:[#allocation7 + $0x828] sm:$0xff]
    %v6747 = vld [vmem:[#allocation7 + $0x830] sm:$0xff]
    %v6748 = vld [vmem:[#allocation7 + $0x838] sm:$0xff]
    %v6749 = vld [vmem:[#allocation7 + $0x840] sm:$0xff]
    %v6750 = vld [vmem:[#allocation7 + $0x848] sm:$0xff]
    %v6751 = vld [vmem:[#allocation7 + $0x850] sm:$0xff]
    %v6752 = vld [vmem:[#allocation7 + $0x858] sm:$0xff]
    %v6753 = vld [vmem:[#allocation7 + $0x860] sm:$0xff]
    %v6754 = vld [vmem:[#allocation7 + $0x868] sm:$0xff]
    %v6755 = vld [vmem:[#allocation7 + $0x870] sm:$0xff]
    %v6756 = vld [vmem:[#allocation7 + $0x878] sm:$0xff]
    %v6757 = vld [vmem:[#allocation7 + $0x880] sm:$0xff]
    %v6758 = vld [vmem:[#allocation7 + $0x888] sm:$0xff]
    %v6759 = vld [vmem:[#allocation7 + $0x890] sm:$0xff]
    %v6760 = vld [vmem:[#allocation7 + $0x898] sm:$0xff]
    %v6761 = vld [vmem:[#allocation7 + $0x8a0] sm:$0xff]
    %v6762 = vld [vmem:[#allocation7 + $0x8a8] sm:$0xff]
    %v6763 = vld [vmem:[#allocation7 + $0x8b0] sm:$0xff]
    %v6764 = vld [vmem:[#allocation7 + $0x8b8] sm:$0xff]
    %v6765 = vld [vmem:[#allocation7 + $0x8c0] sm:$0xff]
    %v6766 = vld [vmem:[#allocation7 + $0x8c8] sm:$0xff]
    %v6767 = vld [vmem:[#allocation7 + $0x8d0] sm:$0xff]
    %v6768 = vld [vmem:[#allocation7 + $0x8d8] sm:$0xff]
    %v6769 = vld [vmem:[#allocation7 + $0x8e0] sm:$0xff]
    %v6770 = vld [vmem:[#allocation7 + $0x8e8] sm:$0xff]
    %v6771 = vld [vmem:[#allocation7 + $0x8f0] sm:$0xff]
    %v6772 = vld [vmem:[#allocation7 + $0x8f8] sm:$0xff]
    %v6773 = vld [vmem:[%s19] sm:$0xff]
    %6775 = vset.pattern.permute.xlu0 0
    %6776 = vperm.xlu0 %6775, %v6773
    %v6777 = vpop.permute.xlu0 %6776
    %v7067 = vunpack.c.l.b16 %v6485
    %v7068 = vunpack.c.h.b16 %v6485
    %v7069 = vunpack.c.l.b16 %v6486
    %v7070 = vunpack.c.h.b16 %v6486
    %v7071 = vunpack.c.l.b16 %v6487
    %v7072 = vunpack.c.h.b16 %v6487
    %v7073 = vunpack.c.l.b16 %v6488
    %v7074 = vunpack.c.h.b16 %v6488
    %v7075 = vunpack.c.l.b16 %v6489
    %v7076 = vunpack.c.h.b16 %v6489
    %v7077 = vunpack.c.l.b16 %v6490
    %v7078 = vunpack.c.h.b16 %v6490
    %v7079 = vunpack.c.l.b16 %v6491
    %v7080 = vunpack.c.h.b16 %v6491
    %v7081 = vunpack.c.l.b16 %v6492
    %v7082 = vunpack.c.h.b16 %v6492
    %v7083 = vunpack.c.l.b16 %v6493
    %v7084 = vunpack.c.h.b16 %v6493
    %v7085 = vunpack.c.l.b16 %v6494
    %v7086 = vunpack.c.h.b16 %v6494
    %v7087 = vunpack.c.l.b16 %v6495
    %v7088 = vunpack.c.h.b16 %v6495
    %v7089 = vunpack.c.l.b16 %v6496
    %v7090 = vunpack.c.h.b16 %v6496
    %v7091 = vunpack.c.l.b16 %v6497
    %v7092 = vunpack.c.h.b16 %v6497
    %v7093 = vunpack.c.l.b16 %v6498
    %v7094 = vunpack.c.h.b16 %v6498
    %v7095 = vunpack.c.l.b16 %v6499
    %v7096 = vunpack.c.h.b16 %v6499
    %v7097 = vunpack.c.l.b16 %v6500
    %v7098 = vunpack.c.h.b16 %v6500
    %v7099 = vunpack.c.l.b16 %v6501
    %v7100 = vunpack.c.h.b16 %v6501
    %v7101 = vunpack.c.l.b16 %v6502
    %v7102 = vunpack.c.h.b16 %v6502
    %v7103 = vunpack.c.l.b16 %v6503
    %v7104 = vunpack.c.h.b16 %v6503
    %v7105 = vunpack.c.l.b16 %v6504
    %v7106 = vunpack.c.h.b16 %v6504
    %v7107 = vunpack.c.l.b16 %v6505
    %v7108 = vunpack.c.h.b16 %v6505
    %v7109 = vunpack.c.l.b16 %v6506
    %v7110 = vunpack.c.h.b16 %v6506
    %v7111 = vunpack.c.l.b16 %v6507
    %v7112 = vunpack.c.h.b16 %v6507
    %v7113 = vunpack.c.l.b16 %v6508
    %v7114 = vunpack.c.h.b16 %v6508
    %v7115 = vunpack.c.l.b16 %v6509
    %v7116 = vunpack.c.h.b16 %v6509
    %v7117 = vunpack.c.l.b16 %v6510
    %v7118 = vunpack.c.h.b16 %v6510
    %v7119 = vunpack.c.l.b16 %v6511
    %v7120 = vunpack.c.h.b16 %v6511
    %v7121 = vunpack.c.l.b16 %v6512
    %v7122 = vunpack.c.h.b16 %v6512
    %v7123 = vunpack.c.l.b16 %v6513
    %v7124 = vunpack.c.h.b16 %v6513
    %v7125 = vunpack.c.l.b16 %v6514
    %v7126 = vunpack.c.h.b16 %v6514
    %v7127 = vunpack.c.l.b16 %v6515
    %v7128 = vunpack.c.h.b16 %v6515
    %v7129 = vunpack.c.l.b16 %v6516
    %v7130 = vunpack.c.h.b16 %v6516
    %v7131 = vunpack.c.l.b16 %v6517
    %v7132 = vunpack.c.h.b16 %v6517
    %v7133 = vunpack.c.l.b16 %v6518
    %v7134 = vunpack.c.h.b16 %v6518
    %v7135 = vunpack.c.l.b16 %v6519
    %v7136 = vunpack.c.h.b16 %v6519
    %v7137 = vunpack.c.l.b16 %v6520
    %v7138 = vunpack.c.h.b16 %v6520
    %v7139 = vunpack.c.l.b16 %v6521
    %v7140 = vunpack.c.h.b16 %v6521
    %v7141 = vunpack.c.l.b16 %v6522
    %v7142 = vunpack.c.h.b16 %v6522
    %v7143 = vunpack.c.l.b16 %v6523
    %v7144 = vunpack.c.h.b16 %v6523
    %v7145 = vunpack.c.l.b16 %v6524
    %v7146 = vunpack.c.h.b16 %v6524
    %v7147 = vunpack.c.l.b16 %v6525
    %v7148 = vunpack.c.h.b16 %v6525
    %v7149 = vunpack.c.l.b16 %v6526
    %v7150 = vunpack.c.h.b16 %v6526
    %v7151 = vunpack.c.l.b16 %v6527
    %v7152 = vunpack.c.h.b16 %v6527
    %v7153 = vunpack.c.l.b16 %v6528
    %v7154 = vunpack.c.h.b16 %v6528
    %v7155 = vunpack.c.l.b16 %v6529
    %v7156 = vunpack.c.h.b16 %v6529
    %v7157 = vunpack.c.l.b16 %v6530
    %v7158 = vunpack.c.h.b16 %v6530
    %v7159 = vunpack.c.l.b16 %v6531
    %v7160 = vunpack.c.h.b16 %v6531
    %v7161 = vunpack.c.l.b16 %v6532
    %v7162 = vunpack.c.h.b16 %v6532
    %v7163 = vunpack.c.l.b16 %v6533
    %v7164 = vunpack.c.h.b16 %v6533
    %v7165 = vunpack.c.l.b16 %v6534
    %v7166 = vunpack.c.h.b16 %v6534
    %v7167 = vunpack.c.l.b16 %v6535
    %v7168 = vunpack.c.h.b16 %v6535
    %v7169 = vunpack.c.l.b16 %v6536
    %v7170 = vunpack.c.h.b16 %v6536
    %v7171 = vunpack.c.l.b16 %v6537
    %v7172 = vunpack.c.h.b16 %v6537
    %v7173 = vunpack.c.l.b16 %v6538
    %v7174 = vunpack.c.h.b16 %v6538
    %v7175 = vunpack.c.l.b16 %v6539
    %v7176 = vunpack.c.h.b16 %v6539
    %v7177 = vunpack.c.l.b16 %v6540
    %v7178 = vunpack.c.h.b16 %v6540
    %v7179 = vunpack.c.l.b16 %v6541
    %v7180 = vunpack.c.h.b16 %v6541
    %v7181 = vunpack.c.l.b16 %v6542
    %v7182 = vunpack.c.h.b16 %v6542
    %v7183 = vunpack.c.l.b16 %v6543
    %v7184 = vunpack.c.h.b16 %v6543
    %v7185 = vunpack.c.l.b16 %v6544
    %v7186 = vunpack.c.h.b16 %v6544
    %v7187 = vunpack.c.l.b16 %v6545
    %v7188 = vunpack.c.h.b16 %v6545
    %v7189 = vunpack.c.l.b16 %v6546
    %v7190 = vunpack.c.h.b16 %v6546
    %v7191 = vunpack.c.l.b16 %v6547
    %v7192 = vunpack.c.h.b16 %v6547
    %v7193 = vunpack.c.l.b16 %v6548
    %v7194 = vunpack.c.h.b16 %v6548
    %v7195 = vunpack.c.l.b16 %v6549
    %v7196 = vunpack.c.h.b16 %v6549
    %v7197 = vunpack.c.l.b16 %v6550
    %v7198 = vunpack.c.h.b16 %v6550
    %v7199 = vunpack.c.l.b16 %v6551
    %v7200 = vunpack.c.h.b16 %v6551
    %v7201 = vunpack.c.l.b16 %v6552
    %v7202 = vunpack.c.h.b16 %v6552
    %v7203 = vunpack.c.l.b16 %v6553
    %v7204 = vunpack.c.h.b16 %v6553
    %v7205 = vunpack.c.l.b16 %v6554
    %v7206 = vunpack.c.h.b16 %v6554
    %v7207 = vunpack.c.l.b16 %v6555
    %v7208 = vunpack.c.h.b16 %v6555
    %v7209 = vunpack.c.l.b16 %v6556
    %v7210 = vunpack.c.h.b16 %v6556
    %v7211 = vunpack.c.l.b16 %v6557
    %v7212 = vunpack.c.h.b16 %v6557
    %v7213 = vunpack.c.l.b16 %v6558
    %v7214 = vunpack.c.h.b16 %v6558
    %v7215 = vunpack.c.l.b16 %v6559
    %v7216 = vunpack.c.h.b16 %v6559
    %v7217 = vunpack.c.l.b16 %v6560
    %v7218 = vunpack.c.h.b16 %v6560
    %v7219 = vunpack.c.l.b16 %v6561
    %v7220 = vunpack.c.h.b16 %v6561
    %v7221 = vunpack.c.l.b16 %v6562
    %v7222 = vunpack.c.h.b16 %v6562
    %v7223 = vunpack.c.l.b16 %v6563
    %v7224 = vunpack.c.h.b16 %v6563
    %v7225 = vunpack.c.l.b16 %v6564
    %v7226 = vunpack.c.h.b16 %v6564
    %v7227 = vunpack.c.l.b16 %v6565
    %v7228 = vunpack.c.h.b16 %v6565
    %v7229 = vunpack.c.l.b16 %v6566
    %v7230 = vunpack.c.h.b16 %v6566
    %v7231 = vunpack.c.l.b16 %v6567
    %v7232 = vunpack.c.h.b16 %v6567
    %v7233 = vunpack.c.l.b16 %v6568
    %v7234 = vunpack.c.h.b16 %v6568
    %v7235 = vunpack.c.l.b16 %v6569
    %v7236 = vunpack.c.h.b16 %v6569
    %v7237 = vunpack.c.l.b16 %v6570
    %v7238 = vunpack.c.h.b16 %v6570
    %v7239 = vunpack.c.l.b16 %v6571
    %v7240 = vunpack.c.h.b16 %v6571
    %v7241 = vunpack.c.l.b16 %v6572
    %v7242 = vunpack.c.h.b16 %v6572
    %v7243 = vunpack.c.l.b16 %v6573
    %v7244 = vunpack.c.h.b16 %v6573
    %v7245 = vunpack.c.l.b16 %v6574
    %v7246 = vunpack.c.h.b16 %v6574
    %v7247 = vunpack.c.l.b16 %v6575
    %v7248 = vunpack.c.h.b16 %v6575
    %v7249 = vunpack.c.l.b16 %v6576
    %v7250 = vunpack.c.h.b16 %v6576
    %v7251 = vunpack.c.l.b16 %v6577
    %v7252 = vunpack.c.h.b16 %v6577
    %v7253 = vunpack.c.l.b16 %v6578
    %v7254 = vunpack.c.h.b16 %v6578
    %v7255 = vunpack.c.l.b16 %v6579
    %v7256 = vunpack.c.h.b16 %v6579
    %v7257 = vunpack.c.l.b16 %v6580
    %v7258 = vunpack.c.h.b16 %v6580
    %v7259 = vunpack.c.l.b16 %v6581
    %v7260 = vunpack.c.h.b16 %v6581
    %v7261 = vunpack.c.l.b16 %v6582
    %v7262 = vunpack.c.h.b16 %v6582
    %v7263 = vunpack.c.l.b16 %v6583
    %v7264 = vunpack.c.h.b16 %v6583
    %v7265 = vunpack.c.l.b16 %v6584
    %v7266 = vunpack.c.h.b16 %v6584
    %v7267 = vunpack.c.l.b16 %v6585
    %v7268 = vunpack.c.h.b16 %v6585
    %v7269 = vunpack.c.l.b16 %v6586
    %v7270 = vunpack.c.h.b16 %v6586
    %v7271 = vunpack.c.l.b16 %v6587
    %v7272 = vunpack.c.h.b16 %v6587
    %v7273 = vunpack.c.l.b16 %v6588
    %v7274 = vunpack.c.h.b16 %v6588
    %v7275 = vunpack.c.l.b16 %v6589
    %v7276 = vunpack.c.h.b16 %v6589
    %v7277 = vunpack.c.l.b16 %v6590
    %v7278 = vunpack.c.h.b16 %v6590
    %v7279 = vunpack.c.l.b16 %v6591
    %v7280 = vunpack.c.h.b16 %v6591
    %v7281 = vunpack.c.l.b16 %v6592
    %v7282 = vunpack.c.h.b16 %v6592
    %v7283 = vunpack.c.l.b16 %v6593
    %v7284 = vunpack.c.h.b16 %v6593
    %v7285 = vunpack.c.l.b16 %v6594
    %v7286 = vunpack.c.h.b16 %v6594
    %v7287 = vunpack.c.l.b16 %v6595
    %v7288 = vunpack.c.h.b16 %v6595
    %v7289 = vunpack.c.l.b16 %v6596
    %v7290 = vunpack.c.h.b16 %v6596
    %v7291 = vunpack.c.l.b16 %v6597
    %v7292 = vunpack.c.h.b16 %v6597
    %v7293 = vunpack.c.l.b16 %v6598
    %v7294 = vunpack.c.h.b16 %v6598
    %v7295 = vunpack.c.l.b16 %v6599
    %v7296 = vunpack.c.h.b16 %v6599
    %v7297 = vunpack.c.l.b16 %v6600
    %v7298 = vunpack.c.h.b16 %v6600
    %v7299 = vunpack.c.l.b16 %v6601
    %v7300 = vunpack.c.h.b16 %v6601
    %v7301 = vunpack.c.l.b16 %v6602
    %v7302 = vunpack.c.h.b16 %v6602
    %v7303 = vunpack.c.l.b16 %v6603
    %v7304 = vunpack.c.h.b16 %v6603
    %v7305 = vunpack.c.l.b16 %v6604
    %v7306 = vunpack.c.h.b16 %v6604
    %v7307 = vunpack.c.l.b16 %v6605
    %v7308 = vunpack.c.h.b16 %v6605
    %v7309 = vunpack.c.l.b16 %v6606
    %v7310 = vunpack.c.h.b16 %v6606
    %v7311 = vunpack.c.l.b16 %v6607
    %v7312 = vunpack.c.h.b16 %v6607
    %v7313 = vunpack.c.l.b16 %v6608
    %v7314 = vunpack.c.h.b16 %v6608
    %v7315 = vunpack.c.l.b16 %v6609
    %v7316 = vunpack.c.h.b16 %v6609
    %v7317 = vunpack.c.l.b16 %v6610
    %v7318 = vunpack.c.h.b16 %v6610
    %v7319 = vunpack.c.l.b16 %v6611
    %v7320 = vunpack.c.h.b16 %v6611
    %v7321 = vunpack.c.l.b16 %v6612
    %v7322 = vunpack.c.h.b16 %v6612
    %v7323 = vunpack.c.l.b16 %v6613
    %v7324 = vunpack.c.h.b16 %v6613
    %v7325 = vunpack.c.l.b16 %v6614
    %v7326 = vunpack.c.h.b16 %v6614
    %v7327 = vunpack.c.l.b16 %v6615
    %v7328 = vunpack.c.h.b16 %v6615
    %v7329 = vunpack.c.l.b16 %v6616
    %v7330 = vunpack.c.h.b16 %v6616
    %v7331 = vunpack.c.l.b16 %v6617
    %v7332 = vunpack.c.h.b16 %v6617
    %v7333 = vunpack.c.l.b16 %v6618
    %v7334 = vunpack.c.h.b16 %v6618
    %v7335 = vunpack.c.l.b16 %v6619
    %v7336 = vunpack.c.h.b16 %v6619
    %v7337 = vunpack.c.l.b16 %v6620
    %v7338 = vunpack.c.h.b16 %v6620
    %v7339 = vunpack.c.l.b16 %v6621
    %v7340 = vunpack.c.h.b16 %v6621
    %v7341 = vunpack.c.l.b16 %v6622
    %v7342 = vunpack.c.h.b16 %v6622
    %v7343 = vunpack.c.l.b16 %v6623
    %v7344 = vunpack.c.h.b16 %v6623
    %v7345 = vunpack.c.l.b16 %v6624
    %v7346 = vunpack.c.h.b16 %v6624
    %v7347 = vunpack.c.l.b16 %v6625
    %v7348 = vunpack.c.h.b16 %v6625
    %v7349 = vunpack.c.l.b16 %v6626
    %v7350 = vunpack.c.h.b16 %v6626
    %v7351 = vunpack.c.l.b16 %v6627
    %v7352 = vunpack.c.h.b16 %v6627
    %v7353 = vunpack.c.l.b16 %v6628
    %v7354 = vunpack.c.h.b16 %v6628
    %v7355 = vunpack.c.l.b16 %v6629
    %v7356 = vunpack.c.h.b16 %v6629
    %v7357 = vunpack.c.l.b16 %v6630
    %v7358 = vunpack.c.h.b16 %v6630
    %v7359 = vunpack.c.l.b16 %v6631
    %v7360 = vunpack.c.h.b16 %v6631
    %v7361 = vunpack.c.l.b16 %v6632
    %v7362 = vunpack.c.h.b16 %v6632
    %v7363 = vunpack.c.l.b16 %v6633
    %v7364 = vunpack.c.h.b16 %v6633
    %v7365 = vunpack.c.l.b16 %v6634
    %v7366 = vunpack.c.h.b16 %v6634
    %v7367 = vunpack.c.l.b16 %v6635
    %v7368 = vunpack.c.h.b16 %v6635
    %v7369 = vunpack.c.l.b16 %v6636
    %v7370 = vunpack.c.h.b16 %v6636
    %v7371 = vunpack.c.l.b16 %v6637
    %v7372 = vunpack.c.h.b16 %v6637
    %v7373 = vunpack.c.l.b16 %v6638
    %v7374 = vunpack.c.h.b16 %v6638
    %v7375 = vunpack.c.l.b16 %v6639
    %v7376 = vunpack.c.h.b16 %v6639
    %v7377 = vunpack.c.l.b16 %v6640
    %v7378 = vunpack.c.h.b16 %v6640
    %v7379 = vunpack.c.l.b16 %v6641
    %v7380 = vunpack.c.h.b16 %v6641
    %v7381 = vunpack.c.l.b16 %v6642
    %v7382 = vunpack.c.h.b16 %v6642
    %v7383 = vunpack.c.l.b16 %v6643
    %v7384 = vunpack.c.h.b16 %v6643
    %v7385 = vunpack.c.l.b16 %v6644
    %v7386 = vunpack.c.h.b16 %v6644
    %v7387 = vunpack.c.l.b16 %v6645
    %v7388 = vunpack.c.h.b16 %v6645
    %v7389 = vunpack.c.l.b16 %v6646
    %v7390 = vunpack.c.h.b16 %v6646
    %v7391 = vunpack.c.l.b16 %v6647
    %v7392 = vunpack.c.h.b16 %v6647
    %v7393 = vunpack.c.l.b16 %v6648
    %v7394 = vunpack.c.h.b16 %v6648
    %v7395 = vunpack.c.l.b16 %v6649
    %v7396 = vunpack.c.h.b16 %v6649
    %v7397 = vunpack.c.l.b16 %v6650
    %v7398 = vunpack.c.h.b16 %v6650
    %v7399 = vunpack.c.l.b16 %v6651
    %v7400 = vunpack.c.h.b16 %v6651
    %v7401 = vunpack.c.l.b16 %v6652
    %v7402 = vunpack.c.h.b16 %v6652
    %v7403 = vunpack.c.l.b16 %v6653
    %v7404 = vunpack.c.h.b16 %v6653
    %v7405 = vunpack.c.l.b16 %v6654
    %v7406 = vunpack.c.h.b16 %v6654
    %v7407 = vunpack.c.l.b16 %v6655
    %v7408 = vunpack.c.h.b16 %v6655
    %v7409 = vunpack.c.l.b16 %v6656
    %v7410 = vunpack.c.h.b16 %v6656
    %v7411 = vunpack.c.l.b16 %v6657
    %v7412 = vunpack.c.h.b16 %v6657
    %v7413 = vunpack.c.l.b16 %v6658
    %v7414 = vunpack.c.h.b16 %v6658
    %v7415 = vunpack.c.l.b16 %v6659
    %v7416 = vunpack.c.h.b16 %v6659
    %v7417 = vunpack.c.l.b16 %v6660
    %v7418 = vunpack.c.h.b16 %v6660
    %v7419 = vunpack.c.l.b16 %v6661
    %v7420 = vunpack.c.h.b16 %v6661
    %v7421 = vunpack.c.l.b16 %v6662
    %v7422 = vunpack.c.h.b16 %v6662
    %v7423 = vunpack.c.l.b16 %v6663
    %v7424 = vunpack.c.h.b16 %v6663
    %v7425 = vunpack.c.l.b16 %v6664
    %v7426 = vunpack.c.h.b16 %v6664
    %v7427 = vunpack.c.l.b16 %v6665
    %v7428 = vunpack.c.h.b16 %v6665
    %v7429 = vunpack.c.l.b16 %v6666
    %v7430 = vunpack.c.h.b16 %v6666
    %v7431 = vunpack.c.l.b16 %v6667
    %v7432 = vunpack.c.h.b16 %v6667
    %v7433 = vunpack.c.l.b16 %v6668
    %v7434 = vunpack.c.h.b16 %v6668
    %v7435 = vunpack.c.l.b16 %v6669
    %v7436 = vunpack.c.h.b16 %v6669
    %v7437 = vunpack.c.l.b16 %v6670
    %v7438 = vunpack.c.h.b16 %v6670
    %v7439 = vunpack.c.l.b16 %v6671
    %v7440 = vunpack.c.h.b16 %v6671
    %v7441 = vunpack.c.l.b16 %v6672
    %v7442 = vunpack.c.h.b16 %v6672
    %v7443 = vunpack.c.l.b16 %v6673
    %v7444 = vunpack.c.h.b16 %v6673
    %v7445 = vunpack.c.l.b16 %v6674
    %v7446 = vunpack.c.h.b16 %v6674
    %v7447 = vunpack.c.l.b16 %v6675
    %v7448 = vunpack.c.h.b16 %v6675
    %v7449 = vunpack.c.l.b16 %v6676
    %v7450 = vunpack.c.h.b16 %v6676
    %v7451 = vunpack.c.l.b16 %v6677
    %v7452 = vunpack.c.h.b16 %v6677
    %v7453 = vunpack.c.l.b16 %v6678
    %v7454 = vunpack.c.h.b16 %v6678
    %v7455 = vunpack.c.l.b16 %v6679
    %v7456 = vunpack.c.h.b16 %v6679
    %v7457 = vunpack.c.l.b16 %v6680
    %v7458 = vunpack.c.h.b16 %v6680
    %v7459 = vunpack.c.l.b16 %v6681
    %v7460 = vunpack.c.h.b16 %v6681
    %v7461 = vunpack.c.l.b16 %v6682
    %v7462 = vunpack.c.h.b16 %v6682
    %v7463 = vunpack.c.l.b16 %v6683
    %v7464 = vunpack.c.h.b16 %v6683
    %v7465 = vunpack.c.l.b16 %v6684
    %v7466 = vunpack.c.h.b16 %v6684
    %v7467 = vunpack.c.l.b16 %v6685
    %v7468 = vunpack.c.h.b16 %v6685
    %v7469 = vunpack.c.l.b16 %v6686
    %v7470 = vunpack.c.h.b16 %v6686
    %v7471 = vunpack.c.l.b16 %v6687
    %v7472 = vunpack.c.h.b16 %v6687
    %v7473 = vunpack.c.l.b16 %v6688
    %v7474 = vunpack.c.h.b16 %v6688
    %v7475 = vunpack.c.l.b16 %v6689
    %v7476 = vunpack.c.h.b16 %v6689
    %v7477 = vunpack.c.l.b16 %v6690
    %v7478 = vunpack.c.h.b16 %v6690
    %v7479 = vunpack.c.l.b16 %v6691
    %v7480 = vunpack.c.h.b16 %v6691
    %v7481 = vunpack.c.l.b16 %v6692
    %v7482 = vunpack.c.h.b16 %v6692
    %v7483 = vunpack.c.l.b16 %v6693
    %v7484 = vunpack.c.h.b16 %v6693
    %v7485 = vunpack.c.l.b16 %v6694
    %v7486 = vunpack.c.h.b16 %v6694
    %v7487 = vunpack.c.l.b16 %v6695
    %v7488 = vunpack.c.h.b16 %v6695
    %v7489 = vunpack.c.l.b16 %v6696
    %v7490 = vunpack.c.h.b16 %v6696
    %v7491 = vunpack.c.l.b16 %v6697
    %v7492 = vunpack.c.h.b16 %v6697
    %v7493 = vunpack.c.l.b16 %v6698
    %v7494 = vunpack.c.h.b16 %v6698
    %v7495 = vunpack.c.l.b16 %v6699
    %v7496 = vunpack.c.h.b16 %v6699
    %v7497 = vunpack.c.l.b16 %v6700
    %v7498 = vunpack.c.h.b16 %v6700
    %v7499 = vunpack.c.l.b16 %v6701
    %v7500 = vunpack.c.h.b16 %v6701
    %v7501 = vunpack.c.l.b16 %v6702
    %v7502 = vunpack.c.h.b16 %v6702
    %v7503 = vunpack.c.l.b16 %v6703
    %v7504 = vunpack.c.h.b16 %v6703
    %v7505 = vunpack.c.l.b16 %v6704
    %v7506 = vunpack.c.h.b16 %v6704
    %v7507 = vunpack.c.l.b16 %v6705
    %v7508 = vunpack.c.h.b16 %v6705
    %v7509 = vunpack.c.l.b16 %v6706
    %v7510 = vunpack.c.h.b16 %v6706
    %v7511 = vunpack.c.l.b16 %v6707
    %v7512 = vunpack.c.h.b16 %v6707
    %v7513 = vunpack.c.l.b16 %v6708
    %v7514 = vunpack.c.h.b16 %v6708
    %v7515 = vunpack.c.l.b16 %v6709
    %v7516 = vunpack.c.h.b16 %v6709
    %v7517 = vunpack.c.l.b16 %v6710
    %v7518 = vunpack.c.h.b16 %v6710
    %v7519 = vunpack.c.l.b16 %v6711
    %v7520 = vunpack.c.h.b16 %v6711
    %v7521 = vunpack.c.l.b16 %v6712
    %v7522 = vunpack.c.h.b16 %v6712
    %v7523 = vunpack.c.l.b16 %v6713
    %v7524 = vunpack.c.h.b16 %v6713
    %v7525 = vunpack.c.l.b16 %v6714
    %v7526 = vunpack.c.h.b16 %v6714
    %v7527 = vunpack.c.l.b16 %v6715
    %v7528 = vunpack.c.h.b16 %v6715
    %v7529 = vunpack.c.l.b16 %v6716
    %v7530 = vunpack.c.h.b16 %v6716
    %v7531 = vunpack.c.l.b16 %v6717
    %v7532 = vunpack.c.h.b16 %v6717
    %v7533 = vunpack.c.l.b16 %v6718
    %v7534 = vunpack.c.h.b16 %v6718
    %v7535 = vunpack.c.l.b16 %v6719
    %v7536 = vunpack.c.h.b16 %v6719
    %v7537 = vunpack.c.l.b16 %v6720
    %v7538 = vunpack.c.h.b16 %v6720
    %v7539 = vunpack.c.l.b16 %v6721
    %v7540 = vunpack.c.h.b16 %v6721
    %v7541 = vunpack.c.l.b16 %v6722
    %v7542 = vunpack.c.h.b16 %v6722
    %v7543 = vunpack.c.l.b16 %v6723
    %v7544 = vunpack.c.h.b16 %v6723
    %v7545 = vunpack.c.l.b16 %v6724
    %v7546 = vunpack.c.h.b16 %v6724
    %v7547 = vunpack.c.l.b16 %v6725
    %v7548 = vunpack.c.h.b16 %v6725
    %v7549 = vunpack.c.l.b16 %v6726
    %v7550 = vunpack.c.h.b16 %v6726
    %v7551 = vunpack.c.l.b16 %v6727
    %v7552 = vunpack.c.h.b16 %v6727
    %v7553 = vunpack.c.l.b16 %v6728
    %v7554 = vunpack.c.h.b16 %v6728
    %v7555 = vunpack.c.l.b16 %v6729
    %v7556 = vunpack.c.h.b16 %v6729
    %v7557 = vunpack.c.l.b16 %v6730
    %v7558 = vunpack.c.h.b16 %v6730
    %v7559 = vunpack.c.l.b16 %v6731
    %v7560 = vunpack.c.h.b16 %v6731
    %v7561 = vunpack.c.l.b16 %v6732
    %v7562 = vunpack.c.h.b16 %v6732
    %v7563 = vunpack.c.l.b16 %v6733
    %v7564 = vunpack.c.h.b16 %v6733
    %v7565 = vunpack.c.l.b16 %v6734
    %v7566 = vunpack.c.h.b16 %v6734
    %v7567 = vunpack.c.l.b16 %v6735
    %v7568 = vunpack.c.h.b16 %v6735
    %v7569 = vunpack.c.l.b16 %v6736
    %v7570 = vunpack.c.h.b16 %v6736
    %v7571 = vunpack.c.l.b16 %v6737
    %v7572 = vunpack.c.h.b16 %v6737
    %v7573 = vunpack.c.l.b16 %v6738
    %v7574 = vunpack.c.h.b16 %v6738
    %v7575 = vunpack.c.l.b16 %v6739
    %v7576 = vunpack.c.h.b16 %v6739
    %v7577 = vunpack.c.l.b16 %v6740
    %v7578 = vunpack.c.h.b16 %v6740
    %v7579 = vunpack.c.l.b16 %v6741
    %v7580 = vunpack.c.h.b16 %v6741
    %v7581 = vunpack.c.l.b16 %v6742
    %v7582 = vunpack.c.h.b16 %v6742
    %v7583 = vunpack.c.l.b16 %v6743
    %v7584 = vunpack.c.h.b16 %v6743
    %v7585 = vunpack.c.l.b16 %v6744
    %v7586 = vunpack.c.h.b16 %v6744
    %v7587 = vunpack.c.l.b16 %v6745
    %v7588 = vunpack.c.h.b16 %v6745
    %v7589 = vunpack.c.l.b16 %v6746
    %v7590 = vunpack.c.h.b16 %v6746
    %v7591 = vunpack.c.l.b16 %v6747
    %v7592 = vunpack.c.h.b16 %v6747
    %v7593 = vunpack.c.l.b16 %v6748
    %v7594 = vunpack.c.h.b16 %v6748
    %v7595 = vunpack.c.l.b16 %v6749
    %v7596 = vunpack.c.h.b16 %v6749
    %v7597 = vunpack.c.l.b16 %v6750
    %v7598 = vunpack.c.h.b16 %v6750
    %v7599 = vunpack.c.l.b16 %v6751
    %v7600 = vunpack.c.h.b16 %v6751
    %v7601 = vunpack.c.l.b16 %v6752
    %v7602 = vunpack.c.h.b16 %v6752
    %v7603 = vunpack.c.l.b16 %v6753
    %v7604 = vunpack.c.h.b16 %v6753
    %v7605 = vunpack.c.l.b16 %v6754
    %v7606 = vunpack.c.h.b16 %v6754
    %v7607 = vunpack.c.l.b16 %v6755
    %v7608 = vunpack.c.h.b16 %v6755
    %v7609 = vunpack.c.l.b16 %v6756
    %v7610 = vunpack.c.h.b16 %v6756
    %v7611 = vunpack.c.l.b16 %v6757
    %v7612 = vunpack.c.h.b16 %v6757
    %v7613 = vunpack.c.l.b16 %v6758
    %v7614 = vunpack.c.h.b16 %v6758
    %v7615 = vunpack.c.l.b16 %v6759
    %v7616 = vunpack.c.h.b16 %v6759
    %v7617 = vunpack.c.l.b16 %v6760
    %v7618 = vunpack.c.h.b16 %v6760
    %v7619 = vunpack.c.l.b16 %v6761
    %v7620 = vunpack.c.h.b16 %v6761
    %v7621 = vunpack.c.l.b16 %v6762
    %v7622 = vunpack.c.h.b16 %v6762
    %v7623 = vunpack.c.l.b16 %v6763
    %v7624 = vunpack.c.h.b16 %v6763
    %v7625 = vunpack.c.l.b16 %v6764
    %v7626 = vunpack.c.h.b16 %v6764
    %v7627 = vunpack.c.l.b16 %v6765
    %v7628 = vunpack.c.h.b16 %v6765
    %v7629 = vunpack.c.l.b16 %v6766
    %v7630 = vunpack.c.h.b16 %v6766
    %v7631 = vunpack.c.l.b16 %v6767
    %v7632 = vunpack.c.h.b16 %v6767
    %v7633 = vunpack.c.l.b16 %v6768
    %v7634 = vunpack.c.h.b16 %v6768
    %v7635 = vunpack.c.l.b16 %v6769
    %v7636 = vunpack.c.h.b16 %v6769
    %v7637 = vunpack.c.l.b16 %v6770
    %v7638 = vunpack.c.h.b16 %v6770
    %v7639 = vunpack.c.l.b16 %v6771
    %v7640 = vunpack.c.h.b16 %v6771
    %v7641 = vunpack.c.l.b16 %v6772
    %v7642 = vunpack.c.h.b16 %v6772
    %v7643 = vpack.c.b16 %v7069, %v7067
    %v7644 = vpack.c.b16 %v7070, %v7068
    %v7645 = vpack.c.b16 %v7073, %v7071
    %v7646 = vpack.c.b16 %v7074, %v7072
    %v7647 = vpack.c.b16 %v7077, %v7075
    %v7648 = vpack.c.b16 %v7078, %v7076
    %v7649 = vpack.c.b16 %v7081, %v7079
    %v7650 = vpack.c.b16 %v7082, %v7080
    %v7651 = vpack.c.b16 %v7085, %v7083
    %v7652 = vpack.c.b16 %v7086, %v7084
    %v7653 = vpack.c.b16 %v7089, %v7087
    %v7654 = vpack.c.b16 %v7090, %v7088
    %v7655 = vpack.c.b16 %v7093, %v7091
    %v7656 = vpack.c.b16 %v7094, %v7092
    %v7657 = vpack.c.b16 %v7097, %v7095
    %v7658 = vpack.c.b16 %v7098, %v7096
    %v7659 = vpack.c.b16 %v7101, %v7099
    %v7660 = vpack.c.b16 %v7102, %v7100
    %v7661 = vpack.c.b16 %v7105, %v7103
    %v7662 = vpack.c.b16 %v7106, %v7104
    %v7663 = vpack.c.b16 %v7109, %v7107
    %v7664 = vpack.c.b16 %v7110, %v7108
    %v7665 = vpack.c.b16 %v7113, %v7111
    %v7666 = vpack.c.b16 %v7114, %v7112
    %v7667 = vpack.c.b16 %v7117, %v7115
    %v7668 = vpack.c.b16 %v7118, %v7116
    %v7669 = vpack.c.b16 %v7121, %v7119
    %v7670 = vpack.c.b16 %v7122, %v7120
    %v7671 = vpack.c.b16 %v7125, %v7123
    %v7672 = vpack.c.b16 %v7126, %v7124
    %v7673 = vpack.c.b16 %v7129, %v7127
    %v7674 = vpack.c.b16 %v7130, %v7128
    %v7675 = vpack.c.b16 %v7133, %v7131
    %v7676 = vpack.c.b16 %v7134, %v7132
    %v7677 = vpack.c.b16 %v7137, %v7135
    %v7678 = vpack.c.b16 %v7138, %v7136
    %v7679 = vpack.c.b16 %v7141, %v7139
    %v7680 = vpack.c.b16 %v7142, %v7140
    %v7681 = vpack.c.b16 %v7145, %v7143
    %v7682 = vpack.c.b16 %v7146, %v7144
    %v7683 = vpack.c.b16 %v7149, %v7147
    %v7684 = vpack.c.b16 %v7150, %v7148
    %v7685 = vpack.c.b16 %v7153, %v7151
    %v7686 = vpack.c.b16 %v7154, %v7152
    %v7687 = vpack.c.b16 %v7157, %v7155
    %v7688 = vpack.c.b16 %v7158, %v7156
    %v7689 = vpack.c.b16 %v7161, %v7159
    %v7690 = vpack.c.b16 %v7162, %v7160
    %v7691 = vpack.c.b16 %v7165, %v7163
    %v7692 = vpack.c.b16 %v7166, %v7164
    %v7693 = vpack.c.b16 %v7169, %v7167
    %v7694 = vpack.c.b16 %v7170, %v7168
    %v7695 = vpack.c.b16 %v7173, %v7171
    %v7696 = vpack.c.b16 %v7174, %v7172
    %v7697 = vpack.c.b16 %v7177, %v7175
    %v7698 = vpack.c.b16 %v7178, %v7176
    %v7699 = vpack.c.b16 %v7181, %v7179
    %v7700 = vpack.c.b16 %v7182, %v7180
    %v7701 = vpack.c.b16 %v7185, %v7183
    %v7702 = vpack.c.b16 %v7186, %v7184
    %v7703 = vpack.c.b16 %v7189, %v7187
    %v7704 = vpack.c.b16 %v7190, %v7188
    %v7705 = vpack.c.b16 %v7193, %v7191
    %v7706 = vpack.c.b16 %v7194, %v7192
    %v7707 = vpack.c.b16 %v7197, %v7195
    %v7708 = vpack.c.b16 %v7198, %v7196
    %v7709 = vpack.c.b16 %v7201, %v7199
    %v7710 = vpack.c.b16 %v7202, %v7200
    %v7711 = vpack.c.b16 %v7205, %v7203
    %v7712 = vpack.c.b16 %v7206, %v7204
    %v7713 = vpack.c.b16 %v7209, %v7207
    %v7714 = vpack.c.b16 %v7210, %v7208
    %v7715 = vpack.c.b16 %v7213, %v7211
    %v7716 = vpack.c.b16 %v7214, %v7212
    %v7717 = vpack.c.b16 %v7217, %v7215
    %v7718 = vpack.c.b16 %v7218, %v7216
    %v7719 = vpack.c.b16 %v7221, %v7219
    %v7720 = vpack.c.b16 %v7222, %v7220
    %v7721 = vpack.c.b16 %v7225, %v7223
    %v7722 = vpack.c.b16 %v7226, %v7224
    %v7723 = vpack.c.b16 %v7229, %v7227
    %v7724 = vpack.c.b16 %v7230, %v7228
    %v7725 = vpack.c.b16 %v7233, %v7231
    %v7726 = vpack.c.b16 %v7234, %v7232
    %v7727 = vpack.c.b16 %v7237, %v7235
    %v7728 = vpack.c.b16 %v7238, %v7236
    %v7729 = vpack.c.b16 %v7241, %v7239
    %v7730 = vpack.c.b16 %v7242, %v7240
    %v7731 = vpack.c.b16 %v7245, %v7243
    %v7732 = vpack.c.b16 %v7246, %v7244
    %v7733 = vpack.c.b16 %v7249, %v7247
    %v7734 = vpack.c.b16 %v7250, %v7248
    %v7735 = vpack.c.b16 %v7253, %v7251
    %v7736 = vpack.c.b16 %v7254, %v7252
    %v7737 = vpack.c.b16 %v7257, %v7255
    %v7738 = vpack.c.b16 %v7258, %v7256
    %v7739 = vpack.c.b16 %v7261, %v7259
    %v7740 = vpack.c.b16 %v7262, %v7260
    %v7741 = vpack.c.b16 %v7265, %v7263
    %v7742 = vpack.c.b16 %v7266, %v7264
    %v7743 = vpack.c.b16 %v7269, %v7267
    %v7744 = vpack.c.b16 %v7270, %v7268
    %v7745 = vpack.c.b16 %v7273, %v7271
    %v7746 = vpack.c.b16 %v7274, %v7272
    %v7747 = vpack.c.b16 %v7277, %v7275
    %v7748 = vpack.c.b16 %v7278, %v7276
    %v7749 = vpack.c.b16 %v7281, %v7279
    %v7750 = vpack.c.b16 %v7282, %v7280
    %v7751 = vpack.c.b16 %v7285, %v7283
    %v7752 = vpack.c.b16 %v7286, %v7284
    %v7753 = vpack.c.b16 %v7289, %v7287
    %v7754 = vpack.c.b16 %v7290, %v7288
    %v7755 = vpack.c.b16 %v7293, %v7291
    %v7756 = vpack.c.b16 %v7294, %v7292
    %v7757 = vpack.c.b16 %v7297, %v7295
    %v7758 = vpack.c.b16 %v7298, %v7296
    %v7759 = vpack.c.b16 %v7301, %v7299
    %v7760 = vpack.c.b16 %v7302, %v7300
    %v7761 = vpack.c.b16 %v7305, %v7303
    %v7762 = vpack.c.b16 %v7306, %v7304
    %v7763 = vpack.c.b16 %v7309, %v7307
    %v7764 = vpack.c.b16 %v7310, %v7308
    %v7765 = vpack.c.b16 %v7313, %v7311
    %v7766 = vpack.c.b16 %v7314, %v7312
    %v7767 = vpack.c.b16 %v7317, %v7315
    %v7768 = vpack.c.b16 %v7318, %v7316
    %v7769 = vpack.c.b16 %v7321, %v7319
    %v7770 = vpack.c.b16 %v7322, %v7320
    %v7771 = vpack.c.b16 %v7325, %v7323
    %v7772 = vpack.c.b16 %v7326, %v7324
    %v7773 = vpack.c.b16 %v7329, %v7327
    %v7774 = vpack.c.b16 %v7330, %v7328
    %v7775 = vpack.c.b16 %v7333, %v7331
    %v7776 = vpack.c.b16 %v7334, %v7332
    %v7777 = vpack.c.b16 %v7337, %v7335
    %v7778 = vpack.c.b16 %v7338, %v7336
    %v7779 = vpack.c.b16 %v7341, %v7339
    %v7780 = vpack.c.b16 %v7342, %v7340
    %v7781 = vpack.c.b16 %v7345, %v7343
    %v7782 = vpack.c.b16 %v7346, %v7344
    %v7783 = vpack.c.b16 %v7349, %v7347
    %v7784 = vpack.c.b16 %v7350, %v7348
    %v7785 = vpack.c.b16 %v7353, %v7351
    %v7786 = vpack.c.b16 %v7354, %v7352
    %v7787 = vpack.c.b16 %v7357, %v7355
    %v7788 = vpack.c.b16 %v7358, %v7356
    %v7789 = vpack.c.b16 %v7361, %v7359
    %v7790 = vpack.c.b16 %v7362, %v7360
    %v7791 = vpack.c.b16 %v7365, %v7363
    %v7792 = vpack.c.b16 %v7366, %v7364
    %v7793 = vpack.c.b16 %v7369, %v7367
    %v7794 = vpack.c.b16 %v7370, %v7368
    %v7795 = vpack.c.b16 %v7373, %v7371
    %v7796 = vpack.c.b16 %v7374, %v7372
    %v7797 = vpack.c.b16 %v7377, %v7375
    %v7798 = vpack.c.b16 %v7378, %v7376
    %v7799 = vpack.c.b16 %v7381, %v7379
    %v7800 = vpack.c.b16 %v7382, %v7380
    %v7801 = vpack.c.b16 %v7385, %v7383
    %v7802 = vpack.c.b16 %v7386, %v7384
    %v7803 = vpack.c.b16 %v7389, %v7387
    %v7804 = vpack.c.b16 %v7390, %v7388
    %v7805 = vpack.c.b16 %v7393, %v7391
    %v7806 = vpack.c.b16 %v7394, %v7392
    %v7807 = vpack.c.b16 %v7397, %v7395
    %v7808 = vpack.c.b16 %v7398, %v7396
    %v7809 = vpack.c.b16 %v7401, %v7399
    %v7810 = vpack.c.b16 %v7402, %v7400
    %v7811 = vpack.c.b16 %v7405, %v7403
    %v7812 = vpack.c.b16 %v7406, %v7404
    %v7813 = vpack.c.b16 %v7409, %v7407
    %v7814 = vpack.c.b16 %v7410, %v7408
    %v7815 = vpack.c.b16 %v7413, %v7411
    %v7816 = vpack.c.b16 %v7414, %v7412
    %v7817 = vpack.c.b16 %v7417, %v7415
    %v7818 = vpack.c.b16 %v7418, %v7416
    %v7819 = vpack.c.b16 %v7421, %v7419
    %v7820 = vpack.c.b16 %v7422, %v7420
    %v7821 = vpack.c.b16 %v7425, %v7423
    %v7822 = vpack.c.b16 %v7426, %v7424
    %v7823 = vpack.c.b16 %v7429, %v7427
    %v7824 = vpack.c.b16 %v7430, %v7428
    %v7825 = vpack.c.b16 %v7433, %v7431
    %v7826 = vpack.c.b16 %v7434, %v7432
    %v7827 = vpack.c.b16 %v7437, %v7435
    %v7828 = vpack.c.b16 %v7438, %v7436
    %v7829 = vpack.c.b16 %v7441, %v7439
    %v7830 = vpack.c.b16 %v7442, %v7440
    %v7831 = vpack.c.b16 %v7445, %v7443
    %v7832 = vpack.c.b16 %v7446, %v7444
    %v7833 = vpack.c.b16 %v7449, %v7447
    %v7834 = vpack.c.b16 %v7450, %v7448
    %v7835 = vpack.c.b16 %v7453, %v7451
    %v7836 = vpack.c.b16 %v7454, %v7452
    %v7837 = vpack.c.b16 %v7457, %v7455
    %v7838 = vpack.c.b16 %v7458, %v7456
    %v7839 = vpack.c.b16 %v7461, %v7459
    %v7840 = vpack.c.b16 %v7462, %v7460
    %v7841 = vpack.c.b16 %v7465, %v7463
    %v7842 = vpack.c.b16 %v7466, %v7464
    %v7843 = vpack.c.b16 %v7469, %v7467
    %v7844 = vpack.c.b16 %v7470, %v7468
    %v7845 = vpack.c.b16 %v7473, %v7471
    %v7846 = vpack.c.b16 %v7474, %v7472
    %v7847 = vpack.c.b16 %v7477, %v7475
    %v7848 = vpack.c.b16 %v7478, %v7476
    %v7849 = vpack.c.b16 %v7481, %v7479
    %v7850 = vpack.c.b16 %v7482, %v7480
    %v7851 = vpack.c.b16 %v7485, %v7483
    %v7852 = vpack.c.b16 %v7486, %v7484
    %v7853 = vpack.c.b16 %v7489, %v7487
    %v7854 = vpack.c.b16 %v7490, %v7488
    %v7855 = vpack.c.b16 %v7493, %v7491
    %v7856 = vpack.c.b16 %v7494, %v7492
    %v7857 = vpack.c.b16 %v7497, %v7495
    %v7858 = vpack.c.b16 %v7498, %v7496
    %v7859 = vpack.c.b16 %v7501, %v7499
    %v7860 = vpack.c.b16 %v7502, %v7500
    %v7861 = vpack.c.b16 %v7505, %v7503
    %v7862 = vpack.c.b16 %v7506, %v7504
    %v7863 = vpack.c.b16 %v7509, %v7507
    %v7864 = vpack.c.b16 %v7510, %v7508
    %v7865 = vpack.c.b16 %v7513, %v7511
    %v7866 = vpack.c.b16 %v7514, %v7512
    %v7867 = vpack.c.b16 %v7517, %v7515
    %v7868 = vpack.c.b16 %v7518, %v7516
    %v7869 = vpack.c.b16 %v7521, %v7519
    %v7870 = vpack.c.b16 %v7522, %v7520
    %v7871 = vpack.c.b16 %v7525, %v7523
    %v7872 = vpack.c.b16 %v7526, %v7524
    %v7873 = vpack.c.b16 %v7529, %v7527
    %v7874 = vpack.c.b16 %v7530, %v7528
    %v7875 = vpack.c.b16 %v7533, %v7531
    %v7876 = vpack.c.b16 %v7534, %v7532
    %v7877 = vpack.c.b16 %v7537, %v7535
    %v7878 = vpack.c.b16 %v7538, %v7536
    %v7879 = vpack.c.b16 %v7541, %v7539
    %v7880 = vpack.c.b16 %v7542, %v7540
    %v7881 = vpack.c.b16 %v7545, %v7543
    %v7882 = vpack.c.b16 %v7546, %v7544
    %v7883 = vpack.c.b16 %v7549, %v7547
    %v7884 = vpack.c.b16 %v7550, %v7548
    %v7885 = vpack.c.b16 %v7553, %v7551
    %v7886 = vpack.c.b16 %v7554, %v7552
    %v7887 = vpack.c.b16 %v7557, %v7555
    %v7888 = vpack.c.b16 %v7558, %v7556
    %v7889 = vpack.c.b16 %v7561, %v7559
    %v7890 = vpack.c.b16 %v7562, %v7560
    %v7891 = vpack.c.b16 %v7565, %v7563
    %v7892 = vpack.c.b16 %v7566, %v7564
    %v7893 = vpack.c.b16 %v7569, %v7567
    %v7894 = vpack.c.b16 %v7570, %v7568
    %v7895 = vpack.c.b16 %v7573, %v7571
    %v7896 = vpack.c.b16 %v7574, %v7572
    %v7897 = vpack.c.b16 %v7577, %v7575
    %v7898 = vpack.c.b16 %v7578, %v7576
    %v7899 = vpack.c.b16 %v7581, %v7579
    %v7900 = vpack.c.b16 %v7582, %v7580
    %v7901 = vpack.c.b16 %v7585, %v7583
    %v7902 = vpack.c.b16 %v7586, %v7584
    %v7903 = vpack.c.b16 %v7589, %v7587
    %v7904 = vpack.c.b16 %v7590, %v7588
    %v7905 = vpack.c.b16 %v7593, %v7591
    %v7906 = vpack.c.b16 %v7594, %v7592
    %v7907 = vpack.c.b16 %v7597, %v7595
    %v7908 = vpack.c.b16 %v7598, %v7596
    %v7909 = vpack.c.b16 %v7601, %v7599
    %v7910 = vpack.c.b16 %v7602, %v7600
    %v7911 = vpack.c.b16 %v7605, %v7603
    %v7912 = vpack.c.b16 %v7606, %v7604
    %v7913 = vpack.c.b16 %v7609, %v7607
    %v7914 = vpack.c.b16 %v7610, %v7608
    %v7915 = vpack.c.b16 %v7613, %v7611
    %v7916 = vpack.c.b16 %v7614, %v7612
    %v7917 = vpack.c.b16 %v7617, %v7615
    %v7918 = vpack.c.b16 %v7618, %v7616
    %v7919 = vpack.c.b16 %v7621, %v7619
    %v7920 = vpack.c.b16 %v7622, %v7620
    %v7921 = vpack.c.b16 %v7625, %v7623
    %v7922 = vpack.c.b16 %v7626, %v7624
    %v7923 = vpack.c.b16 %v7629, %v7627
    %v7924 = vpack.c.b16 %v7630, %v7628
    %v7925 = vpack.c.b16 %v7633, %v7631
    %v7926 = vpack.c.b16 %v7634, %v7632
    %v7927 = vpack.c.b16 %v7637, %v7635
    %v7928 = vpack.c.b16 %v7638, %v7636
    %v7929 = vpack.c.b16 %v7641, %v7639
    %v7930 = vpack.c.b16 %v7642, %v7640
    %8219 = vmatprep.subr.bf16.mxu0 %v7658
    %8220 = vmatpush1.bf16.msra.mxu0 %v7657
    %8221 = vmatprep.subr.bf16.mxu0 %v7656
    %8222 = vmatpush1.bf16.msra.mxu0 %v7655
    %8223 = vmatprep.subr.bf16.mxu0 %v7654
    %8224 = vmatpush1.bf16.msra.mxu0 %v7653
    %8225 = vmatprep.subr.bf16.mxu0 %v7652
    %8226 = vmatpush1.bf16.msra.mxu0 %v7651
    %8227 = vmatprep.subr.bf16.mxu0 %v7650
    %8228 = vmatpush1.bf16.msra.mxu0 %v7649
    %8229 = vmatprep.subr.bf16.mxu0 %v7648
    %8230 = vmatpush1.bf16.msra.mxu0 %v7647
    %8231 = vmatprep.subr.bf16.mxu0 %v7646
    %8232 = vmatpush1.bf16.msra.mxu0 %v7645
    %8233 = vmatprep.subr.bf16.mxu0 %v7644
    %8234 = vmatpush1.bf16.msra.mxu0 %v7643
    %8235 = vmatprep.subr.bf16.mxu0 %v7674
    %8236 = vmatpush2.bf16.msra.mxu0 %v7673
    %8237 = vmatprep.subr.bf16.mxu0 %v7672
    %8238 = vmatpush2.bf16.msra.mxu0 %v7671
    %8239 = vmatprep.subr.bf16.mxu0 %v7670
    %8240 = vmatpush2.bf16.msra.mxu0 %v7669
    %8241 = vmatprep.subr.bf16.mxu0 %v7668
    %8242 = vmatpush2.bf16.msra.mxu0 %v7667
    %8243 = vmatprep.subr.bf16.mxu0 %v7666
    %8244 = vmatpush2.bf16.msra.mxu0 %v7665
    %8245 = vmatprep.subr.bf16.mxu0 %v7664
    %8246 = vmatpush2.bf16.msra.mxu0 %v7663
    %8247 = vmatprep.subr.bf16.mxu0 %v7662
    %8248 = vmatpush2.bf16.msra.mxu0 %v7661
    %8249 = vmatprep.subr.bf16.mxu0 %v7660
    %8250 = vmatpush2.bf16.msra.mxu0 %v7659
    %8251 = vmatprep.mubr.bf16.mxu0 %v6468
    %8252 = vmatmul.mubr.bf16.gmra.mxu0 %v6467
    %v8253 = vpop.f32.mrf.mxu0
    %v8254 = vadd.f32 %v6777, %v8253
    %v8255 = vpop.f32.mrf.mxu0
    %v8256 = vadd.f32 %v6777, %v8255
    %v8257 = vpop.f32.mrf.mxu0
    %v8258 = vpop.f32.mrf.mxu0
    %8259 = vdwg.mxu0
    %8260 = vmatprep.subr.bf16.mxu0 %v7690
    %8261 = vmatpush1.bf16.msra.mxu0 %v7689
    %8262 = vmatprep.subr.bf16.mxu0 %v7688
    %8263 = vmatpush1.bf16.msra.mxu0 %v7687
    %8264 = vmatprep.subr.bf16.mxu0 %v7686
    %8265 = vmatpush1.bf16.msra.mxu0 %v7685
    %8266 = vmatprep.subr.bf16.mxu0 %v7684
    %8267 = vmatpush1.bf16.msra.mxu0 %v7683
    %8268 = vmatprep.subr.bf16.mxu0 %v7682
    %8269 = vmatpush1.bf16.msra.mxu0 %v7681
    %8270 = vmatprep.subr.bf16.mxu0 %v7680
    %8271 = vmatpush1.bf16.msra.mxu0 %v7679
    %8272 = vmatprep.subr.bf16.mxu0 %v7678
    %8273 = vmatpush1.bf16.msra.mxu0 %v7677
    %8274 = vmatprep.subr.bf16.mxu0 %v7676
    %8275 = vmatpush1.bf16.msra.mxu0 %v7675
    %8276 = vmatprep.subr.bf16.mxu0 %v7706
    %8277 = vmatpush2.bf16.msra.mxu0 %v7705
    %8278 = vmatprep.subr.bf16.mxu0 %v7704
    %8279 = vmatpush2.bf16.msra.mxu0 %v7703
    %8280 = vmatprep.subr.bf16.mxu0 %v7702
    %8281 = vmatpush2.bf16.msra.mxu0 %v7701
    %8282 = vmatprep.subr.bf16.mxu0 %v7700
    %8283 = vmatpush2.bf16.msra.mxu0 %v7699
    %8284 = vmatprep.subr.bf16.mxu0 %v7698
    %8285 = vmatpush2.bf16.msra.mxu0 %v7697
    %8286 = vmatprep.subr.bf16.mxu0 %v7696
    %8287 = vmatpush2.bf16.msra.mxu0 %v7695
    %8288 = vmatprep.subr.bf16.mxu0 %v7694
    %8289 = vmatpush2.bf16.msra.mxu0 %v7693
    %8290 = vmatprep.subr.bf16.mxu0 %v7692
    %8291 = vmatpush2.bf16.msra.mxu0 %v7691
    %8292 = vmatprep.mubr.bf16.mxu0 %v6470
    %8293 = vmatmul.mubr.bf16.gmra.mxu0 %v6469
    %v8294 = vpop.f32.mrf.mxu0
    %v8295 = vadd.f32 %v8254, %v8294
    %v8296 = vpop.f32.mrf.mxu0
    %v8297 = vadd.f32 %v8256, %v8296
    %v8298 = vpop.f32.mrf.mxu0
    %v8299 = vpop.f32.mrf.mxu0
    %8300 = vdwg.mxu0
    %8301 = vmatprep.subr.bf16.mxu0 %v7722
    %8302 = vmatpush1.bf16.msra.mxu0 %v7721
    %8303 = vmatprep.subr.bf16.mxu0 %v7720
    %8304 = vmatpush1.bf16.msra.mxu0 %v7719
    %8305 = vmatprep.subr.bf16.mxu0 %v7718
    %8306 = vmatpush1.bf16.msra.mxu0 %v7717
    %8307 = vmatprep.subr.bf16.mxu0 %v7716
    %8308 = vmatpush1.bf16.msra.mxu0 %v7715
    %8309 = vmatprep.subr.bf16.mxu0 %v7714
    %8310 = vmatpush1.bf16.msra.mxu0 %v7713
    %8311 = vmatprep.subr.bf16.mxu0 %v7712
    %8312 = vmatpush1.bf16.msra.mxu0 %v7711
    %8313 = vmatprep.subr.bf16.mxu0 %v7710
    %8314 = vmatpush1.bf16.msra.mxu0 %v7709
    %8315 = vmatprep.subr.bf16.mxu0 %v7708
    %8316 = vmatpush1.bf16.msra.mxu0 %v7707
    %8317 = vmatprep.subr.bf16.mxu0 %v7738
    %8318 = vmatpush2.bf16.msra.mxu0 %v7737
    %8319 = vmatprep.subr.bf16.mxu0 %v7736
    %8320 = vmatpush2.bf16.msra.mxu0 %v7735
    %8321 = vmatprep.subr.bf16.mxu0 %v7734
    %8322 = vmatpush2.bf16.msra.mxu0 %v7733
    %8323 = vmatprep.subr.bf16.mxu0 %v7732
    %8324 = vmatpush2.bf16.msra.mxu0 %v7731
    %8325 = vmatprep.subr.bf16.mxu0 %v7730
    %8326 = vmatpush2.bf16.msra.mxu0 %v7729
    %8327 = vmatprep.subr.bf16.mxu0 %v7728
    %8328 = vmatpush2.bf16.msra.mxu0 %v7727
    %8329 = vmatprep.subr.bf16.mxu0 %v7726
    %8330 = vmatpush2.bf16.msra.mxu0 %v7725
    %8331 = vmatprep.subr.bf16.mxu0 %v7724
    %8332 = vmatpush2.bf16.msra.mxu0 %v7723
    %8333 = vmatprep.mubr.bf16.mxu0 %v6472
    %8334 = vmatmul.mubr.bf16.gmra.mxu0 %v6471
    %v8335 = vpop.f32.mrf.mxu0
    %v8336 = vadd.f32 %v8295, %v8335
    %v8337 = vpop.f32.mrf.mxu0
    %v8338 = vadd.f32 %v8297, %v8337
    %v8339 = vpop.f32.mrf.mxu0
    %v8340 = vpop.f32.mrf.mxu0
    %8341 = vdwg.mxu0
    %8342 = vmatprep.subr.bf16.mxu0 %v7754
    %8343 = vmatpush1.bf16.msra.mxu0 %v7753
    %8344 = vmatprep.subr.bf16.mxu0 %v7752
    %8345 = vmatpush1.bf16.msra.mxu0 %v7751
    %8346 = vmatprep.subr.bf16.mxu0 %v7750
    %8347 = vmatpush1.bf16.msra.mxu0 %v7749
    %8348 = vmatprep.subr.bf16.mxu0 %v7748
    %8349 = vmatpush1.bf16.msra.mxu0 %v7747
    %8350 = vmatprep.subr.bf16.mxu0 %v7746
    %8351 = vmatpush1.bf16.msra.mxu0 %v7745
    %8352 = vmatprep.subr.bf16.mxu0 %v7744
    %8353 = vmatpush1.bf16.msra.mxu0 %v7743
    %8354 = vmatprep.subr.bf16.mxu0 %v7742
    %8355 = vmatpush1.bf16.msra.mxu0 %v7741
    %8356 = vmatprep.subr.bf16.mxu0 %v7740
    %8357 = vmatpush1.bf16.msra.mxu0 %v7739
    %8358 = vmatprep.subr.bf16.mxu0 %v7770
    %8359 = vmatpush2.bf16.msra.mxu0 %v7769
    %8360 = vmatprep.subr.bf16.mxu0 %v7768
    %8361 = vmatpush2.bf16.msra.mxu0 %v7767
    %8362 = vmatprep.subr.bf16.mxu0 %v7766
    %8363 = vmatpush2.bf16.msra.mxu0 %v7765
    %8364 = vmatprep.subr.bf16.mxu0 %v7764
    %8365 = vmatpush2.bf16.msra.mxu0 %v7763
    %8366 = vmatprep.subr.bf16.mxu0 %v7762
    %8367 = vmatpush2.bf16.msra.mxu0 %v7761
    %8368 = vmatprep.subr.bf16.mxu0 %v7760
    %8369 = vmatpush2.bf16.msra.mxu0 %v7759
    %8370 = vmatprep.subr.bf16.mxu0 %v7758
    %8371 = vmatpush2.bf16.msra.mxu0 %v7757
    %8372 = vmatprep.subr.bf16.mxu0 %v7756
    %8373 = vmatpush2.bf16.msra.mxu0 %v7755
    %8374 = vmatprep.mubr.bf16.mxu0 %v6474
    %8375 = vmatmul.mubr.bf16.gmra.mxu0 %v6473
    %v8376 = vpop.f32.mrf.mxu0
    %v8377 = vadd.f32 %v8336, %v8376
    %v8378 = vpop.f32.mrf.mxu0
    %v8379 = vadd.f32 %v8338, %v8378
    %v8380 = vpop.f32.mrf.mxu0
    %v8381 = vpop.f32.mrf.mxu0
    %8382 = vdwg.mxu0
    %8383 = vmatprep.subr.bf16.mxu0 %v7786
    %8384 = vmatpush1.bf16.msra.mxu0 %v7785
    %8385 = vmatprep.subr.bf16.mxu0 %v7784
    %8386 = vmatpush1.bf16.msra.mxu0 %v7783
    %8387 = vmatprep.subr.bf16.mxu0 %v7782
    %8388 = vmatpush1.bf16.msra.mxu0 %v7781
    %8389 = vmatprep.subr.bf16.mxu0 %v7780
    %8390 = vmatpush1.bf16.msra.mxu0 %v7779
    %8391 = vmatprep.subr.bf16.mxu0 %v7778
    %8392 = vmatpush1.bf16.msra.mxu0 %v7777
    %8393 = vmatprep.subr.bf16.mxu0 %v7776
    %8394 = vmatpush1.bf16.msra.mxu0 %v7775
    %8395 = vmatprep.subr.bf16.mxu0 %v7774
    %8396 = vmatpush1.bf16.msra.mxu0 %v7773
    %8397 = vmatprep.subr.bf16.mxu0 %v7772
    %8398 = vmatpush1.bf16.msra.mxu0 %v7771
    %8399 = vmatprep.subr.bf16.mxu0 %v7802
    %8400 = vmatpush2.bf16.msra.mxu0 %v7801
    %8401 = vmatprep.subr.bf16.mxu0 %v7800
    %8402 = vmatpush2.bf16.msra.mxu0 %v7799
    %8403 = vmatprep.subr.bf16.mxu0 %v7798
    %8404 = vmatpush2.bf16.msra.mxu0 %v7797
    %8405 = vmatprep.subr.bf16.mxu0 %v7796
    %8406 = vmatpush2.bf16.msra.mxu0 %v7795
    %8407 = vmatprep.subr.bf16.mxu0 %v7794
    %8408 = vmatpush2.bf16.msra.mxu0 %v7793
    %8409 = vmatprep.subr.bf16.mxu0 %v7792
    %8410 = vmatpush2.bf16.msra.mxu0 %v7791
    %8411 = vmatprep.subr.bf16.mxu0 %v7790
    %8412 = vmatpush2.bf16.msra.mxu0 %v7789
    %8413 = vmatprep.subr.bf16.mxu0 %v7788
    %8414 = vmatpush2.bf16.msra.mxu0 %v7787
    %8415 = vmatprep.mubr.bf16.mxu0 %v6476
    %8416 = vmatmul.mubr.bf16.gmra.mxu0 %v6475
    %v8417 = vpop.f32.mrf.mxu0
    %v8418 = vadd.f32 %v8377, %v8417
    %v8419 = vpop.f32.mrf.mxu0
    %v8420 = vadd.f32 %v8379, %v8419
    %v8421 = vpop.f32.mrf.mxu0
    %v8422 = vpop.f32.mrf.mxu0
    %8423 = vdwg.mxu0
    %8424 = vmatprep.subr.bf16.mxu0 %v7818
    %8425 = vmatpush1.bf16.msra.mxu0 %v7817
    %8426 = vmatprep.subr.bf16.mxu0 %v7816
    %8427 = vmatpush1.bf16.msra.mxu0 %v7815
    %8428 = vmatprep.subr.bf16.mxu0 %v7814
    %8429 = vmatpush1.bf16.msra.mxu0 %v7813
    %8430 = vmatprep.subr.bf16.mxu0 %v7812
    %8431 = vmatpush1.bf16.msra.mxu0 %v7811
    %8432 = vmatprep.subr.bf16.mxu0 %v7810
    %8433 = vmatpush1.bf16.msra.mxu0 %v7809
    %8434 = vmatprep.subr.bf16.mxu0 %v7808
    %8435 = vmatpush1.bf16.msra.mxu0 %v7807
    %8436 = vmatprep.subr.bf16.mxu0 %v7806
    %8437 = vmatpush1.bf16.msra.mxu0 %v7805
    %8438 = vmatprep.subr.bf16.mxu0 %v7804
    %8439 = vmatpush1.bf16.msra.mxu0 %v7803
    %8440 = vmatprep.subr.bf16.mxu0 %v7834
    %8441 = vmatpush2.bf16.msra.mxu0 %v7833
    %8442 = vmatprep.subr.bf16.mxu0 %v7832
    %8443 = vmatpush2.bf16.msra.mxu0 %v7831
    %8444 = vmatprep.subr.bf16.mxu0 %v7830
    %8445 = vmatpush2.bf16.msra.mxu0 %v7829
    %8446 = vmatprep.subr.bf16.mxu0 %v7828
    %8447 = vmatpush2.bf16.msra.mxu0 %v7827
    %8448 = vmatprep.subr.bf16.mxu0 %v7826
    %8449 = vmatpush2.bf16.msra.mxu0 %v7825
    %8450 = vmatprep.subr.bf16.mxu0 %v7824
    %8451 = vmatpush2.bf16.msra.mxu0 %v7823
    %8452 = vmatprep.subr.bf16.mxu0 %v7822
    %8453 = vmatpush2.bf16.msra.mxu0 %v7821
    %8454 = vmatprep.subr.bf16.mxu0 %v7820
    %8455 = vmatpush2.bf16.msra.mxu0 %v7819
    %8456 = vmatprep.mubr.bf16.mxu0 %v6478
    %8457 = vmatmul.mubr.bf16.gmra.mxu0 %v6477
    %v8458 = vpop.f32.mrf.mxu0
    %v8459 = vadd.f32 %v8418, %v8458
    %v8460 = vpop.f32.mrf.mxu0
    %v8461 = vadd.f32 %v8420, %v8460
    %v8462 = vpop.f32.mrf.mxu0
    %v8463 = vpop.f32.mrf.mxu0
    %8464 = vdwg.mxu0
    %8465 = vmatprep.subr.bf16.mxu0 %v7850
    %8466 = vmatpush1.bf16.msra.mxu0 %v7849
    %8467 = vmatprep.subr.bf16.mxu0 %v7848
    %8468 = vmatpush1.bf16.msra.mxu0 %v7847
    %8469 = vmatprep.subr.bf16.mxu0 %v7846
    %8470 = vmatpush1.bf16.msra.mxu0 %v7845
    %8471 = vmatprep.subr.bf16.mxu0 %v7844
    %8472 = vmatpush1.bf16.msra.mxu0 %v7843
    %8473 = vmatprep.subr.bf16.mxu0 %v7842
    %8474 = vmatpush1.bf16.msra.mxu0 %v7841
    %8475 = vmatprep.subr.bf16.mxu0 %v7840
    %8476 = vmatpush1.bf16.msra.mxu0 %v7839
    %8477 = vmatprep.subr.bf16.mxu0 %v7838
    %8478 = vmatpush1.bf16.msra.mxu0 %v7837
    %8479 = vmatprep.subr.bf16.mxu0 %v7836
    %8480 = vmatpush1.bf16.msra.mxu0 %v7835
    %8481 = vmatprep.subr.bf16.mxu0 %v7866
    %8482 = vmatpush2.bf16.msra.mxu0 %v7865
    %8483 = vmatprep.subr.bf16.mxu0 %v7864
    %8484 = vmatpush2.bf16.msra.mxu0 %v7863
    %8485 = vmatprep.subr.bf16.mxu0 %v7862
    %8486 = vmatpush2.bf16.msra.mxu0 %v7861
    %8487 = vmatprep.subr.bf16.mxu0 %v7860
    %8488 = vmatpush2.bf16.msra.mxu0 %v7859
    %8489 = vmatprep.subr.bf16.mxu0 %v7858
    %8490 = vmatpush2.bf16.msra.mxu0 %v7857
    %8491 = vmatprep.subr.bf16.mxu0 %v7856
    %8492 = vmatpush2.bf16.msra.mxu0 %v7855
    %8493 = vmatprep.subr.bf16.mxu0 %v7854
    %8494 = vmatpush2.bf16.msra.mxu0 %v7853
    %8495 = vmatprep.subr.bf16.mxu0 %v7852
    %8496 = vmatpush2.bf16.msra.mxu0 %v7851
    %8497 = vmatprep.mubr.bf16.mxu0 %v6480
    %8498 = vmatmul.mubr.bf16.gmra.mxu0 %v6479
    %v8499 = vpop.f32.mrf.mxu0
    %v8500 = vadd.f32 %v8459, %v8499
    %v8501 = vpop.f32.mrf.mxu0
    %v8502 = vadd.f32 %v8461, %v8501
    %v8503 = vpop.f32.mrf.mxu0
    %v8504 = vpop.f32.mrf.mxu0
    %8505 = vdwg.mxu0
    %8506 = vmatprep.subr.bf16.mxu0 %v7882
    %8507 = vmatpush1.bf16.msra.mxu0 %v7881
    %8508 = vmatprep.subr.bf16.mxu0 %v7880
    %8509 = vmatpush1.bf16.msra.mxu0 %v7879
    %8510 = vmatprep.subr.bf16.mxu0 %v7878
    %8511 = vmatpush1.bf16.msra.mxu0 %v7877
    %8512 = vmatprep.subr.bf16.mxu0 %v7876
    %8513 = vmatpush1.bf16.msra.mxu0 %v7875
    %8514 = vmatprep.subr.bf16.mxu0 %v7874
    %8515 = vmatpush1.bf16.msra.mxu0 %v7873
    %8516 = vmatprep.subr.bf16.mxu0 %v7872
    %8517 = vmatpush1.bf16.msra.mxu0 %v7871
    %8518 = vmatprep.subr.bf16.mxu0 %v7870
    %8519 = vmatpush1.bf16.msra.mxu0 %v7869
    %8520 = vmatprep.subr.bf16.mxu0 %v7868
    %8521 = vmatpush1.bf16.msra.mxu0 %v7867
    %8522 = vmatprep.subr.bf16.mxu0 %v7898
    %8523 = vmatpush2.bf16.msra.mxu0 %v7897
    %8524 = vmatprep.subr.bf16.mxu0 %v7896
    %8525 = vmatpush2.bf16.msra.mxu0 %v7895
    %8526 = vmatprep.subr.bf16.mxu0 %v7894
    %8527 = vmatpush2.bf16.msra.mxu0 %v7893
    %8528 = vmatprep.subr.bf16.mxu0 %v7892
    %8529 = vmatpush2.bf16.msra.mxu0 %v7891
    %8530 = vmatprep.subr.bf16.mxu0 %v7890
    %8531 = vmatpush2.bf16.msra.mxu0 %v7889
    %8532 = vmatprep.subr.bf16.mxu0 %v7888
    %8533 = vmatpush2.bf16.msra.mxu0 %v7887
    %8534 = vmatprep.subr.bf16.mxu0 %v7886
    %8535 = vmatpush2.bf16.msra.mxu0 %v7885
    %8536 = vmatprep.subr.bf16.mxu0 %v7884
    %8537 = vmatpush2.bf16.msra.mxu0 %v7883
    %8538 = vmatprep.mubr.bf16.mxu0 %v6482
    %8539 = vmatmul.mubr.bf16.gmra.mxu0 %v6481
    %v8540 = vpop.f32.mrf.mxu0
    %v8541 = vadd.f32 %v8500, %v8540
    %v8542 = vpop.f32.mrf.mxu0
    %v8543 = vadd.f32 %v8502, %v8542
    %v8544 = vpop.f32.mrf.mxu0
    %v8545 = vpop.f32.mrf.mxu0
    %8546 = vdwg.mxu0
    %8547 = vmatprep.subr.bf16.mxu0 %v7914
    %8548 = vmatpush1.bf16.msra.mxu0 %v7913
    %8549 = vmatprep.subr.bf16.mxu0 %v7912
    %8550 = vmatpush1.bf16.msra.mxu0 %v7911
    %8551 = vmatprep.subr.bf16.mxu0 %v7910
    %8552 = vmatpush1.bf16.msra.mxu0 %v7909
    %8553 = vmatprep.subr.bf16.mxu0 %v7908
    %8554 = vmatpush1.bf16.msra.mxu0 %v7907
    %8555 = vmatprep.subr.bf16.mxu0 %v7906
    %8556 = vmatpush1.bf16.msra.mxu0 %v7905
    %8557 = vmatprep.subr.bf16.mxu0 %v7904
    %8558 = vmatpush1.bf16.msra.mxu0 %v7903
    %8559 = vmatprep.subr.bf16.mxu0 %v7902
    %8560 = vmatpush1.bf16.msra.mxu0 %v7901
    %8561 = vmatprep.subr.bf16.mxu0 %v7900
    %8562 = vmatpush1.bf16.msra.mxu0 %v7899
    %8563 = vmatprep.subr.bf16.mxu0 %v7930
    %8564 = vmatpush2.bf16.msra.mxu0 %v7929
    %8565 = vmatprep.subr.bf16.mxu0 %v7928
    %8566 = vmatpush2.bf16.msra.mxu0 %v7927
    %8567 = vmatprep.subr.bf16.mxu0 %v7926
    %8568 = vmatpush2.bf16.msra.mxu0 %v7925
    %8569 = vmatprep.subr.bf16.mxu0 %v7924
    %8570 = vmatpush2.bf16.msra.mxu0 %v7923
    %8571 = vmatprep.subr.bf16.mxu0 %v7922
    %8572 = vmatpush2.bf16.msra.mxu0 %v7921
    %8573 = vmatprep.subr.bf16.mxu0 %v7920
    %8574 = vmatpush2.bf16.msra.mxu0 %v7919
    %8575 = vmatprep.subr.bf16.mxu0 %v7918
    %8576 = vmatpush2.bf16.msra.mxu0 %v7917
    %8577 = vmatprep.subr.bf16.mxu0 %v7916
    %8578 = vmatpush2.bf16.msra.mxu0 %v7915
    %8579 = vmatprep.mubr.bf16.mxu0 %v6484
    %8580 = vmatmul.mubr.bf16.gmra.mxu0 %v6483
    %v8581 = vpop.f32.mrf.mxu0
    %v8582 = vadd.f32 %v8541, %v8581
    %v8583 = vpop.f32.mrf.mxu0
    %v8584 = vadd.f32 %v8543, %v8583
    %v8585 = vpop.f32.mrf.mxu0
    %v8586 = vpop.f32.mrf.mxu0
    %8587 = vdwg.mxu0
    %v8588 = vld [vmem:[%s20] sm:$0xff]
    %v8589 = vld [vmem:[%s21] sm:$0xff]
    %v8590 = vadd.f32 %v8582, %v8584
    %8591 = vadd.xlane.f32.xlu0 %v8590
    %v8592 = vpop.xlane.xlu0 %8591
    %v8593 = vmul.f32 %v8582, %v8582
    %v8594 = vmul.f32 %v8584, %v8584
    %v8595 = vadd.f32 %v8593, %v8594
    %8596 = vadd.xlane.f32.xlu0 %v8595
    %v8597 = vpop.xlane.xlu0 %8596
    %v8598 = vmul.f32 %v8592, %v4769
    %v8599 = vsel %vm465, %v8598, 0.0
    %8600 = vadd.xlane.f32.xlu0 %v8599
    %v8601 = vpop.xlane.xlu0 %8600
    %v8602 = vrot.slane %v8601, 4
    %v8603 = vadd.f32 %v8601, %v8602
    %v8604 = vrot.slane %v8603, 2
    %v8605 = vadd.f32 %v8603, %v8604
    %v8606 = vrot.slane %v8605, 1
    %v8607 = vadd.f32 %v8605, %v8606
    %s8608 = vtos %v8607
    %s8609 = smul.f32 %s8608, 0.0009765625
    %v8610 = vmul.f32 %v8597, %v4769
    %v8611 = vsel %vm465, %v8610, 0.0
    %8612 = vadd.xlane.f32.xlu0 %v8611
    %v8613 = vpop.xlane.xlu0 %8612
    %v8614 = vrot.slane %v8613, 4
    %v8615 = vadd.f32 %v8613, %v8614
    %v8616 = vrot.slane %v8615, 2
    %v8617 = vadd.f32 %v8615, %v8616
    %v8618 = vrot.slane %v8617, 1
    %v8619 = vadd.f32 %v8617, %v8618
    %s8620 = vtos %v8619
    %s8621 = smul.f32 %s8620, 0.0009765625
    %s8622 = smul.f32 %s8609, %s8609
    %s8623 = ssub.f32 %s8621, %s8622
    %v8624 = vstv %s8609
    %v8625 = vmul.f32 %v4769, %v8624
    %v8626 = vadd.f32 %v8625, 0.0
    %v8627 = vstv %s8623
    %v8628 = vmul.f32 %v4769, %v8627
    %v8629 = vadd.f32 %v8628, 0.0
    %v8630 = vmul.f32 %v8592, %v4802
    %v8631 = vsel %vm465, %v8630, 0.0
    %8632 = vadd.xlane.f32.xlu0 %v8631
    %v8633 = vpop.xlane.xlu0 %8632
    %v8634 = vrot.slane %v8633, 4
    %v8635 = vadd.f32 %v8633, %v8634
    %v8636 = vrot.slane %v8635, 2
    %v8637 = vadd.f32 %v8635, %v8636
    %v8638 = vrot.slane %v8637, 1
    %v8639 = vadd.f32 %v8637, %v8638
    %s8640 = vtos %v8639
    %s8641 = smul.f32 %s8640, 0.0009765625
    %v8642 = vmul.f32 %v8597, %v4802
    %v8643 = vsel %vm465, %v8642, 0.0
    %8644 = vadd.xlane.f32.xlu0 %v8643
    %v8645 = vpop.xlane.xlu0 %8644
    %v8646 = vrot.slane %v8645, 4
    %v8647 = vadd.f32 %v8645, %v8646
    %v8648 = vrot.slane %v8647, 2
    %v8649 = vadd.f32 %v8647, %v8648
    %v8650 = vrot.slane %v8649, 1
    %v8651 = vadd.f32 %v8649, %v8650
    %s8652 = vtos %v8651
    %s8653 = smul.f32 %s8652, 0.0009765625
    %s8654 = smul.f32 %s8641, %s8641
    %s8655 = ssub.f32 %s8653, %s8654
    %v8656 = vstv %s8641
    %v8657 = vmul.f32 %v4802, %v8656
    %v8658 = vadd.f32 %v8626, %v8657
    %v8659 = vstv %s8655
    %v8660 = vmul.f32 %v4802, %v8659
    %v8661 = vadd.f32 %v8629, %v8660
    %v8662 = vadd.f32 %v8661, 1e-05
    %v8663 = vrsqrt.pop %v8662
    %v8664 = vmul.f32 %v8663, %v8588
    %8666 = vset.pattern.permute.xlu0 0
    %8667 = vperm.xlu0 %8666, %v8658
    %v8668 = vpop.permute.xlu0 %8667
    %v8670 = vsub.f32 %v8582, %v8668
    %v8671 = vsub.f32 %v8584, %v8668
    %8673 = vset.pattern.permute.xlu0 0
    %8674 = vperm.xlu0 %8673, %v8664
    %v8675 = vpop.permute.xlu0 %8674
    %v8677 = vmul.f32 %v8670, %v8675
    %v8678 = vmul.f32 %v8671, %v8675
    %8680 = vset.pattern.permute.xlu0 0
    %8681 = vperm.xlu0 %8680, %v8589
    %v8682 = vpop.permute.xlu0 %8681
    %v8684 = vadd.f32 %v8677, %v8682
    %v8685 = vadd.f32 %v8678, %v8682
    %vm8686 = vcmp.ge.f32.partialorder %v8684, 0.0
    %vm8687 = vcmp.ge.f32.partialorder %v8685, 0.0
    %v8688 = vmul.f32 %v8684, 0.2
    %v8689 = vmul.f32 %v8685, 0.2
    %v8690 = vsel %vm8686, %v8684, %v8688
    %v8691 = vsel %vm8687, %v8685, %v8689
    %v8692 = vld [vmem:[#allocation10] sm:$0x7]
    %v8693 = vld [vmem:[%s24] sm:$0x7]
    %8695 = vset.pattern.permute.xlu0 0
    %8696 = vperm.xlu0 %8695, %v8693
    %v8697 = vpop.permute.xlu0 %8696
    %v8700 = vsel %vm197, %v8692, 0
    %8702 = vmatprep.subr.mxu0 0.0
    %8703 = vmatpush1.msra.mxu0 0.0
    %8704 = vmatprep.subr.mxu0 0.0
    %8705 = vmatpush1.msra.mxu0 0.0
    %8706 = vmatprep.subr.mxu0 0.0
    %8707 = vmatpush1.msra.mxu0 0.0
    %8708 = vmatprep.subr.mxu0 0.0
    %8709 = vmatpush1.msra.mxu0 0.0
    %8710 = vmatprep.subr.mxu0 0.0
    %8711 = vmatpush1.msra.mxu0 0.0
    %8712 = vmatprep.subr.mxu0 0.0
    %8713 = vmatpush1.msra.mxu0 0.0
    %8714 = vmatprep.subr.mxu0 0.0
    %8715 = vmatpush1.msra.mxu0 0.0
    %8716 = vmatprep.subr.mxu0 0.0
    %8717 = vmatpush1.msra.mxu0 0.0
    %8718 = vmatprep.subr.mxu0 0.0
    %8719 = vmatpush1.msra.mxu0 0.0
    %8720 = vmatprep.subr.mxu0 0.0
    %8721 = vmatpush1.msra.mxu0 0.0
    %8722 = vmatprep.subr.mxu0 0.0
    %8723 = vmatpush1.msra.mxu0 0.0
    %8724 = vmatprep.subr.mxu0 0.0
    %8725 = vmatpush1.msra.mxu0 0.0
    %8726 = vmatprep.subr.mxu0 0.0
    %8727 = vmatpush1.msra.mxu0 0.0
    %8728 = vmatprep.subr.mxu0 0.0
    %8729 = vmatpush1.msra.mxu0 0.0
    %8730 = vmatprep.subr.mxu0 0.0
    %8731 = vmatpush1.msra.mxu0 0.0
    %8732 = vmatprep.subr.mxu0 %v8691
    %8733 = vmatpush1.msra.mxu0 %v8690
    %8734 = vmatprep.subr.mxu0 0.0
    %8735 = vmatpush2.msra.mxu0 0.0
    %8736 = vmatprep.subr.mxu0 0.0
    %8737 = vmatpush2.msra.mxu0 0.0
    %8738 = vmatprep.subr.mxu0 0.0
    %8739 = vmatpush2.msra.mxu0 0.0
    %8740 = vmatprep.subr.mxu0 0.0
    %8741 = vmatpush2.msra.mxu0 0.0
    %8742 = vmatprep.subr.mxu0 0.0
    %8743 = vmatpush2.msra.mxu0 0.0
    %8744 = vmatprep.subr.mxu0 0.0
    %8745 = vmatpush2.msra.mxu0 0.0
    %8746 = vmatprep.subr.mxu0 0.0
    %8747 = vmatpush2.msra.mxu0 0.0
    %8748 = vmatprep.subr.mxu0 0.0
    %8749 = vmatpush2.msra.mxu0 0.0
    %8750 = vmatprep.subr.mxu0 0.0
    %8751 = vmatpush2.msra.mxu0 0.0
    %8752 = vmatprep.subr.mxu0 0.0
    %8753 = vmatpush2.msra.mxu0 0.0
    %8754 = vmatprep.subr.mxu0 0.0
    %8755 = vmatpush2.msra.mxu0 0.0
    %8756 = vmatprep.subr.mxu0 0.0
    %8757 = vmatpush2.msra.mxu0 0.0
    %8758 = vmatprep.subr.mxu0 0.0
    %8759 = vmatpush2.msra.mxu0 0.0
    %8760 = vmatprep.subr.mxu0 0.0
    %8761 = vmatpush2.msra.mxu0 0.0
    %8762 = vmatprep.subr.mxu0 0.0
    %8763 = vmatpush2.msra.mxu0 0.0
    %8764 = vmatprep.subr.mxu0 0.0
    %8765 = vmatpush2.msra.mxu0 0.0
    %8766 = vmatprep.mubr.f32.mxu0 0.0
    %8767 = vmatmul.mubr.f32.gmra.mxu0 %v8700
    %v8768 = vpop.f32.mrf.mxu0
    %v8769 = vadd.f32 %v8697, %v8768
    %v8770 = vpop.f32.mrf.mxu0
    %v8771 = vadd.f32 %v8697, %v8770
    %8772 = vdwg.mxu0
    %v8775 = vcombine.low %v8769, %v8771
    %s8777 = scalar_lea.vmem %s25, 8
    %8778 = vst [vmem:[%s8777] sm:$0x77] %v8775
    // Predicated region
    $region126: #{cnn_decoder_forward.1} parent=1 // pred_check
      _
    $region127: #{cnn_decoder_forward.1} parent=1 // pred_check_branch
      %8780 = sbr.rel (0) target = $region129
    $region128: #{cnn_decoder_forward.1} parent=1 // pred_region
      _
    $region129: #{cnn_decoder_forward.1} parent=1 // pred_fallthru
      _
    // Predicated region
    $region130: #{cnn_decoder_forward.1} parent=1 // pred_check
      _
    $region131: #{cnn_decoder_forward.1} parent=1 // pred_check_branch
      %8782 = sbr.rel (0) target = $region133
    $region132: #{cnn_decoder_forward.1} parent=1 // pred_region
      _
    $region133: #{cnn_decoder_forward.1} parent=1 // pred_fallthru
      _
    %8783 = vsyncpa [#allocation3], 1
    %8784 = vsyncpa [#allocation5], 1
    %8785 = vsyncpa [#allocation8], 1
    %8786 = vsyncpa [#allocation11], 1

</llo_original>
